<compile_context>
chip_gen: v6e
topology: v6e:2x2x1
jax: 0.10.0
libtpu: 0.0.40
codegen_flags: <defaults>
</compile_context>

<pallas_src>
import math
from functools import partial

import jax
import jax.numpy as jnp
from jax.experimental import pallas as pl
from jax.experimental.pallas import tpu as pltpu

# ---------------------------------------------------------------------------
# Problem sizes (small, synthetic, but consistent with the module)
# ---------------------------------------------------------------------------
N_PROPOSALS = 128        # == box_batch_size_per_image=128 in the module
K_POOLED    = 512        # synthetic flattened pooled-ROI feature size (real: 256*7*7=12544)
H_REPR      = 1024       # representation size (fixed: nn.Linear(1024, 65))
NUM_CLASSES = 128        # synthetic stand-in for len(ALL_ITEMS); multiple of 128 (lane width)
NUM_QTY     = 65         # quantity classes (fixed by the module)
QTY_PAD     = 128        # lane-pad of the quantity head (padded cols get -1e30 bias)
N_HEADS     = 6          # [cls | qty | dx | dy | dw | dh]
TM          = 128        # proposal tile (one full 128-row MXU pass per grid step)
TK_MAX      = 2048       # K-reduction tile upper bound (for the real K=12544 case)

BBOX_XFORM_CLIP = math.log(1000.0 / 16.0)   # torchvision BoxCoder default
BOX_W = (10.0, 10.0, 5.0, 5.0)              # torchvision BoxCoder weights


# ---------------------------------------------------------------------------
# Fused ROI-head kernel
#   grid = (proposal tiles, K-reduction tiles);  K axis is "arbitrary" (accumulator).
# ---------------------------------------------------------------------------
def roi_head_kernel(
    img_ref,                      # scalar-prefetch: (2,) int32 = (H, W)
    x_ref,                        # (TM, TK)        bf16   pooled+flattened ROI features
    prop_ref,                     # (TM, 4)         f32    proposals (x1, y1, x2, y2)
    w_head_ref,                   # (TK, H)         bf16   box_head final FC weight tile
    b_head_ref,                   # (1, H)          f32
    w_all_ref,                    # (H, 6*C)        bf16   [cls | qty | dx | dy | dw | dh]
    b_all_ref,                    # (1, 6*C)        f32    (qty pad lanes = -1e30)
    feat_ref,                     # (TM, H)         f32    box_features out
    scores_ref,                   # (TM, C)         f32    softmax class scores out
    boxes_ref,                    # (TM, 4*C)       f32    decoded+clipped boxes slab out
    qty_ref,                      # (TM, C)         int32  quantity argmax (broadcast) out
    acc_ref,                      # (TM, H)         f32    VMEM accumulator scratch
):
    kk = pl.program_id(1)
    C = scores_ref.shape[-1]

    # ---- box_head final FC: K-tiled accumulation on the MXU (bias folded into init) ----
    @pl.when(kk == 0)
    def _():
        acc_ref[...] = jnp.broadcast_to(b_head_ref[...], acc_ref.shape)

    acc_ref[...] += jnp.dot(x_ref[...], w_head_ref[...],
                            preferred_element_type=jnp.float32)

    @pl.when(kk == pl.num_programs(1) - 1)
    def _():
        # ---- ReLU ----
        feat = jnp.maximum(acc_ref[...], 0.0)
        feat_ref[...] = feat

        # ---- ONE fused matmul for all six heads: (TM, H) @ (H, 6*C) ----
        logits = jnp.dot(feat.astype(jnp.bfloat16), w_all_ref[...],
                         preferred_element_type=jnp.float32) + b_all_ref[...]

        cls = logits[:, 0 * C:1 * C]
        q   = logits[:, 1 * C:2 * C]
        tx  = logits[:, 2 * C:3 * C]
        ty  = logits[:, 3 * C:4 * C]
        tw  = logits[:, 4 * C:5 * C]
        th  = logits[:, 5 * C:6 * C]

        # ---- class logits -> softmax scores (EUP reciprocal) ----
        cls_max = jnp.max(cls, axis=-1, keepdims=True)
        e = jnp.exp(cls - cls_max)
        inv = pl.reciprocal(jnp.sum(e, axis=-1, keepdims=True), approx=True)
        scores_ref[...] = e * inv

        # ---- quantity: argmax(softmax) == argmax(logits); pad lanes carry -1e30 bias ----
        q_max = jnp.max(q, axis=-1, keepdims=True)
        ids = jax.lax.broadcasted_iota(jnp.int32, q.shape, 1)
        qty_idx = jnp.min(jnp.where(q == q_max, ids, jnp.int32(q.shape[-1])),
                          axis=-1, keepdims=True)
        qty_ref[...] = jnp.broadcast_to(qty_idx, qty_ref.shape)   # torch: repeat 'n -> n c'

        # ---- BoxCoder.decode (weights 10,10,5,5; xform clip) ----
        p = prop_ref[...]
        px1, py1, px2, py2 = p[:, 0:1], p[:, 1:2], p[:, 2:3], p[:, 3:4]
        w = px2 - px1
        h = py2 - py1
        cx = px1 + 0.5 * w
        cy = py1 + 0.5 * h

        dx = tx * (1.0 / BOX_W[0])
        dy = ty * (1.0 / BOX_W[1])
        dw = jnp.minimum(tw * (1.0 / BOX_W[2]), BBOX_XFORM_CLIP)
        dh = jnp.minimum(th * (1.0 / BOX_W[3]), BBOX_XFORM_CLIP)

        pcx = dx * w + cx
        pcy = dy * h + cy
        pw = jnp.exp(dw) * w
        ph = jnp.exp(dh) * h

        bx1 = pcx - 0.5 * pw
        by1 = pcy - 0.5 * ph
        bx2 = pcx + 0.5 * pw
        by2 = pcy + 0.5 * ph

        # ---- clip_boxes_to_image((H, W)); lane-dense slab, 128-lane aligned slice stores ----
        img_h = img_ref[0].astype(jnp.float32)
        img_w = img_ref[1].astype(jnp.float32)
        boxes_ref[:, 0 * C:1 * C] = jnp.clip(bx1, 0.0, img_w)
        boxes_ref[:, 1 * C:2 * C] = jnp.clip(by1, 0.0, img_h)
        boxes_ref[:, 2 * C:3 * C] = jnp.clip(bx2, 0.0, img_w)
        boxes_ref[:, 3 * C:4 * C] = jnp.clip(by2, 0.0, img_h)


# ---------------------------------------------------------------------------
# pallas_call wrapper (+ plain-JAX glue matching postprocess_detections_custom pre-NMS)
# ---------------------------------------------------------------------------
@partial(jax.jit, static_argnames=())
def roi_heads_forward(image_shape, x_pooled, proposals, params):
    n, k = x_pooled.shape
    assert n % TM == 0
    tk = k if k <= TK_MAX else TK_MAX
    assert k % tk == 0
    grid = (n // TM, k // tk)          # reduction (K) axis last, "arbitrary"

    C = NUM_CLASSES
    WIDE = N_HEADS * C

    row2 = lambda shape: pl.BlockSpec(shape, lambda i, kk, img: (i, 0))
    full = lambda shape: pl.BlockSpec(shape, lambda i, kk, img: (0, 0))

    in_specs = [
        pl.BlockSpec((TM, tk), lambda i, kk, img: (i, kk)),       # x_pooled (bf16)
        row2((TM, 4)),                                            # proposals (f32)
        pl.BlockSpec((tk, H_REPR), lambda i, kk, img: (kk, 0)),   # w_head (bf16)
        full((1, H_REPR)),                                        # b_head (f32)
        full((H_REPR, WIDE)),                                     # w_all (bf16)
        full((1, WIDE)),                                          # b_all (f32)
    ]
    out_specs = [
        row2((TM, H_REPR)),            # box_features
        row2((TM, C)),                 # scores
        row2((TM, 4 * C)),             # boxes slab (x1|y1|x2|y2)
        row2((TM, C)),                 # quantity argmax (broadcast along classes)
    ]
    out_shapes = (
        jax.ShapeDtypeStruct((n, H_REPR), jnp.float32),
        jax.ShapeDtypeStruct((n, C), jnp.float32),
        jax.ShapeDtypeStruct((n, 4 * C), jnp.float32),
        jax.ShapeDtypeStruct((n, C), jnp.int32),
    )

    feat, scores, boxes_slab, qty = pl.pallas_call(
        roi_head_kernel,
        out_shape=out_shapes,
        grid_spec=pltpu.PrefetchScalarGridSpec(
            num_scalar_prefetch=1,
            grid=grid,
            in_specs=in_specs,
            out_specs=out_specs,
            scratch_shapes=[pltpu.VMEM((TM, H_REPR), jnp.float32)],
        ),
        compiler_params=pltpu.CompilerParams(
            dimension_semantics=("parallel", "arbitrary"),
        ),
    )(
        image_shape,
        x_pooled, proposals,
        params["w_head"], params["b_head"],
        params["w_all"], params["b_all"],
    )

    # --- plain-JAX glue matching postprocess_detections_custom (pre-NMS part) ---
    pred_boxes = jnp.transpose(boxes_slab.reshape(n, 4, C), (0, 2, 1))   # (N, C, 4)
    labels = jnp.broadcast_to(jnp.arange(C)[None, :], (n, C))
    box_idxs = jnp.broadcast_to(jnp.arange(n)[:, None], (n, C))

    # drop background column (class 0) and flatten, as in the torch code
    result = {
        "boxes": pred_boxes[:, 1:, :].reshape(-1, 4),
        "scores": scores[:, 1:].reshape(-1),
        "labels": labels[:, 1:].reshape(-1),
        "quantities": qty[:, 1:].reshape(-1),
        "box_idxs": box_idxs[:, 1:].reshape(-1),
        "features": feat,
    }
    # TODO(synk): score_thresh filtering, remove_small_boxes, batched_nms and
    #             detections_per_img top-k are dynamic-shape, data-dependent ops
    #             left out of the kernel.
    return result


# ---------------------------------------------------------------------------
# Deterministic synthetic parameters (shapes implied by the module __init__)
# ---------------------------------------------------------------------------
def make_params(key):
    keys = jax.random.split(key, 8)

    def lin(kw, kb, fan_in, fan_out):
        s = 1.0 / math.sqrt(fan_in)
        w = jax.random.uniform(kw, (fan_in, fan_out), jnp.float32, -s, s)
        b = jax.random.uniform(kb, (1, fan_out), jnp.float32, -s, s)
        return w, b

    # box_head final FC -> 1024
    w_head, b_head = lin(keys[0], keys[1], K_POOLED, H_REPR)
    # cls_score: Linear(1024, num_classes)
    w_cls, b_cls = lin(keys[2], keys[3], H_REPR, NUM_CLASSES)
    # bbox_pred: Linear(1024, 4*num_classes); class-major [dx,dy,dw,dh] per class
    w_reg, b_reg = lin(keys[4], keys[5], H_REPR, 4 * NUM_CLASSES)
    w_reg = w_reg.reshape(H_REPR, NUM_CLASSES, 4)
    b_reg = b_reg.reshape(1, NUM_CLASSES, 4)
    # quantity_prediction: Linear(1024, 65), lane-padded to 128 (pad bias = -inf-ish)
    w_q, b_q = lin(keys[6], keys[7], H_REPR, NUM_QTY)
    w_qty = jnp.zeros((H_REPR, QTY_PAD), jnp.float32).at[:, :NUM_QTY].set(w_q)
    b_qty = jnp.full((1, QTY_PAD), -1e30, jnp.float32).at[:, :NUM_QTY].set(b_q)

    # Fuse the six post-feature heads: [cls | qty | dx | dy | dw | dh] -> (1024, 768)
    w_all = jnp.concatenate(
        [w_cls, w_qty,
         w_reg[:, :, 0], w_reg[:, :, 1], w_reg[:, :, 2], w_reg[:, :, 3]],
        axis=1,
    )
    b_all = jnp.concatenate(
        [b_cls, b_qty,
         b_reg[:, :, 0], b_reg[:, :, 1], b_reg[:, :, 2], b_reg[:, :, 3]],
        axis=1,
    )

    return {
        "w_head": w_head.astype(jnp.bfloat16),   # bf16 weights: halves HBM bytes, MXU rate
        "b_head": b_head,                        # biases stay f32
        "w_all": w_all.astype(jnp.bfloat16),
        "b_all": b_all,
    }


if __name__ == "__main__":
    key = jax.random.PRNGKey(0)
    k_par, k_x, k_prop = jax.random.split(key, 3)

    params = make_params(k_par)

    # synthetic pooled+flattened ROI features (stand-in for RoIAlign + conv head output)
    x_pooled = jax.random.normal(k_x, (N_PROPOSALS, K_POOLED), jnp.float32)
    x_pooled = x_pooled.astype(jnp.bfloat16)

    # synthetic proposals (x1, y1, x2, y2) inside a 512x512 image
    xy = jax.random.uniform(k_prop, (N_PROPOSALS, 2), jnp.float32, 0.0, 400.0)
    wh = jax.random.uniform(jax.random.PRNGKey(1), (N_PROPOSALS, 2), jnp.float32, 8.0, 100.0)
    proposals = jnp.concatenate([xy, xy + wh], axis=-1)

    image_shape = jnp.array([512, 512], dtype=jnp.int32)   # (H, W)

    out = roi_heads_forward(image_shape, x_pooled, proposals, params)
    out = jax.block_until_ready(out)

    # light sanity checks
    assert out["boxes"].shape == (N_PROPOSALS * (NUM_CLASSES - 1), 4)
    assert out["scores"].shape == (N_PROPOSALS * (NUM_CLASSES - 1),)
    assert out["features"].shape == (N_PROPOSALS, H_REPR)
    assert bool(jnp.all(jnp.isfinite(out["boxes"])))
    assert bool(jnp.all(jnp.isfinite(out["scores"])))
    assert bool(jnp.all(out["quantities"] >= 0)) and bool(jnp.all(out["quantities"] < NUM_QTY))
    assert bool(jnp.all(out["boxes"] >= 0.0)) and bool(jnp.all(out["boxes"] <= 512.0))

    print("KERNEL_OK")
</pallas_src>

<mosaic_0001>
module attributes {stable_mosaic.version = 11 : i64} {
  func.func @roi_head_kernel(%arg0: i32, %arg1: i32, %arg2: memref<2xi32, #tpu.memory_space<smem>>, %arg3: memref<128x512xbf16, #tpu.memory_space<vmem>>, %arg4: memref<128x4xf32, #tpu.memory_space<vmem>>, %arg5: memref<512x1024xbf16, #tpu.memory_space<vmem>>, %arg6: memref<1x1024xf32, #tpu.memory_space<vmem>>, %arg7: memref<1024x768xbf16, #tpu.memory_space<vmem>>, %arg8: memref<1x768xf32, #tpu.memory_space<vmem>>, %arg9: memref<128x1024xf32, #tpu.memory_space<vmem>>, %arg10: memref<128x128xf32, #tpu.memory_space<vmem>>, %arg11: memref<128x512xf32, #tpu.memory_space<vmem>>, %arg12: memref<128x128xi32, #tpu.memory_space<vmem>>, %arg13: memref<128x1024xf32, #tpu.memory_space<vmem>>) attributes {dimension_semantics = [#tpu.dimension_semantics<parallel>, #tpu.dimension_semantics<arbitrary>], iteration_bounds = array<i64: 1, 1>, scalar_prefetch = 1 : i64, scratch_operands = 1 : i64, tpu.core_type = #tpu.core_type<tc>, window_params = [{transform_indices = @transform_0, window_bounds = array<i64: 128, 512>}, {transform_indices = @transform_1, window_bounds = array<i64: 128, 4>}, {transform_indices = @transform_2, window_bounds = array<i64: 512, 1024>}, {pipeline_mode = #tpu.pipeline_mode<synchronous>, transform_indices = @transform_3, window_bounds = array<i64: 1, 1024>}, {pipeline_mode = #tpu.pipeline_mode<synchronous>, transform_indices = @transform_4, window_bounds = array<i64: 1024, 768>}, {pipeline_mode = #tpu.pipeline_mode<synchronous>, transform_indices = @transform_5, window_bounds = array<i64: 1, 768>}, {transform_indices = @transform_6, window_bounds = array<i64: 128, 1024>}, {transform_indices = @transform_7, window_bounds = array<i64: 128, 128>}, {transform_indices = @transform_8, window_bounds = array<i64: 128, 512>}, {transform_indices = @transform_9, window_bounds = array<i64: 128, 128>}]} {
    %c0_i32 = arith.constant 0 : i32
    %0 = arith.cmpi eq, %arg1, %c0_i32 : i32
    %1 = arith.extui %0 : i1 to i32
    %c0_i32_0 = arith.constant 0 : i32
    %2 = arith.cmpi ne, %1, %c0_i32_0 : i32
    scf.if %2 {
      %c0_10 = arith.constant 0 : index
      %c0_11 = arith.constant 0 : index
      %12 = vector.load %arg6[%c0_10, %c0_11] : memref<1x1024xf32, #tpu.memory_space<vmem>>, vector<1x1024xf32>
      %13 = vector.shape_cast %12 : vector<1x1024xf32> to vector<1x1024xf32>
      %14 = vector.broadcast %13 : vector<1x1024xf32> to vector<128x1024xf32>
      %c0_12 = arith.constant 0 : index
      %c0_13 = arith.constant 0 : index
      %15 = vector.load %arg13[%c0_12, %c0_13] : memref<128x1024xf32, #tpu.memory_space<vmem>>, vector<128x1024xf32>
      tpu.vector_store %arg13[%c0_12, %c0_13], %14 {strides = array<i32>} : memref<128x1024xf32, #tpu.memory_space<vmem>>, vector<128x1024xf32>,
    } else {
    }
    %c0 = arith.constant 0 : index
    %c0_1 = arith.constant 0 : index
    %3 = vector.load %arg13[%c0, %c0_1] : memref<128x1024xf32, #tpu.memory_space<vmem>>, vector<128x1024xf32>
    %c0_2 = arith.constant 0 : index
    %c0_3 = arith.constant 0 : index
    %4 = vector.load %arg3[%c0_2, %c0_3] : memref<128x512xbf16, #tpu.memory_space<vmem>>, vector<128x512xbf16>
    %c0_4 = arith.constant 0 : index
    %c0_5 = arith.constant 0 : index
    %5 = vector.load %arg5[%c0_4, %c0_5] : memref<512x1024xbf16, #tpu.memory_space<vmem>>, vector<512x1024xbf16>
    %cst = arith.constant dense<0.000000e+00> : vector<128x1024xf32>
    %6 = tpu.matmul %4, %5, %cst {dimension_numbers = #tpu.dot_dimension_numbers<[1], [0], [0], [1], [0, 0, 1, 1], [], []>} : vector<128x512xbf16>, vector<512x1024xbf16>, vector<128x1024xf32> -> vector<128x1024xf32>
    %7 = arith.addf %3, %6 : vector<128x1024xf32>
    %c0_6 = arith.constant 0 : index
    %c0_7 = arith.constant 0 : index
    %8 = vector.load %arg13[%c0_6, %c0_7] : memref<128x1024xf32, #tpu.memory_space<vmem>>, vector<128x1024xf32>
    tpu.vector_store %arg13[%c0_6, %c0_7], %7 {strides = array<i32>} : memref<128x1024xf32, #tpu.memory_space<vmem>>, vector<128x1024xf32>,
    %c0_i32_8 = arith.constant 0 : i32
    %9 = arith.cmpi eq, %arg1, %c0_i32_8 : i32
    %10 = arith.extui %9 : i1 to i32
    %c0_i32_9 = arith.constant 0 : i32
    %11 = arith.cmpi ne, %10, %c0_i32_9 : i32
    scf.if %11 {
      %c0_10 = arith.constant 0 : index
      %c0_11 = arith.constant 0 : index
      %12 = vector.load %arg13[%c0_10, %c0_11] : memref<128x1024xf32, #tpu.memory_space<vmem>>, vector<128x1024xf32>
      %cst_12 = arith.constant 0.000000e+00 : f32
      %13 = vector.broadcast %cst_12 : f32 to vector<128x1024xf32>
      %14 = arith.maximumf %12, %13 : vector<128x1024xf32>
      %c0_13 = arith.constant 0 : index
      %c0_14 = arith.constant 0 : index
      %15 = vector.load %arg9[%c0_13, %c0_14] : memref<128x1024xf32, #tpu.memory_space<vmem>>, vector<128x1024xf32>
      tpu.vector_store %arg9[%c0_13, %c0_14], %14 {strides = array<i32>} : memref<128x1024xf32, #tpu.memory_space<vmem>>, vector<128x1024xf32>,
      %16 = arith.truncf %14 : vector<128x1024xf32> to vector<128x1024xbf16>
      %c0_15 = arith.constant 0 : index
      %c0_16 = arith.constant 0 : index
      %17 = vector.load %arg7[%c0_15, %c0_16] : memref<1024x768xbf16, #tpu.memory_space<vmem>>, vector<1024x768xbf16>
      %cst_17 = arith.constant dense<0.000000e+00> : vector<128x768xf32>
      %18 = tpu.matmul %16, %17, %cst_17 {dimension_numbers = #tpu.dot_dimension_numbers<[1], [0], [0], [1], [0, 0, 1, 1], [], []>} : vector<128x1024xbf16>, vector<1024x768xbf16>, vector<128x768xf32> -> vector<128x768xf32>
      %c0_18 = arith.constant 0 : index
      %c0_19 = arith.constant 0 : index
      %19 = vector.load %arg8[%c0_18, %c0_19] : memref<1x768xf32, #tpu.memory_space<vmem>>, vector<1x768xf32>
      %20 = vector.broadcast %19 : vector<1x768xf32> to vector<128x768xf32>
      %21 = arith.addf %18, %20 : vector<128x768xf32>
      %22 = vector.extract_strided_slice %21 {offsets = [0, 0], sizes = [128, 128], strides = [1, 1]} : vector<128x768xf32> to vector<128x128xf32>
      %23 = vector.extract_strided_slice %21 {offsets = [0, 128], sizes = [128, 128], strides = [1, 1]} : vector<128x768xf32> to vector<128x128xf32>
      %24 = vector.extract_strided_slice %21 {offsets = [0, 256], sizes = [128, 128], strides = [1, 1]} : vector<128x768xf32> to vector<128x128xf32>
      %25 = vector.extract_strided_slice %21 {offsets = [0, 384], sizes = [128, 128], strides = [1, 1]} : vector<128x768xf32> to vector<128x128xf32>
      %26 = vector.extract_strided_slice %21 {offsets = [0, 512], sizes = [128, 128], strides = [1, 1]} : vector<128x768xf32> to vector<128x128xf32>
      %27 = vector.extract_strided_slice %21 {offsets = [0, 640], sizes = [128, 128], strides = [1, 1]} : vector<128x768xf32> to vector<128x128xf32>
      %cst_20 = arith.constant dense<0xFF800000> : vector<128xf32>
      %28 = vector.multi_reduction <maximumf>, %22, %cst_20 [1] : vector<128x128xf32> to vector<128xf32>
      %29 = vector.shape_cast %28 : vector<128xf32> to vector<128x1xf32>
      %30 = vector.broadcast %29 : vector<128x1xf32> to vector<128x128xf32>
      %31 = arith.subf %22, %30 : vector<128x128xf32>
      %32 = math.exp %31 : vector<128x128xf32>
      %cst_21 = arith.constant dense<0.000000e+00> : vector<128xf32>
      %33 = vector.multi_reduction <add>, %32, %cst_21 [1] : vector<128x128xf32> to vector<128xf32>
      %34 = vector.shape_cast %33 : vector<128xf32> to vector<128x1xf32>
      %35 = tpu.reciprocal %34 {approx = true} : vector<128x1xf32> -> vector<128x1xf32>
      %36 = vector.broadcast %35 : vector<128x1xf32> to vector<128x128xf32>
      %37 = arith.mulf %32, %36 : vector<128x128xf32>
      %c0_22 = arith.constant 0 : index
      %c0_23 = arith.constant 0 : index
      %38 = vector.load %arg10[%c0_22, %c0_23] : memref<128x128xf32, #tpu.memory_space<vmem>>, vector<128x128xf32>
      tpu.vector_store %arg10[%c0_22, %c0_23], %37 {strides = array<i32>} : memref<128x128xf32, #tpu.memory_space<vmem>>, vector<128x128xf32>,
      %cst_24 = arith.constant dense<0xFF800000> : vector<128xf32>
      %39 = vector.multi_reduction <maximumf>, %23, %cst_24 [1] : vector<128x128xf32> to vector<128xf32>
      %40 = vector.shape_cast %39 : vector<128xf32> to vector<128x1xf32>
      %41 = tpu.iota {dimensions = array<i32: 1>} : vector<128x128xi32>
      %42 = vector.broadcast %40 : vector<128x1xf32> to vector<128x128xf32>
      %43 = arith.cmpf oeq, %23, %42 : vector<128x128xf32>
      %c128_i32 = arith.constant 128 : i32
      %44 = vector.broadcast %c128_i32 : i32 to vector<128x128xi32>
      %45 = arith.select %43, %41, %44 : vector<128x128xi1>, vector<128x128xi32>
      %cst_25 = arith.constant dense<2147483647> : vector<128xi32>
      %46 = vector.multi_reduction <minsi>, %45, %cst_25 [1] : vector<128x128xi32> to vector<128xi32>
      %47 = vector.shape_cast %46 : vector<128xi32> to vector<128x1xi32>
      %48 = vector.shape_cast %47 : vector<128x1xi32> to vector<128x1xi32>
      %49 = vector.broadcast %48 : vector<128x1xi32> to vector<128x128xi32>
      %c0_26 = arith.constant 0 : index
      %c0_27 = arith.constant 0 : index
      %50 = vector.load %arg12[%c0_26, %c0_27] : memref<128x128xi32, #tpu.memory_space<vmem>>, vector<128x128xi32>
      tpu.vector_store %arg12[%c0_26, %c0_27], %49 {strides = array<i32>} : memref<128x128xi32, #tpu.memory_space<vmem>>, vector<128x128xi32>,
      %c0_28 = arith.constant 0 : index
      %c0_29 = arith.constant 0 : index
      %51 = vector.load %arg4[%c0_28, %c0_29] : memref<128x4xf32, #tpu.memory_space<vmem>>, vector<128x4xf32>
      %52 = vector.extract_strided_slice %51 {offsets = [0, 0], sizes = [128, 1], strides = [1, 1]} : vector<128x4xf32> to vector<128x1xf32>
      %53 = vector.extract_strided_slice %51 {offsets = [0, 1], sizes = [128, 1], strides = [1, 1]} : vector<128x4xf32> to vector<128x1xf32>
      %54 = vector.extract_strided_slice %51 {offsets = [0, 2], sizes = [128, 1], strides = [1, 1]} : vector<128x4xf32> to vector<128x1xf32>
      %55 = vector.extract_strided_slice %51 {offsets = [0, 3], sizes = [128, 1], strides = [1, 1]} : vector<128x4xf32> to vector<128x1xf32>
      %56 = arith.subf %54, %52 : vector<128x1xf32>
      %57 = arith.subf %55, %53 : vector<128x1xf32>
      %cst_30 = arith.constant 5.000000e-01 : f32
      %58 = vector.broadcast %cst_30 : f32 to vector<128x1xf32>
      %59 = arith.mulf %58, %56 : vector<128x1xf32>
      %60 = arith.addf %52, %59 : vector<128x1xf32>
      %cst_31 = arith.constant 5.000000e-01 : f32
      %61 = vector.broadcast %cst_31 : f32 to vector<128x1xf32>
      %62 = arith.mulf %61, %57 : vector<128x1xf32>
      %63 = arith.addf %53, %62 : vector<128x1xf32>
      %cst_32 = arith.constant 1.000000e-01 : f32
      %64 = vector.broadcast %cst_32 : f32 to vector<128x128xf32>
      %65 = arith.mulf %24, %64 : vector<128x128xf32>
      %cst_33 = arith.constant 1.000000e-01 : f32
      %66 = vector.broadcast %cst_33 : f32 to vector<128x128xf32>
      %67 = arith.mulf %25, %66 : vector<128x128xf32>
      %cst_34 = arith.constant 2.000000e-01 : f32
      %68 = vector.broadcast %cst_34 : f32 to vector<128x128xf32>
      %69 = arith.mulf %26, %68 : vector<128x128xf32>
      %cst_35 = arith.constant 4.13516665 : f32
      %70 = vector.broadcast %cst_35 : f32 to vector<128x128xf32>
      %71 = arith.minimumf %69, %70 : vector<128x128xf32>
      %cst_36 = arith.constant 2.000000e-01 : f32
      %72 = vector.broadcast %cst_36 : f32 to vector<128x128xf32>
      %73 = arith.mulf %27, %72 : vector<128x128xf32>
      %cst_37 = arith.constant 4.13516665 : f32
      %74 = vector.broadcast %cst_37 : f32 to vector<128x128xf32>
      %75 = arith.minimumf %73, %74 : vector<128x128xf32>
      %76 = vector.broadcast %56 : vector<128x1xf32> to vector<128x128xf32>
      %77 = arith.mulf %65, %76 : vector<128x128xf32>
      %78 = vector.broadcast %60 : vector<128x1xf32> to vector<128x128xf32>
      %79 = arith.addf %77, %78 : vector<128x128xf32>
      %80 = vector.broadcast %57 : vector<128x1xf32> to vector<128x128xf32>
      %81 = arith.mulf %67, %80 : vector<128x128xf32>
      %82 = vector.broadcast %63 : vector<128x1xf32> to vector<128x128xf32>
      %83 = arith.addf %81, %82 : vector<128x128xf32>
      %84 = math.exp %71 : vector<128x128xf32>
      %85 = vector.broadcast %56 : vector<128x1xf32> to vector<128x128xf32>
      %86 = arith.mulf %84, %85 : vector<128x128xf32>
      %87 = math.exp %75 : vector<128x128xf32>
      %88 = vector.broadcast %57 : vector<128x1xf32> to vector<128x128xf32>
      %89 = arith.mulf %87, %88 : vector<128x128xf32>
      %cst_38 = arith.constant 5.000000e-01 : f32
      %90 = vector.broadcast %cst_38 : f32 to vector<128x128xf32>
      %91 = arith.mulf %90, %86 : vector<128x128xf32>
      %92 = arith.subf %79, %91 : vector<128x128xf32>
      %cst_39 = arith.constant 5.000000e-01 : f32
      %93 = vector.broadcast %cst_39 : f32 to vector<128x128xf32>
      %94 = arith.mulf %93, %89 : vector<128x128xf32>
      %95 = arith.subf %83, %94 : vector<128x128xf32>
      %cst_40 = arith.constant 5.000000e-01 : f32
      %96 = vector.broadcast %cst_40 : f32 to vector<128x128xf32>
      %97 = arith.mulf %96, %86 : vector<128x128xf32>
      %98 = arith.addf %79, %97 : vector<128x128xf32>
      %cst_41 = arith.constant 5.000000e-01 : f32
      %99 = vector.broadcast %cst_41 : f32 to vector<128x128xf32>
      %100 = arith.mulf %99, %89 : vector<128x128xf32>
      %101 = arith.addf %83, %100 : vector<128x128xf32>
      %c0_42 = arith.constant 0 : index
      %102 = memref.load %arg2[%c0_42] : memref<2xi32, #tpu.memory_space<smem>>
      %103 = arith.sitofp %102 : i32 to f32
      %c1 = arith.constant 1 : index
      %104 = memref.load %arg2[%c1] : memref<2xi32, #tpu.memory_space<smem>>
      %105 = arith.sitofp %104 : i32 to f32
      %cst_43 = arith.constant 0.000000e+00 : f32
      %106 = vector.broadcast %cst_43 : f32 to vector<128x128xf32>
      %107 = arith.maximumf %106, %92 : vector<128x128xf32>
      %108 = vector.broadcast %105 : f32 to vector<128x128xf32>
      %109 = arith.minimumf %108, %107 : vector<128x128xf32>
      %c0_44 = arith.constant 0 : index
      %c0_45 = arith.constant 0 : index
      %110 = vector.load %arg11[%c0_44, %c0_45] : memref<128x512xf32, #tpu.memory_space<vmem>>, vector<128x128xf32>
      tpu.vector_store %arg11[%c0_44, %c0_45], %109 {strides = array<i32>} : memref<128x512xf32, #tpu.memory_space<vmem>>, vector<128x128xf32>,
      %cst_46 = arith.constant 0.000000e+00 : f32
      %111 = vector.broadcast %cst_46 : f32 to vector<128x128xf32>
      %112 = arith.maximumf %111, %95 : vector<128x128xf32>
      %113 = vector.broadcast %103 : f32 to vector<128x128xf32>
      %114 = arith.minimumf %113, %112 : vector<128x128xf32>
      %c0_47 = arith.constant 0 : index
      %c128 = arith.constant 128 : index
      %115 = vector.load %arg11[%c0_47, %c128] : memref<128x512xf32, #tpu.memory_space<vmem>>, vector<128x128xf32>
      tpu.vector_store %arg11[%c0_47, %c128], %114 {strides = array<i32>} : memref<128x512xf32, #tpu.memory_space<vmem>>, vector<128x128xf32>,
      %cst_48 = arith.constant 0.000000e+00 : f32
      %116 = vector.broadcast %cst_48 : f32 to vector<128x128xf32>
      %117 = arith.maximumf %116, %98 : vector<128x128xf32>
      %118 = vector.broadcast %105 : f32 to vector<128x128xf32>
      %119 = arith.minimumf %118, %117 : vector<128x128xf32>
      %c0_49 = arith.constant 0 : index
      %c256 = arith.constant 256 : index
      %120 = vector.load %arg11[%c0_49, %c256] : memref<128x512xf32, #tpu.memory_space<vmem>>, vector<128x128xf32>
      tpu.vector_store %arg11[%c0_49, %c256], %119 {strides = array<i32>} : memref<128x512xf32, #tpu.memory_space<vmem>>, vector<128x128xf32>,
      %cst_50 = arith.constant 0.000000e+00 : f32
      %121 = vector.broadcast %cst_50 : f32 to vector<128x128xf32>
      %122 = arith.maximumf %121, %101 : vector<128x128xf32>
      %123 = vector.broadcast %103 : f32 to vector<128x128xf32>
      %124 = arith.minimumf %123, %122 : vector<128x128xf32>
      %c0_51 = arith.constant 0 : index
      %c384 = arith.constant 384 : index
      %125 = vector.load %arg11[%c0_51, %c384] : memref<128x512xf32, #tpu.memory_space<vmem>>, vector<128x128xf32>
      tpu.vector_store %arg11[%c0_51, %c384], %124 {strides = array<i32>} : memref<128x512xf32, #tpu.memory_space<vmem>>, vector<128x128xf32>,
    } else {
    }
    return
  }
  func.func @transform_0(%arg0: i32, %arg1: i32, %arg2: memref<2xi32, #tpu.memory_space<smem>>) -> (i32, i32) {
    %c0_i32 = arith.constant 0 : i32
    return %arg0, %arg1 : i32, i32
  }
  func.func @transform_1(%arg0: i32, %arg1: i32, %arg2: memref<2xi32, #tpu.memory_space<smem>>) -> (i32, i32) {
    %c0_i32 = arith.constant 0 : i32
    %c0_i32_0 = arith.constant 0 : i32
    return %arg0, %c0_i32 : i32, i32
  }
  func.func @transform_2(%arg0: i32, %arg1: i32, %arg2: memref<2xi32, #tpu.memory_space<smem>>) -> (i32, i32) {
    %c0_i32 = arith.constant 0 : i32
    %c0_i32_0 = arith.constant 0 : i32
    return %arg1, %c0_i32 : i32, i32
  }
  func.func @transform_3(%arg0: i32, %arg1: i32, %arg2: memref<2xi32, #tpu.memory_space<smem>>) -> (i32, i32) {
    %c0_i32 = arith.constant 0 : i32
    %c0_i32_0 = arith.constant 0 : i32
    %c0_i32_1 = arith.constant 0 : i32
    return %c0_i32, %c0_i32_0 : i32, i32
  }
  func.func @transform_4(%arg0: i32, %arg1: i32, %arg2: memref<2xi32, #tpu.memory_space<smem>>) -> (i32, i32) {
    %c0_i32 = arith.constant 0 : i32
    %c0_i32_0 = arith.constant 0 : i32
    %c0_i32_1 = arith.constant 0 : i32
    return %c0_i32, %c0_i32_0 : i32, i32
  }
  func.func @transform_5(%arg0: i32, %arg1: i32, %arg2: memref<2xi32, #tpu.memory_space<smem>>) -> (i32, i32) {
    %c0_i32 = arith.constant 0 : i32
    %c0_i32_0 = arith.constant 0 : i32
    %c0_i32_1 = arith.constant 0 : i32
    return %c0_i32, %c0_i32_0 : i32, i32
  }
  func.func @transform_6(%arg0: i32, %arg1: i32, %arg2: memref<2xi32, #tpu.memory_space<smem>>) -> (i32, i32) {
    %c0_i32 = arith.constant 0 : i32
    %c0_i32_0 = arith.constant 0 : i32
    return %arg0, %c0_i32 : i32, i32
  }
  func.func @transform_7(%arg0: i32, %arg1: i32, %arg2: memref<2xi32, #tpu.memory_space<smem>>) -> (i32, i32) {
    %c0_i32 = arith.constant 0 : i32
    %c0_i32_0 = arith.constant 0 : i32
    return %arg0, %c0_i32 : i32, i32
  }
  func.func @transform_8(%arg0: i32, %arg1: i32, %arg2: memref<2xi32, #tpu.memory_space<smem>>) -> (i32, i32) {
    %c0_i32 = arith.constant 0 : i32
    %c0_i32_0 = arith.constant 0 : i32
    return %arg0, %c0_i32 : i32, i32
  }
  func.func @transform_9(%arg0: i32, %arg1: i32, %arg2: memref<2xi32, #tpu.memory_space<smem>>) -> (i32, i32) {
    %c0_i32 = arith.constant 0 : i32
    %c0_i32_0 = arith.constant 0 : i32
    return %arg0, %c0_i32 : i32, i32
  }
}

</mosaic_0001>

<llo_original>
// kernel: roi_heads_forward.1
$region0: #{roi_heads_forward.1}
  #allocation0 [shape = 'u32[]', space=smem, size = 0x4, offset = 0x4, fixed_abs, tag = 'smem constant byte address 0x4 - core index']
  #allocation1 [shape = 'u32[144,128]{1,0:T(1,128)}', space=vmem, size = 0x12000, scoped, tag = 'internal scratch']
  #allocation2 [shape = 'f32[128,1024]{1,0:T(8,128)}', space=vmem, size = 0x80000, scoped, tag = 'scratch operand']
  #allocation3 [shape = 's32[1]{0}', space=sflag, size = 0x4, scoped, tag = 'scoped memory for roi_heads_forward.1']
  #allocation4 [shape = 'u8[512]{0}', space=smem, size = 0x200, scoped, tag = 'prefetched SMEM operand 0']
  %s0 = inlined_call_operand.hbm [shape: s32[2], index: 0, kind: input, shape index: {}]
  %s1 = inlined_call_operand.hbm [shape: bf16[128,512], index: 1, kind: input, shape index: {}]
  %s2 = inlined_call_operand.vmem [shape: f32[128,4], index: 2, kind: input, shape index: {}]
  %s3 = inlined_call_operand.hbm [shape: bf16[512,1024], index: 3, kind: input, shape index: {}]
  %s4 = inlined_call_operand.hbm [shape: f32[1,1024], index: 4, kind: input, shape index: {}]
  %s5 = inlined_call_operand.hbm [shape: bf16[1024,768], index: 5, kind: input, shape index: {}]
  %s6 = inlined_call_operand.hbm [shape: f32[1,768], index: 6, kind: input, shape index: {}]
  %s7 = inlined_call_operand.hbm [shape: f32[128,1024], index: 7, kind: output, shape index: {0}]
  %s8 = inlined_call_operand.vmem [shape: f32[128,128], index: 8, kind: output, shape index: {1}]
  %s9 = inlined_call_operand.vmem [shape: f32[128,512], index: 9, kind: output, shape index: {2}]
  %s10 = inlined_call_operand.vmem [shape: s32[128,128], index: 10, kind: output, shape index: {3}]
  %11 = xla_tuple %s7, %s8, %s9, %s10
  %s12 = sld [smem:[#allocation0]]
  $region86: #{roi_heads_forward.1} parent=0
    _
  %s14 = ssub.s32 1, %s12
  %s15 = scalar_select 0, %s14, %s12
  %17 = dma.hbm_to_smem %s0, 16, [#allocation4], [#allocation3]
  %18 = dma.done [#allocation3], 16
  %19 = sfence
  $region1: #{roi_heads_forward.1} parent=0
    #allocation5 [shape = 'u8[131072]{0}', space=vmem, size = 0x20000, scoped, tag = 'input window, operand 1, single buffered']
    #allocation6 [shape = 's32[1]{0}', space=sflag, size = 0x4, scoped, tag = 'scoped memory for roi_heads_forward.1']
    #allocation7 [shape = 's32[1]{0}', space=sflag, size = 0x4, scoped, tag = 'scoped memory for roi_heads_forward.1']
    #allocation8 [shape = 'u8[1048576]{0}', space=vmem, size = 0x100000, scoped, tag = 'input window, operand 3, single buffered']
    #allocation9 [shape = 's32[1]{0}', space=sflag, size = 0x4, scoped, tag = 'scoped memory for roi_heads_forward.1']
    #allocation10 [shape = 'u8[4096]{0}', space=vmem, size = 0x1000, scoped, tag = 'input window, operand 4, single buffered']
    #allocation11 [shape = 'u8[1572864]{0}', space=vmem, size = 0x180000, scoped, tag = 'input window, operand 5, single buffered']
    #allocation12 [shape = 's32[1]{0}', space=sflag, size = 0x4, scoped, tag = 'scoped memory for roi_heads_forward.1']
    #allocation13 [shape = 'u8[3072]{0}', space=vmem, size = 0xc00, scoped, tag = 'input window, operand 6, single buffered']
    #allocation14 [shape = 'u8[524288]{0}', space=vmem, size = 0x80000, scoped, tag = 'output window, operand 0, single buffered']
    %20 = vsyncpa [#allocation6], 0
    %21 = vsyncpa [#allocation9], 0
    %22 = vsyncpa [#allocation12], 0
    %23 = vsyncpa [#allocation7], 0
    // Predicated region
    $region2: #{roi_heads_forward.1} parent=1 // pred_check
      _
    $region3: #{roi_heads_forward.1} parent=1 // pred_check_branch
      %25 = sbr.rel (0) target = $region5
    $region4: #{roi_heads_forward.1} parent=1 // pred_region
      %s27 = ssub.s32 4096, 4096
      %28 = vsyncadd [#allocation6], %s27
      %s29 = sshll.u32 [#allocation5], 4
      %s30 = int_to_ptr.vmem [resolvable:$true] %s29
      %35 = dma.hbm_to_vmem [thread:$0]  %s1, 4096, %s30, [#allocation6], 256, 256, 16
    $region5: #{roi_heads_forward.1} parent=1 // pred_fallthru
      _
    // Predicated region
    $region6: #{roi_heads_forward.1} parent=1 // pred_check
      _
    $region7: #{roi_heads_forward.1} parent=1 // pred_check_branch
      %37 = sbr.rel (0) target = $region9
    $region8: #{roi_heads_forward.1} parent=1 // pred_region
      _
    $region9: #{roi_heads_forward.1} parent=1 // pred_fallthru
      _
    // Predicated region
    $region10: #{roi_heads_forward.1} parent=1 // pred_check
      _
    $region11: #{roi_heads_forward.1} parent=1 // pred_check_branch
      %39 = sbr.rel (0) target = $region13
    $region12: #{roi_heads_forward.1} parent=1 // pred_region
      %s41 = ssub.s32 32768, 32768
      %42 = vsyncadd [#allocation9], %s41
      %s43 = sshll.u32 [#allocation8], 4
      %s44 = int_to_ptr.vmem [resolvable:$true] %s43
      %49 = dma.hbm_to_vmem [thread:$0]  %s3, 32768, %s44, [#allocation9], 512, 512, 32
    $region13: #{roi_heads_forward.1} parent=1 // pred_fallthru
      _
    // Predicated region
    $region14: #{roi_heads_forward.1} parent=1 // pred_check
      _
    $region15: #{roi_heads_forward.1} parent=1 // pred_check_branch
      %51 = sbr.rel (0) target = $region17
    $region16: #{roi_heads_forward.1} parent=1 // pred_region
      %s53 = ssub.s32 128, 128
      %54 = vsyncadd [#allocation9], %s53
      %s56 = sshll.u32 [#allocation10], 4
      %s57 = int_to_ptr.vmem [resolvable:$true] %s56
      %59 = dma.hbm_to_vmem [thread:$0]  %s4, 128, %s57, [#allocation9]
    $region17: #{roi_heads_forward.1} parent=1 // pred_fallthru
      _
    // Predicated region
    $region18: #{roi_heads_forward.1} parent=1 // pred_check
      _
    $region19: #{roi_heads_forward.1} parent=1 // pred_check_branch
      %61 = sbr.rel (0) target = $region21
    $region20: #{roi_heads_forward.1} parent=1 // pred_region
      %s63 = ssub.s32 49152, 49152
      %64 = vsyncadd [#allocation12], %s63
      %s65 = sshll.u32 [#allocation11], 4
      %s66 = int_to_ptr.vmem [resolvable:$true] %s65
      %71 = dma.hbm_to_vmem [thread:$0]  %s5, 49152, %s66, [#allocation12], 384, 384, 24
    $region21: #{roi_heads_forward.1} parent=1 // pred_fallthru
      _
    // Predicated region
    $region22: #{roi_heads_forward.1} parent=1 // pred_check
      _
    $region23: #{roi_heads_forward.1} parent=1 // pred_check_branch
      %73 = sbr.rel (0) target = $region25
    $region24: #{roi_heads_forward.1} parent=1 // pred_region
      %s75 = ssub.s32 96, 96
      %76 = vsyncadd [#allocation12], %s75
      %s78 = sshll.u32 [#allocation13], 4
      %s79 = int_to_ptr.vmem [resolvable:$true] %s78
      %81 = dma.hbm_to_vmem [thread:$0]  %s6, 96, %s79, [#allocation12]
    $region25: #{roi_heads_forward.1} parent=1 // pred_fallthru
      _
    // Predicated region
    $region26: #{roi_heads_forward.1} parent=1 // pred_check
      _
    $region27: #{roi_heads_forward.1} parent=1 // pred_check_branch
      %83 = sbr.rel (0) target = $region29
    $region28: #{roi_heads_forward.1} parent=1 // pred_region
      %84 = dma.done [#allocation6], 4096
    $region29: #{roi_heads_forward.1} parent=1 // pred_fallthru
      _
    // Predicated region
    $region30: #{roi_heads_forward.1} parent=1 // pred_check
      _
    $region31: #{roi_heads_forward.1} parent=1 // pred_check_branch
      %86 = sbr.rel (0) target = $region33
    $region32: #{roi_heads_forward.1} parent=1 // pred_region
      %87 = dma.done [#allocation9], 32768
    $region33: #{roi_heads_forward.1} parent=1 // pred_fallthru
      _
    // Predicated region
    $region34: #{roi_heads_forward.1} parent=1 // pred_check
      _
    $region35: #{roi_heads_forward.1} parent=1 // pred_check_branch
      %89 = sbr.rel (0) target = $region37
    $region36: #{roi_heads_forward.1} parent=1 // pred_region
      %90 = dma.done [#allocation9], 128
    $region37: #{roi_heads_forward.1} parent=1 // pred_fallthru
      _
    // Predicated region
    $region38: #{roi_heads_forward.1} parent=1 // pred_check
      _
    $region39: #{roi_heads_forward.1} parent=1 // pred_check_branch
      %92 = sbr.rel (0) target = $region41
    $region40: #{roi_heads_forward.1} parent=1 // pred_region
      %93 = dma.done [#allocation12], 49152
    $region41: #{roi_heads_forward.1} parent=1 // pred_fallthru
      _
    // Predicated region
    $region42: #{roi_heads_forward.1} parent=1 // pred_check
      _
    $region43: #{roi_heads_forward.1} parent=1 // pred_check_branch
      %95 = sbr.rel (0) target = $region45
    $region44: #{roi_heads_forward.1} parent=1 // pred_region
      %96 = dma.done [#allocation12], 96
    $region45: #{roi_heads_forward.1} parent=1 // pred_fallthru
      _
    %p97 = scmp.eq.s32.totalorder 0, 0
    // Predicated region
    $region46: #{roi_heads_forward.1} parent=1 // pred_check
      %p98 = pneg %p97
    $region47: #{roi_heads_forward.1} parent=1 // pred_check_branch
      %100 = sbr.rel (%p98) target = $region49
    $region48: #{roi_heads_forward.1} parent=1 // pred_region
      %v101 = vld [vmem:[#allocation10] sm:$0xff]
      %v103 = vlaneseq
      %v104 = vshrl.u32 %v103, 7
      %v105 = vsub.s32 0, %v104
      %v106 = vrot.slane %v101, %v105
      %v107 = vlaneseq
      %v108 = vshrl.u32 %v107, 7
      %v109 = vsub.s32 1, %v108
      %v110 = vrot.slane %v101, %v109
      %v111 = vlaneseq
      %v112 = vshrl.u32 %v111, 7
      %v113 = vsub.s32 2, %v112
      %v114 = vrot.slane %v101, %v113
      %v115 = vlaneseq
      %v116 = vshrl.u32 %v115, 7
      %v117 = vsub.s32 3, %v116
      %v118 = vrot.slane %v101, %v117
      %v119 = vlaneseq
      %v120 = vshrl.u32 %v119, 7
      %v121 = vsub.s32 4, %v120
      %v122 = vrot.slane %v101, %v121
      %v123 = vlaneseq
      %v124 = vshrl.u32 %v123, 7
      %v125 = vsub.s32 5, %v124
      %v126 = vrot.slane %v101, %v125
      %v127 = vlaneseq
      %v128 = vshrl.u32 %v127, 7
      %v129 = vsub.s32 6, %v128
      %v130 = vrot.slane %v101, %v129
      %v131 = vlaneseq
      %v132 = vshrl.u32 %v131, 7
      %v133 = vsub.s32 7, %v132
      %v134 = vrot.slane %v101, %v133
      %143 = vst [vmem:[#allocation2] sm:$0xff] %v106
      %144 = vst [vmem:[#allocation2 + $0x8] sm:$0xff] %v110
      %145 = vst [vmem:[#allocation2 + $0x10] sm:$0xff] %v114
      %146 = vst [vmem:[#allocation2 + $0x18] sm:$0xff] %v118
      %147 = vst [vmem:[#allocation2 + $0x20] sm:$0xff] %v122
      %148 = vst [vmem:[#allocation2 + $0x28] sm:$0xff] %v126
      %149 = vst [vmem:[#allocation2 + $0x30] sm:$0xff] %v130
      %150 = vst [vmem:[#allocation2 + $0x38] sm:$0xff] %v134
      %151 = vst [vmem:[#allocation2 + $0x40] sm:$0xff] %v106
      %152 = vst [vmem:[#allocation2 + $0x48] sm:$0xff] %v110
      %153 = vst [vmem:[#allocation2 + $0x50] sm:$0xff] %v114
      %154 = vst [vmem:[#allocation2 + $0x58] sm:$0xff] %v118
      %155 = vst [vmem:[#allocation2 + $0x60] sm:$0xff] %v122
      %156 = vst [vmem:[#allocation2 + $0x68] sm:$0xff] %v126
      %157 = vst [vmem:[#allocation2 + $0x70] sm:$0xff] %v130
      %158 = vst [vmem:[#allocation2 + $0x78] sm:$0xff] %v134
      %159 = vst [vmem:[#allocation2 + $0x80] sm:$0xff] %v106
      %160 = vst [vmem:[#allocation2 + $0x88] sm:$0xff] %v110
      %161 = vst [vmem:[#allocation2 + $0x90] sm:$0xff] %v114
      %162 = vst [vmem:[#allocation2 + $0x98] sm:$0xff] %v118
      %163 = vst [vmem:[#allocation2 + $0xa0] sm:$0xff] %v122
      %164 = vst [vmem:[#allocation2 + $0xa8] sm:$0xff] %v126
      %165 = vst [vmem:[#allocation2 + $0xb0] sm:$0xff] %v130
      %166 = vst [vmem:[#allocation2 + $0xb8] sm:$0xff] %v134
      %167 = vst [vmem:[#allocation2 + $0xc0] sm:$0xff] %v106
      %168 = vst [vmem:[#allocation2 + $0xc8] sm:$0xff] %v110
      %169 = vst [vmem:[#allocation2 + $0xd0] sm:$0xff] %v114
      %170 = vst [vmem:[#allocation2 + $0xd8] sm:$0xff] %v118
      %171 = vst [vmem:[#allocation2 + $0xe0] sm:$0xff] %v122
      %172 = vst [vmem:[#allocation2 + $0xe8] sm:$0xff] %v126
      %173 = vst [vmem:[#allocation2 + $0xf0] sm:$0xff] %v130
      %174 = vst [vmem:[#allocation2 + $0xf8] sm:$0xff] %v134
      %175 = vst [vmem:[#allocation2 + $0x100] sm:$0xff] %v106
      %176 = vst [vmem:[#allocation2 + $0x108] sm:$0xff] %v110
      %177 = vst [vmem:[#allocation2 + $0x110] sm:$0xff] %v114
      %178 = vst [vmem:[#allocation2 + $0x118] sm:$0xff] %v118
      %179 = vst [vmem:[#allocation2 + $0x120] sm:$0xff] %v122
      %180 = vst [vmem:[#allocation2 + $0x128] sm:$0xff] %v126
      %181 = vst [vmem:[#allocation2 + $0x130] sm:$0xff] %v130
      %182 = vst [vmem:[#allocation2 + $0x138] sm:$0xff] %v134
      %183 = vst [vmem:[#allocation2 + $0x140] sm:$0xff] %v106
      %184 = vst [vmem:[#allocation2 + $0x148] sm:$0xff] %v110
      %185 = vst [vmem:[#allocation2 + $0x150] sm:$0xff] %v114
      %186 = vst [vmem:[#allocation2 + $0x158] sm:$0xff] %v118
      %187 = vst [vmem:[#allocation2 + $0x160] sm:$0xff] %v122
      %188 = vst [vmem:[#allocation2 + $0x168] sm:$0xff] %v126
      %189 = vst [vmem:[#allocation2 + $0x170] sm:$0xff] %v130
      %190 = vst [vmem:[#allocation2 + $0x178] sm:$0xff] %v134
      %191 = vst [vmem:[#allocation2 + $0x180] sm:$0xff] %v106
      %192 = vst [vmem:[#allocation2 + $0x188] sm:$0xff] %v110
      %193 = vst [vmem:[#allocation2 + $0x190] sm:$0xff] %v114
      %194 = vst [vmem:[#allocation2 + $0x198] sm:$0xff] %v118
      %195 = vst [vmem:[#allocation2 + $0x1a0] sm:$0xff] %v122
      %196 = vst [vmem:[#allocation2 + $0x1a8] sm:$0xff] %v126
      %197 = vst [vmem:[#allocation2 + $0x1b0] sm:$0xff] %v130
      %198 = vst [vmem:[#allocation2 + $0x1b8] sm:$0xff] %v134
      %199 = vst [vmem:[#allocation2 + $0x1c0] sm:$0xff] %v106
      %200 = vst [vmem:[#allocation2 + $0x1c8] sm:$0xff] %v110
      %201 = vst [vmem:[#allocation2 + $0x1d0] sm:$0xff] %v114
      %202 = vst [vmem:[#allocation2 + $0x1d8] sm:$0xff] %v118
      %203 = vst [vmem:[#allocation2 + $0x1e0] sm:$0xff] %v122
      %204 = vst [vmem:[#allocation2 + $0x1e8] sm:$0xff] %v126
      %205 = vst [vmem:[#allocation2 + $0x1f0] sm:$0xff] %v130
      %206 = vst [vmem:[#allocation2 + $0x1f8] sm:$0xff] %v134
      %207 = vst [vmem:[#allocation2 + $0x200] sm:$0xff] %v106
      %208 = vst [vmem:[#allocation2 + $0x208] sm:$0xff] %v110
      %209 = vst [vmem:[#allocation2 + $0x210] sm:$0xff] %v114
      %210 = vst [vmem:[#allocation2 + $0x218] sm:$0xff] %v118
      %211 = vst [vmem:[#allocation2 + $0x220] sm:$0xff] %v122
      %212 = vst [vmem:[#allocation2 + $0x228] sm:$0xff] %v126
      %213 = vst [vmem:[#allocation2 + $0x230] sm:$0xff] %v130
      %214 = vst [vmem:[#allocation2 + $0x238] sm:$0xff] %v134
      %215 = vst [vmem:[#allocation2 + $0x240] sm:$0xff] %v106
      %216 = vst [vmem:[#allocation2 + $0x248] sm:$0xff] %v110
      %217 = vst [vmem:[#allocation2 + $0x250] sm:$0xff] %v114
      %218 = vst [vmem:[#allocation2 + $0x258] sm:$0xff] %v118
      %219 = vst [vmem:[#allocation2 + $0x260] sm:$0xff] %v122
      %220 = vst [vmem:[#allocation2 + $0x268] sm:$0xff] %v126
      %221 = vst [vmem:[#allocation2 + $0x270] sm:$0xff] %v130
      %222 = vst [vmem:[#allocation2 + $0x278] sm:$0xff] %v134
      %223 = vst [vmem:[#allocation2 + $0x280] sm:$0xff] %v106
      %224 = vst [vmem:[#allocation2 + $0x288] sm:$0xff] %v110
      %225 = vst [vmem:[#allocation2 + $0x290] sm:$0xff] %v114
      %226 = vst [vmem:[#allocation2 + $0x298] sm:$0xff] %v118
      %227 = vst [vmem:[#allocation2 + $0x2a0] sm:$0xff] %v122
      %228 = vst [vmem:[#allocation2 + $0x2a8] sm:$0xff] %v126
      %229 = vst [vmem:[#allocation2 + $0x2b0] sm:$0xff] %v130
      %230 = vst [vmem:[#allocation2 + $0x2b8] sm:$0xff] %v134
      %231 = vst [vmem:[#allocation2 + $0x2c0] sm:$0xff] %v106
      %232 = vst [vmem:[#allocation2 + $0x2c8] sm:$0xff] %v110
      %233 = vst [vmem:[#allocation2 + $0x2d0] sm:$0xff] %v114
      %234 = vst [vmem:[#allocation2 + $0x2d8] sm:$0xff] %v118
      %235 = vst [vmem:[#allocation2 + $0x2e0] sm:$0xff] %v122
      %236 = vst [vmem:[#allocation2 + $0x2e8] sm:$0xff] %v126
      %237 = vst [vmem:[#allocation2 + $0x2f0] sm:$0xff] %v130
      %238 = vst [vmem:[#allocation2 + $0x2f8] sm:$0xff] %v134
      %239 = vst [vmem:[#allocation2 + $0x300] sm:$0xff] %v106
      %240 = vst [vmem:[#allocation2 + $0x308] sm:$0xff] %v110
      %241 = vst [vmem:[#allocation2 + $0x310] sm:$0xff] %v114
      %242 = vst [vmem:[#allocation2 + $0x318] sm:$0xff] %v118
      %243 = vst [vmem:[#allocation2 + $0x320] sm:$0xff] %v122
      %244 = vst [vmem:[#allocation2 + $0x328] sm:$0xff] %v126
      %245 = vst [vmem:[#allocation2 + $0x330] sm:$0xff] %v130
      %246 = vst [vmem:[#allocation2 + $0x338] sm:$0xff] %v134
      %247 = vst [vmem:[#allocation2 + $0x340] sm:$0xff] %v106
      %248 = vst [vmem:[#allocation2 + $0x348] sm:$0xff] %v110
      %249 = vst [vmem:[#allocation2 + $0x350] sm:$0xff] %v114
      %250 = vst [vmem:[#allocation2 + $0x358] sm:$0xff] %v118
      %251 = vst [vmem:[#allocation2 + $0x360] sm:$0xff] %v122
      %252 = vst [vmem:[#allocation2 + $0x368] sm:$0xff] %v126
      %253 = vst [vmem:[#allocation2 + $0x370] sm:$0xff] %v130
      %254 = vst [vmem:[#allocation2 + $0x378] sm:$0xff] %v134
      %255 = vst [vmem:[#allocation2 + $0x380] sm:$0xff] %v106
      %256 = vst [vmem:[#allocation2 + $0x388] sm:$0xff] %v110
      %257 = vst [vmem:[#allocation2 + $0x390] sm:$0xff] %v114
      %258 = vst [vmem:[#allocation2 + $0x398] sm:$0xff] %v118
      %259 = vst [vmem:[#allocation2 + $0x3a0] sm:$0xff] %v122
      %260 = vst [vmem:[#allocation2 + $0x3a8] sm:$0xff] %v126
      %261 = vst [vmem:[#allocation2 + $0x3b0] sm:$0xff] %v130
      %262 = vst [vmem:[#allocation2 + $0x3b8] sm:$0xff] %v134
      %263 = vst [vmem:[#allocation2 + $0x3c0] sm:$0xff] %v106
      %264 = vst [vmem:[#allocation2 + $0x3c8] sm:$0xff] %v110
      %265 = vst [vmem:[#allocation2 + $0x3d0] sm:$0xff] %v114
      %266 = vst [vmem:[#allocation2 + $0x3d8] sm:$0xff] %v118
      %267 = vst [vmem:[#allocation2 + $0x3e0] sm:$0xff] %v122
      %268 = vst [vmem:[#allocation2 + $0x3e8] sm:$0xff] %v126
      %269 = vst [vmem:[#allocation2 + $0x3f0] sm:$0xff] %v130
      %270 = vst [vmem:[#allocation2 + $0x3f8] sm:$0xff] %v134
    $region49: #{roi_heads_forward.1} parent=1 // pred_fallthru
      _
    %v271 = vld [vmem:[#allocation2] sm:$0xff]
    %v272 = vld [vmem:[#allocation2 + $0x8] sm:$0xff]
    %v273 = vld [vmem:[#allocation2 + $0x10] sm:$0xff]
    %v274 = vld [vmem:[#allocation2 + $0x18] sm:$0xff]
    %v275 = vld [vmem:[#allocation2 + $0x20] sm:$0xff]
    %v276 = vld [vmem:[#allocation2 + $0x28] sm:$0xff]
    %v277 = vld [vmem:[#allocation2 + $0x30] sm:$0xff]
    %v278 = vld [vmem:[#allocation2 + $0x38] sm:$0xff]
    %v279 = vld [vmem:[#allocation2 + $0x40] sm:$0xff]
    %v280 = vld [vmem:[#allocation2 + $0x48] sm:$0xff]
    %v281 = vld [vmem:[#allocation2 + $0x50] sm:$0xff]
    %v282 = vld [vmem:[#allocation2 + $0x58] sm:$0xff]
    %v283 = vld [vmem:[#allocation2 + $0x60] sm:$0xff]
    %v284 = vld [vmem:[#allocation2 + $0x68] sm:$0xff]
    %v285 = vld [vmem:[#allocation2 + $0x70] sm:$0xff]
    %v286 = vld [vmem:[#allocation2 + $0x78] sm:$0xff]
    %v287 = vld [vmem:[#allocation2 + $0x80] sm:$0xff]
    %v288 = vld [vmem:[#allocation2 + $0x88] sm:$0xff]
    %v289 = vld [vmem:[#allocation2 + $0x90] sm:$0xff]
    %v290 = vld [vmem:[#allocation2 + $0x98] sm:$0xff]
    %v291 = vld [vmem:[#allocation2 + $0xa0] sm:$0xff]
    %v292 = vld [vmem:[#allocation2 + $0xa8] sm:$0xff]
    %v293 = vld [vmem:[#allocation2 + $0xb0] sm:$0xff]
    %v294 = vld [vmem:[#allocation2 + $0xb8] sm:$0xff]
    %v295 = vld [vmem:[#allocation2 + $0xc0] sm:$0xff]
    %v296 = vld [vmem:[#allocation2 + $0xc8] sm:$0xff]
    %v297 = vld [vmem:[#allocation2 + $0xd0] sm:$0xff]
    %v298 = vld [vmem:[#allocation2 + $0xd8] sm:$0xff]
    %v299 = vld [vmem:[#allocation2 + $0xe0] sm:$0xff]
    %v300 = vld [vmem:[#allocation2 + $0xe8] sm:$0xff]
    %v301 = vld [vmem:[#allocation2 + $0xf0] sm:$0xff]
    %v302 = vld [vmem:[#allocation2 + $0xf8] sm:$0xff]
    %v303 = vld [vmem:[#allocation2 + $0x100] sm:$0xff]
    %v304 = vld [vmem:[#allocation2 + $0x108] sm:$0xff]
    %v305 = vld [vmem:[#allocation2 + $0x110] sm:$0xff]
    %v306 = vld [vmem:[#allocation2 + $0x118] sm:$0xff]
    %v307 = vld [vmem:[#allocation2 + $0x120] sm:$0xff]
    %v308 = vld [vmem:[#allocation2 + $0x128] sm:$0xff]
    %v309 = vld [vmem:[#allocation2 + $0x130] sm:$0xff]
    %v310 = vld [vmem:[#allocation2 + $0x138] sm:$0xff]
    %v311 = vld [vmem:[#allocation2 + $0x140] sm:$0xff]
    %v312 = vld [vmem:[#allocation2 + $0x148] sm:$0xff]
    %v313 = vld [vmem:[#allocation2 + $0x150] sm:$0xff]
    %v314 = vld [vmem:[#allocation2 + $0x158] sm:$0xff]
    %v315 = vld [vmem:[#allocation2 + $0x160] sm:$0xff]
    %v316 = vld [vmem:[#allocation2 + $0x168] sm:$0xff]
    %v317 = vld [vmem:[#allocation2 + $0x170] sm:$0xff]
    %v318 = vld [vmem:[#allocation2 + $0x178] sm:$0xff]
    %v319 = vld [vmem:[#allocation2 + $0x180] sm:$0xff]
    %v320 = vld [vmem:[#allocation2 + $0x188] sm:$0xff]
    %v321 = vld [vmem:[#allocation2 + $0x190] sm:$0xff]
    %v322 = vld [vmem:[#allocation2 + $0x198] sm:$0xff]
    %v323 = vld [vmem:[#allocation2 + $0x1a0] sm:$0xff]
    %v324 = vld [vmem:[#allocation2 + $0x1a8] sm:$0xff]
    %v325 = vld [vmem:[#allocation2 + $0x1b0] sm:$0xff]
    %v326 = vld [vmem:[#allocation2 + $0x1b8] sm:$0xff]
    %v327 = vld [vmem:[#allocation2 + $0x1c0] sm:$0xff]
    %v328 = vld [vmem:[#allocation2 + $0x1c8] sm:$0xff]
    %v329 = vld [vmem:[#allocation2 + $0x1d0] sm:$0xff]
    %v330 = vld [vmem:[#allocation2 + $0x1d8] sm:$0xff]
    %v331 = vld [vmem:[#allocation2 + $0x1e0] sm:$0xff]
    %v332 = vld [vmem:[#allocation2 + $0x1e8] sm:$0xff]
    %v333 = vld [vmem:[#allocation2 + $0x1f0] sm:$0xff]
    %v334 = vld [vmem:[#allocation2 + $0x1f8] sm:$0xff]
    %v335 = vld [vmem:[#allocation2 + $0x200] sm:$0xff]
    %v336 = vld [vmem:[#allocation2 + $0x208] sm:$0xff]
    %v337 = vld [vmem:[#allocation2 + $0x210] sm:$0xff]
    %v338 = vld [vmem:[#allocation2 + $0x218] sm:$0xff]
    %v339 = vld [vmem:[#allocation2 + $0x220] sm:$0xff]
    %v340 = vld [vmem:[#allocation2 + $0x228] sm:$0xff]
    %v341 = vld [vmem:[#allocation2 + $0x230] sm:$0xff]
    %v342 = vld [vmem:[#allocation2 + $0x238] sm:$0xff]
    %v343 = vld [vmem:[#allocation2 + $0x240] sm:$0xff]
    %v344 = vld [vmem:[#allocation2 + $0x248] sm:$0xff]
    %v345 = vld [vmem:[#allocation2 + $0x250] sm:$0xff]
    %v346 = vld [vmem:[#allocation2 + $0x258] sm:$0xff]
    %v347 = vld [vmem:[#allocation2 + $0x260] sm:$0xff]
    %v348 = vld [vmem:[#allocation2 + $0x268] sm:$0xff]
    %v349 = vld [vmem:[#allocation2 + $0x270] sm:$0xff]
    %v350 = vld [vmem:[#allocation2 + $0x278] sm:$0xff]
    %v351 = vld [vmem:[#allocation2 + $0x280] sm:$0xff]
    %v352 = vld [vmem:[#allocation2 + $0x288] sm:$0xff]
    %v353 = vld [vmem:[#allocation2 + $0x290] sm:$0xff]
    %v354 = vld [vmem:[#allocation2 + $0x298] sm:$0xff]
    %v355 = vld [vmem:[#allocation2 + $0x2a0] sm:$0xff]
    %v356 = vld [vmem:[#allocation2 + $0x2a8] sm:$0xff]
    %v357 = vld [vmem:[#allocation2 + $0x2b0] sm:$0xff]
    %v358 = vld [vmem:[#allocation2 + $0x2b8] sm:$0xff]
    %v359 = vld [vmem:[#allocation2 + $0x2c0] sm:$0xff]
    %v360 = vld [vmem:[#allocation2 + $0x2c8] sm:$0xff]
    %v361 = vld [vmem:[#allocation2 + $0x2d0] sm:$0xff]
    %v362 = vld [vmem:[#allocation2 + $0x2d8] sm:$0xff]
    %v363 = vld [vmem:[#allocation2 + $0x2e0] sm:$0xff]
    %v364 = vld [vmem:[#allocation2 + $0x2e8] sm:$0xff]
    %v365 = vld [vmem:[#allocation2 + $0x2f0] sm:$0xff]
    %v366 = vld [vmem:[#allocation2 + $0x2f8] sm:$0xff]
    %v367 = vld [vmem:[#allocation2 + $0x300] sm:$0xff]
    %v368 = vld [vmem:[#allocation2 + $0x308] sm:$0xff]
    %v369 = vld [vmem:[#allocation2 + $0x310] sm:$0xff]
    %v370 = vld [vmem:[#allocation2 + $0x318] sm:$0xff]
    %v371 = vld [vmem:[#allocation2 + $0x320] sm:$0xff]
    %v372 = vld [vmem:[#allocation2 + $0x328] sm:$0xff]
    %v373 = vld [vmem:[#allocation2 + $0x330] sm:$0xff]
    %v374 = vld [vmem:[#allocation2 + $0x338] sm:$0xff]
    %v375 = vld [vmem:[#allocation2 + $0x340] sm:$0xff]
    %v376 = vld [vmem:[#allocation2 + $0x348] sm:$0xff]
    %v377 = vld [vmem:[#allocation2 + $0x350] sm:$0xff]
    %v378 = vld [vmem:[#allocation2 + $0x358] sm:$0xff]
    %v379 = vld [vmem:[#allocation2 + $0x360] sm:$0xff]
    %v380 = vld [vmem:[#allocation2 + $0x368] sm:$0xff]
    %v381 = vld [vmem:[#allocation2 + $0x370] sm:$0xff]
    %v382 = vld [vmem:[#allocation2 + $0x378] sm:$0xff]
    %v383 = vld [vmem:[#allocation2 + $0x380] sm:$0xff]
    %v384 = vld [vmem:[#allocation2 + $0x388] sm:$0xff]
    %v385 = vld [vmem:[#allocation2 + $0x390] sm:$0xff]
    %v386 = vld [vmem:[#allocation2 + $0x398] sm:$0xff]
    %v387 = vld [vmem:[#allocation2 + $0x3a0] sm:$0xff]
    %v388 = vld [vmem:[#allocation2 + $0x3a8] sm:$0xff]
    %v389 = vld [vmem:[#allocation2 + $0x3b0] sm:$0xff]
    %v390 = vld [vmem:[#allocation2 + $0x3b8] sm:$0xff]
    %v391 = vld [vmem:[#allocation2 + $0x3c0] sm:$0xff]
    %v392 = vld [vmem:[#allocation2 + $0x3c8] sm:$0xff]
    %v393 = vld [vmem:[#allocation2 + $0x3d0] sm:$0xff]
    %v394 = vld [vmem:[#allocation2 + $0x3d8] sm:$0xff]
    %v395 = vld [vmem:[#allocation2 + $0x3e0] sm:$0xff]
    %v396 = vld [vmem:[#allocation2 + $0x3e8] sm:$0xff]
    %v397 = vld [vmem:[#allocation2 + $0x3f0] sm:$0xff]
    %v398 = vld [vmem:[#allocation2 + $0x3f8] sm:$0xff]
    %v399 = vld [vmem:[#allocation5] sm:$0xff]
    %v400 = vld [vmem:[#allocation5 + $0x8] sm:$0xff]
    %v401 = vld [vmem:[#allocation5 + $0x10] sm:$0xff]
    %v402 = vld [vmem:[#allocation5 + $0x18] sm:$0xff]
    %v403 = vld [vmem:[#allocation5 + $0x20] sm:$0xff]
    %v404 = vld [vmem:[#allocation5 + $0x28] sm:$0xff]
    %v405 = vld [vmem:[#allocation5 + $0x30] sm:$0xff]
    %v406 = vld [vmem:[#allocation5 + $0x38] sm:$0xff]
    %v407 = vld [vmem:[#allocation5 + $0x40] sm:$0xff]
    %v408 = vld [vmem:[#allocation5 + $0x48] sm:$0xff]
    %v409 = vld [vmem:[#allocation5 + $0x50] sm:$0xff]
    %v410 = vld [vmem:[#allocation5 + $0x58] sm:$0xff]
    %v411 = vld [vmem:[#allocation5 + $0x60] sm:$0xff]
    %v412 = vld [vmem:[#allocation5 + $0x68] sm:$0xff]
    %v413 = vld [vmem:[#allocation5 + $0x70] sm:$0xff]
    %v414 = vld [vmem:[#allocation5 + $0x78] sm:$0xff]
    %v415 = vld [vmem:[#allocation5 + $0x80] sm:$0xff]
    %v416 = vld [vmem:[#allocation5 + $0x88] sm:$0xff]
    %v417 = vld [vmem:[#allocation5 + $0x90] sm:$0xff]
    %v418 = vld [vmem:[#allocation5 + $0x98] sm:$0xff]
    %v419 = vld [vmem:[#allocation5 + $0xa0] sm:$0xff]
    %v420 = vld [vmem:[#allocation5 + $0xa8] sm:$0xff]
    %v421 = vld [vmem:[#allocation5 + $0xb0] sm:$0xff]
    %v422 = vld [vmem:[#allocation5 + $0xb8] sm:$0xff]
    %v423 = vld [vmem:[#allocation5 + $0xc0] sm:$0xff]
    %v424 = vld [vmem:[#allocation5 + $0xc8] sm:$0xff]
    %v425 = vld [vmem:[#allocation5 + $0xd0] sm:$0xff]
    %v426 = vld [vmem:[#allocation5 + $0xd8] sm:$0xff]
    %v427 = vld [vmem:[#allocation5 + $0xe0] sm:$0xff]
    %v428 = vld [vmem:[#allocation5 + $0xe8] sm:$0xff]
    %v429 = vld [vmem:[#allocation5 + $0xf0] sm:$0xff]
    %v430 = vld [vmem:[#allocation5 + $0xf8] sm:$0xff]
    %v431 = vld [vmem:[#allocation8] sm:$0xff]
    %v432 = vld [vmem:[#allocation8 + $0x8] sm:$0xff]
    %v433 = vld [vmem:[#allocation8 + $0x10] sm:$0xff]
    %v434 = vld [vmem:[#allocation8 + $0x18] sm:$0xff]
    %v435 = vld [vmem:[#allocation8 + $0x20] sm:$0xff]
    %v436 = vld [vmem:[#allocation8 + $0x28] sm:$0xff]
    %v437 = vld [vmem:[#allocation8 + $0x30] sm:$0xff]
    %v438 = vld [vmem:[#allocation8 + $0x38] sm:$0xff]
    %v439 = vld [vmem:[#allocation8 + $0x40] sm:$0xff]
    %v440 = vld [vmem:[#allocation8 + $0x48] sm:$0xff]
    %v441 = vld [vmem:[#allocation8 + $0x50] sm:$0xff]
    %v442 = vld [vmem:[#allocation8 + $0x58] sm:$0xff]
    %v443 = vld [vmem:[#allocation8 + $0x60] sm:$0xff]
    %v444 = vld [vmem:[#allocation8 + $0x68] sm:$0xff]
    %v445 = vld [vmem:[#allocation8 + $0x70] sm:$0xff]
    %v446 = vld [vmem:[#allocation8 + $0x78] sm:$0xff]
    %v447 = vld [vmem:[#allocation8 + $0x80] sm:$0xff]
    %v448 = vld [vmem:[#allocation8 + $0x88] sm:$0xff]
    %v449 = vld [vmem:[#allocation8 + $0x90] sm:$0xff]
    %v450 = vld [vmem:[#allocation8 + $0x98] sm:$0xff]
    %v451 = vld [vmem:[#allocation8 + $0xa0] sm:$0xff]
    %v452 = vld [vmem:[#allocation8 + $0xa8] sm:$0xff]
    %v453 = vld [vmem:[#allocation8 + $0xb0] sm:$0xff]
    %v454 = vld [vmem:[#allocation8 + $0xb8] sm:$0xff]
    %v455 = vld [vmem:[#allocation8 + $0xc0] sm:$0xff]
    %v456 = vld [vmem:[#allocation8 + $0xc8] sm:$0xff]
    %v457 = vld [vmem:[#allocation8 + $0xd0] sm:$0xff]
    %v458 = vld [vmem:[#allocation8 + $0xd8] sm:$0xff]
    %v459 = vld [vmem:[#allocation8 + $0xe0] sm:$0xff]
    %v460 = vld [vmem:[#allocation8 + $0xe8] sm:$0xff]
    %v461 = vld [vmem:[#allocation8 + $0xf0] sm:$0xff]
    %v462 = vld [vmem:[#allocation8 + $0xf8] sm:$0xff]
    %v463 = vld [vmem:[#allocation8 + $0x100] sm:$0xff]
    %v464 = vld [vmem:[#allocation8 + $0x108] sm:$0xff]
    %v465 = vld [vmem:[#allocation8 + $0x110] sm:$0xff]
    %v466 = vld [vmem:[#allocation8 + $0x118] sm:$0xff]
    %v467 = vld [vmem:[#allocation8 + $0x120] sm:$0xff]
    %v468 = vld [vmem:[#allocation8 + $0x128] sm:$0xff]
    %v469 = vld [vmem:[#allocation8 + $0x130] sm:$0xff]
    %v470 = vld [vmem:[#allocation8 + $0x138] sm:$0xff]
    %v471 = vld [vmem:[#allocation8 + $0x140] sm:$0xff]
    %v472 = vld [vmem:[#allocation8 + $0x148] sm:$0xff]
    %v473 = vld [vmem:[#allocation8 + $0x150] sm:$0xff]
    %v474 = vld [vmem:[#allocation8 + $0x158] sm:$0xff]
    %v475 = vld [vmem:[#allocation8 + $0x160] sm:$0xff]
    %v476 = vld [vmem:[#allocation8 + $0x168] sm:$0xff]
    %v477 = vld [vmem:[#allocation8 + $0x170] sm:$0xff]
    %v478 = vld [vmem:[#allocation8 + $0x178] sm:$0xff]
    %v479 = vld [vmem:[#allocation8 + $0x180] sm:$0xff]
    %v480 = vld [vmem:[#allocation8 + $0x188] sm:$0xff]
    %v481 = vld [vmem:[#allocation8 + $0x190] sm:$0xff]
    %v482 = vld [vmem:[#allocation8 + $0x198] sm:$0xff]
    %v483 = vld [vmem:[#allocation8 + $0x1a0] sm:$0xff]
    %v484 = vld [vmem:[#allocation8 + $0x1a8] sm:$0xff]
    %v485 = vld [vmem:[#allocation8 + $0x1b0] sm:$0xff]
    %v486 = vld [vmem:[#allocation8 + $0x1b8] sm:$0xff]
    %v487 = vld [vmem:[#allocation8 + $0x1c0] sm:$0xff]
    %v488 = vld [vmem:[#allocation8 + $0x1c8] sm:$0xff]
    %v489 = vld [vmem:[#allocation8 + $0x1d0] sm:$0xff]
    %v490 = vld [vmem:[#allocation8 + $0x1d8] sm:$0xff]
    %v491 = vld [vmem:[#allocation8 + $0x1e0] sm:$0xff]
    %v492 = vld [vmem:[#allocation8 + $0x1e8] sm:$0xff]
    %v493 = vld [vmem:[#allocation8 + $0x1f0] sm:$0xff]
    %v494 = vld [vmem:[#allocation8 + $0x1f8] sm:$0xff]
    %v495 = vld [vmem:[#allocation8 + $0x200] sm:$0xff]
    %v496 = vld [vmem:[#allocation8 + $0x208] sm:$0xff]
    %v497 = vld [vmem:[#allocation8 + $0x210] sm:$0xff]
    %v498 = vld [vmem:[#allocation8 + $0x218] sm:$0xff]
    %v499 = vld [vmem:[#allocation8 + $0x220] sm:$0xff]
    %v500 = vld [vmem:[#allocation8 + $0x228] sm:$0xff]
    %v501 = vld [vmem:[#allocation8 + $0x230] sm:$0xff]
    %v502 = vld [vmem:[#allocation8 + $0x238] sm:$0xff]
    %v503 = vld [vmem:[#allocation8 + $0x240] sm:$0xff]
    %v504 = vld [vmem:[#allocation8 + $0x248] sm:$0xff]
    %v505 = vld [vmem:[#allocation8 + $0x250] sm:$0xff]
    %v506 = vld [vmem:[#allocation8 + $0x258] sm:$0xff]
    %v507 = vld [vmem:[#allocation8 + $0x260] sm:$0xff]
    %v508 = vld [vmem:[#allocation8 + $0x268] sm:$0xff]
    %v509 = vld [vmem:[#allocation8 + $0x270] sm:$0xff]
    %v510 = vld [vmem:[#allocation8 + $0x278] sm:$0xff]
    %v511 = vld [vmem:[#allocation8 + $0x280] sm:$0xff]
    %v512 = vld [vmem:[#allocation8 + $0x288] sm:$0xff]
    %v513 = vld [vmem:[#allocation8 + $0x290] sm:$0xff]
    %v514 = vld [vmem:[#allocation8 + $0x298] sm:$0xff]
    %v515 = vld [vmem:[#allocation8 + $0x2a0] sm:$0xff]
    %v516 = vld [vmem:[#allocation8 + $0x2a8] sm:$0xff]
    %v517 = vld [vmem:[#allocation8 + $0x2b0] sm:$0xff]
    %v518 = vld [vmem:[#allocation8 + $0x2b8] sm:$0xff]
    %v519 = vld [vmem:[#allocation8 + $0x2c0] sm:$0xff]
    %v520 = vld [vmem:[#allocation8 + $0x2c8] sm:$0xff]
    %v521 = vld [vmem:[#allocation8 + $0x2d0] sm:$0xff]
    %v522 = vld [vmem:[#allocation8 + $0x2d8] sm:$0xff]
    %v523 = vld [vmem:[#allocation8 + $0x2e0] sm:$0xff]
    %v524 = vld [vmem:[#allocation8 + $0x2e8] sm:$0xff]
    %v525 = vld [vmem:[#allocation8 + $0x2f0] sm:$0xff]
    %v526 = vld [vmem:[#allocation8 + $0x2f8] sm:$0xff]
    %v527 = vld [vmem:[#allocation8 + $0x300] sm:$0xff]
    %v528 = vld [vmem:[#allocation8 + $0x308] sm:$0xff]
    %v529 = vld [vmem:[#allocation8 + $0x310] sm:$0xff]
    %v530 = vld [vmem:[#allocation8 + $0x318] sm:$0xff]
    %v531 = vld [vmem:[#allocation8 + $0x320] sm:$0xff]
    %v532 = vld [vmem:[#allocation8 + $0x328] sm:$0xff]
    %v533 = vld [vmem:[#allocation8 + $0x330] sm:$0xff]
    %v534 = vld [vmem:[#allocation8 + $0x338] sm:$0xff]
    %v535 = vld [vmem:[#allocation8 + $0x340] sm:$0xff]
    %v536 = vld [vmem:[#allocation8 + $0x348] sm:$0xff]
    %v537 = vld [vmem:[#allocation8 + $0x350] sm:$0xff]
    %v538 = vld [vmem:[#allocation8 + $0x358] sm:$0xff]
    %v539 = vld [vmem:[#allocation8 + $0x360] sm:$0xff]
    %v540 = vld [vmem:[#allocation8 + $0x368] sm:$0xff]
    %v541 = vld [vmem:[#allocation8 + $0x370] sm:$0xff]
    %v542 = vld [vmem:[#allocation8 + $0x378] sm:$0xff]
    %v543 = vld [vmem:[#allocation8 + $0x380] sm:$0xff]
    %v544 = vld [vmem:[#allocation8 + $0x388] sm:$0xff]
    %v545 = vld [vmem:[#allocation8 + $0x390] sm:$0xff]
    %v546 = vld [vmem:[#allocation8 + $0x398] sm:$0xff]
    %v547 = vld [vmem:[#allocation8 + $0x3a0] sm:$0xff]
    %v548 = vld [vmem:[#allocation8 + $0x3a8] sm:$0xff]
    %v549 = vld [vmem:[#allocation8 + $0x3b0] sm:$0xff]
    %v550 = vld [vmem:[#allocation8 + $0x3b8] sm:$0xff]
    %v551 = vld [vmem:[#allocation8 + $0x3c0] sm:$0xff]
    %v552 = vld [vmem:[#allocation8 + $0x3c8] sm:$0xff]
    %v553 = vld [vmem:[#allocation8 + $0x3d0] sm:$0xff]
    %v554 = vld [vmem:[#allocation8 + $0x3d8] sm:$0xff]
    %v555 = vld [vmem:[#allocation8 + $0x3e0] sm:$0xff]
    %v556 = vld [vmem:[#allocation8 + $0x3e8] sm:$0xff]
    %v557 = vld [vmem:[#allocation8 + $0x3f0] sm:$0xff]
    %v558 = vld [vmem:[#allocation8 + $0x3f8] sm:$0xff]
    %v559 = vld [vmem:[#allocation8 + $0x400] sm:$0xff]
    %v560 = vld [vmem:[#allocation8 + $0x408] sm:$0xff]
    %v561 = vld [vmem:[#allocation8 + $0x410] sm:$0xff]
    %v562 = vld [vmem:[#allocation8 + $0x418] sm:$0xff]
    %v563 = vld [vmem:[#allocation8 + $0x420] sm:$0xff]
    %v564 = vld [vmem:[#allocation8 + $0x428] sm:$0xff]
    %v565 = vld [vmem:[#allocation8 + $0x430] sm:$0xff]
    %v566 = vld [vmem:[#allocation8 + $0x438] sm:$0xff]
    %v567 = vld [vmem:[#allocation8 + $0x440] sm:$0xff]
    %v568 = vld [vmem:[#allocation8 + $0x448] sm:$0xff]
    %v569 = vld [vmem:[#allocation8 + $0x450] sm:$0xff]
    %v570 = vld [vmem:[#allocation8 + $0x458] sm:$0xff]
    %v571 = vld [vmem:[#allocation8 + $0x460] sm:$0xff]
    %v572 = vld [vmem:[#allocation8 + $0x468] sm:$0xff]
    %v573 = vld [vmem:[#allocation8 + $0x470] sm:$0xff]
    %v574 = vld [vmem:[#allocation8 + $0x478] sm:$0xff]
    %v575 = vld [vmem:[#allocation8 + $0x480] sm:$0xff]
    %v576 = vld [vmem:[#allocation8 + $0x488] sm:$0xff]
    %v577 = vld [vmem:[#allocation8 + $0x490] sm:$0xff]
    %v578 = vld [vmem:[#allocation8 + $0x498] sm:$0xff]
    %v579 = vld [vmem:[#allocation8 + $0x4a0] sm:$0xff]
    %v580 = vld [vmem:[#allocation8 + $0x4a8] sm:$0xff]
    %v581 = vld [vmem:[#allocation8 + $0x4b0] sm:$0xff]
    %v582 = vld [vmem:[#allocation8 + $0x4b8] sm:$0xff]
    %v583 = vld [vmem:[#allocation8 + $0x4c0] sm:$0xff]
    %v584 = vld [vmem:[#allocation8 + $0x4c8] sm:$0xff]
    %v585 = vld [vmem:[#allocation8 + $0x4d0] sm:$0xff]
    %v586 = vld [vmem:[#allocation8 + $0x4d8] sm:$0xff]
    %v587 = vld [vmem:[#allocation8 + $0x4e0] sm:$0xff]
    %v588 = vld [vmem:[#allocation8 + $0x4e8] sm:$0xff]
    %v589 = vld [vmem:[#allocation8 + $0x4f0] sm:$0xff]
    %v590 = vld [vmem:[#allocation8 + $0x4f8] sm:$0xff]
    %v591 = vld [vmem:[#allocation8 + $0x500] sm:$0xff]
    %v592 = vld [vmem:[#allocation8 + $0x508] sm:$0xff]
    %v593 = vld [vmem:[#allocation8 + $0x510] sm:$0xff]
    %v594 = vld [vmem:[#allocation8 + $0x518] sm:$0xff]
    %v595 = vld [vmem:[#allocation8 + $0x520] sm:$0xff]
    %v596 = vld [vmem:[#allocation8 + $0x528] sm:$0xff]
    %v597 = vld [vmem:[#allocation8 + $0x530] sm:$0xff]
    %v598 = vld [vmem:[#allocation8 + $0x538] sm:$0xff]
    %v599 = vld [vmem:[#allocation8 + $0x540] sm:$0xff]
    %v600 = vld [vmem:[#allocation8 + $0x548] sm:$0xff]
    %v601 = vld [vmem:[#allocation8 + $0x550] sm:$0xff]
    %v602 = vld [vmem:[#allocation8 + $0x558] sm:$0xff]
    %v603 = vld [vmem:[#allocation8 + $0x560] sm:$0xff]
    %v604 = vld [vmem:[#allocation8 + $0x568] sm:$0xff]
    %v605 = vld [vmem:[#allocation8 + $0x570] sm:$0xff]
    %v606 = vld [vmem:[#allocation8 + $0x578] sm:$0xff]
    %v607 = vld [vmem:[#allocation8 + $0x580] sm:$0xff]
    %v608 = vld [vmem:[#allocation8 + $0x588] sm:$0xff]
    %v609 = vld [vmem:[#allocation8 + $0x590] sm:$0xff]
    %v610 = vld [vmem:[#allocation8 + $0x598] sm:$0xff]
    %v611 = vld [vmem:[#allocation8 + $0x5a0] sm:$0xff]
    %v612 = vld [vmem:[#allocation8 + $0x5a8] sm:$0xff]
    %v613 = vld [vmem:[#allocation8 + $0x5b0] sm:$0xff]
    %v614 = vld [vmem:[#allocation8 + $0x5b8] sm:$0xff]
    %v615 = vld [vmem:[#allocation8 + $0x5c0] sm:$0xff]
    %v616 = vld [vmem:[#allocation8 + $0x5c8] sm:$0xff]
    %v617 = vld [vmem:[#allocation8 + $0x5d0] sm:$0xff]
    %v618 = vld [vmem:[#allocation8 + $0x5d8] sm:$0xff]
    %v619 = vld [vmem:[#allocation8 + $0x5e0] sm:$0xff]
    %v620 = vld [vmem:[#allocation8 + $0x5e8] sm:$0xff]
    %v621 = vld [vmem:[#allocation8 + $0x5f0] sm:$0xff]
    %v622 = vld [vmem:[#allocation8 + $0x5f8] sm:$0xff]
    %v623 = vld [vmem:[#allocation8 + $0x600] sm:$0xff]
    %v624 = vld [vmem:[#allocation8 + $0x608] sm:$0xff]
    %v625 = vld [vmem:[#allocation8 + $0x610] sm:$0xff]
    %v626 = vld [vmem:[#allocation8 + $0x618] sm:$0xff]
    %v627 = vld [vmem:[#allocation8 + $0x620] sm:$0xff]
    %v628 = vld [vmem:[#allocation8 + $0x628] sm:$0xff]
    %v629 = vld [vmem:[#allocation8 + $0x630] sm:$0xff]
    %v630 = vld [vmem:[#allocation8 + $0x638] sm:$0xff]
    %v631 = vld [vmem:[#allocation8 + $0x640] sm:$0xff]
    %v632 = vld [vmem:[#allocation8 + $0x648] sm:$0xff]
    %v633 = vld [vmem:[#allocation8 + $0x650] sm:$0xff]
    %v634 = vld [vmem:[#allocation8 + $0x658] sm:$0xff]
    %v635 = vld [vmem:[#allocation8 + $0x660] sm:$0xff]
    %v636 = vld [vmem:[#allocation8 + $0x668] sm:$0xff]
    %v637 = vld [vmem:[#allocation8 + $0x670] sm:$0xff]
    %v638 = vld [vmem:[#allocation8 + $0x678] sm:$0xff]
    %v639 = vld [vmem:[#allocation8 + $0x680] sm:$0xff]
    %v640 = vld [vmem:[#allocation8 + $0x688] sm:$0xff]
    %v641 = vld [vmem:[#allocation8 + $0x690] sm:$0xff]
    %v642 = vld [vmem:[#allocation8 + $0x698] sm:$0xff]
    %v643 = vld [vmem:[#allocation8 + $0x6a0] sm:$0xff]
    %v644 = vld [vmem:[#allocation8 + $0x6a8] sm:$0xff]
    %v645 = vld [vmem:[#allocation8 + $0x6b0] sm:$0xff]
    %v646 = vld [vmem:[#allocation8 + $0x6b8] sm:$0xff]
    %v647 = vld [vmem:[#allocation8 + $0x6c0] sm:$0xff]
    %v648 = vld [vmem:[#allocation8 + $0x6c8] sm:$0xff]
    %v649 = vld [vmem:[#allocation8 + $0x6d0] sm:$0xff]
    %v650 = vld [vmem:[#allocation8 + $0x6d8] sm:$0xff]
    %v651 = vld [vmem:[#allocation8 + $0x6e0] sm:$0xff]
    %v652 = vld [vmem:[#allocation8 + $0x6e8] sm:$0xff]
    %v653 = vld [vmem:[#allocation8 + $0x6f0] sm:$0xff]
    %v654 = vld [vmem:[#allocation8 + $0x6f8] sm:$0xff]
    %v655 = vld [vmem:[#allocation8 + $0x700] sm:$0xff]
    %v656 = vld [vmem:[#allocation8 + $0x708] sm:$0xff]
    %v657 = vld [vmem:[#allocation8 + $0x710] sm:$0xff]
    %v658 = vld [vmem:[#allocation8 + $0x718] sm:$0xff]
    %v659 = vld [vmem:[#allocation8 + $0x720] sm:$0xff]
    %v660 = vld [vmem:[#allocation8 + $0x728] sm:$0xff]
    %v661 = vld [vmem:[#allocation8 + $0x730] sm:$0xff]
    %v662 = vld [vmem:[#allocation8 + $0x738] sm:$0xff]
    %v663 = vld [vmem:[#allocation8 + $0x740] sm:$0xff]
    %v664 = vld [vmem:[#allocation8 + $0x748] sm:$0xff]
    %v665 = vld [vmem:[#allocation8 + $0x750] sm:$0xff]
    %v666 = vld [vmem:[#allocation8 + $0x758] sm:$0xff]
    %v667 = vld [vmem:[#allocation8 + $0x760] sm:$0xff]
    %v668 = vld [vmem:[#allocation8 + $0x768] sm:$0xff]
    %v669 = vld [vmem:[#allocation8 + $0x770] sm:$0xff]
    %v670 = vld [vmem:[#allocation8 + $0x778] sm:$0xff]
    %v671 = vld [vmem:[#allocation8 + $0x780] sm:$0xff]
    %v672 = vld [vmem:[#allocation8 + $0x788] sm:$0xff]
    %v673 = vld [vmem:[#allocation8 + $0x790] sm:$0xff]
    %v674 = vld [vmem:[#allocation8 + $0x798] sm:$0xff]
    %v675 = vld [vmem:[#allocation8 + $0x7a0] sm:$0xff]
    %v676 = vld [vmem:[#allocation8 + $0x7a8] sm:$0xff]
    %v677 = vld [vmem:[#allocation8 + $0x7b0] sm:$0xff]
    %v678 = vld [vmem:[#allocation8 + $0x7b8] sm:$0xff]
    %v679 = vld [vmem:[#allocation8 + $0x7c0] sm:$0xff]
    %v680 = vld [vmem:[#allocation8 + $0x7c8] sm:$0xff]
    %v681 = vld [vmem:[#allocation8 + $0x7d0] sm:$0xff]
    %v682 = vld [vmem:[#allocation8 + $0x7d8] sm:$0xff]
    %v683 = vld [vmem:[#allocation8 + $0x7e0] sm:$0xff]
    %v684 = vld [vmem:[#allocation8 + $0x7e8] sm:$0xff]
    %v685 = vld [vmem:[#allocation8 + $0x7f0] sm:$0xff]
    %v686 = vld [vmem:[#allocation8 + $0x7f8] sm:$0xff]
    %v719 = vunpack.c.l.b16 %v399
    %v720 = vunpack.c.h.b16 %v399
    %v721 = vunpack.c.l.b16 %v400
    %v722 = vunpack.c.h.b16 %v400
    %v723 = vunpack.c.l.b16 %v401
    %v724 = vunpack.c.h.b16 %v401
    %v725 = vunpack.c.l.b16 %v402
    %v726 = vunpack.c.h.b16 %v402
    %v727 = vunpack.c.l.b16 %v403
    %v728 = vunpack.c.h.b16 %v403
    %v729 = vunpack.c.l.b16 %v404
    %v730 = vunpack.c.h.b16 %v404
    %v731 = vunpack.c.l.b16 %v405
    %v732 = vunpack.c.h.b16 %v405
    %v733 = vunpack.c.l.b16 %v406
    %v734 = vunpack.c.h.b16 %v406
    %v735 = vunpack.c.l.b16 %v407
    %v736 = vunpack.c.h.b16 %v407
    %v737 = vunpack.c.l.b16 %v408
    %v738 = vunpack.c.h.b16 %v408
    %v739 = vunpack.c.l.b16 %v409
    %v740 = vunpack.c.h.b16 %v409
    %v741 = vunpack.c.l.b16 %v410
    %v742 = vunpack.c.h.b16 %v410
    %v743 = vunpack.c.l.b16 %v411
    %v744 = vunpack.c.h.b16 %v411
    %v745 = vunpack.c.l.b16 %v412
    %v746 = vunpack.c.h.b16 %v412
    %v747 = vunpack.c.l.b16 %v413
    %v748 = vunpack.c.h.b16 %v413
    %v749 = vunpack.c.l.b16 %v414
    %v750 = vunpack.c.h.b16 %v414
    %v751 = vunpack.c.l.b16 %v415
    %v752 = vunpack.c.h.b16 %v415
    %v753 = vunpack.c.l.b16 %v416
    %v754 = vunpack.c.h.b16 %v416
    %v755 = vunpack.c.l.b16 %v417
    %v756 = vunpack.c.h.b16 %v417
    %v757 = vunpack.c.l.b16 %v418
    %v758 = vunpack.c.h.b16 %v418
    %v759 = vunpack.c.l.b16 %v419
    %v760 = vunpack.c.h.b16 %v419
    %v761 = vunpack.c.l.b16 %v420
    %v762 = vunpack.c.h.b16 %v420
    %v763 = vunpack.c.l.b16 %v421
    %v764 = vunpack.c.h.b16 %v421
    %v765 = vunpack.c.l.b16 %v422
    %v766 = vunpack.c.h.b16 %v422
    %v767 = vunpack.c.l.b16 %v423
    %v768 = vunpack.c.h.b16 %v423
    %v769 = vunpack.c.l.b16 %v424
    %v770 = vunpack.c.h.b16 %v424
    %v771 = vunpack.c.l.b16 %v425
    %v772 = vunpack.c.h.b16 %v425
    %v773 = vunpack.c.l.b16 %v426
    %v774 = vunpack.c.h.b16 %v426
    %v775 = vunpack.c.l.b16 %v427
    %v776 = vunpack.c.h.b16 %v427
    %v777 = vunpack.c.l.b16 %v428
    %v778 = vunpack.c.h.b16 %v428
    %v779 = vunpack.c.l.b16 %v429
    %v780 = vunpack.c.h.b16 %v429
    %v781 = vunpack.c.l.b16 %v430
    %v782 = vunpack.c.h.b16 %v430
    %v783 = vpack.c.b16 %v723, %v719
    %v784 = vpack.c.b16 %v724, %v720
    %v785 = vpack.c.b16 %v725, %v721
    %v786 = vpack.c.b16 %v726, %v722
    %v787 = vpack.c.b16 %v731, %v727
    %v788 = vpack.c.b16 %v732, %v728
    %v789 = vpack.c.b16 %v733, %v729
    %v790 = vpack.c.b16 %v734, %v730
    %v791 = vpack.c.b16 %v739, %v735
    %v792 = vpack.c.b16 %v740, %v736
    %v793 = vpack.c.b16 %v741, %v737
    %v794 = vpack.c.b16 %v742, %v738
    %v795 = vpack.c.b16 %v747, %v743
    %v796 = vpack.c.b16 %v748, %v744
    %v797 = vpack.c.b16 %v749, %v745
    %v798 = vpack.c.b16 %v750, %v746
    %v799 = vpack.c.b16 %v755, %v751
    %v800 = vpack.c.b16 %v756, %v752
    %v801 = vpack.c.b16 %v757, %v753
    %v802 = vpack.c.b16 %v758, %v754
    %v803 = vpack.c.b16 %v763, %v759
    %v804 = vpack.c.b16 %v764, %v760
    %v805 = vpack.c.b16 %v765, %v761
    %v806 = vpack.c.b16 %v766, %v762
    %v807 = vpack.c.b16 %v771, %v767
    %v808 = vpack.c.b16 %v772, %v768
    %v809 = vpack.c.b16 %v773, %v769
    %v810 = vpack.c.b16 %v774, %v770
    %v811 = vpack.c.b16 %v779, %v775
    %v812 = vpack.c.b16 %v780, %v776
    %v813 = vpack.c.b16 %v781, %v777
    %v814 = vpack.c.b16 %v782, %v778
    %v1103 = vunpack.c.l.b16 %v431
    %v1104 = vunpack.c.h.b16 %v431
    %v1105 = vunpack.c.l.b16 %v432
    %v1106 = vunpack.c.h.b16 %v432
    %v1107 = vunpack.c.l.b16 %v433
    %v1108 = vunpack.c.h.b16 %v433
    %v1109 = vunpack.c.l.b16 %v434
    %v1110 = vunpack.c.h.b16 %v434
    %v1111 = vunpack.c.l.b16 %v435
    %v1112 = vunpack.c.h.b16 %v435
    %v1113 = vunpack.c.l.b16 %v436
    %v1114 = vunpack.c.h.b16 %v436
    %v1115 = vunpack.c.l.b16 %v437
    %v1116 = vunpack.c.h.b16 %v437
    %v1117 = vunpack.c.l.b16 %v438
    %v1118 = vunpack.c.h.b16 %v438
    %v1119 = vunpack.c.l.b16 %v439
    %v1120 = vunpack.c.h.b16 %v439
    %v1121 = vunpack.c.l.b16 %v440
    %v1122 = vunpack.c.h.b16 %v440
    %v1123 = vunpack.c.l.b16 %v441
    %v1124 = vunpack.c.h.b16 %v441
    %v1125 = vunpack.c.l.b16 %v442
    %v1126 = vunpack.c.h.b16 %v442
    %v1127 = vunpack.c.l.b16 %v443
    %v1128 = vunpack.c.h.b16 %v443
    %v1129 = vunpack.c.l.b16 %v444
    %v1130 = vunpack.c.h.b16 %v444
    %v1131 = vunpack.c.l.b16 %v445
    %v1132 = vunpack.c.h.b16 %v445
    %v1133 = vunpack.c.l.b16 %v446
    %v1134 = vunpack.c.h.b16 %v446
    %v1135 = vunpack.c.l.b16 %v447
    %v1136 = vunpack.c.h.b16 %v447
    %v1137 = vunpack.c.l.b16 %v448
    %v1138 = vunpack.c.h.b16 %v448
    %v1139 = vunpack.c.l.b16 %v449
    %v1140 = vunpack.c.h.b16 %v449
    %v1141 = vunpack.c.l.b16 %v450
    %v1142 = vunpack.c.h.b16 %v450
    %v1143 = vunpack.c.l.b16 %v451
    %v1144 = vunpack.c.h.b16 %v451
    %v1145 = vunpack.c.l.b16 %v452
    %v1146 = vunpack.c.h.b16 %v452
    %v1147 = vunpack.c.l.b16 %v453
    %v1148 = vunpack.c.h.b16 %v453
    %v1149 = vunpack.c.l.b16 %v454
    %v1150 = vunpack.c.h.b16 %v454
    %v1151 = vunpack.c.l.b16 %v455
    %v1152 = vunpack.c.h.b16 %v455
    %v1153 = vunpack.c.l.b16 %v456
    %v1154 = vunpack.c.h.b16 %v456
    %v1155 = vunpack.c.l.b16 %v457
    %v1156 = vunpack.c.h.b16 %v457
    %v1157 = vunpack.c.l.b16 %v458
    %v1158 = vunpack.c.h.b16 %v458
    %v1159 = vunpack.c.l.b16 %v459
    %v1160 = vunpack.c.h.b16 %v459
    %v1161 = vunpack.c.l.b16 %v460
    %v1162 = vunpack.c.h.b16 %v460
    %v1163 = vunpack.c.l.b16 %v461
    %v1164 = vunpack.c.h.b16 %v461
    %v1165 = vunpack.c.l.b16 %v462
    %v1166 = vunpack.c.h.b16 %v462
    %v1167 = vunpack.c.l.b16 %v463
    %v1168 = vunpack.c.h.b16 %v463
    %v1169 = vunpack.c.l.b16 %v464
    %v1170 = vunpack.c.h.b16 %v464
    %v1171 = vunpack.c.l.b16 %v465
    %v1172 = vunpack.c.h.b16 %v465
    %v1173 = vunpack.c.l.b16 %v466
    %v1174 = vunpack.c.h.b16 %v466
    %v1175 = vunpack.c.l.b16 %v467
    %v1176 = vunpack.c.h.b16 %v467
    %v1177 = vunpack.c.l.b16 %v468
    %v1178 = vunpack.c.h.b16 %v468
    %v1179 = vunpack.c.l.b16 %v469
    %v1180 = vunpack.c.h.b16 %v469
    %v1181 = vunpack.c.l.b16 %v470
    %v1182 = vunpack.c.h.b16 %v470
    %v1183 = vunpack.c.l.b16 %v471
    %v1184 = vunpack.c.h.b16 %v471
    %v1185 = vunpack.c.l.b16 %v472
    %v1186 = vunpack.c.h.b16 %v472
    %v1187 = vunpack.c.l.b16 %v473
    %v1188 = vunpack.c.h.b16 %v473
    %v1189 = vunpack.c.l.b16 %v474
    %v1190 = vunpack.c.h.b16 %v474
    %v1191 = vunpack.c.l.b16 %v475
    %v1192 = vunpack.c.h.b16 %v475
    %v1193 = vunpack.c.l.b16 %v476
    %v1194 = vunpack.c.h.b16 %v476
    %v1195 = vunpack.c.l.b16 %v477
    %v1196 = vunpack.c.h.b16 %v477
    %v1197 = vunpack.c.l.b16 %v478
    %v1198 = vunpack.c.h.b16 %v478
    %v1199 = vunpack.c.l.b16 %v479
    %v1200 = vunpack.c.h.b16 %v479
    %v1201 = vunpack.c.l.b16 %v480
    %v1202 = vunpack.c.h.b16 %v480
    %v1203 = vunpack.c.l.b16 %v481
    %v1204 = vunpack.c.h.b16 %v481
    %v1205 = vunpack.c.l.b16 %v482
    %v1206 = vunpack.c.h.b16 %v482
    %v1207 = vunpack.c.l.b16 %v483
    %v1208 = vunpack.c.h.b16 %v483
    %v1209 = vunpack.c.l.b16 %v484
    %v1210 = vunpack.c.h.b16 %v484
    %v1211 = vunpack.c.l.b16 %v485
    %v1212 = vunpack.c.h.b16 %v485
    %v1213 = vunpack.c.l.b16 %v486
    %v1214 = vunpack.c.h.b16 %v486
    %v1215 = vunpack.c.l.b16 %v487
    %v1216 = vunpack.c.h.b16 %v487
    %v1217 = vunpack.c.l.b16 %v488
    %v1218 = vunpack.c.h.b16 %v488
    %v1219 = vunpack.c.l.b16 %v489
    %v1220 = vunpack.c.h.b16 %v489
    %v1221 = vunpack.c.l.b16 %v490
    %v1222 = vunpack.c.h.b16 %v490
    %v1223 = vunpack.c.l.b16 %v491
    %v1224 = vunpack.c.h.b16 %v491
    %v1225 = vunpack.c.l.b16 %v492
    %v1226 = vunpack.c.h.b16 %v492
    %v1227 = vunpack.c.l.b16 %v493
    %v1228 = vunpack.c.h.b16 %v493
    %v1229 = vunpack.c.l.b16 %v494
    %v1230 = vunpack.c.h.b16 %v494
    %v1231 = vunpack.c.l.b16 %v495
    %v1232 = vunpack.c.h.b16 %v495
    %v1233 = vunpack.c.l.b16 %v496
    %v1234 = vunpack.c.h.b16 %v496
    %v1235 = vunpack.c.l.b16 %v497
    %v1236 = vunpack.c.h.b16 %v497
    %v1237 = vunpack.c.l.b16 %v498
    %v1238 = vunpack.c.h.b16 %v498
    %v1239 = vunpack.c.l.b16 %v499
    %v1240 = vunpack.c.h.b16 %v499
    %v1241 = vunpack.c.l.b16 %v500
    %v1242 = vunpack.c.h.b16 %v500
    %v1243 = vunpack.c.l.b16 %v501
    %v1244 = vunpack.c.h.b16 %v501
    %v1245 = vunpack.c.l.b16 %v502
    %v1246 = vunpack.c.h.b16 %v502
    %v1247 = vunpack.c.l.b16 %v503
    %v1248 = vunpack.c.h.b16 %v503
    %v1249 = vunpack.c.l.b16 %v504
    %v1250 = vunpack.c.h.b16 %v504
    %v1251 = vunpack.c.l.b16 %v505
    %v1252 = vunpack.c.h.b16 %v505
    %v1253 = vunpack.c.l.b16 %v506
    %v1254 = vunpack.c.h.b16 %v506
    %v1255 = vunpack.c.l.b16 %v507
    %v1256 = vunpack.c.h.b16 %v507
    %v1257 = vunpack.c.l.b16 %v508
    %v1258 = vunpack.c.h.b16 %v508
    %v1259 = vunpack.c.l.b16 %v509
    %v1260 = vunpack.c.h.b16 %v509
    %v1261 = vunpack.c.l.b16 %v510
    %v1262 = vunpack.c.h.b16 %v510
    %v1263 = vunpack.c.l.b16 %v511
    %v1264 = vunpack.c.h.b16 %v511
    %v1265 = vunpack.c.l.b16 %v512
    %v1266 = vunpack.c.h.b16 %v512
    %v1267 = vunpack.c.l.b16 %v513
    %v1268 = vunpack.c.h.b16 %v513
    %v1269 = vunpack.c.l.b16 %v514
    %v1270 = vunpack.c.h.b16 %v514
    %v1271 = vunpack.c.l.b16 %v515
    %v1272 = vunpack.c.h.b16 %v515
    %v1273 = vunpack.c.l.b16 %v516
    %v1274 = vunpack.c.h.b16 %v516
    %v1275 = vunpack.c.l.b16 %v517
    %v1276 = vunpack.c.h.b16 %v517
    %v1277 = vunpack.c.l.b16 %v518
    %v1278 = vunpack.c.h.b16 %v518
    %v1279 = vunpack.c.l.b16 %v519
    %v1280 = vunpack.c.h.b16 %v519
    %v1281 = vunpack.c.l.b16 %v520
    %v1282 = vunpack.c.h.b16 %v520
    %v1283 = vunpack.c.l.b16 %v521
    %v1284 = vunpack.c.h.b16 %v521
    %v1285 = vunpack.c.l.b16 %v522
    %v1286 = vunpack.c.h.b16 %v522
    %v1287 = vunpack.c.l.b16 %v523
    %v1288 = vunpack.c.h.b16 %v523
    %v1289 = vunpack.c.l.b16 %v524
    %v1290 = vunpack.c.h.b16 %v524
    %v1291 = vunpack.c.l.b16 %v525
    %v1292 = vunpack.c.h.b16 %v525
    %v1293 = vunpack.c.l.b16 %v526
    %v1294 = vunpack.c.h.b16 %v526
    %v1295 = vunpack.c.l.b16 %v527
    %v1296 = vunpack.c.h.b16 %v527
    %v1297 = vunpack.c.l.b16 %v528
    %v1298 = vunpack.c.h.b16 %v528
    %v1299 = vunpack.c.l.b16 %v529
    %v1300 = vunpack.c.h.b16 %v529
    %v1301 = vunpack.c.l.b16 %v530
    %v1302 = vunpack.c.h.b16 %v530
    %v1303 = vunpack.c.l.b16 %v531
    %v1304 = vunpack.c.h.b16 %v531
    %v1305 = vunpack.c.l.b16 %v532
    %v1306 = vunpack.c.h.b16 %v532
    %v1307 = vunpack.c.l.b16 %v533
    %v1308 = vunpack.c.h.b16 %v533
    %v1309 = vunpack.c.l.b16 %v534
    %v1310 = vunpack.c.h.b16 %v534
    %v1311 = vunpack.c.l.b16 %v535
    %v1312 = vunpack.c.h.b16 %v535
    %v1313 = vunpack.c.l.b16 %v536
    %v1314 = vunpack.c.h.b16 %v536
    %v1315 = vunpack.c.l.b16 %v537
    %v1316 = vunpack.c.h.b16 %v537
    %v1317 = vunpack.c.l.b16 %v538
    %v1318 = vunpack.c.h.b16 %v538
    %v1319 = vunpack.c.l.b16 %v539
    %v1320 = vunpack.c.h.b16 %v539
    %v1321 = vunpack.c.l.b16 %v540
    %v1322 = vunpack.c.h.b16 %v540
    %v1323 = vunpack.c.l.b16 %v541
    %v1324 = vunpack.c.h.b16 %v541
    %v1325 = vunpack.c.l.b16 %v542
    %v1326 = vunpack.c.h.b16 %v542
    %v1327 = vunpack.c.l.b16 %v543
    %v1328 = vunpack.c.h.b16 %v543
    %v1329 = vunpack.c.l.b16 %v544
    %v1330 = vunpack.c.h.b16 %v544
    %v1331 = vunpack.c.l.b16 %v545
    %v1332 = vunpack.c.h.b16 %v545
    %v1333 = vunpack.c.l.b16 %v546
    %v1334 = vunpack.c.h.b16 %v546
    %v1335 = vunpack.c.l.b16 %v547
    %v1336 = vunpack.c.h.b16 %v547
    %v1337 = vunpack.c.l.b16 %v548
    %v1338 = vunpack.c.h.b16 %v548
    %v1339 = vunpack.c.l.b16 %v549
    %v1340 = vunpack.c.h.b16 %v549
    %v1341 = vunpack.c.l.b16 %v550
    %v1342 = vunpack.c.h.b16 %v550
    %v1343 = vunpack.c.l.b16 %v551
    %v1344 = vunpack.c.h.b16 %v551
    %v1345 = vunpack.c.l.b16 %v552
    %v1346 = vunpack.c.h.b16 %v552
    %v1347 = vunpack.c.l.b16 %v553
    %v1348 = vunpack.c.h.b16 %v553
    %v1349 = vunpack.c.l.b16 %v554
    %v1350 = vunpack.c.h.b16 %v554
    %v1351 = vunpack.c.l.b16 %v555
    %v1352 = vunpack.c.h.b16 %v555
    %v1353 = vunpack.c.l.b16 %v556
    %v1354 = vunpack.c.h.b16 %v556
    %v1355 = vunpack.c.l.b16 %v557
    %v1356 = vunpack.c.h.b16 %v557
    %v1357 = vunpack.c.l.b16 %v558
    %v1358 = vunpack.c.h.b16 %v558
    %v1359 = vunpack.c.l.b16 %v559
    %v1360 = vunpack.c.h.b16 %v559
    %v1361 = vunpack.c.l.b16 %v560
    %v1362 = vunpack.c.h.b16 %v560
    %v1363 = vunpack.c.l.b16 %v561
    %v1364 = vunpack.c.h.b16 %v561
    %v1365 = vunpack.c.l.b16 %v562
    %v1366 = vunpack.c.h.b16 %v562
    %v1367 = vunpack.c.l.b16 %v563
    %v1368 = vunpack.c.h.b16 %v563
    %v1369 = vunpack.c.l.b16 %v564
    %v1370 = vunpack.c.h.b16 %v564
    %v1371 = vunpack.c.l.b16 %v565
    %v1372 = vunpack.c.h.b16 %v565
    %v1373 = vunpack.c.l.b16 %v566
    %v1374 = vunpack.c.h.b16 %v566
    %v1375 = vunpack.c.l.b16 %v567
    %v1376 = vunpack.c.h.b16 %v567
    %v1377 = vunpack.c.l.b16 %v568
    %v1378 = vunpack.c.h.b16 %v568
    %v1379 = vunpack.c.l.b16 %v569
    %v1380 = vunpack.c.h.b16 %v569
    %v1381 = vunpack.c.l.b16 %v570
    %v1382 = vunpack.c.h.b16 %v570
    %v1383 = vunpack.c.l.b16 %v571
    %v1384 = vunpack.c.h.b16 %v571
    %v1385 = vunpack.c.l.b16 %v572
    %v1386 = vunpack.c.h.b16 %v572
    %v1387 = vunpack.c.l.b16 %v573
    %v1388 = vunpack.c.h.b16 %v573
    %v1389 = vunpack.c.l.b16 %v574
    %v1390 = vunpack.c.h.b16 %v574
    %v1391 = vunpack.c.l.b16 %v575
    %v1392 = vunpack.c.h.b16 %v575
    %v1393 = vunpack.c.l.b16 %v576
    %v1394 = vunpack.c.h.b16 %v576
    %v1395 = vunpack.c.l.b16 %v577
    %v1396 = vunpack.c.h.b16 %v577
    %v1397 = vunpack.c.l.b16 %v578
    %v1398 = vunpack.c.h.b16 %v578
    %v1399 = vunpack.c.l.b16 %v579
    %v1400 = vunpack.c.h.b16 %v579
    %v1401 = vunpack.c.l.b16 %v580
    %v1402 = vunpack.c.h.b16 %v580
    %v1403 = vunpack.c.l.b16 %v581
    %v1404 = vunpack.c.h.b16 %v581
    %v1405 = vunpack.c.l.b16 %v582
    %v1406 = vunpack.c.h.b16 %v582
    %v1407 = vunpack.c.l.b16 %v583
    %v1408 = vunpack.c.h.b16 %v583
    %v1409 = vunpack.c.l.b16 %v584
    %v1410 = vunpack.c.h.b16 %v584
    %v1411 = vunpack.c.l.b16 %v585
    %v1412 = vunpack.c.h.b16 %v585
    %v1413 = vunpack.c.l.b16 %v586
    %v1414 = vunpack.c.h.b16 %v586
    %v1415 = vunpack.c.l.b16 %v587
    %v1416 = vunpack.c.h.b16 %v587
    %v1417 = vunpack.c.l.b16 %v588
    %v1418 = vunpack.c.h.b16 %v588
    %v1419 = vunpack.c.l.b16 %v589
    %v1420 = vunpack.c.h.b16 %v589
    %v1421 = vunpack.c.l.b16 %v590
    %v1422 = vunpack.c.h.b16 %v590
    %v1423 = vunpack.c.l.b16 %v591
    %v1424 = vunpack.c.h.b16 %v591
    %v1425 = vunpack.c.l.b16 %v592
    %v1426 = vunpack.c.h.b16 %v592
    %v1427 = vunpack.c.l.b16 %v593
    %v1428 = vunpack.c.h.b16 %v593
    %v1429 = vunpack.c.l.b16 %v594
    %v1430 = vunpack.c.h.b16 %v594
    %v1431 = vunpack.c.l.b16 %v595
    %v1432 = vunpack.c.h.b16 %v595
    %v1433 = vunpack.c.l.b16 %v596
    %v1434 = vunpack.c.h.b16 %v596
    %v1435 = vunpack.c.l.b16 %v597
    %v1436 = vunpack.c.h.b16 %v597
    %v1437 = vunpack.c.l.b16 %v598
    %v1438 = vunpack.c.h.b16 %v598
    %v1439 = vunpack.c.l.b16 %v599
    %v1440 = vunpack.c.h.b16 %v599
    %v1441 = vunpack.c.l.b16 %v600
    %v1442 = vunpack.c.h.b16 %v600
    %v1443 = vunpack.c.l.b16 %v601
    %v1444 = vunpack.c.h.b16 %v601
    %v1445 = vunpack.c.l.b16 %v602
    %v1446 = vunpack.c.h.b16 %v602
    %v1447 = vunpack.c.l.b16 %v603
    %v1448 = vunpack.c.h.b16 %v603
    %v1449 = vunpack.c.l.b16 %v604
    %v1450 = vunpack.c.h.b16 %v604
    %v1451 = vunpack.c.l.b16 %v605
    %v1452 = vunpack.c.h.b16 %v605
    %v1453 = vunpack.c.l.b16 %v606
    %v1454 = vunpack.c.h.b16 %v606
    %v1455 = vunpack.c.l.b16 %v607
    %v1456 = vunpack.c.h.b16 %v607
    %v1457 = vunpack.c.l.b16 %v608
    %v1458 = vunpack.c.h.b16 %v608
    %v1459 = vunpack.c.l.b16 %v609
    %v1460 = vunpack.c.h.b16 %v609
    %v1461 = vunpack.c.l.b16 %v610
    %v1462 = vunpack.c.h.b16 %v610
    %v1463 = vunpack.c.l.b16 %v611
    %v1464 = vunpack.c.h.b16 %v611
    %v1465 = vunpack.c.l.b16 %v612
    %v1466 = vunpack.c.h.b16 %v612
    %v1467 = vunpack.c.l.b16 %v613
    %v1468 = vunpack.c.h.b16 %v613
    %v1469 = vunpack.c.l.b16 %v614
    %v1470 = vunpack.c.h.b16 %v614
    %v1471 = vunpack.c.l.b16 %v615
    %v1472 = vunpack.c.h.b16 %v615
    %v1473 = vunpack.c.l.b16 %v616
    %v1474 = vunpack.c.h.b16 %v616
    %v1475 = vunpack.c.l.b16 %v617
    %v1476 = vunpack.c.h.b16 %v617
    %v1477 = vunpack.c.l.b16 %v618
    %v1478 = vunpack.c.h.b16 %v618
    %v1479 = vunpack.c.l.b16 %v619
    %v1480 = vunpack.c.h.b16 %v619
    %v1481 = vunpack.c.l.b16 %v620
    %v1482 = vunpack.c.h.b16 %v620
    %v1483 = vunpack.c.l.b16 %v621
    %v1484 = vunpack.c.h.b16 %v621
    %v1485 = vunpack.c.l.b16 %v622
    %v1486 = vunpack.c.h.b16 %v622
    %v1487 = vunpack.c.l.b16 %v623
    %v1488 = vunpack.c.h.b16 %v623
    %v1489 = vunpack.c.l.b16 %v624
    %v1490 = vunpack.c.h.b16 %v624
    %v1491 = vunpack.c.l.b16 %v625
    %v1492 = vunpack.c.h.b16 %v625
    %v1493 = vunpack.c.l.b16 %v626
    %v1494 = vunpack.c.h.b16 %v626
    %v1495 = vunpack.c.l.b16 %v627
    %v1496 = vunpack.c.h.b16 %v627
    %v1497 = vunpack.c.l.b16 %v628
    %v1498 = vunpack.c.h.b16 %v628
    %v1499 = vunpack.c.l.b16 %v629
    %v1500 = vunpack.c.h.b16 %v629
    %v1501 = vunpack.c.l.b16 %v630
    %v1502 = vunpack.c.h.b16 %v630
    %v1503 = vunpack.c.l.b16 %v631
    %v1504 = vunpack.c.h.b16 %v631
    %v1505 = vunpack.c.l.b16 %v632
    %v1506 = vunpack.c.h.b16 %v632
    %v1507 = vunpack.c.l.b16 %v633
    %v1508 = vunpack.c.h.b16 %v633
    %v1509 = vunpack.c.l.b16 %v634
    %v1510 = vunpack.c.h.b16 %v634
    %v1511 = vunpack.c.l.b16 %v635
    %v1512 = vunpack.c.h.b16 %v635
    %v1513 = vunpack.c.l.b16 %v636
    %v1514 = vunpack.c.h.b16 %v636
    %v1515 = vunpack.c.l.b16 %v637
    %v1516 = vunpack.c.h.b16 %v637
    %v1517 = vunpack.c.l.b16 %v638
    %v1518 = vunpack.c.h.b16 %v638
    %v1519 = vunpack.c.l.b16 %v639
    %v1520 = vunpack.c.h.b16 %v639
    %v1521 = vunpack.c.l.b16 %v640
    %v1522 = vunpack.c.h.b16 %v640
    %v1523 = vunpack.c.l.b16 %v641
    %v1524 = vunpack.c.h.b16 %v641
    %v1525 = vunpack.c.l.b16 %v642
    %v1526 = vunpack.c.h.b16 %v642
    %v1527 = vunpack.c.l.b16 %v643
    %v1528 = vunpack.c.h.b16 %v643
    %v1529 = vunpack.c.l.b16 %v644
    %v1530 = vunpack.c.h.b16 %v644
    %v1531 = vunpack.c.l.b16 %v645
    %v1532 = vunpack.c.h.b16 %v645
    %v1533 = vunpack.c.l.b16 %v646
    %v1534 = vunpack.c.h.b16 %v646
    %v1535 = vunpack.c.l.b16 %v647
    %v1536 = vunpack.c.h.b16 %v647
    %v1537 = vunpack.c.l.b16 %v648
    %v1538 = vunpack.c.h.b16 %v648
    %v1539 = vunpack.c.l.b16 %v649
    %v1540 = vunpack.c.h.b16 %v649
    %v1541 = vunpack.c.l.b16 %v650
    %v1542 = vunpack.c.h.b16 %v650
    %v1543 = vunpack.c.l.b16 %v651
    %v1544 = vunpack.c.h.b16 %v651
    %v1545 = vunpack.c.l.b16 %v652
    %v1546 = vunpack.c.h.b16 %v652
    %v1547 = vunpack.c.l.b16 %v653
    %v1548 = vunpack.c.h.b16 %v653
    %v1549 = vunpack.c.l.b16 %v654
    %v1550 = vunpack.c.h.b16 %v654
    %v1551 = vunpack.c.l.b16 %v655
    %v1552 = vunpack.c.h.b16 %v655
    %v1553 = vunpack.c.l.b16 %v656
    %v1554 = vunpack.c.h.b16 %v656
    %v1555 = vunpack.c.l.b16 %v657
    %v1556 = vunpack.c.h.b16 %v657
    %v1557 = vunpack.c.l.b16 %v658
    %v1558 = vunpack.c.h.b16 %v658
    %v1559 = vunpack.c.l.b16 %v659
    %v1560 = vunpack.c.h.b16 %v659
    %v1561 = vunpack.c.l.b16 %v660
    %v1562 = vunpack.c.h.b16 %v660
    %v1563 = vunpack.c.l.b16 %v661
    %v1564 = vunpack.c.h.b16 %v661
    %v1565 = vunpack.c.l.b16 %v662
    %v1566 = vunpack.c.h.b16 %v662
    %v1567 = vunpack.c.l.b16 %v663
    %v1568 = vunpack.c.h.b16 %v663
    %v1569 = vunpack.c.l.b16 %v664
    %v1570 = vunpack.c.h.b16 %v664
    %v1571 = vunpack.c.l.b16 %v665
    %v1572 = vunpack.c.h.b16 %v665
    %v1573 = vunpack.c.l.b16 %v666
    %v1574 = vunpack.c.h.b16 %v666
    %v1575 = vunpack.c.l.b16 %v667
    %v1576 = vunpack.c.h.b16 %v667
    %v1577 = vunpack.c.l.b16 %v668
    %v1578 = vunpack.c.h.b16 %v668
    %v1579 = vunpack.c.l.b16 %v669
    %v1580 = vunpack.c.h.b16 %v669
    %v1581 = vunpack.c.l.b16 %v670
    %v1582 = vunpack.c.h.b16 %v670
    %v1583 = vunpack.c.l.b16 %v671
    %v1584 = vunpack.c.h.b16 %v671
    %v1585 = vunpack.c.l.b16 %v672
    %v1586 = vunpack.c.h.b16 %v672
    %v1587 = vunpack.c.l.b16 %v673
    %v1588 = vunpack.c.h.b16 %v673
    %v1589 = vunpack.c.l.b16 %v674
    %v1590 = vunpack.c.h.b16 %v674
    %v1591 = vunpack.c.l.b16 %v675
    %v1592 = vunpack.c.h.b16 %v675
    %v1593 = vunpack.c.l.b16 %v676
    %v1594 = vunpack.c.h.b16 %v676
    %v1595 = vunpack.c.l.b16 %v677
    %v1596 = vunpack.c.h.b16 %v677
    %v1597 = vunpack.c.l.b16 %v678
    %v1598 = vunpack.c.h.b16 %v678
    %v1599 = vunpack.c.l.b16 %v679
    %v1600 = vunpack.c.h.b16 %v679
    %v1601 = vunpack.c.l.b16 %v680
    %v1602 = vunpack.c.h.b16 %v680
    %v1603 = vunpack.c.l.b16 %v681
    %v1604 = vunpack.c.h.b16 %v681
    %v1605 = vunpack.c.l.b16 %v682
    %v1606 = vunpack.c.h.b16 %v682
    %v1607 = vunpack.c.l.b16 %v683
    %v1608 = vunpack.c.h.b16 %v683
    %v1609 = vunpack.c.l.b16 %v684
    %v1610 = vunpack.c.h.b16 %v684
    %v1611 = vunpack.c.l.b16 %v685
    %v1612 = vunpack.c.h.b16 %v685
    %v1613 = vunpack.c.l.b16 %v686
    %v1614 = vunpack.c.h.b16 %v686
    %v1615 = vpack.c.b16 %v1111, %v1103
    %v1616 = vpack.c.b16 %v1112, %v1104
    %v1617 = vpack.c.b16 %v1113, %v1105
    %v1618 = vpack.c.b16 %v1114, %v1106
    %v1619 = vpack.c.b16 %v1115, %v1107
    %v1620 = vpack.c.b16 %v1116, %v1108
    %v1621 = vpack.c.b16 %v1117, %v1109
    %v1622 = vpack.c.b16 %v1118, %v1110
    %v1623 = vpack.c.b16 %v1127, %v1119
    %v1624 = vpack.c.b16 %v1128, %v1120
    %v1625 = vpack.c.b16 %v1129, %v1121
    %v1626 = vpack.c.b16 %v1130, %v1122
    %v1627 = vpack.c.b16 %v1131, %v1123
    %v1628 = vpack.c.b16 %v1132, %v1124
    %v1629 = vpack.c.b16 %v1133, %v1125
    %v1630 = vpack.c.b16 %v1134, %v1126
    %v1631 = vpack.c.b16 %v1143, %v1135
    %v1632 = vpack.c.b16 %v1144, %v1136
    %v1633 = vpack.c.b16 %v1145, %v1137
    %v1634 = vpack.c.b16 %v1146, %v1138
    %v1635 = vpack.c.b16 %v1147, %v1139
    %v1636 = vpack.c.b16 %v1148, %v1140
    %v1637 = vpack.c.b16 %v1149, %v1141
    %v1638 = vpack.c.b16 %v1150, %v1142
    %v1639 = vpack.c.b16 %v1159, %v1151
    %v1640 = vpack.c.b16 %v1160, %v1152
    %v1641 = vpack.c.b16 %v1161, %v1153
    %v1642 = vpack.c.b16 %v1162, %v1154
    %v1643 = vpack.c.b16 %v1163, %v1155
    %v1644 = vpack.c.b16 %v1164, %v1156
    %v1645 = vpack.c.b16 %v1165, %v1157
    %v1646 = vpack.c.b16 %v1166, %v1158
    %v1647 = vpack.c.b16 %v1175, %v1167
    %v1648 = vpack.c.b16 %v1176, %v1168
    %v1649 = vpack.c.b16 %v1177, %v1169
    %v1650 = vpack.c.b16 %v1178, %v1170
    %v1651 = vpack.c.b16 %v1179, %v1171
    %v1652 = vpack.c.b16 %v1180, %v1172
    %v1653 = vpack.c.b16 %v1181, %v1173
    %v1654 = vpack.c.b16 %v1182, %v1174
    %v1655 = vpack.c.b16 %v1191, %v1183
    %v1656 = vpack.c.b16 %v1192, %v1184
    %v1657 = vpack.c.b16 %v1193, %v1185
    %v1658 = vpack.c.b16 %v1194, %v1186
    %v1659 = vpack.c.b16 %v1195, %v1187
    %v1660 = vpack.c.b16 %v1196, %v1188
    %v1661 = vpack.c.b16 %v1197, %v1189
    %v1662 = vpack.c.b16 %v1198, %v1190
    %v1663 = vpack.c.b16 %v1207, %v1199
    %v1664 = vpack.c.b16 %v1208, %v1200
    %v1665 = vpack.c.b16 %v1209, %v1201
    %v1666 = vpack.c.b16 %v1210, %v1202
    %v1667 = vpack.c.b16 %v1211, %v1203
    %v1668 = vpack.c.b16 %v1212, %v1204
    %v1669 = vpack.c.b16 %v1213, %v1205
    %v1670 = vpack.c.b16 %v1214, %v1206
    %v1671 = vpack.c.b16 %v1223, %v1215
    %v1672 = vpack.c.b16 %v1224, %v1216
    %v1673 = vpack.c.b16 %v1225, %v1217
    %v1674 = vpack.c.b16 %v1226, %v1218
    %v1675 = vpack.c.b16 %v1227, %v1219
    %v1676 = vpack.c.b16 %v1228, %v1220
    %v1677 = vpack.c.b16 %v1229, %v1221
    %v1678 = vpack.c.b16 %v1230, %v1222
    %v1679 = vpack.c.b16 %v1239, %v1231
    %v1680 = vpack.c.b16 %v1240, %v1232
    %v1681 = vpack.c.b16 %v1241, %v1233
    %v1682 = vpack.c.b16 %v1242, %v1234
    %v1683 = vpack.c.b16 %v1243, %v1235
    %v1684 = vpack.c.b16 %v1244, %v1236
    %v1685 = vpack.c.b16 %v1245, %v1237
    %v1686 = vpack.c.b16 %v1246, %v1238
    %v1687 = vpack.c.b16 %v1255, %v1247
    %v1688 = vpack.c.b16 %v1256, %v1248
    %v1689 = vpack.c.b16 %v1257, %v1249
    %v1690 = vpack.c.b16 %v1258, %v1250
    %v1691 = vpack.c.b16 %v1259, %v1251
    %v1692 = vpack.c.b16 %v1260, %v1252
    %v1693 = vpack.c.b16 %v1261, %v1253
    %v1694 = vpack.c.b16 %v1262, %v1254
    %v1695 = vpack.c.b16 %v1271, %v1263
    %v1696 = vpack.c.b16 %v1272, %v1264
    %v1697 = vpack.c.b16 %v1273, %v1265
    %v1698 = vpack.c.b16 %v1274, %v1266
    %v1699 = vpack.c.b16 %v1275, %v1267
    %v1700 = vpack.c.b16 %v1276, %v1268
    %v1701 = vpack.c.b16 %v1277, %v1269
    %v1702 = vpack.c.b16 %v1278, %v1270
    %v1703 = vpack.c.b16 %v1287, %v1279
    %v1704 = vpack.c.b16 %v1288, %v1280
    %v1705 = vpack.c.b16 %v1289, %v1281
    %v1706 = vpack.c.b16 %v1290, %v1282
    %v1707 = vpack.c.b16 %v1291, %v1283
    %v1708 = vpack.c.b16 %v1292, %v1284
    %v1709 = vpack.c.b16 %v1293, %v1285
    %v1710 = vpack.c.b16 %v1294, %v1286
    %v1711 = vpack.c.b16 %v1303, %v1295
    %v1712 = vpack.c.b16 %v1304, %v1296
    %v1713 = vpack.c.b16 %v1305, %v1297
    %v1714 = vpack.c.b16 %v1306, %v1298
    %v1715 = vpack.c.b16 %v1307, %v1299
    %v1716 = vpack.c.b16 %v1308, %v1300
    %v1717 = vpack.c.b16 %v1309, %v1301
    %v1718 = vpack.c.b16 %v1310, %v1302
    %v1719 = vpack.c.b16 %v1319, %v1311
    %v1720 = vpack.c.b16 %v1320, %v1312
    %v1721 = vpack.c.b16 %v1321, %v1313
    %v1722 = vpack.c.b16 %v1322, %v1314
    %v1723 = vpack.c.b16 %v1323, %v1315
    %v1724 = vpack.c.b16 %v1324, %v1316
    %v1725 = vpack.c.b16 %v1325, %v1317
    %v1726 = vpack.c.b16 %v1326, %v1318
    %v1727 = vpack.c.b16 %v1335, %v1327
    %v1728 = vpack.c.b16 %v1336, %v1328
    %v1729 = vpack.c.b16 %v1337, %v1329
    %v1730 = vpack.c.b16 %v1338, %v1330
    %v1731 = vpack.c.b16 %v1339, %v1331
    %v1732 = vpack.c.b16 %v1340, %v1332
    %v1733 = vpack.c.b16 %v1341, %v1333
    %v1734 = vpack.c.b16 %v1342, %v1334
    %v1735 = vpack.c.b16 %v1351, %v1343
    %v1736 = vpack.c.b16 %v1352, %v1344
    %v1737 = vpack.c.b16 %v1353, %v1345
    %v1738 = vpack.c.b16 %v1354, %v1346
    %v1739 = vpack.c.b16 %v1355, %v1347
    %v1740 = vpack.c.b16 %v1356, %v1348
    %v1741 = vpack.c.b16 %v1357, %v1349
    %v1742 = vpack.c.b16 %v1358, %v1350
    %v1743 = vpack.c.b16 %v1367, %v1359
    %v1744 = vpack.c.b16 %v1368, %v1360
    %v1745 = vpack.c.b16 %v1369, %v1361
    %v1746 = vpack.c.b16 %v1370, %v1362
    %v1747 = vpack.c.b16 %v1371, %v1363
    %v1748 = vpack.c.b16 %v1372, %v1364
    %v1749 = vpack.c.b16 %v1373, %v1365
    %v1750 = vpack.c.b16 %v1374, %v1366
    %v1751 = vpack.c.b16 %v1383, %v1375
    %v1752 = vpack.c.b16 %v1384, %v1376
    %v1753 = vpack.c.b16 %v1385, %v1377
    %v1754 = vpack.c.b16 %v1386, %v1378
    %v1755 = vpack.c.b16 %v1387, %v1379
    %v1756 = vpack.c.b16 %v1388, %v1380
    %v1757 = vpack.c.b16 %v1389, %v1381
    %v1758 = vpack.c.b16 %v1390, %v1382
    %v1759 = vpack.c.b16 %v1399, %v1391
    %v1760 = vpack.c.b16 %v1400, %v1392
    %v1761 = vpack.c.b16 %v1401, %v1393
    %v1762 = vpack.c.b16 %v1402, %v1394
    %v1763 = vpack.c.b16 %v1403, %v1395
    %v1764 = vpack.c.b16 %v1404, %v1396
    %v1765 = vpack.c.b16 %v1405, %v1397
    %v1766 = vpack.c.b16 %v1406, %v1398
    %v1767 = vpack.c.b16 %v1415, %v1407
    %v1768 = vpack.c.b16 %v1416, %v1408
    %v1769 = vpack.c.b16 %v1417, %v1409
    %v1770 = vpack.c.b16 %v1418, %v1410
    %v1771 = vpack.c.b16 %v1419, %v1411
    %v1772 = vpack.c.b16 %v1420, %v1412
    %v1773 = vpack.c.b16 %v1421, %v1413
    %v1774 = vpack.c.b16 %v1422, %v1414
    %v1775 = vpack.c.b16 %v1431, %v1423
    %v1776 = vpack.c.b16 %v1432, %v1424
    %v1777 = vpack.c.b16 %v1433, %v1425
    %v1778 = vpack.c.b16 %v1434, %v1426
    %v1779 = vpack.c.b16 %v1435, %v1427
    %v1780 = vpack.c.b16 %v1436, %v1428
    %v1781 = vpack.c.b16 %v1437, %v1429
    %v1782 = vpack.c.b16 %v1438, %v1430
    %v1783 = vpack.c.b16 %v1447, %v1439
    %v1784 = vpack.c.b16 %v1448, %v1440
    %v1785 = vpack.c.b16 %v1449, %v1441
    %v1786 = vpack.c.b16 %v1450, %v1442
    %v1787 = vpack.c.b16 %v1451, %v1443
    %v1788 = vpack.c.b16 %v1452, %v1444
    %v1789 = vpack.c.b16 %v1453, %v1445
    %v1790 = vpack.c.b16 %v1454, %v1446
    %v1791 = vpack.c.b16 %v1463, %v1455
    %v1792 = vpack.c.b16 %v1464, %v1456
    %v1793 = vpack.c.b16 %v1465, %v1457
    %v1794 = vpack.c.b16 %v1466, %v1458
    %v1795 = vpack.c.b16 %v1467, %v1459
    %v1796 = vpack.c.b16 %v1468, %v1460
    %v1797 = vpack.c.b16 %v1469, %v1461
    %v1798 = vpack.c.b16 %v1470, %v1462
    %v1799 = vpack.c.b16 %v1479, %v1471
    %v1800 = vpack.c.b16 %v1480, %v1472
    %v1801 = vpack.c.b16 %v1481, %v1473
    %v1802 = vpack.c.b16 %v1482, %v1474
    %v1803 = vpack.c.b16 %v1483, %v1475
    %v1804 = vpack.c.b16 %v1484, %v1476
    %v1805 = vpack.c.b16 %v1485, %v1477
    %v1806 = vpack.c.b16 %v1486, %v1478
    %v1807 = vpack.c.b16 %v1495, %v1487
    %v1808 = vpack.c.b16 %v1496, %v1488
    %v1809 = vpack.c.b16 %v1497, %v1489
    %v1810 = vpack.c.b16 %v1498, %v1490
    %v1811 = vpack.c.b16 %v1499, %v1491
    %v1812 = vpack.c.b16 %v1500, %v1492
    %v1813 = vpack.c.b16 %v1501, %v1493
    %v1814 = vpack.c.b16 %v1502, %v1494
    %v1815 = vpack.c.b16 %v1511, %v1503
    %v1816 = vpack.c.b16 %v1512, %v1504
    %v1817 = vpack.c.b16 %v1513, %v1505
    %v1818 = vpack.c.b16 %v1514, %v1506
    %v1819 = vpack.c.b16 %v1515, %v1507
    %v1820 = vpack.c.b16 %v1516, %v1508
    %v1821 = vpack.c.b16 %v1517, %v1509
    %v1822 = vpack.c.b16 %v1518, %v1510
    %v1823 = vpack.c.b16 %v1527, %v1519
    %v1824 = vpack.c.b16 %v1528, %v1520
    %v1825 = vpack.c.b16 %v1529, %v1521
    %v1826 = vpack.c.b16 %v1530, %v1522
    %v1827 = vpack.c.b16 %v1531, %v1523
    %v1828 = vpack.c.b16 %v1532, %v1524
    %v1829 = vpack.c.b16 %v1533, %v1525
    %v1830 = vpack.c.b16 %v1534, %v1526
    %v1831 = vpack.c.b16 %v1543, %v1535
    %v1832 = vpack.c.b16 %v1544, %v1536
    %v1833 = vpack.c.b16 %v1545, %v1537
    %v1834 = vpack.c.b16 %v1546, %v1538
    %v1835 = vpack.c.b16 %v1547, %v1539
    %v1836 = vpack.c.b16 %v1548, %v1540
    %v1837 = vpack.c.b16 %v1549, %v1541
    %v1838 = vpack.c.b16 %v1550, %v1542
    %v1839 = vpack.c.b16 %v1559, %v1551
    %v1840 = vpack.c.b16 %v1560, %v1552
    %v1841 = vpack.c.b16 %v1561, %v1553
    %v1842 = vpack.c.b16 %v1562, %v1554
    %v1843 = vpack.c.b16 %v1563, %v1555
    %v1844 = vpack.c.b16 %v1564, %v1556
    %v1845 = vpack.c.b16 %v1565, %v1557
    %v1846 = vpack.c.b16 %v1566, %v1558
    %v1847 = vpack.c.b16 %v1575, %v1567
    %v1848 = vpack.c.b16 %v1576, %v1568
    %v1849 = vpack.c.b16 %v1577, %v1569
    %v1850 = vpack.c.b16 %v1578, %v1570
    %v1851 = vpack.c.b16 %v1579, %v1571
    %v1852 = vpack.c.b16 %v1580, %v1572
    %v1853 = vpack.c.b16 %v1581, %v1573
    %v1854 = vpack.c.b16 %v1582, %v1574
    %v1855 = vpack.c.b16 %v1591, %v1583
    %v1856 = vpack.c.b16 %v1592, %v1584
    %v1857 = vpack.c.b16 %v1593, %v1585
    %v1858 = vpack.c.b16 %v1594, %v1586
    %v1859 = vpack.c.b16 %v1595, %v1587
    %v1860 = vpack.c.b16 %v1596, %v1588
    %v1861 = vpack.c.b16 %v1597, %v1589
    %v1862 = vpack.c.b16 %v1598, %v1590
    %v1863 = vpack.c.b16 %v1607, %v1599
    %v1864 = vpack.c.b16 %v1608, %v1600
    %v1865 = vpack.c.b16 %v1609, %v1601
    %v1866 = vpack.c.b16 %v1610, %v1602
    %v1867 = vpack.c.b16 %v1611, %v1603
    %v1868 = vpack.c.b16 %v1612, %v1604
    %v1869 = vpack.c.b16 %v1613, %v1605
    %v1870 = vpack.c.b16 %v1614, %v1606
    %2127 = vmatprep.subr.bf16.mxu0 %v1672
    %2128 = vmatpush1.bf16.msra.mxu0 %v1671
    %2129 = vmatprep.subr.bf16.mxu0 %v1664
    %2130 = vmatpush1.bf16.msra.mxu0 %v1663
    %2131 = vmatprep.subr.bf16.mxu0 %v1656
    %2132 = vmatpush1.bf16.msra.mxu0 %v1655
    %2133 = vmatprep.subr.bf16.mxu0 %v1648
    %2134 = vmatpush1.bf16.msra.mxu0 %v1647
    %2135 = vmatprep.subr.bf16.mxu0 %v1640
    %2136 = vmatpush1.bf16.msra.mxu0 %v1639
    %2137 = vmatprep.subr.bf16.mxu0 %v1632
    %2138 = vmatpush1.bf16.msra.mxu0 %v1631
    %2139 = vmatprep.subr.bf16.mxu0 %v1624
    %2140 = vmatpush1.bf16.msra.mxu0 %v1623
    %2141 = vmatprep.subr.bf16.mxu0 %v1616
    %2142 = vmatpush1.bf16.msra.mxu0 %v1615
    %2143 = vmatprep.subr.bf16.mxu0 %v1736
    %2144 = vmatpush2.bf16.msra.mxu0 %v1735
    %2145 = vmatprep.subr.bf16.mxu0 %v1728
    %2146 = vmatpush2.bf16.msra.mxu0 %v1727
    %2147 = vmatprep.subr.bf16.mxu0 %v1720
    %2148 = vmatpush2.bf16.msra.mxu0 %v1719
    %2149 = vmatprep.subr.bf16.mxu0 %v1712
    %2150 = vmatpush2.bf16.msra.mxu0 %v1711
    %2151 = vmatprep.subr.bf16.mxu0 %v1704
    %2152 = vmatpush2.bf16.msra.mxu0 %v1703
    %2153 = vmatprep.subr.bf16.mxu0 %v1696
    %2154 = vmatpush2.bf16.msra.mxu0 %v1695
    %2155 = vmatprep.subr.bf16.mxu0 %v1688
    %2156 = vmatpush2.bf16.msra.mxu0 %v1687
    %2157 = vmatprep.subr.bf16.mxu0 %v1680
    %2158 = vmatpush2.bf16.msra.mxu0 %v1679
    %2159 = vmatprep.mubr.bf16.mxu0 %v784
    %2160 = vmatmul.mubr.bf16.gmra.mxu0 %v783
    %v2161 = vpop.f32.mrf.mxu0
    %v2162 = vadd.f32 0.0, %v2161
    %v2163 = vpop.f32.mrf.mxu0
    %v2164 = vadd.f32 0.0, %v2163
    %v2165 = vpop.f32.mrf.mxu0
    %v2166 = vadd.f32 0.0, %v2165
    %v2167 = vpop.f32.mrf.mxu0
    %v2168 = vadd.f32 0.0, %v2167
    %2169 = vmatprep.mubr.bf16.mxu0 %v788
    %2170 = vmatmul.mubr.bf16.gmra.mxu0 %v787
    %v2171 = vpop.f32.mrf.mxu0
    %v2172 = vadd.f32 0.0, %v2171
    %v2173 = vpop.f32.mrf.mxu0
    %v2174 = vadd.f32 0.0, %v2173
    %v2175 = vpop.f32.mrf.mxu0
    %v2176 = vadd.f32 0.0, %v2175
    %v2177 = vpop.f32.mrf.mxu0
    %v2178 = vadd.f32 0.0, %v2177
    %2179 = vmatprep.mubr.bf16.mxu0 %v792
    %2180 = vmatmul.mubr.bf16.gmra.mxu0 %v791
    %v2181 = vpop.f32.mrf.mxu0
    %v2182 = vadd.f32 0.0, %v2181
    %v2183 = vpop.f32.mrf.mxu0
    %v2184 = vadd.f32 0.0, %v2183
    %v2185 = vpop.f32.mrf.mxu0
    %v2186 = vadd.f32 0.0, %v2185
    %v2187 = vpop.f32.mrf.mxu0
    %v2188 = vadd.f32 0.0, %v2187
    %2189 = vmatprep.mubr.bf16.mxu0 %v796
    %2190 = vmatmul.mubr.bf16.gmra.mxu0 %v795
    %v2191 = vpop.f32.mrf.mxu0
    %v2192 = vadd.f32 0.0, %v2191
    %v2193 = vpop.f32.mrf.mxu0
    %v2194 = vadd.f32 0.0, %v2193
    %v2195 = vpop.f32.mrf.mxu0
    %v2196 = vadd.f32 0.0, %v2195
    %v2197 = vpop.f32.mrf.mxu0
    %v2198 = vadd.f32 0.0, %v2197
    %2199 = vmatprep.mubr.bf16.mxu0 %v800
    %2200 = vmatmul.mubr.bf16.gmra.mxu0 %v799
    %v2201 = vpop.f32.mrf.mxu0
    %v2202 = vadd.f32 0.0, %v2201
    %v2203 = vpop.f32.mrf.mxu0
    %v2204 = vadd.f32 0.0, %v2203
    %v2205 = vpop.f32.mrf.mxu0
    %v2206 = vadd.f32 0.0, %v2205
    %v2207 = vpop.f32.mrf.mxu0
    %v2208 = vadd.f32 0.0, %v2207
    %2209 = vmatprep.mubr.bf16.mxu0 %v804
    %2210 = vmatmul.mubr.bf16.gmra.mxu0 %v803
    %v2211 = vpop.f32.mrf.mxu0
    %v2212 = vadd.f32 0.0, %v2211
    %v2213 = vpop.f32.mrf.mxu0
    %v2214 = vadd.f32 0.0, %v2213
    %v2215 = vpop.f32.mrf.mxu0
    %v2216 = vadd.f32 0.0, %v2215
    %v2217 = vpop.f32.mrf.mxu0
    %v2218 = vadd.f32 0.0, %v2217
    %2219 = vmatprep.mubr.bf16.mxu0 %v808
    %2220 = vmatmul.mubr.bf16.gmra.mxu0 %v807
    %v2221 = vpop.f32.mrf.mxu0
    %v2222 = vadd.f32 0.0, %v2221
    %v2223 = vpop.f32.mrf.mxu0
    %v2224 = vadd.f32 0.0, %v2223
    %v2225 = vpop.f32.mrf.mxu0
    %v2226 = vadd.f32 0.0, %v2225
    %v2227 = vpop.f32.mrf.mxu0
    %v2228 = vadd.f32 0.0, %v2227
    %2229 = vmatprep.mubr.bf16.mxu0 %v812
    %2230 = vmatmul.mubr.bf16.gmra.mxu0 %v811
    %v2231 = vpop.f32.mrf.mxu0
    %v2232 = vadd.f32 0.0, %v2231
    %v2233 = vpop.f32.mrf.mxu0
    %v2234 = vadd.f32 0.0, %v2233
    %v2235 = vpop.f32.mrf.mxu0
    %v2236 = vadd.f32 0.0, %v2235
    %v2237 = vpop.f32.mrf.mxu0
    %v2238 = vadd.f32 0.0, %v2237
    %2239 = vdwg.mxu0
    %2240 = vmatprep.subr.bf16.mxu0 %v1800
    %2241 = vmatpush1.bf16.msra.mxu0 %v1799
    %2242 = vmatprep.subr.bf16.mxu0 %v1792
    %2243 = vmatpush1.bf16.msra.mxu0 %v1791
    %2244 = vmatprep.subr.bf16.mxu0 %v1784
    %2245 = vmatpush1.bf16.msra.mxu0 %v1783
    %2246 = vmatprep.subr.bf16.mxu0 %v1776
    %2247 = vmatpush1.bf16.msra.mxu0 %v1775
    %2248 = vmatprep.subr.bf16.mxu0 %v1768
    %2249 = vmatpush1.bf16.msra.mxu0 %v1767
    %2250 = vmatprep.subr.bf16.mxu0 %v1760
    %2251 = vmatpush1.bf16.msra.mxu0 %v1759
    %2252 = vmatprep.subr.bf16.mxu0 %v1752
    %2253 = vmatpush1.bf16.msra.mxu0 %v1751
    %2254 = vmatprep.subr.bf16.mxu0 %v1744
    %2255 = vmatpush1.bf16.msra.mxu0 %v1743
    %2256 = vmatprep.subr.bf16.mxu0 %v1864
    %2257 = vmatpush2.bf16.msra.mxu0 %v1863
    %2258 = vmatprep.subr.bf16.mxu0 %v1856
    %2259 = vmatpush2.bf16.msra.mxu0 %v1855
    %2260 = vmatprep.subr.bf16.mxu0 %v1848
    %2261 = vmatpush2.bf16.msra.mxu0 %v1847
    %2262 = vmatprep.subr.bf16.mxu0 %v1840
    %2263 = vmatpush2.bf16.msra.mxu0 %v1839
    %2264 = vmatprep.subr.bf16.mxu0 %v1832
    %2265 = vmatpush2.bf16.msra.mxu0 %v1831
    %2266 = vmatprep.subr.bf16.mxu0 %v1824
    %2267 = vmatpush2.bf16.msra.mxu0 %v1823
    %2268 = vmatprep.subr.bf16.mxu0 %v1816
    %2269 = vmatpush2.bf16.msra.mxu0 %v1815
    %2270 = vmatprep.subr.bf16.mxu0 %v1808
    %2271 = vmatpush2.bf16.msra.mxu0 %v1807
    %2272 = vmatprep.mubr.bf16.mxu0 %v786
    %2273 = vmatmul.mubr.bf16.gmra.mxu0 %v785
    %v2274 = vpop.f32.mrf.mxu0
    %v2275 = vadd.f32 %v2162, %v2274
    %v2276 = vpop.f32.mrf.mxu0
    %v2277 = vadd.f32 %v2164, %v2276
    %v2278 = vpop.f32.mrf.mxu0
    %v2279 = vadd.f32 %v2166, %v2278
    %v2280 = vpop.f32.mrf.mxu0
    %v2281 = vadd.f32 %v2168, %v2280
    %2282 = vmatprep.mubr.bf16.mxu0 %v790
    %2283 = vmatmul.mubr.bf16.gmra.mxu0 %v789
    %v2284 = vpop.f32.mrf.mxu0
    %v2285 = vadd.f32 %v2172, %v2284
    %v2286 = vpop.f32.mrf.mxu0
    %v2287 = vadd.f32 %v2174, %v2286
    %v2288 = vpop.f32.mrf.mxu0
    %v2289 = vadd.f32 %v2176, %v2288
    %v2290 = vpop.f32.mrf.mxu0
    %v2291 = vadd.f32 %v2178, %v2290
    %2292 = vmatprep.mubr.bf16.mxu0 %v794
    %2293 = vmatmul.mubr.bf16.gmra.mxu0 %v793
    %v2294 = vpop.f32.mrf.mxu0
    %v2295 = vadd.f32 %v2182, %v2294
    %v2296 = vpop.f32.mrf.mxu0
    %v2297 = vadd.f32 %v2184, %v2296
    %v2298 = vpop.f32.mrf.mxu0
    %v2299 = vadd.f32 %v2186, %v2298
    %v2300 = vpop.f32.mrf.mxu0
    %v2301 = vadd.f32 %v2188, %v2300
    %2302 = vmatprep.mubr.bf16.mxu0 %v798
    %2303 = vmatmul.mubr.bf16.gmra.mxu0 %v797
    %v2304 = vpop.f32.mrf.mxu0
    %v2305 = vadd.f32 %v2192, %v2304
    %v2306 = vpop.f32.mrf.mxu0
    %v2307 = vadd.f32 %v2194, %v2306
    %v2308 = vpop.f32.mrf.mxu0
    %v2309 = vadd.f32 %v2196, %v2308
    %v2310 = vpop.f32.mrf.mxu0
    %v2311 = vadd.f32 %v2198, %v2310
    %2312 = vmatprep.mubr.bf16.mxu0 %v802
    %2313 = vmatmul.mubr.bf16.gmra.mxu0 %v801
    %v2314 = vpop.f32.mrf.mxu0
    %v2315 = vadd.f32 %v2202, %v2314
    %v2316 = vpop.f32.mrf.mxu0
    %v2317 = vadd.f32 %v2204, %v2316
    %v2318 = vpop.f32.mrf.mxu0
    %v2319 = vadd.f32 %v2206, %v2318
    %v2320 = vpop.f32.mrf.mxu0
    %v2321 = vadd.f32 %v2208, %v2320
    %2322 = vmatprep.mubr.bf16.mxu0 %v806
    %2323 = vmatmul.mubr.bf16.gmra.mxu0 %v805
    %v2324 = vpop.f32.mrf.mxu0
    %v2325 = vadd.f32 %v2212, %v2324
    %v2326 = vpop.f32.mrf.mxu0
    %v2327 = vadd.f32 %v2214, %v2326
    %v2328 = vpop.f32.mrf.mxu0
    %v2329 = vadd.f32 %v2216, %v2328
    %v2330 = vpop.f32.mrf.mxu0
    %v2331 = vadd.f32 %v2218, %v2330
    %2332 = vmatprep.mubr.bf16.mxu0 %v810
    %2333 = vmatmul.mubr.bf16.gmra.mxu0 %v809
    %v2334 = vpop.f32.mrf.mxu0
    %v2335 = vadd.f32 %v2222, %v2334
    %v2336 = vpop.f32.mrf.mxu0
    %v2337 = vadd.f32 %v2224, %v2336
    %v2338 = vpop.f32.mrf.mxu0
    %v2339 = vadd.f32 %v2226, %v2338
    %v2340 = vpop.f32.mrf.mxu0
    %v2341 = vadd.f32 %v2228, %v2340
    %2342 = vmatprep.mubr.bf16.mxu0 %v814
    %2343 = vmatmul.mubr.bf16.gmra.mxu0 %v813
    %v2344 = vpop.f32.mrf.mxu0
    %v2345 = vadd.f32 %v2232, %v2344
    %v2346 = vpop.f32.mrf.mxu0
    %v2347 = vadd.f32 %v2234, %v2346
    %v2348 = vpop.f32.mrf.mxu0
    %v2349 = vadd.f32 %v2236, %v2348
    %v2350 = vpop.f32.mrf.mxu0
    %v2351 = vadd.f32 %v2238, %v2350
    %2352 = vdwg.mxu0
    %2353 = vmatprep.subr.bf16.mxu0 %v1674
    %2354 = vmatpush1.bf16.msra.mxu0 %v1673
    %2355 = vmatprep.subr.bf16.mxu0 %v1666
    %2356 = vmatpush1.bf16.msra.mxu0 %v1665
    %2357 = vmatprep.subr.bf16.mxu0 %v1658
    %2358 = vmatpush1.bf16.msra.mxu0 %v1657
    %2359 = vmatprep.subr.bf16.mxu0 %v1650
    %2360 = vmatpush1.bf16.msra.mxu0 %v1649
    %2361 = vmatprep.subr.bf16.mxu0 %v1642
    %2362 = vmatpush1.bf16.msra.mxu0 %v1641
    %2363 = vmatprep.subr.bf16.mxu0 %v1634
    %2364 = vmatpush1.bf16.msra.mxu0 %v1633
    %2365 = vmatprep.subr.bf16.mxu0 %v1626
    %2366 = vmatpush1.bf16.msra.mxu0 %v1625
    %2367 = vmatprep.subr.bf16.mxu0 %v1618
    %2368 = vmatpush1.bf16.msra.mxu0 %v1617
    %2369 = vmatprep.subr.bf16.mxu0 %v1738
    %2370 = vmatpush2.bf16.msra.mxu0 %v1737
    %2371 = vmatprep.subr.bf16.mxu0 %v1730
    %2372 = vmatpush2.bf16.msra.mxu0 %v1729
    %2373 = vmatprep.subr.bf16.mxu0 %v1722
    %2374 = vmatpush2.bf16.msra.mxu0 %v1721
    %2375 = vmatprep.subr.bf16.mxu0 %v1714
    %2376 = vmatpush2.bf16.msra.mxu0 %v1713
    %2377 = vmatprep.subr.bf16.mxu0 %v1706
    %2378 = vmatpush2.bf16.msra.mxu0 %v1705
    %2379 = vmatprep.subr.bf16.mxu0 %v1698
    %2380 = vmatpush2.bf16.msra.mxu0 %v1697
    %2381 = vmatprep.subr.bf16.mxu0 %v1690
    %2382 = vmatpush2.bf16.msra.mxu0 %v1689
    %2383 = vmatprep.subr.bf16.mxu0 %v1682
    %2384 = vmatpush2.bf16.msra.mxu0 %v1681
    %2385 = vmatprep.mubr.bf16.mxu0 %v784
    %2386 = vmatmul.mubr.bf16.gmra.mxu0 %v783
    %v2387 = vpop.f32.mrf.mxu0
    %v2388 = vadd.f32 0.0, %v2387
    %v2389 = vpop.f32.mrf.mxu0
    %v2390 = vadd.f32 0.0, %v2389
    %v2391 = vpop.f32.mrf.mxu0
    %v2392 = vadd.f32 0.0, %v2391
    %v2393 = vpop.f32.mrf.mxu0
    %v2394 = vadd.f32 0.0, %v2393
    %2395 = vmatprep.mubr.bf16.mxu0 %v788
    %2396 = vmatmul.mubr.bf16.gmra.mxu0 %v787
    %v2397 = vpop.f32.mrf.mxu0
    %v2398 = vadd.f32 0.0, %v2397
    %v2399 = vpop.f32.mrf.mxu0
    %v2400 = vadd.f32 0.0, %v2399
    %v2401 = vpop.f32.mrf.mxu0
    %v2402 = vadd.f32 0.0, %v2401
    %v2403 = vpop.f32.mrf.mxu0
    %v2404 = vadd.f32 0.0, %v2403
    %2405 = vmatprep.mubr.bf16.mxu0 %v792
    %2406 = vmatmul.mubr.bf16.gmra.mxu0 %v791
    %v2407 = vpop.f32.mrf.mxu0
    %v2408 = vadd.f32 0.0, %v2407
    %v2409 = vpop.f32.mrf.mxu0
    %v2410 = vadd.f32 0.0, %v2409
    %v2411 = vpop.f32.mrf.mxu0
    %v2412 = vadd.f32 0.0, %v2411
    %v2413 = vpop.f32.mrf.mxu0
    %v2414 = vadd.f32 0.0, %v2413
    %2415 = vmatprep.mubr.bf16.mxu0 %v796
    %2416 = vmatmul.mubr.bf16.gmra.mxu0 %v795
    %v2417 = vpop.f32.mrf.mxu0
    %v2418 = vadd.f32 0.0, %v2417
    %v2419 = vpop.f32.mrf.mxu0
    %v2420 = vadd.f32 0.0, %v2419
    %v2421 = vpop.f32.mrf.mxu0
    %v2422 = vadd.f32 0.0, %v2421
    %v2423 = vpop.f32.mrf.mxu0
    %v2424 = vadd.f32 0.0, %v2423
    %2425 = vmatprep.mubr.bf16.mxu0 %v800
    %2426 = vmatmul.mubr.bf16.gmra.mxu0 %v799
    %v2427 = vpop.f32.mrf.mxu0
    %v2428 = vadd.f32 0.0, %v2427
    %v2429 = vpop.f32.mrf.mxu0
    %v2430 = vadd.f32 0.0, %v2429
    %v2431 = vpop.f32.mrf.mxu0
    %v2432 = vadd.f32 0.0, %v2431
    %v2433 = vpop.f32.mrf.mxu0
    %v2434 = vadd.f32 0.0, %v2433
    %2435 = vmatprep.mubr.bf16.mxu0 %v804
    %2436 = vmatmul.mubr.bf16.gmra.mxu0 %v803
    %v2437 = vpop.f32.mrf.mxu0
    %v2438 = vadd.f32 0.0, %v2437
    %v2439 = vpop.f32.mrf.mxu0
    %v2440 = vadd.f32 0.0, %v2439
    %v2441 = vpop.f32.mrf.mxu0
    %v2442 = vadd.f32 0.0, %v2441
    %v2443 = vpop.f32.mrf.mxu0
    %v2444 = vadd.f32 0.0, %v2443
    %2445 = vmatprep.mubr.bf16.mxu0 %v808
    %2446 = vmatmul.mubr.bf16.gmra.mxu0 %v807
    %v2447 = vpop.f32.mrf.mxu0
    %v2448 = vadd.f32 0.0, %v2447
    %v2449 = vpop.f32.mrf.mxu0
    %v2450 = vadd.f32 0.0, %v2449
    %v2451 = vpop.f32.mrf.mxu0
    %v2452 = vadd.f32 0.0, %v2451
    %v2453 = vpop.f32.mrf.mxu0
    %v2454 = vadd.f32 0.0, %v2453
    %2455 = vmatprep.mubr.bf16.mxu0 %v812
    %2456 = vmatmul.mubr.bf16.gmra.mxu0 %v811
    %v2457 = vpop.f32.mrf.mxu0
    %v2458 = vadd.f32 0.0, %v2457
    %v2459 = vpop.f32.mrf.mxu0
    %v2460 = vadd.f32 0.0, %v2459
    %v2461 = vpop.f32.mrf.mxu0
    %v2462 = vadd.f32 0.0, %v2461
    %v2463 = vpop.f32.mrf.mxu0
    %v2464 = vadd.f32 0.0, %v2463
    %2465 = vdwg.mxu0
    %2466 = vmatprep.subr.bf16.mxu0 %v1802
    %2467 = vmatpush1.bf16.msra.mxu0 %v1801
    %2468 = vmatprep.subr.bf16.mxu0 %v1794
    %2469 = vmatpush1.bf16.msra.mxu0 %v1793
    %2470 = vmatprep.subr.bf16.mxu0 %v1786
    %2471 = vmatpush1.bf16.msra.mxu0 %v1785
    %2472 = vmatprep.subr.bf16.mxu0 %v1778
    %2473 = vmatpush1.bf16.msra.mxu0 %v1777
    %2474 = vmatprep.subr.bf16.mxu0 %v1770
    %2475 = vmatpush1.bf16.msra.mxu0 %v1769
    %2476 = vmatprep.subr.bf16.mxu0 %v1762
    %2477 = vmatpush1.bf16.msra.mxu0 %v1761
    %2478 = vmatprep.subr.bf16.mxu0 %v1754
    %2479 = vmatpush1.bf16.msra.mxu0 %v1753
    %2480 = vmatprep.subr.bf16.mxu0 %v1746
    %2481 = vmatpush1.bf16.msra.mxu0 %v1745
    %2482 = vmatprep.subr.bf16.mxu0 %v1866
    %2483 = vmatpush2.bf16.msra.mxu0 %v1865
    %2484 = vmatprep.subr.bf16.mxu0 %v1858
    %2485 = vmatpush2.bf16.msra.mxu0 %v1857
    %2486 = vmatprep.subr.bf16.mxu0 %v1850
    %2487 = vmatpush2.bf16.msra.mxu0 %v1849
    %2488 = vmatprep.subr.bf16.mxu0 %v1842
    %2489 = vmatpush2.bf16.msra.mxu0 %v1841
    %2490 = vmatprep.subr.bf16.mxu0 %v1834
    %2491 = vmatpush2.bf16.msra.mxu0 %v1833
    %2492 = vmatprep.subr.bf16.mxu0 %v1826
    %2493 = vmatpush2.bf16.msra.mxu0 %v1825
    %2494 = vmatprep.subr.bf16.mxu0 %v1818
    %2495 = vmatpush2.bf16.msra.mxu0 %v1817
    %2496 = vmatprep.subr.bf16.mxu0 %v1810
    %2497 = vmatpush2.bf16.msra.mxu0 %v1809
    %2498 = vmatprep.mubr.bf16.mxu0 %v786
    %2499 = vmatmul.mubr.bf16.gmra.mxu0 %v785
    %v2500 = vpop.f32.mrf.mxu0
    %v2501 = vadd.f32 %v2388, %v2500
    %v2502 = vpop.f32.mrf.mxu0
    %v2503 = vadd.f32 %v2390, %v2502
    %v2504 = vpop.f32.mrf.mxu0
    %v2505 = vadd.f32 %v2392, %v2504
    %v2506 = vpop.f32.mrf.mxu0
    %v2507 = vadd.f32 %v2394, %v2506
    %2508 = vmatprep.mubr.bf16.mxu0 %v790
    %2509 = vmatmul.mubr.bf16.gmra.mxu0 %v789
    %v2510 = vpop.f32.mrf.mxu0
    %v2511 = vadd.f32 %v2398, %v2510
    %v2512 = vpop.f32.mrf.mxu0
    %v2513 = vadd.f32 %v2400, %v2512
    %v2514 = vpop.f32.mrf.mxu0
    %v2515 = vadd.f32 %v2402, %v2514
    %v2516 = vpop.f32.mrf.mxu0
    %v2517 = vadd.f32 %v2404, %v2516
    %2518 = vmatprep.mubr.bf16.mxu0 %v794
    %2519 = vmatmul.mubr.bf16.gmra.mxu0 %v793
    %v2520 = vpop.f32.mrf.mxu0
    %v2521 = vadd.f32 %v2408, %v2520
    %v2522 = vpop.f32.mrf.mxu0
    %v2523 = vadd.f32 %v2410, %v2522
    %v2524 = vpop.f32.mrf.mxu0
    %v2525 = vadd.f32 %v2412, %v2524
    %v2526 = vpop.f32.mrf.mxu0
    %v2527 = vadd.f32 %v2414, %v2526
    %2528 = vmatprep.mubr.bf16.mxu0 %v798
    %2529 = vmatmul.mubr.bf16.gmra.mxu0 %v797
    %v2530 = vpop.f32.mrf.mxu0
    %v2531 = vadd.f32 %v2418, %v2530
    %v2532 = vpop.f32.mrf.mxu0
    %v2533 = vadd.f32 %v2420, %v2532
    %v2534 = vpop.f32.mrf.mxu0
    %v2535 = vadd.f32 %v2422, %v2534
    %v2536 = vpop.f32.mrf.mxu0
    %v2537 = vadd.f32 %v2424, %v2536
    %2538 = vmatprep.mubr.bf16.mxu0 %v802
    %2539 = vmatmul.mubr.bf16.gmra.mxu0 %v801
    %v2540 = vpop.f32.mrf.mxu0
    %v2541 = vadd.f32 %v2428, %v2540
    %v2542 = vpop.f32.mrf.mxu0
    %v2543 = vadd.f32 %v2430, %v2542
    %v2544 = vpop.f32.mrf.mxu0
    %v2545 = vadd.f32 %v2432, %v2544
    %v2546 = vpop.f32.mrf.mxu0
    %v2547 = vadd.f32 %v2434, %v2546
    %2548 = vmatprep.mubr.bf16.mxu0 %v806
    %2549 = vmatmul.mubr.bf16.gmra.mxu0 %v805
    %v2550 = vpop.f32.mrf.mxu0
    %v2551 = vadd.f32 %v2438, %v2550
    %v2552 = vpop.f32.mrf.mxu0
    %v2553 = vadd.f32 %v2440, %v2552
    %v2554 = vpop.f32.mrf.mxu0
    %v2555 = vadd.f32 %v2442, %v2554
    %v2556 = vpop.f32.mrf.mxu0
    %v2557 = vadd.f32 %v2444, %v2556
    %2558 = vmatprep.mubr.bf16.mxu0 %v810
    %2559 = vmatmul.mubr.bf16.gmra.mxu0 %v809
    %v2560 = vpop.f32.mrf.mxu0
    %v2561 = vadd.f32 %v2448, %v2560
    %v2562 = vpop.f32.mrf.mxu0
    %v2563 = vadd.f32 %v2450, %v2562
    %v2564 = vpop.f32.mrf.mxu0
    %v2565 = vadd.f32 %v2452, %v2564
    %v2566 = vpop.f32.mrf.mxu0
    %v2567 = vadd.f32 %v2454, %v2566
    %2568 = vmatprep.mubr.bf16.mxu0 %v814
    %2569 = vmatmul.mubr.bf16.gmra.mxu0 %v813
    %v2570 = vpop.f32.mrf.mxu0
    %v2571 = vadd.f32 %v2458, %v2570
    %v2572 = vpop.f32.mrf.mxu0
    %v2573 = vadd.f32 %v2460, %v2572
    %v2574 = vpop.f32.mrf.mxu0
    %v2575 = vadd.f32 %v2462, %v2574
    %v2576 = vpop.f32.mrf.mxu0
    %v2577 = vadd.f32 %v2464, %v2576
    %2578 = vdwg.mxu0
    %2579 = vmatprep.subr.bf16.mxu0 %v1676
    %2580 = vmatpush1.bf16.msra.mxu0 %v1675
    %2581 = vmatprep.subr.bf16.mxu0 %v1668
    %2582 = vmatpush1.bf16.msra.mxu0 %v1667
    %2583 = vmatprep.subr.bf16.mxu0 %v1660
    %2584 = vmatpush1.bf16.msra.mxu0 %v1659
    %2585 = vmatprep.subr.bf16.mxu0 %v1652
    %2586 = vmatpush1.bf16.msra.mxu0 %v1651
    %2587 = vmatprep.subr.bf16.mxu0 %v1644
    %2588 = vmatpush1.bf16.msra.mxu0 %v1643
    %2589 = vmatprep.subr.bf16.mxu0 %v1636
    %2590 = vmatpush1.bf16.msra.mxu0 %v1635
    %2591 = vmatprep.subr.bf16.mxu0 %v1628
    %2592 = vmatpush1.bf16.msra.mxu0 %v1627
    %2593 = vmatprep.subr.bf16.mxu0 %v1620
    %2594 = vmatpush1.bf16.msra.mxu0 %v1619
    %2595 = vmatprep.subr.bf16.mxu0 %v1740
    %2596 = vmatpush2.bf16.msra.mxu0 %v1739
    %2597 = vmatprep.subr.bf16.mxu0 %v1732
    %2598 = vmatpush2.bf16.msra.mxu0 %v1731
    %2599 = vmatprep.subr.bf16.mxu0 %v1724
    %2600 = vmatpush2.bf16.msra.mxu0 %v1723
    %2601 = vmatprep.subr.bf16.mxu0 %v1716
    %2602 = vmatpush2.bf16.msra.mxu0 %v1715
    %2603 = vmatprep.subr.bf16.mxu0 %v1708
    %2604 = vmatpush2.bf16.msra.mxu0 %v1707
    %2605 = vmatprep.subr.bf16.mxu0 %v1700
    %2606 = vmatpush2.bf16.msra.mxu0 %v1699
    %2607 = vmatprep.subr.bf16.mxu0 %v1692
    %2608 = vmatpush2.bf16.msra.mxu0 %v1691
    %2609 = vmatprep.subr.bf16.mxu0 %v1684
    %2610 = vmatpush2.bf16.msra.mxu0 %v1683
    %2611 = vmatprep.mubr.bf16.mxu0 %v784
    %2612 = vmatmul.mubr.bf16.gmra.mxu0 %v783
    %v2613 = vpop.f32.mrf.mxu0
    %v2614 = vadd.f32 0.0, %v2613
    %v2615 = vpop.f32.mrf.mxu0
    %v2616 = vadd.f32 0.0, %v2615
    %v2617 = vpop.f32.mrf.mxu0
    %v2618 = vadd.f32 0.0, %v2617
    %v2619 = vpop.f32.mrf.mxu0
    %v2620 = vadd.f32 0.0, %v2619
    %2621 = vmatprep.mubr.bf16.mxu0 %v788
    %2622 = vmatmul.mubr.bf16.gmra.mxu0 %v787
    %v2623 = vpop.f32.mrf.mxu0
    %v2624 = vadd.f32 0.0, %v2623
    %v2625 = vpop.f32.mrf.mxu0
    %v2626 = vadd.f32 0.0, %v2625
    %v2627 = vpop.f32.mrf.mxu0
    %v2628 = vadd.f32 0.0, %v2627
    %v2629 = vpop.f32.mrf.mxu0
    %v2630 = vadd.f32 0.0, %v2629
    %2631 = vmatprep.mubr.bf16.mxu0 %v792
    %2632 = vmatmul.mubr.bf16.gmra.mxu0 %v791
    %v2633 = vpop.f32.mrf.mxu0
    %v2634 = vadd.f32 0.0, %v2633
    %v2635 = vpop.f32.mrf.mxu0
    %v2636 = vadd.f32 0.0, %v2635
    %v2637 = vpop.f32.mrf.mxu0
    %v2638 = vadd.f32 0.0, %v2637
    %v2639 = vpop.f32.mrf.mxu0
    %v2640 = vadd.f32 0.0, %v2639
    %2641 = vmatprep.mubr.bf16.mxu0 %v796
    %2642 = vmatmul.mubr.bf16.gmra.mxu0 %v795
    %v2643 = vpop.f32.mrf.mxu0
    %v2644 = vadd.f32 0.0, %v2643
    %v2645 = vpop.f32.mrf.mxu0
    %v2646 = vadd.f32 0.0, %v2645
    %v2647 = vpop.f32.mrf.mxu0
    %v2648 = vadd.f32 0.0, %v2647
    %v2649 = vpop.f32.mrf.mxu0
    %v2650 = vadd.f32 0.0, %v2649
    %2651 = vmatprep.mubr.bf16.mxu0 %v800
    %2652 = vmatmul.mubr.bf16.gmra.mxu0 %v799
    %v2653 = vpop.f32.mrf.mxu0
    %v2654 = vadd.f32 0.0, %v2653
    %v2655 = vpop.f32.mrf.mxu0
    %v2656 = vadd.f32 0.0, %v2655
    %v2657 = vpop.f32.mrf.mxu0
    %v2658 = vadd.f32 0.0, %v2657
    %v2659 = vpop.f32.mrf.mxu0
    %v2660 = vadd.f32 0.0, %v2659
    %2661 = vmatprep.mubr.bf16.mxu0 %v804
    %2662 = vmatmul.mubr.bf16.gmra.mxu0 %v803
    %v2663 = vpop.f32.mrf.mxu0
    %v2664 = vadd.f32 0.0, %v2663
    %v2665 = vpop.f32.mrf.mxu0
    %v2666 = vadd.f32 0.0, %v2665
    %v2667 = vpop.f32.mrf.mxu0
    %v2668 = vadd.f32 0.0, %v2667
    %v2669 = vpop.f32.mrf.mxu0
    %v2670 = vadd.f32 0.0, %v2669
    %2671 = vmatprep.mubr.bf16.mxu0 %v808
    %2672 = vmatmul.mubr.bf16.gmra.mxu0 %v807
    %v2673 = vpop.f32.mrf.mxu0
    %v2674 = vadd.f32 0.0, %v2673
    %v2675 = vpop.f32.mrf.mxu0
    %v2676 = vadd.f32 0.0, %v2675
    %v2677 = vpop.f32.mrf.mxu0
    %v2678 = vadd.f32 0.0, %v2677
    %v2679 = vpop.f32.mrf.mxu0
    %v2680 = vadd.f32 0.0, %v2679
    %2681 = vmatprep.mubr.bf16.mxu0 %v812
    %2682 = vmatmul.mubr.bf16.gmra.mxu0 %v811
    %v2683 = vpop.f32.mrf.mxu0
    %v2684 = vadd.f32 0.0, %v2683
    %v2685 = vpop.f32.mrf.mxu0
    %v2686 = vadd.f32 0.0, %v2685
    %v2687 = vpop.f32.mrf.mxu0
    %v2688 = vadd.f32 0.0, %v2687
    %v2689 = vpop.f32.mrf.mxu0
    %v2690 = vadd.f32 0.0, %v2689
    %2691 = vdwg.mxu0
    %2692 = vmatprep.subr.bf16.mxu0 %v1804
    %2693 = vmatpush1.bf16.msra.mxu0 %v1803
    %2694 = vmatprep.subr.bf16.mxu0 %v1796
    %2695 = vmatpush1.bf16.msra.mxu0 %v1795
    %2696 = vmatprep.subr.bf16.mxu0 %v1788
    %2697 = vmatpush1.bf16.msra.mxu0 %v1787
    %2698 = vmatprep.subr.bf16.mxu0 %v1780
    %2699 = vmatpush1.bf16.msra.mxu0 %v1779
    %2700 = vmatprep.subr.bf16.mxu0 %v1772
    %2701 = vmatpush1.bf16.msra.mxu0 %v1771
    %2702 = vmatprep.subr.bf16.mxu0 %v1764
    %2703 = vmatpush1.bf16.msra.mxu0 %v1763
    %2704 = vmatprep.subr.bf16.mxu0 %v1756
    %2705 = vmatpush1.bf16.msra.mxu0 %v1755
    %2706 = vmatprep.subr.bf16.mxu0 %v1748
    %2707 = vmatpush1.bf16.msra.mxu0 %v1747
    %2708 = vmatprep.subr.bf16.mxu0 %v1868
    %2709 = vmatpush2.bf16.msra.mxu0 %v1867
    %2710 = vmatprep.subr.bf16.mxu0 %v1860
    %2711 = vmatpush2.bf16.msra.mxu0 %v1859
    %2712 = vmatprep.subr.bf16.mxu0 %v1852
    %2713 = vmatpush2.bf16.msra.mxu0 %v1851
    %2714 = vmatprep.subr.bf16.mxu0 %v1844
    %2715 = vmatpush2.bf16.msra.mxu0 %v1843
    %2716 = vmatprep.subr.bf16.mxu0 %v1836
    %2717 = vmatpush2.bf16.msra.mxu0 %v1835
    %2718 = vmatprep.subr.bf16.mxu0 %v1828
    %2719 = vmatpush2.bf16.msra.mxu0 %v1827
    %2720 = vmatprep.subr.bf16.mxu0 %v1820
    %2721 = vmatpush2.bf16.msra.mxu0 %v1819
    %2722 = vmatprep.subr.bf16.mxu0 %v1812
    %2723 = vmatpush2.bf16.msra.mxu0 %v1811
    %2724 = vmatprep.mubr.bf16.mxu0 %v786
    %2725 = vmatmul.mubr.bf16.gmra.mxu0 %v785
    %v2726 = vpop.f32.mrf.mxu0
    %v2727 = vadd.f32 %v2614, %v2726
    %v2728 = vpop.f32.mrf.mxu0
    %v2729 = vadd.f32 %v2616, %v2728
    %v2730 = vpop.f32.mrf.mxu0
    %v2731 = vadd.f32 %v2618, %v2730
    %v2732 = vpop.f32.mrf.mxu0
    %v2733 = vadd.f32 %v2620, %v2732
    %2734 = vmatprep.mubr.bf16.mxu0 %v790
    %2735 = vmatmul.mubr.bf16.gmra.mxu0 %v789
    %v2736 = vpop.f32.mrf.mxu0
    %v2737 = vadd.f32 %v2624, %v2736
    %v2738 = vpop.f32.mrf.mxu0
    %v2739 = vadd.f32 %v2626, %v2738
    %v2740 = vpop.f32.mrf.mxu0
    %v2741 = vadd.f32 %v2628, %v2740
    %v2742 = vpop.f32.mrf.mxu0
    %v2743 = vadd.f32 %v2630, %v2742
    %2744 = vmatprep.mubr.bf16.mxu0 %v794
    %2745 = vmatmul.mubr.bf16.gmra.mxu0 %v793
    %v2746 = vpop.f32.mrf.mxu0
    %v2747 = vadd.f32 %v2634, %v2746
    %v2748 = vpop.f32.mrf.mxu0
    %v2749 = vadd.f32 %v2636, %v2748
    %v2750 = vpop.f32.mrf.mxu0
    %v2751 = vadd.f32 %v2638, %v2750
    %v2752 = vpop.f32.mrf.mxu0
    %v2753 = vadd.f32 %v2640, %v2752
    %2754 = vmatprep.mubr.bf16.mxu0 %v798
    %2755 = vmatmul.mubr.bf16.gmra.mxu0 %v797
    %v2756 = vpop.f32.mrf.mxu0
    %v2757 = vadd.f32 %v2644, %v2756
    %v2758 = vpop.f32.mrf.mxu0
    %v2759 = vadd.f32 %v2646, %v2758
    %v2760 = vpop.f32.mrf.mxu0
    %v2761 = vadd.f32 %v2648, %v2760
    %v2762 = vpop.f32.mrf.mxu0
    %v2763 = vadd.f32 %v2650, %v2762
    %2764 = vmatprep.mubr.bf16.mxu0 %v802
    %2765 = vmatmul.mubr.bf16.gmra.mxu0 %v801
    %v2766 = vpop.f32.mrf.mxu0
    %v2767 = vadd.f32 %v2654, %v2766
    %v2768 = vpop.f32.mrf.mxu0
    %v2769 = vadd.f32 %v2656, %v2768
    %v2770 = vpop.f32.mrf.mxu0
    %v2771 = vadd.f32 %v2658, %v2770
    %v2772 = vpop.f32.mrf.mxu0
    %v2773 = vadd.f32 %v2660, %v2772
    %2774 = vmatprep.mubr.bf16.mxu0 %v806
    %2775 = vmatmul.mubr.bf16.gmra.mxu0 %v805
    %v2776 = vpop.f32.mrf.mxu0
    %v2777 = vadd.f32 %v2664, %v2776
    %v2778 = vpop.f32.mrf.mxu0
    %v2779 = vadd.f32 %v2666, %v2778
    %v2780 = vpop.f32.mrf.mxu0
    %v2781 = vadd.f32 %v2668, %v2780
    %v2782 = vpop.f32.mrf.mxu0
    %v2783 = vadd.f32 %v2670, %v2782
    %2784 = vmatprep.mubr.bf16.mxu0 %v810
    %2785 = vmatmul.mubr.bf16.gmra.mxu0 %v809
    %v2786 = vpop.f32.mrf.mxu0
    %v2787 = vadd.f32 %v2674, %v2786
    %v2788 = vpop.f32.mrf.mxu0
    %v2789 = vadd.f32 %v2676, %v2788
    %v2790 = vpop.f32.mrf.mxu0
    %v2791 = vadd.f32 %v2678, %v2790
    %v2792 = vpop.f32.mrf.mxu0
    %v2793 = vadd.f32 %v2680, %v2792
    %2794 = vmatprep.mubr.bf16.mxu0 %v814
    %2795 = vmatmul.mubr.bf16.gmra.mxu0 %v813
    %v2796 = vpop.f32.mrf.mxu0
    %v2797 = vadd.f32 %v2684, %v2796
    %v2798 = vpop.f32.mrf.mxu0
    %v2799 = vadd.f32 %v2686, %v2798
    %v2800 = vpop.f32.mrf.mxu0
    %v2801 = vadd.f32 %v2688, %v2800
    %v2802 = vpop.f32.mrf.mxu0
    %v2803 = vadd.f32 %v2690, %v2802
    %2804 = vdwg.mxu0
    %2805 = vmatprep.subr.bf16.mxu0 %v1678
    %2806 = vmatpush1.bf16.msra.mxu0 %v1677
    %2807 = vmatprep.subr.bf16.mxu0 %v1670
    %2808 = vmatpush1.bf16.msra.mxu0 %v1669
    %2809 = vmatprep.subr.bf16.mxu0 %v1662
    %2810 = vmatpush1.bf16.msra.mxu0 %v1661
    %2811 = vmatprep.subr.bf16.mxu0 %v1654
    %2812 = vmatpush1.bf16.msra.mxu0 %v1653
    %2813 = vmatprep.subr.bf16.mxu0 %v1646
    %2814 = vmatpush1.bf16.msra.mxu0 %v1645
    %2815 = vmatprep.subr.bf16.mxu0 %v1638
    %2816 = vmatpush1.bf16.msra.mxu0 %v1637
    %2817 = vmatprep.subr.bf16.mxu0 %v1630
    %2818 = vmatpush1.bf16.msra.mxu0 %v1629
    %2819 = vmatprep.subr.bf16.mxu0 %v1622
    %2820 = vmatpush1.bf16.msra.mxu0 %v1621
    %2821 = vmatprep.subr.bf16.mxu0 %v1742
    %2822 = vmatpush2.bf16.msra.mxu0 %v1741
    %2823 = vmatprep.subr.bf16.mxu0 %v1734
    %2824 = vmatpush2.bf16.msra.mxu0 %v1733
    %2825 = vmatprep.subr.bf16.mxu0 %v1726
    %2826 = vmatpush2.bf16.msra.mxu0 %v1725
    %2827 = vmatprep.subr.bf16.mxu0 %v1718
    %2828 = vmatpush2.bf16.msra.mxu0 %v1717
    %2829 = vmatprep.subr.bf16.mxu0 %v1710
    %2830 = vmatpush2.bf16.msra.mxu0 %v1709
    %2831 = vmatprep.subr.bf16.mxu0 %v1702
    %2832 = vmatpush2.bf16.msra.mxu0 %v1701
    %2833 = vmatprep.subr.bf16.mxu0 %v1694
    %2834 = vmatpush2.bf16.msra.mxu0 %v1693
    %2835 = vmatprep.subr.bf16.mxu0 %v1686
    %2836 = vmatpush2.bf16.msra.mxu0 %v1685
    %2837 = vmatprep.mubr.bf16.mxu0 %v784
    %2838 = vmatmul.mubr.bf16.gmra.mxu0 %v783
    %v2839 = vpop.f32.mrf.mxu0
    %v2840 = vadd.f32 0.0, %v2839
    %v2841 = vpop.f32.mrf.mxu0
    %v2842 = vadd.f32 0.0, %v2841
    %v2843 = vpop.f32.mrf.mxu0
    %v2844 = vadd.f32 0.0, %v2843
    %v2845 = vpop.f32.mrf.mxu0
    %v2846 = vadd.f32 0.0, %v2845
    %2847 = vmatprep.mubr.bf16.mxu0 %v788
    %2848 = vmatmul.mubr.bf16.gmra.mxu0 %v787
    %v2849 = vpop.f32.mrf.mxu0
    %v2850 = vadd.f32 0.0, %v2849
    %v2851 = vpop.f32.mrf.mxu0
    %v2852 = vadd.f32 0.0, %v2851
    %v2853 = vpop.f32.mrf.mxu0
    %v2854 = vadd.f32 0.0, %v2853
    %v2855 = vpop.f32.mrf.mxu0
    %v2856 = vadd.f32 0.0, %v2855
    %2857 = vmatprep.mubr.bf16.mxu0 %v792
    %2858 = vmatmul.mubr.bf16.gmra.mxu0 %v791
    %v2859 = vpop.f32.mrf.mxu0
    %v2860 = vadd.f32 0.0, %v2859
    %v2861 = vpop.f32.mrf.mxu0
    %v2862 = vadd.f32 0.0, %v2861
    %v2863 = vpop.f32.mrf.mxu0
    %v2864 = vadd.f32 0.0, %v2863
    %v2865 = vpop.f32.mrf.mxu0
    %v2866 = vadd.f32 0.0, %v2865
    %2867 = vmatprep.mubr.bf16.mxu0 %v796
    %2868 = vmatmul.mubr.bf16.gmra.mxu0 %v795
    %v2869 = vpop.f32.mrf.mxu0
    %v2870 = vadd.f32 0.0, %v2869
    %v2871 = vpop.f32.mrf.mxu0
    %v2872 = vadd.f32 0.0, %v2871
    %v2873 = vpop.f32.mrf.mxu0
    %v2874 = vadd.f32 0.0, %v2873
    %v2875 = vpop.f32.mrf.mxu0
    %v2876 = vadd.f32 0.0, %v2875
    %2877 = vmatprep.mubr.bf16.mxu0 %v800
    %2878 = vmatmul.mubr.bf16.gmra.mxu0 %v799
    %v2879 = vpop.f32.mrf.mxu0
    %v2880 = vadd.f32 0.0, %v2879
    %v2881 = vpop.f32.mrf.mxu0
    %v2882 = vadd.f32 0.0, %v2881
    %v2883 = vpop.f32.mrf.mxu0
    %v2884 = vadd.f32 0.0, %v2883
    %v2885 = vpop.f32.mrf.mxu0
    %v2886 = vadd.f32 0.0, %v2885
    %2887 = vmatprep.mubr.bf16.mxu0 %v804
    %2888 = vmatmul.mubr.bf16.gmra.mxu0 %v803
    %v2889 = vpop.f32.mrf.mxu0
    %v2890 = vadd.f32 0.0, %v2889
    %v2891 = vpop.f32.mrf.mxu0
    %v2892 = vadd.f32 0.0, %v2891
    %v2893 = vpop.f32.mrf.mxu0
    %v2894 = vadd.f32 0.0, %v2893
    %v2895 = vpop.f32.mrf.mxu0
    %v2896 = vadd.f32 0.0, %v2895
    %2897 = vmatprep.mubr.bf16.mxu0 %v808
    %2898 = vmatmul.mubr.bf16.gmra.mxu0 %v807
    %v2899 = vpop.f32.mrf.mxu0
    %v2900 = vadd.f32 0.0, %v2899
    %v2901 = vpop.f32.mrf.mxu0
    %v2902 = vadd.f32 0.0, %v2901
    %v2903 = vpop.f32.mrf.mxu0
    %v2904 = vadd.f32 0.0, %v2903
    %v2905 = vpop.f32.mrf.mxu0
    %v2906 = vadd.f32 0.0, %v2905
    %2907 = vmatprep.mubr.bf16.mxu0 %v812
    %2908 = vmatmul.mubr.bf16.gmra.mxu0 %v811
    %v2909 = vpop.f32.mrf.mxu0
    %v2910 = vadd.f32 0.0, %v2909
    %v2911 = vpop.f32.mrf.mxu0
    %v2912 = vadd.f32 0.0, %v2911
    %v2913 = vpop.f32.mrf.mxu0
    %v2914 = vadd.f32 0.0, %v2913
    %v2915 = vpop.f32.mrf.mxu0
    %v2916 = vadd.f32 0.0, %v2915
    %2917 = vdwg.mxu0
    %2918 = vmatprep.subr.bf16.mxu0 %v1806
    %2919 = vmatpush1.bf16.msra.mxu0 %v1805
    %2920 = vmatprep.subr.bf16.mxu0 %v1798
    %2921 = vmatpush1.bf16.msra.mxu0 %v1797
    %2922 = vmatprep.subr.bf16.mxu0 %v1790
    %2923 = vmatpush1.bf16.msra.mxu0 %v1789
    %2924 = vmatprep.subr.bf16.mxu0 %v1782
    %2925 = vmatpush1.bf16.msra.mxu0 %v1781
    %2926 = vmatprep.subr.bf16.mxu0 %v1774
    %2927 = vmatpush1.bf16.msra.mxu0 %v1773
    %2928 = vmatprep.subr.bf16.mxu0 %v1766
    %2929 = vmatpush1.bf16.msra.mxu0 %v1765
    %2930 = vmatprep.subr.bf16.mxu0 %v1758
    %2931 = vmatpush1.bf16.msra.mxu0 %v1757
    %2932 = vmatprep.subr.bf16.mxu0 %v1750
    %2933 = vmatpush1.bf16.msra.mxu0 %v1749
    %2934 = vmatprep.subr.bf16.mxu0 %v1870
    %2935 = vmatpush2.bf16.msra.mxu0 %v1869
    %2936 = vmatprep.subr.bf16.mxu0 %v1862
    %2937 = vmatpush2.bf16.msra.mxu0 %v1861
    %2938 = vmatprep.subr.bf16.mxu0 %v1854
    %2939 = vmatpush2.bf16.msra.mxu0 %v1853
    %2940 = vmatprep.subr.bf16.mxu0 %v1846
    %2941 = vmatpush2.bf16.msra.mxu0 %v1845
    %2942 = vmatprep.subr.bf16.mxu0 %v1838
    %2943 = vmatpush2.bf16.msra.mxu0 %v1837
    %2944 = vmatprep.subr.bf16.mxu0 %v1830
    %2945 = vmatpush2.bf16.msra.mxu0 %v1829
    %2946 = vmatprep.subr.bf16.mxu0 %v1822
    %2947 = vmatpush2.bf16.msra.mxu0 %v1821
    %2948 = vmatprep.subr.bf16.mxu0 %v1814
    %2949 = vmatpush2.bf16.msra.mxu0 %v1813
    %2950 = vmatprep.mubr.bf16.mxu0 %v786
    %2951 = vmatmul.mubr.bf16.gmra.mxu0 %v785
    %v2952 = vpop.f32.mrf.mxu0
    %v2953 = vadd.f32 %v2840, %v2952
    %v2954 = vpop.f32.mrf.mxu0
    %v2955 = vadd.f32 %v2842, %v2954
    %v2956 = vpop.f32.mrf.mxu0
    %v2957 = vadd.f32 %v2844, %v2956
    %v2958 = vpop.f32.mrf.mxu0
    %v2959 = vadd.f32 %v2846, %v2958
    %2960 = vmatprep.mubr.bf16.mxu0 %v790
    %2961 = vmatmul.mubr.bf16.gmra.mxu0 %v789
    %v2962 = vpop.f32.mrf.mxu0
    %v2963 = vadd.f32 %v2850, %v2962
    %v2964 = vpop.f32.mrf.mxu0
    %v2965 = vadd.f32 %v2852, %v2964
    %v2966 = vpop.f32.mrf.mxu0
    %v2967 = vadd.f32 %v2854, %v2966
    %v2968 = vpop.f32.mrf.mxu0
    %v2969 = vadd.f32 %v2856, %v2968
    %2970 = vmatprep.mubr.bf16.mxu0 %v794
    %2971 = vmatmul.mubr.bf16.gmra.mxu0 %v793
    %v2972 = vpop.f32.mrf.mxu0
    %v2973 = vadd.f32 %v2860, %v2972
    %v2974 = vpop.f32.mrf.mxu0
    %v2975 = vadd.f32 %v2862, %v2974
    %v2976 = vpop.f32.mrf.mxu0
    %v2977 = vadd.f32 %v2864, %v2976
    %v2978 = vpop.f32.mrf.mxu0
    %v2979 = vadd.f32 %v2866, %v2978
    %2980 = vmatprep.mubr.bf16.mxu0 %v798
    %2981 = vmatmul.mubr.bf16.gmra.mxu0 %v797
    %v2982 = vpop.f32.mrf.mxu0
    %v2983 = vadd.f32 %v2870, %v2982
    %v2984 = vpop.f32.mrf.mxu0
    %v2985 = vadd.f32 %v2872, %v2984
    %v2986 = vpop.f32.mrf.mxu0
    %v2987 = vadd.f32 %v2874, %v2986
    %v2988 = vpop.f32.mrf.mxu0
    %v2989 = vadd.f32 %v2876, %v2988
    %2990 = vmatprep.mubr.bf16.mxu0 %v802
    %2991 = vmatmul.mubr.bf16.gmra.mxu0 %v801
    %v2992 = vpop.f32.mrf.mxu0
    %v2993 = vadd.f32 %v2880, %v2992
    %v2994 = vpop.f32.mrf.mxu0
    %v2995 = vadd.f32 %v2882, %v2994
    %v2996 = vpop.f32.mrf.mxu0
    %v2997 = vadd.f32 %v2884, %v2996
    %v2998 = vpop.f32.mrf.mxu0
    %v2999 = vadd.f32 %v2886, %v2998
    %3000 = vmatprep.mubr.bf16.mxu0 %v806
    %3001 = vmatmul.mubr.bf16.gmra.mxu0 %v805
    %v3002 = vpop.f32.mrf.mxu0
    %v3003 = vadd.f32 %v2890, %v3002
    %v3004 = vpop.f32.mrf.mxu0
    %v3005 = vadd.f32 %v2892, %v3004
    %v3006 = vpop.f32.mrf.mxu0
    %v3007 = vadd.f32 %v2894, %v3006
    %v3008 = vpop.f32.mrf.mxu0
    %v3009 = vadd.f32 %v2896, %v3008
    %3010 = vmatprep.mubr.bf16.mxu0 %v810
    %3011 = vmatmul.mubr.bf16.gmra.mxu0 %v809
    %v3012 = vpop.f32.mrf.mxu0
    %v3013 = vadd.f32 %v2900, %v3012
    %v3014 = vpop.f32.mrf.mxu0
    %v3015 = vadd.f32 %v2902, %v3014
    %v3016 = vpop.f32.mrf.mxu0
    %v3017 = vadd.f32 %v2904, %v3016
    %v3018 = vpop.f32.mrf.mxu0
    %v3019 = vadd.f32 %v2906, %v3018
    %3020 = vmatprep.mubr.bf16.mxu0 %v814
    %3021 = vmatmul.mubr.bf16.gmra.mxu0 %v813
    %v3022 = vpop.f32.mrf.mxu0
    %v3023 = vadd.f32 %v2910, %v3022
    %v3024 = vpop.f32.mrf.mxu0
    %v3025 = vadd.f32 %v2912, %v3024
    %v3026 = vpop.f32.mrf.mxu0
    %v3027 = vadd.f32 %v2914, %v3026
    %v3028 = vpop.f32.mrf.mxu0
    %v3029 = vadd.f32 %v2916, %v3028
    %3030 = vdwg.mxu0
    %v3031 = vadd.f32 %v271, %v2275
    %v3032 = vadd.f32 %v272, %v2277
    %v3033 = vadd.f32 %v273, %v2501
    %v3034 = vadd.f32 %v274, %v2503
    %v3035 = vadd.f32 %v275, %v2727
    %v3036 = vadd.f32 %v276, %v2729
    %v3037 = vadd.f32 %v277, %v2953
    %v3038 = vadd.f32 %v278, %v2955
    %v3039 = vadd.f32 %v279, %v2279
    %v3040 = vadd.f32 %v280, %v2281
    %v3041 = vadd.f32 %v281, %v2505
    %v3042 = vadd.f32 %v282, %v2507
    %v3043 = vadd.f32 %v283, %v2731
    %v3044 = vadd.f32 %v284, %v2733
    %v3045 = vadd.f32 %v285, %v2957
    %v3046 = vadd.f32 %v286, %v2959
    %v3047 = vadd.f32 %v287, %v2285
    %v3048 = vadd.f32 %v288, %v2287
    %v3049 = vadd.f32 %v289, %v2511
    %v3050 = vadd.f32 %v290, %v2513
    %v3051 = vadd.f32 %v291, %v2737
    %v3052 = vadd.f32 %v292, %v2739
    %v3053 = vadd.f32 %v293, %v2963
    %v3054 = vadd.f32 %v294, %v2965
    %v3055 = vadd.f32 %v295, %v2289
    %v3056 = vadd.f32 %v296, %v2291
    %v3057 = vadd.f32 %v297, %v2515
    %v3058 = vadd.f32 %v298, %v2517
    %v3059 = vadd.f32 %v299, %v2741
    %v3060 = vadd.f32 %v300, %v2743
    %v3061 = vadd.f32 %v301, %v2967
    %v3062 = vadd.f32 %v302, %v2969
    %v3063 = vadd.f32 %v303, %v2295
    %v3064 = vadd.f32 %v304, %v2297
    %v3065 = vadd.f32 %v305, %v2521
    %v3066 = vadd.f32 %v306, %v2523
    %v3067 = vadd.f32 %v307, %v2747
    %v3068 = vadd.f32 %v308, %v2749
    %v3069 = vadd.f32 %v309, %v2973
    %v3070 = vadd.f32 %v310, %v2975
    %v3071 = vadd.f32 %v311, %v2299
    %v3072 = vadd.f32 %v312, %v2301
    %v3073 = vadd.f32 %v313, %v2525
    %v3074 = vadd.f32 %v314, %v2527
    %v3075 = vadd.f32 %v315, %v2751
    %v3076 = vadd.f32 %v316, %v2753
    %v3077 = vadd.f32 %v317, %v2977
    %v3078 = vadd.f32 %v318, %v2979
    %v3079 = vadd.f32 %v319, %v2305
    %v3080 = vadd.f32 %v320, %v2307
    %v3081 = vadd.f32 %v321, %v2531
    %v3082 = vadd.f32 %v322, %v2533
    %v3083 = vadd.f32 %v323, %v2757
    %v3084 = vadd.f32 %v324, %v2759
    %v3085 = vadd.f32 %v325, %v2983
    %v3086 = vadd.f32 %v326, %v2985
    %v3087 = vadd.f32 %v327, %v2309
    %v3088 = vadd.f32 %v328, %v2311
    %v3089 = vadd.f32 %v329, %v2535
    %v3090 = vadd.f32 %v330, %v2537
    %v3091 = vadd.f32 %v331, %v2761
    %v3092 = vadd.f32 %v332, %v2763
    %v3093 = vadd.f32 %v333, %v2987
    %v3094 = vadd.f32 %v334, %v2989
    %v3095 = vadd.f32 %v335, %v2315
    %v3096 = vadd.f32 %v336, %v2317
    %v3097 = vadd.f32 %v337, %v2541
    %v3098 = vadd.f32 %v338, %v2543
    %v3099 = vadd.f32 %v339, %v2767
    %v3100 = vadd.f32 %v340, %v2769
    %v3101 = vadd.f32 %v341, %v2993
    %v3102 = vadd.f32 %v342, %v2995
    %v3103 = vadd.f32 %v343, %v2319
    %v3104 = vadd.f32 %v344, %v2321
    %v3105 = vadd.f32 %v345, %v2545
    %v3106 = vadd.f32 %v346, %v2547
    %v3107 = vadd.f32 %v347, %v2771
    %v3108 = vadd.f32 %v348, %v2773
    %v3109 = vadd.f32 %v349, %v2997
    %v3110 = vadd.f32 %v350, %v2999
    %v3111 = vadd.f32 %v351, %v2325
    %v3112 = vadd.f32 %v352, %v2327
    %v3113 = vadd.f32 %v353, %v2551
    %v3114 = vadd.f32 %v354, %v2553
    %v3115 = vadd.f32 %v355, %v2777
    %v3116 = vadd.f32 %v356, %v2779
    %v3117 = vadd.f32 %v357, %v3003
    %v3118 = vadd.f32 %v358, %v3005
    %v3119 = vadd.f32 %v359, %v2329
    %v3120 = vadd.f32 %v360, %v2331
    %v3121 = vadd.f32 %v361, %v2555
    %v3122 = vadd.f32 %v362, %v2557
    %v3123 = vadd.f32 %v363, %v2781
    %v3124 = vadd.f32 %v364, %v2783
    %v3125 = vadd.f32 %v365, %v3007
    %v3126 = vadd.f32 %v366, %v3009
    %v3127 = vadd.f32 %v367, %v2335
    %v3128 = vadd.f32 %v368, %v2337
    %v3129 = vadd.f32 %v369, %v2561
    %v3130 = vadd.f32 %v370, %v2563
    %v3131 = vadd.f32 %v371, %v2787
    %v3132 = vadd.f32 %v372, %v2789
    %v3133 = vadd.f32 %v373, %v3013
    %v3134 = vadd.f32 %v374, %v3015
    %v3135 = vadd.f32 %v375, %v2339
    %v3136 = vadd.f32 %v376, %v2341
    %v3137 = vadd.f32 %v377, %v2565
    %v3138 = vadd.f32 %v378, %v2567
    %v3139 = vadd.f32 %v379, %v2791
    %v3140 = vadd.f32 %v380, %v2793
    %v3141 = vadd.f32 %v381, %v3017
    %v3142 = vadd.f32 %v382, %v3019
    %v3143 = vadd.f32 %v383, %v2345
    %v3144 = vadd.f32 %v384, %v2347
    %v3145 = vadd.f32 %v385, %v2571
    %v3146 = vadd.f32 %v386, %v2573
    %v3147 = vadd.f32 %v387, %v2797
    %v3148 = vadd.f32 %v388, %v2799
    %v3149 = vadd.f32 %v389, %v3023
    %v3150 = vadd.f32 %v390, %v3025
    %v3151 = vadd.f32 %v391, %v2349
    %v3152 = vadd.f32 %v392, %v2351
    %v3153 = vadd.f32 %v393, %v2575
    %v3154 = vadd.f32 %v394, %v2577
    %v3155 = vadd.f32 %v395, %v2801
    %v3156 = vadd.f32 %v396, %v2803
    %v3157 = vadd.f32 %v397, %v3027
    %v3158 = vadd.f32 %v398, %v3029
    %3159 = vst [vmem:[#allocation2] sm:$0xff] %v3031
    %3160 = vst [vmem:[#allocation2 + $0x8] sm:$0xff] %v3032
    %3161 = vst [vmem:[#allocation2 + $0x10] sm:$0xff] %v3033
    %3162 = vst [vmem:[#allocation2 + $0x18] sm:$0xff] %v3034
    %3163 = vst [vmem:[#allocation2 + $0x20] sm:$0xff] %v3035
    %3164 = vst [vmem:[#allocation2 + $0x28] sm:$0xff] %v3036
    %3165 = vst [vmem:[#allocation2 + $0x30] sm:$0xff] %v3037
    %3166 = vst [vmem:[#allocation2 + $0x38] sm:$0xff] %v3038
    %3167 = vst [vmem:[#allocation2 + $0x40] sm:$0xff] %v3039
    %3168 = vst [vmem:[#allocation2 + $0x48] sm:$0xff] %v3040
    %3169 = vst [vmem:[#allocation2 + $0x50] sm:$0xff] %v3041
    %3170 = vst [vmem:[#allocation2 + $0x58] sm:$0xff] %v3042
    %3171 = vst [vmem:[#allocation2 + $0x60] sm:$0xff] %v3043
    %3172 = vst [vmem:[#allocation2 + $0x68] sm:$0xff] %v3044
    %3173 = vst [vmem:[#allocation2 + $0x70] sm:$0xff] %v3045
    %3174 = vst [vmem:[#allocation2 + $0x78] sm:$0xff] %v3046
    %3175 = vst [vmem:[#allocation2 + $0x80] sm:$0xff] %v3047
    %3176 = vst [vmem:[#allocation2 + $0x88] sm:$0xff] %v3048
    %3177 = vst [vmem:[#allocation2 + $0x90] sm:$0xff] %v3049
    %3178 = vst [vmem:[#allocation2 + $0x98] sm:$0xff] %v3050
    %3179 = vst [vmem:[#allocation2 + $0xa0] sm:$0xff] %v3051
    %3180 = vst [vmem:[#allocation2 + $0xa8] sm:$0xff] %v3052
    %3181 = vst [vmem:[#allocation2 + $0xb0] sm:$0xff] %v3053
    %3182 = vst [vmem:[#allocation2 + $0xb8] sm:$0xff] %v3054
    %3183 = vst [vmem:[#allocation2 + $0xc0] sm:$0xff] %v3055
    %3184 = vst [vmem:[#allocation2 + $0xc8] sm:$0xff] %v3056
    %3185 = vst [vmem:[#allocation2 + $0xd0] sm:$0xff] %v3057
    %3186 = vst [vmem:[#allocation2 + $0xd8] sm:$0xff] %v3058
    %3187 = vst [vmem:[#allocation2 + $0xe0] sm:$0xff] %v3059
    %3188 = vst [vmem:[#allocation2 + $0xe8] sm:$0xff] %v3060
    %3189 = vst [vmem:[#allocation2 + $0xf0] sm:$0xff] %v3061
    %3190 = vst [vmem:[#allocation2 + $0xf8] sm:$0xff] %v3062
    %3191 = vst [vmem:[#allocation2 + $0x100] sm:$0xff] %v3063
    %3192 = vst [vmem:[#allocation2 + $0x108] sm:$0xff] %v3064
    %3193 = vst [vmem:[#allocation2 + $0x110] sm:$0xff] %v3065
    %3194 = vst [vmem:[#allocation2 + $0x118] sm:$0xff] %v3066
    %3195 = vst [vmem:[#allocation2 + $0x120] sm:$0xff] %v3067
    %3196 = vst [vmem:[#allocation2 + $0x128] sm:$0xff] %v3068
    %3197 = vst [vmem:[#allocation2 + $0x130] sm:$0xff] %v3069
    %3198 = vst [vmem:[#allocation2 + $0x138] sm:$0xff] %v3070
    %3199 = vst [vmem:[#allocation2 + $0x140] sm:$0xff] %v3071
    %3200 = vst [vmem:[#allocation2 + $0x148] sm:$0xff] %v3072
    %3201 = vst [vmem:[#allocation2 + $0x150] sm:$0xff] %v3073
    %3202 = vst [vmem:[#allocation2 + $0x158] sm:$0xff] %v3074
    %3203 = vst [vmem:[#allocation2 + $0x160] sm:$0xff] %v3075
    %3204 = vst [vmem:[#allocation2 + $0x168] sm:$0xff] %v3076
    %3205 = vst [vmem:[#allocation2 + $0x170] sm:$0xff] %v3077
    %3206 = vst [vmem:[#allocation2 + $0x178] sm:$0xff] %v3078
    %3207 = vst [vmem:[#allocation2 + $0x180] sm:$0xff] %v3079
    %3208 = vst [vmem:[#allocation2 + $0x188] sm:$0xff] %v3080
    %3209 = vst [vmem:[#allocation2 + $0x190] sm:$0xff] %v3081
    %3210 = vst [vmem:[#allocation2 + $0x198] sm:$0xff] %v3082
    %3211 = vst [vmem:[#allocation2 + $0x1a0] sm:$0xff] %v3083
    %3212 = vst [vmem:[#allocation2 + $0x1a8] sm:$0xff] %v3084
    %3213 = vst [vmem:[#allocation2 + $0x1b0] sm:$0xff] %v3085
    %3214 = vst [vmem:[#allocation2 + $0x1b8] sm:$0xff] %v3086
    %3215 = vst [vmem:[#allocation2 + $0x1c0] sm:$0xff] %v3087
    %3216 = vst [vmem:[#allocation2 + $0x1c8] sm:$0xff] %v3088
    %3217 = vst [vmem:[#allocation2 + $0x1d0] sm:$0xff] %v3089
    %3218 = vst [vmem:[#allocation2 + $0x1d8] sm:$0xff] %v3090
    %3219 = vst [vmem:[#allocation2 + $0x1e0] sm:$0xff] %v3091
    %3220 = vst [vmem:[#allocation2 + $0x1e8] sm:$0xff] %v3092
    %3221 = vst [vmem:[#allocation2 + $0x1f0] sm:$0xff] %v3093
    %3222 = vst [vmem:[#allocation2 + $0x1f8] sm:$0xff] %v3094
    %3223 = vst [vmem:[#allocation2 + $0x200] sm:$0xff] %v3095
    %3224 = vst [vmem:[#allocation2 + $0x208] sm:$0xff] %v3096
    %3225 = vst [vmem:[#allocation2 + $0x210] sm:$0xff] %v3097
    %3226 = vst [vmem:[#allocation2 + $0x218] sm:$0xff] %v3098
    %3227 = vst [vmem:[#allocation2 + $0x220] sm:$0xff] %v3099
    %3228 = vst [vmem:[#allocation2 + $0x228] sm:$0xff] %v3100
    %3229 = vst [vmem:[#allocation2 + $0x230] sm:$0xff] %v3101
    %3230 = vst [vmem:[#allocation2 + $0x238] sm:$0xff] %v3102
    %3231 = vst [vmem:[#allocation2 + $0x240] sm:$0xff] %v3103
    %3232 = vst [vmem:[#allocation2 + $0x248] sm:$0xff] %v3104
    %3233 = vst [vmem:[#allocation2 + $0x250] sm:$0xff] %v3105
    %3234 = vst [vmem:[#allocation2 + $0x258] sm:$0xff] %v3106
    %3235 = vst [vmem:[#allocation2 + $0x260] sm:$0xff] %v3107
    %3236 = vst [vmem:[#allocation2 + $0x268] sm:$0xff] %v3108
    %3237 = vst [vmem:[#allocation2 + $0x270] sm:$0xff] %v3109
    %3238 = vst [vmem:[#allocation2 + $0x278] sm:$0xff] %v3110
    %3239 = vst [vmem:[#allocation2 + $0x280] sm:$0xff] %v3111
    %3240 = vst [vmem:[#allocation2 + $0x288] sm:$0xff] %v3112
    %3241 = vst [vmem:[#allocation2 + $0x290] sm:$0xff] %v3113
    %3242 = vst [vmem:[#allocation2 + $0x298] sm:$0xff] %v3114
    %3243 = vst [vmem:[#allocation2 + $0x2a0] sm:$0xff] %v3115
    %3244 = vst [vmem:[#allocation2 + $0x2a8] sm:$0xff] %v3116
    %3245 = vst [vmem:[#allocation2 + $0x2b0] sm:$0xff] %v3117
    %3246 = vst [vmem:[#allocation2 + $0x2b8] sm:$0xff] %v3118
    %3247 = vst [vmem:[#allocation2 + $0x2c0] sm:$0xff] %v3119
    %3248 = vst [vmem:[#allocation2 + $0x2c8] sm:$0xff] %v3120
    %3249 = vst [vmem:[#allocation2 + $0x2d0] sm:$0xff] %v3121
    %3250 = vst [vmem:[#allocation2 + $0x2d8] sm:$0xff] %v3122
    %3251 = vst [vmem:[#allocation2 + $0x2e0] sm:$0xff] %v3123
    %3252 = vst [vmem:[#allocation2 + $0x2e8] sm:$0xff] %v3124
    %3253 = vst [vmem:[#allocation2 + $0x2f0] sm:$0xff] %v3125
    %3254 = vst [vmem:[#allocation2 + $0x2f8] sm:$0xff] %v3126
    %3255 = vst [vmem:[#allocation2 + $0x300] sm:$0xff] %v3127
    %3256 = vst [vmem:[#allocation2 + $0x308] sm:$0xff] %v3128
    %3257 = vst [vmem:[#allocation2 + $0x310] sm:$0xff] %v3129
    %3258 = vst [vmem:[#allocation2 + $0x318] sm:$0xff] %v3130
    %3259 = vst [vmem:[#allocation2 + $0x320] sm:$0xff] %v3131
    %3260 = vst [vmem:[#allocation2 + $0x328] sm:$0xff] %v3132
    %3261 = vst [vmem:[#allocation2 + $0x330] sm:$0xff] %v3133
    %3262 = vst [vmem:[#allocation2 + $0x338] sm:$0xff] %v3134
    %3263 = vst [vmem:[#allocation2 + $0x340] sm:$0xff] %v3135
    %3264 = vst [vmem:[#allocation2 + $0x348] sm:$0xff] %v3136
    %3265 = vst [vmem:[#allocation2 + $0x350] sm:$0xff] %v3137
    %3266 = vst [vmem:[#allocation2 + $0x358] sm:$0xff] %v3138
    %3267 = vst [vmem:[#allocation2 + $0x360] sm:$0xff] %v3139
    %3268 = vst [vmem:[#allocation2 + $0x368] sm:$0xff] %v3140
    %3269 = vst [vmem:[#allocation2 + $0x370] sm:$0xff] %v3141
    %3270 = vst [vmem:[#allocation2 + $0x378] sm:$0xff] %v3142
    %3271 = vst [vmem:[#allocation2 + $0x380] sm:$0xff] %v3143
    %3272 = vst [vmem:[#allocation2 + $0x388] sm:$0xff] %v3144
    %3273 = vst [vmem:[#allocation2 + $0x390] sm:$0xff] %v3145
    %3274 = vst [vmem:[#allocation2 + $0x398] sm:$0xff] %v3146
    %3275 = vst [vmem:[#allocation2 + $0x3a0] sm:$0xff] %v3147
    %3276 = vst [vmem:[#allocation2 + $0x3a8] sm:$0xff] %v3148
    %3277 = vst [vmem:[#allocation2 + $0x3b0] sm:$0xff] %v3149
    %3278 = vst [vmem:[#allocation2 + $0x3b8] sm:$0xff] %v3150
    %3279 = vst [vmem:[#allocation2 + $0x3c0] sm:$0xff] %v3151
    %3280 = vst [vmem:[#allocation2 + $0x3c8] sm:$0xff] %v3152
    %3281 = vst [vmem:[#allocation2 + $0x3d0] sm:$0xff] %v3153
    %3282 = vst [vmem:[#allocation2 + $0x3d8] sm:$0xff] %v3154
    %3283 = vst [vmem:[#allocation2 + $0x3e0] sm:$0xff] %v3155
    %3284 = vst [vmem:[#allocation2 + $0x3e8] sm:$0xff] %v3156
    %3285 = vst [vmem:[#allocation2 + $0x3f0] sm:$0xff] %v3157
    %3286 = vst [vmem:[#allocation2 + $0x3f8] sm:$0xff] %v3158
    // Predicated region
    $region50: #{roi_heads_forward.1} parent=1 // pred_check
      %p3287 = pneg %p97
    $region51: #{roi_heads_forward.1} parent=1 // pred_check_branch
      %3289 = sbr.rel (%p3287) target = $region53
    $region52: #{roi_heads_forward.1} parent=1 // pred_region
      %v3290 = vld [vmem:[#allocation2] sm:$0xff]
      %v3291 = vld [vmem:[#allocation2 + $0x8] sm:$0xff]
      %v3292 = vld [vmem:[#allocation2 + $0x10] sm:$0xff]
      %v3293 = vld [vmem:[#allocation2 + $0x18] sm:$0xff]
      %v3294 = vld [vmem:[#allocation2 + $0x20] sm:$0xff]
      %v3295 = vld [vmem:[#allocation2 + $0x28] sm:$0xff]
      %v3296 = vld [vmem:[#allocation2 + $0x30] sm:$0xff]
      %v3297 = vld [vmem:[#allocation2 + $0x38] sm:$0xff]
      %v3298 = vld [vmem:[#allocation2 + $0x40] sm:$0xff]
      %v3299 = vld [vmem:[#allocation2 + $0x48] sm:$0xff]
      %v3300 = vld [vmem:[#allocation2 + $0x50] sm:$0xff]
      %v3301 = vld [vmem:[#allocation2 + $0x58] sm:$0xff]
      %v3302 = vld [vmem:[#allocation2 + $0x60] sm:$0xff]
      %v3303 = vld [vmem:[#allocation2 + $0x68] sm:$0xff]
      %v3304 = vld [vmem:[#allocation2 + $0x70] sm:$0xff]
      %v3305 = vld [vmem:[#allocation2 + $0x78] sm:$0xff]
      %v3306 = vld [vmem:[#allocation2 + $0x80] sm:$0xff]
      %v3307 = vld [vmem:[#allocation2 + $0x88] sm:$0xff]
      %v3308 = vld [vmem:[#allocation2 + $0x90] sm:$0xff]
      %v3309 = vld [vmem:[#allocation2 + $0x98] sm:$0xff]
      %v3310 = vld [vmem:[#allocation2 + $0xa0] sm:$0xff]
      %v3311 = vld [vmem:[#allocation2 + $0xa8] sm:$0xff]
      %v3312 = vld [vmem:[#allocation2 + $0xb0] sm:$0xff]
      %v3313 = vld [vmem:[#allocation2 + $0xb8] sm:$0xff]
      %v3314 = vld [vmem:[#allocation2 + $0xc0] sm:$0xff]
      %v3315 = vld [vmem:[#allocation2 + $0xc8] sm:$0xff]
      %v3316 = vld [vmem:[#allocation2 + $0xd0] sm:$0xff]
      %v3317 = vld [vmem:[#allocation2 + $0xd8] sm:$0xff]
      %v3318 = vld [vmem:[#allocation2 + $0xe0] sm:$0xff]
      %v3319 = vld [vmem:[#allocation2 + $0xe8] sm:$0xff]
      %v3320 = vld [vmem:[#allocation2 + $0xf0] sm:$0xff]
      %v3321 = vld [vmem:[#allocation2 + $0xf8] sm:$0xff]
      %v3322 = vld [vmem:[#allocation2 + $0x100] sm:$0xff]
      %v3323 = vld [vmem:[#allocation2 + $0x108] sm:$0xff]
      %v3324 = vld [vmem:[#allocation2 + $0x110] sm:$0xff]
      %v3325 = vld [vmem:[#allocation2 + $0x118] sm:$0xff]
      %v3326 = vld [vmem:[#allocation2 + $0x120] sm:$0xff]
      %v3327 = vld [vmem:[#allocation2 + $0x128] sm:$0xff]
      %v3328 = vld [vmem:[#allocation2 + $0x130] sm:$0xff]
      %v3329 = vld [vmem:[#allocation2 + $0x138] sm:$0xff]
      %v3330 = vld [vmem:[#allocation2 + $0x140] sm:$0xff]
      %v3331 = vld [vmem:[#allocation2 + $0x148] sm:$0xff]
      %v3332 = vld [vmem:[#allocation2 + $0x150] sm:$0xff]
      %v3333 = vld [vmem:[#allocation2 + $0x158] sm:$0xff]
      %v3334 = vld [vmem:[#allocation2 + $0x160] sm:$0xff]
      %v3335 = vld [vmem:[#allocation2 + $0x168] sm:$0xff]
      %v3336 = vld [vmem:[#allocation2 + $0x170] sm:$0xff]
      %v3337 = vld [vmem:[#allocation2 + $0x178] sm:$0xff]
      %v3338 = vld [vmem:[#allocation2 + $0x180] sm:$0xff]
      %v3339 = vld [vmem:[#allocation2 + $0x188] sm:$0xff]
      %v3340 = vld [vmem:[#allocation2 + $0x190] sm:$0xff]
      %v3341 = vld [vmem:[#allocation2 + $0x198] sm:$0xff]
      %v3342 = vld [vmem:[#allocation2 + $0x1a0] sm:$0xff]
      %v3343 = vld [vmem:[#allocation2 + $0x1a8] sm:$0xff]
      %v3344 = vld [vmem:[#allocation2 + $0x1b0] sm:$0xff]
      %v3345 = vld [vmem:[#allocation2 + $0x1b8] sm:$0xff]
      %v3346 = vld [vmem:[#allocation2 + $0x1c0] sm:$0xff]
      %v3347 = vld [vmem:[#allocation2 + $0x1c8] sm:$0xff]
      %v3348 = vld [vmem:[#allocation2 + $0x1d0] sm:$0xff]
      %v3349 = vld [vmem:[#allocation2 + $0x1d8] sm:$0xff]
      %v3350 = vld [vmem:[#allocation2 + $0x1e0] sm:$0xff]
      %v3351 = vld [vmem:[#allocation2 + $0x1e8] sm:$0xff]
      %v3352 = vld [vmem:[#allocation2 + $0x1f0] sm:$0xff]
      %v3353 = vld [vmem:[#allocation2 + $0x1f8] sm:$0xff]
      %v3354 = vld [vmem:[#allocation2 + $0x200] sm:$0xff]
      %v3355 = vld [vmem:[#allocation2 + $0x208] sm:$0xff]
      %v3356 = vld [vmem:[#allocation2 + $0x210] sm:$0xff]
      %v3357 = vld [vmem:[#allocation2 + $0x218] sm:$0xff]
      %v3358 = vld [vmem:[#allocation2 + $0x220] sm:$0xff]
      %v3359 = vld [vmem:[#allocation2 + $0x228] sm:$0xff]
      %v3360 = vld [vmem:[#allocation2 + $0x230] sm:$0xff]
      %v3361 = vld [vmem:[#allocation2 + $0x238] sm:$0xff]
      %v3362 = vld [vmem:[#allocation2 + $0x240] sm:$0xff]
      %v3363 = vld [vmem:[#allocation2 + $0x248] sm:$0xff]
      %v3364 = vld [vmem:[#allocation2 + $0x250] sm:$0xff]
      %v3365 = vld [vmem:[#allocation2 + $0x258] sm:$0xff]
      %v3366 = vld [vmem:[#allocation2 + $0x260] sm:$0xff]
      %v3367 = vld [vmem:[#allocation2 + $0x268] sm:$0xff]
      %v3368 = vld [vmem:[#allocation2 + $0x270] sm:$0xff]
      %v3369 = vld [vmem:[#allocation2 + $0x278] sm:$0xff]
      %v3370 = vld [vmem:[#allocation2 + $0x280] sm:$0xff]
      %v3371 = vld [vmem:[#allocation2 + $0x288] sm:$0xff]
      %v3372 = vld [vmem:[#allocation2 + $0x290] sm:$0xff]
      %v3373 = vld [vmem:[#allocation2 + $0x298] sm:$0xff]
      %v3374 = vld [vmem:[#allocation2 + $0x2a0] sm:$0xff]
      %v3375 = vld [vmem:[#allocation2 + $0x2a8] sm:$0xff]
      %v3376 = vld [vmem:[#allocation2 + $0x2b0] sm:$0xff]
      %v3377 = vld [vmem:[#allocation2 + $0x2b8] sm:$0xff]
      %v3378 = vld [vmem:[#allocation2 + $0x2c0] sm:$0xff]
      %v3379 = vld [vmem:[#allocation2 + $0x2c8] sm:$0xff]
      %v3380 = vld [vmem:[#allocation2 + $0x2d0] sm:$0xff]
      %v3381 = vld [vmem:[#allocation2 + $0x2d8] sm:$0xff]
      %v3382 = vld [vmem:[#allocation2 + $0x2e0] sm:$0xff]
      %v3383 = vld [vmem:[#allocation2 + $0x2e8] sm:$0xff]
      %v3384 = vld [vmem:[#allocation2 + $0x2f0] sm:$0xff]
      %v3385 = vld [vmem:[#allocation2 + $0x2f8] sm:$0xff]
      %v3386 = vld [vmem:[#allocation2 + $0x300] sm:$0xff]
      %v3387 = vld [vmem:[#allocation2 + $0x308] sm:$0xff]
      %v3388 = vld [vmem:[#allocation2 + $0x310] sm:$0xff]
      %v3389 = vld [vmem:[#allocation2 + $0x318] sm:$0xff]
      %v3390 = vld [vmem:[#allocation2 + $0x320] sm:$0xff]
      %v3391 = vld [vmem:[#allocation2 + $0x328] sm:$0xff]
      %v3392 = vld [vmem:[#allocation2 + $0x330] sm:$0xff]
      %v3393 = vld [vmem:[#allocation2 + $0x338] sm:$0xff]
      %v3394 = vld [vmem:[#allocation2 + $0x340] sm:$0xff]
      %v3395 = vld [vmem:[#allocation2 + $0x348] sm:$0xff]
      %v3396 = vld [vmem:[#allocation2 + $0x350] sm:$0xff]
      %v3397 = vld [vmem:[#allocation2 + $0x358] sm:$0xff]
      %v3398 = vld [vmem:[#allocation2 + $0x360] sm:$0xff]
      %v3399 = vld [vmem:[#allocation2 + $0x368] sm:$0xff]
      %v3400 = vld [vmem:[#allocation2 + $0x370] sm:$0xff]
      %v3401 = vld [vmem:[#allocation2 + $0x378] sm:$0xff]
      %v3402 = vld [vmem:[#allocation2 + $0x380] sm:$0xff]
      %v3403 = vld [vmem:[#allocation2 + $0x388] sm:$0xff]
      %v3404 = vld [vmem:[#allocation2 + $0x390] sm:$0xff]
      %v3405 = vld [vmem:[#allocation2 + $0x398] sm:$0xff]
      %v3406 = vld [vmem:[#allocation2 + $0x3a0] sm:$0xff]
      %v3407 = vld [vmem:[#allocation2 + $0x3a8] sm:$0xff]
      %v3408 = vld [vmem:[#allocation2 + $0x3b0] sm:$0xff]
      %v3409 = vld [vmem:[#allocation2 + $0x3b8] sm:$0xff]
      %v3410 = vld [vmem:[#allocation2 + $0x3c0] sm:$0xff]
      %v3411 = vld [vmem:[#allocation2 + $0x3c8] sm:$0xff]
      %v3412 = vld [vmem:[#allocation2 + $0x3d0] sm:$0xff]
      %v3413 = vld [vmem:[#allocation2 + $0x3d8] sm:$0xff]
      %v3414 = vld [vmem:[#allocation2 + $0x3e0] sm:$0xff]
      %v3415 = vld [vmem:[#allocation2 + $0x3e8] sm:$0xff]
      %v3416 = vld [vmem:[#allocation2 + $0x3f0] sm:$0xff]
      %v3417 = vld [vmem:[#allocation2 + $0x3f8] sm:$0xff]
      %v3418 = vmax.f32 %v3290, 0.0
      %v3419 = vmax.f32 %v3291, 0.0
      %v3420 = vmax.f32 %v3292, 0.0
      %v3421 = vmax.f32 %v3293, 0.0
      %v3422 = vmax.f32 %v3294, 0.0
      %v3423 = vmax.f32 %v3295, 0.0
      %v3424 = vmax.f32 %v3296, 0.0
      %v3425 = vmax.f32 %v3297, 0.0
      %v3426 = vmax.f32 %v3298, 0.0
      %v3427 = vmax.f32 %v3299, 0.0
      %v3428 = vmax.f32 %v3300, 0.0
      %v3429 = vmax.f32 %v3301, 0.0
      %v3430 = vmax.f32 %v3302, 0.0
      %v3431 = vmax.f32 %v3303, 0.0
      %v3432 = vmax.f32 %v3304, 0.0
      %v3433 = vmax.f32 %v3305, 0.0
      %v3434 = vmax.f32 %v3306, 0.0
      %v3435 = vmax.f32 %v3307, 0.0
      %v3436 = vmax.f32 %v3308, 0.0
      %v3437 = vmax.f32 %v3309, 0.0
      %v3438 = vmax.f32 %v3310, 0.0
      %v3439 = vmax.f32 %v3311, 0.0
      %v3440 = vmax.f32 %v3312, 0.0
      %v3441 = vmax.f32 %v3313, 0.0
      %v3442 = vmax.f32 %v3314, 0.0
      %v3443 = vmax.f32 %v3315, 0.0
      %v3444 = vmax.f32 %v3316, 0.0
      %v3445 = vmax.f32 %v3317, 0.0
      %v3446 = vmax.f32 %v3318, 0.0
      %v3447 = vmax.f32 %v3319, 0.0
      %v3448 = vmax.f32 %v3320, 0.0
      %v3449 = vmax.f32 %v3321, 0.0
      %v3450 = vmax.f32 %v3322, 0.0
      %v3451 = vmax.f32 %v3323, 0.0
      %v3452 = vmax.f32 %v3324, 0.0
      %v3453 = vmax.f32 %v3325, 0.0
      %v3454 = vmax.f32 %v3326, 0.0
      %v3455 = vmax.f32 %v3327, 0.0
      %v3456 = vmax.f32 %v3328, 0.0
      %v3457 = vmax.f32 %v3329, 0.0
      %v3458 = vmax.f32 %v3330, 0.0
      %v3459 = vmax.f32 %v3331, 0.0
      %v3460 = vmax.f32 %v3332, 0.0
      %v3461 = vmax.f32 %v3333, 0.0
      %v3462 = vmax.f32 %v3334, 0.0
      %v3463 = vmax.f32 %v3335, 0.0
      %v3464 = vmax.f32 %v3336, 0.0
      %v3465 = vmax.f32 %v3337, 0.0
      %v3466 = vmax.f32 %v3338, 0.0
      %v3467 = vmax.f32 %v3339, 0.0
      %v3468 = vmax.f32 %v3340, 0.0
      %v3469 = vmax.f32 %v3341, 0.0
      %v3470 = vmax.f32 %v3342, 0.0
      %v3471 = vmax.f32 %v3343, 0.0
      %v3472 = vmax.f32 %v3344, 0.0
      %v3473 = vmax.f32 %v3345, 0.0
      %v3474 = vmax.f32 %v3346, 0.0
      %v3475 = vmax.f32 %v3347, 0.0
      %v3476 = vmax.f32 %v3348, 0.0
      %v3477 = vmax.f32 %v3349, 0.0
      %v3478 = vmax.f32 %v3350, 0.0
      %v3479 = vmax.f32 %v3351, 0.0
      %v3480 = vmax.f32 %v3352, 0.0
      %v3481 = vmax.f32 %v3353, 0.0
      %v3482 = vmax.f32 %v3354, 0.0
      %v3483 = vmax.f32 %v3355, 0.0
      %v3484 = vmax.f32 %v3356, 0.0
      %v3485 = vmax.f32 %v3357, 0.0
      %v3486 = vmax.f32 %v3358, 0.0
      %v3487 = vmax.f32 %v3359, 0.0
      %v3488 = vmax.f32 %v3360, 0.0
      %v3489 = vmax.f32 %v3361, 0.0
      %v3490 = vmax.f32 %v3362, 0.0
      %v3491 = vmax.f32 %v3363, 0.0
      %v3492 = vmax.f32 %v3364, 0.0
      %v3493 = vmax.f32 %v3365, 0.0
      %v3494 = vmax.f32 %v3366, 0.0
      %v3495 = vmax.f32 %v3367, 0.0
      %v3496 = vmax.f32 %v3368, 0.0
      %v3497 = vmax.f32 %v3369, 0.0
      %v3498 = vmax.f32 %v3370, 0.0
      %v3499 = vmax.f32 %v3371, 0.0
      %v3500 = vmax.f32 %v3372, 0.0
      %v3501 = vmax.f32 %v3373, 0.0
      %v3502 = vmax.f32 %v3374, 0.0
      %v3503 = vmax.f32 %v3375, 0.0
      %v3504 = vmax.f32 %v3376, 0.0
      %v3505 = vmax.f32 %v3377, 0.0
      %v3506 = vmax.f32 %v3378, 0.0
      %v3507 = vmax.f32 %v3379, 0.0
      %v3508 = vmax.f32 %v3380, 0.0
      %v3509 = vmax.f32 %v3381, 0.0
      %v3510 = vmax.f32 %v3382, 0.0
      %v3511 = vmax.f32 %v3383, 0.0
      %v3512 = vmax.f32 %v3384, 0.0
      %v3513 = vmax.f32 %v3385, 0.0
      %v3514 = vmax.f32 %v3386, 0.0
      %v3515 = vmax.f32 %v3387, 0.0
      %v3516 = vmax.f32 %v3388, 0.0
      %v3517 = vmax.f32 %v3389, 0.0
      %v3518 = vmax.f32 %v3390, 0.0
      %v3519 = vmax.f32 %v3391, 0.0
      %v3520 = vmax.f32 %v3392, 0.0
      %v3521 = vmax.f32 %v3393, 0.0
      %v3522 = vmax.f32 %v3394, 0.0
      %v3523 = vmax.f32 %v3395, 0.0
      %v3524 = vmax.f32 %v3396, 0.0
      %v3525 = vmax.f32 %v3397, 0.0
      %v3526 = vmax.f32 %v3398, 0.0
      %v3527 = vmax.f32 %v3399, 0.0
      %v3528 = vmax.f32 %v3400, 0.0
      %v3529 = vmax.f32 %v3401, 0.0
      %v3530 = vmax.f32 %v3402, 0.0
      %v3531 = vmax.f32 %v3403, 0.0
      %v3532 = vmax.f32 %v3404, 0.0
      %v3533 = vmax.f32 %v3405, 0.0
      %v3534 = vmax.f32 %v3406, 0.0
      %v3535 = vmax.f32 %v3407, 0.0
      %v3536 = vmax.f32 %v3408, 0.0
      %v3537 = vmax.f32 %v3409, 0.0
      %v3538 = vmax.f32 %v3410, 0.0
      %v3539 = vmax.f32 %v3411, 0.0
      %v3540 = vmax.f32 %v3412, 0.0
      %v3541 = vmax.f32 %v3413, 0.0
      %v3542 = vmax.f32 %v3414, 0.0
      %v3543 = vmax.f32 %v3415, 0.0
      %v3544 = vmax.f32 %v3416, 0.0
      %v3545 = vmax.f32 %v3417, 0.0
      %3546 = vst [vmem:[#allocation14] sm:$0xff] %v3418
      %3547 = vst [vmem:[#allocation14 + $0x8] sm:$0xff] %v3419
      %3548 = vst [vmem:[#allocation14 + $0x10] sm:$0xff] %v3420
      %3549 = vst [vmem:[#allocation14 + $0x18] sm:$0xff] %v3421
      %3550 = vst [vmem:[#allocation14 + $0x20] sm:$0xff] %v3422
      %3551 = vst [vmem:[#allocation14 + $0x28] sm:$0xff] %v3423
      %3552 = vst [vmem:[#allocation14 + $0x30] sm:$0xff] %v3424
      %3553 = vst [vmem:[#allocation14 + $0x38] sm:$0xff] %v3425
      %3554 = vst [vmem:[#allocation14 + $0x40] sm:$0xff] %v3426
      %3555 = vst [vmem:[#allocation14 + $0x48] sm:$0xff] %v3427
      %3556 = vst [vmem:[#allocation14 + $0x50] sm:$0xff] %v3428
      %3557 = vst [vmem:[#allocation14 + $0x58] sm:$0xff] %v3429
      %3558 = vst [vmem:[#allocation14 + $0x60] sm:$0xff] %v3430
      %3559 = vst [vmem:[#allocation14 + $0x68] sm:$0xff] %v3431
      %3560 = vst [vmem:[#allocation14 + $0x70] sm:$0xff] %v3432
      %3561 = vst [vmem:[#allocation14 + $0x78] sm:$0xff] %v3433
      %3562 = vst [vmem:[#allocation14 + $0x80] sm:$0xff] %v3434
      %3563 = vst [vmem:[#allocation14 + $0x88] sm:$0xff] %v3435
      %3564 = vst [vmem:[#allocation14 + $0x90] sm:$0xff] %v3436
      %3565 = vst [vmem:[#allocation14 + $0x98] sm:$0xff] %v3437
      %3566 = vst [vmem:[#allocation14 + $0xa0] sm:$0xff] %v3438
      %3567 = vst [vmem:[#allocation14 + $0xa8] sm:$0xff] %v3439
      %3568 = vst [vmem:[#allocation14 + $0xb0] sm:$0xff] %v3440
      %3569 = vst [vmem:[#allocation14 + $0xb8] sm:$0xff] %v3441
      %3570 = vst [vmem:[#allocation14 + $0xc0] sm:$0xff] %v3442
      %3571 = vst [vmem:[#allocation14 + $0xc8] sm:$0xff] %v3443
      %3572 = vst [vmem:[#allocation14 + $0xd0] sm:$0xff] %v3444
      %3573 = vst [vmem:[#allocation14 + $0xd8] sm:$0xff] %v3445
      %3574 = vst [vmem:[#allocation14 + $0xe0] sm:$0xff] %v3446
      %3575 = vst [vmem:[#allocation14 + $0xe8] sm:$0xff] %v3447
      %3576 = vst [vmem:[#allocation14 + $0xf0] sm:$0xff] %v3448
      %3577 = vst [vmem:[#allocation14 + $0xf8] sm:$0xff] %v3449
      %3578 = vst [vmem:[#allocation14 + $0x100] sm:$0xff] %v3450
      %3579 = vst [vmem:[#allocation14 + $0x108] sm:$0xff] %v3451
      %3580 = vst [vmem:[#allocation14 + $0x110] sm:$0xff] %v3452
      %3581 = vst [vmem:[#allocation14 + $0x118] sm:$0xff] %v3453
      %3582 = vst [vmem:[#allocation14 + $0x120] sm:$0xff] %v3454
      %3583 = vst [vmem:[#allocation14 + $0x128] sm:$0xff] %v3455
      %3584 = vst [vmem:[#allocation14 + $0x130] sm:$0xff] %v3456
      %3585 = vst [vmem:[#allocation14 + $0x138] sm:$0xff] %v3457
      %3586 = vst [vmem:[#allocation14 + $0x140] sm:$0xff] %v3458
      %3587 = vst [vmem:[#allocation14 + $0x148] sm:$0xff] %v3459
      %3588 = vst [vmem:[#allocation14 + $0x150] sm:$0xff] %v3460
      %3589 = vst [vmem:[#allocation14 + $0x158] sm:$0xff] %v3461
      %3590 = vst [vmem:[#allocation14 + $0x160] sm:$0xff] %v3462
      %3591 = vst [vmem:[#allocation14 + $0x168] sm:$0xff] %v3463
      %3592 = vst [vmem:[#allocation14 + $0x170] sm:$0xff] %v3464
      %3593 = vst [vmem:[#allocation14 + $0x178] sm:$0xff] %v3465
      %3594 = vst [vmem:[#allocation14 + $0x180] sm:$0xff] %v3466
      %3595 = vst [vmem:[#allocation14 + $0x188] sm:$0xff] %v3467
      %3596 = vst [vmem:[#allocation14 + $0x190] sm:$0xff] %v3468
      %3597 = vst [vmem:[#allocation14 + $0x198] sm:$0xff] %v3469
      %3598 = vst [vmem:[#allocation14 + $0x1a0] sm:$0xff] %v3470
      %3599 = vst [vmem:[#allocation14 + $0x1a8] sm:$0xff] %v3471
      %3600 = vst [vmem:[#allocation14 + $0x1b0] sm:$0xff] %v3472
      %3601 = vst [vmem:[#allocation14 + $0x1b8] sm:$0xff] %v3473
      %3602 = vst [vmem:[#allocation14 + $0x1c0] sm:$0xff] %v3474
      %3603 = vst [vmem:[#allocation14 + $0x1c8] sm:$0xff] %v3475
      %3604 = vst [vmem:[#allocation14 + $0x1d0] sm:$0xff] %v3476
      %3605 = vst [vmem:[#allocation14 + $0x1d8] sm:$0xff] %v3477
      %3606 = vst [vmem:[#allocation14 + $0x1e0] sm:$0xff] %v3478
      %3607 = vst [vmem:[#allocation14 + $0x1e8] sm:$0xff] %v3479
      %3608 = vst [vmem:[#allocation14 + $0x1f0] sm:$0xff] %v3480
      %3609 = vst [vmem:[#allocation14 + $0x1f8] sm:$0xff] %v3481
      %3610 = vst [vmem:[#allocation14 + $0x200] sm:$0xff] %v3482
      %3611 = vst [vmem:[#allocation14 + $0x208] sm:$0xff] %v3483
      %3612 = vst [vmem:[#allocation14 + $0x210] sm:$0xff] %v3484
      %3613 = vst [vmem:[#allocation14 + $0x218] sm:$0xff] %v3485
      %3614 = vst [vmem:[#allocation14 + $0x220] sm:$0xff] %v3486
      %3615 = vst [vmem:[#allocation14 + $0x228] sm:$0xff] %v3487
      %3616 = vst [vmem:[#allocation14 + $0x230] sm:$0xff] %v3488
      %3617 = vst [vmem:[#allocation14 + $0x238] sm:$0xff] %v3489
      %3618 = vst [vmem:[#allocation14 + $0x240] sm:$0xff] %v3490
      %3619 = vst [vmem:[#allocation14 + $0x248] sm:$0xff] %v3491
      %3620 = vst [vmem:[#allocation14 + $0x250] sm:$0xff] %v3492
      %3621 = vst [vmem:[#allocation14 + $0x258] sm:$0xff] %v3493
      %3622 = vst [vmem:[#allocation14 + $0x260] sm:$0xff] %v3494
      %3623 = vst [vmem:[#allocation14 + $0x268] sm:$0xff] %v3495
      %3624 = vst [vmem:[#allocation14 + $0x270] sm:$0xff] %v3496
      %3625 = vst [vmem:[#allocation14 + $0x278] sm:$0xff] %v3497
      %3626 = vst [vmem:[#allocation14 + $0x280] sm:$0xff] %v3498
      %3627 = vst [vmem:[#allocation14 + $0x288] sm:$0xff] %v3499
      %3628 = vst [vmem:[#allocation14 + $0x290] sm:$0xff] %v3500
      %3629 = vst [vmem:[#allocation14 + $0x298] sm:$0xff] %v3501
      %3630 = vst [vmem:[#allocation14 + $0x2a0] sm:$0xff] %v3502
      %3631 = vst [vmem:[#allocation14 + $0x2a8] sm:$0xff] %v3503
      %3632 = vst [vmem:[#allocation14 + $0x2b0] sm:$0xff] %v3504
      %3633 = vst [vmem:[#allocation14 + $0x2b8] sm:$0xff] %v3505
      %3634 = vst [vmem:[#allocation14 + $0x2c0] sm:$0xff] %v3506
      %3635 = vst [vmem:[#allocation14 + $0x2c8] sm:$0xff] %v3507
      %3636 = vst [vmem:[#allocation14 + $0x2d0] sm:$0xff] %v3508
      %3637 = vst [vmem:[#allocation14 + $0x2d8] sm:$0xff] %v3509
      %3638 = vst [vmem:[#allocation14 + $0x2e0] sm:$0xff] %v3510
      %3639 = vst [vmem:[#allocation14 + $0x2e8] sm:$0xff] %v3511
      %3640 = vst [vmem:[#allocation14 + $0x2f0] sm:$0xff] %v3512
      %3641 = vst [vmem:[#allocation14 + $0x2f8] sm:$0xff] %v3513
      %3642 = vst [vmem:[#allocation14 + $0x300] sm:$0xff] %v3514
      %3643 = vst [vmem:[#allocation14 + $0x308] sm:$0xff] %v3515
      %3644 = vst [vmem:[#allocation14 + $0x310] sm:$0xff] %v3516
      %3645 = vst [vmem:[#allocation14 + $0x318] sm:$0xff] %v3517
      %3646 = vst [vmem:[#allocation14 + $0x320] sm:$0xff] %v3518
      %3647 = vst [vmem:[#allocation14 + $0x328] sm:$0xff] %v3519
      %3648 = vst [vmem:[#allocation14 + $0x330] sm:$0xff] %v3520
      %3649 = vst [vmem:[#allocation14 + $0x338] sm:$0xff] %v3521
      %3650 = vst [vmem:[#allocation14 + $0x340] sm:$0xff] %v3522
      %3651 = vst [vmem:[#allocation14 + $0x348] sm:$0xff] %v3523
      %3652 = vst [vmem:[#allocation14 + $0x350] sm:$0xff] %v3524
      %3653 = vst [vmem:[#allocation14 + $0x358] sm:$0xff] %v3525
      %3654 = vst [vmem:[#allocation14 + $0x360] sm:$0xff] %v3526
      %3655 = vst [vmem:[#allocation14 + $0x368] sm:$0xff] %v3527
      %3656 = vst [vmem:[#allocation14 + $0x370] sm:$0xff] %v3528
      %3657 = vst [vmem:[#allocation14 + $0x378] sm:$0xff] %v3529
      %3658 = vst [vmem:[#allocation14 + $0x380] sm:$0xff] %v3530
      %3659 = vst [vmem:[#allocation14 + $0x388] sm:$0xff] %v3531
      %3660 = vst [vmem:[#allocation14 + $0x390] sm:$0xff] %v3532
      %3661 = vst [vmem:[#allocation14 + $0x398] sm:$0xff] %v3533
      %3662 = vst [vmem:[#allocation14 + $0x3a0] sm:$0xff] %v3534
      %3663 = vst [vmem:[#allocation14 + $0x3a8] sm:$0xff] %v3535
      %3664 = vst [vmem:[#allocation14 + $0x3b0] sm:$0xff] %v3536
      %3665 = vst [vmem:[#allocation14 + $0x3b8] sm:$0xff] %v3537
      %3666 = vst [vmem:[#allocation14 + $0x3c0] sm:$0xff] %v3538
      %3667 = vst [vmem:[#allocation14 + $0x3c8] sm:$0xff] %v3539
      %3668 = vst [vmem:[#allocation14 + $0x3d0] sm:$0xff] %v3540
      %3669 = vst [vmem:[#allocation14 + $0x3d8] sm:$0xff] %v3541
      %3670 = vst [vmem:[#allocation14 + $0x3e0] sm:$0xff] %v3542
      %3671 = vst [vmem:[#allocation14 + $0x3e8] sm:$0xff] %v3543
      %3672 = vst [vmem:[#allocation14 + $0x3f0] sm:$0xff] %v3544
      %3673 = vst [vmem:[#allocation14 + $0x3f8] sm:$0xff] %v3545
      %v3674 = vpack.c.bf16 %v3426, %v3418
      %v3675 = vpack.c.bf16 %v3427, %v3419
      %v3676 = vpack.c.bf16 %v3428, %v3420
      %v3677 = vpack.c.bf16 %v3429, %v3421
      %v3678 = vpack.c.bf16 %v3430, %v3422
      %v3679 = vpack.c.bf16 %v3431, %v3423
      %v3680 = vpack.c.bf16 %v3432, %v3424
      %v3681 = vpack.c.bf16 %v3433, %v3425
      %v3682 = vpack.c.bf16 %v3442, %v3434
      %v3683 = vpack.c.bf16 %v3443, %v3435
      %v3684 = vpack.c.bf16 %v3444, %v3436
      %v3685 = vpack.c.bf16 %v3445, %v3437
      %v3686 = vpack.c.bf16 %v3446, %v3438
      %v3687 = vpack.c.bf16 %v3447, %v3439
      %v3688 = vpack.c.bf16 %v3448, %v3440
      %v3689 = vpack.c.bf16 %v3449, %v3441
      %v3690 = vpack.c.bf16 %v3458, %v3450
      %v3691 = vpack.c.bf16 %v3459, %v3451
      %v3692 = vpack.c.bf16 %v3460, %v3452
      %v3693 = vpack.c.bf16 %v3461, %v3453
      %v3694 = vpack.c.bf16 %v3462, %v3454
      %v3695 = vpack.c.bf16 %v3463, %v3455
      %v3696 = vpack.c.bf16 %v3464, %v3456
      %v3697 = vpack.c.bf16 %v3465, %v3457
      %v3698 = vpack.c.bf16 %v3474, %v3466
      %v3699 = vpack.c.bf16 %v3475, %v3467
      %v3700 = vpack.c.bf16 %v3476, %v3468
      %v3701 = vpack.c.bf16 %v3477, %v3469
      %v3702 = vpack.c.bf16 %v3478, %v3470
      %v3703 = vpack.c.bf16 %v3479, %v3471
      %v3704 = vpack.c.bf16 %v3480, %v3472
      %v3705 = vpack.c.bf16 %v3481, %v3473
      %v3706 = vpack.c.bf16 %v3490, %v3482
      %v3707 = vpack.c.bf16 %v3491, %v3483
      %v3708 = vpack.c.bf16 %v3492, %v3484
      %v3709 = vpack.c.bf16 %v3493, %v3485
      %v3710 = vpack.c.bf16 %v3494, %v3486
      %v3711 = vpack.c.bf16 %v3495, %v3487
      %v3712 = vpack.c.bf16 %v3496, %v3488
      %v3713 = vpack.c.bf16 %v3497, %v3489
      %v3714 = vpack.c.bf16 %v3506, %v3498
      %v3715 = vpack.c.bf16 %v3507, %v3499
      %v3716 = vpack.c.bf16 %v3508, %v3500
      %v3717 = vpack.c.bf16 %v3509, %v3501
      %v3718 = vpack.c.bf16 %v3510, %v3502
      %v3719 = vpack.c.bf16 %v3511, %v3503
      %v3720 = vpack.c.bf16 %v3512, %v3504
      %v3721 = vpack.c.bf16 %v3513, %v3505
      %v3722 = vpack.c.bf16 %v3522, %v3514
      %v3723 = vpack.c.bf16 %v3523, %v3515
      %v3724 = vpack.c.bf16 %v3524, %v3516
      %v3725 = vpack.c.bf16 %v3525, %v3517
      %v3726 = vpack.c.bf16 %v3526, %v3518
      %v3727 = vpack.c.bf16 %v3527, %v3519
      %v3728 = vpack.c.bf16 %v3528, %v3520
      %v3729 = vpack.c.bf16 %v3529, %v3521
      %v3730 = vpack.c.bf16 %v3538, %v3530
      %v3731 = vpack.c.bf16 %v3539, %v3531
      %v3732 = vpack.c.bf16 %v3540, %v3532
      %v3733 = vpack.c.bf16 %v3541, %v3533
      %v3734 = vpack.c.bf16 %v3542, %v3534
      %v3735 = vpack.c.bf16 %v3543, %v3535
      %v3736 = vpack.c.bf16 %v3544, %v3536
      %v3737 = vpack.c.bf16 %v3545, %v3537
      %v3738 = vld [vmem:[#allocation11] sm:$0xff]
      %v3739 = vld [vmem:[#allocation11 + $0x8] sm:$0xff]
      %v3740 = vld [vmem:[#allocation11 + $0x10] sm:$0xff]
      %v3741 = vld [vmem:[#allocation11 + $0x18] sm:$0xff]
      %v3742 = vld [vmem:[#allocation11 + $0x20] sm:$0xff]
      %v3743 = vld [vmem:[#allocation11 + $0x28] sm:$0xff]
      %v3744 = vld [vmem:[#allocation11 + $0x30] sm:$0xff]
      %v3745 = vld [vmem:[#allocation11 + $0x38] sm:$0xff]
      %v3746 = vld [vmem:[#allocation11 + $0x40] sm:$0xff]
      %v3747 = vld [vmem:[#allocation11 + $0x48] sm:$0xff]
      %v3748 = vld [vmem:[#allocation11 + $0x50] sm:$0xff]
      %v3749 = vld [vmem:[#allocation11 + $0x58] sm:$0xff]
      %v3750 = vld [vmem:[#allocation11 + $0x60] sm:$0xff]
      %v3751 = vld [vmem:[#allocation11 + $0x68] sm:$0xff]
      %v3752 = vld [vmem:[#allocation11 + $0x70] sm:$0xff]
      %v3753 = vld [vmem:[#allocation11 + $0x78] sm:$0xff]
      %v3754 = vld [vmem:[#allocation11 + $0x80] sm:$0xff]
      %v3755 = vld [vmem:[#allocation11 + $0x88] sm:$0xff]
      %v3756 = vld [vmem:[#allocation11 + $0x90] sm:$0xff]
      %v3757 = vld [vmem:[#allocation11 + $0x98] sm:$0xff]
      %v3758 = vld [vmem:[#allocation11 + $0xa0] sm:$0xff]
      %v3759 = vld [vmem:[#allocation11 + $0xa8] sm:$0xff]
      %v3760 = vld [vmem:[#allocation11 + $0xb0] sm:$0xff]
      %v3761 = vld [vmem:[#allocation11 + $0xb8] sm:$0xff]
      %v3762 = vld [vmem:[#allocation11 + $0xc0] sm:$0xff]
      %v3763 = vld [vmem:[#allocation11 + $0xc8] sm:$0xff]
      %v3764 = vld [vmem:[#allocation11 + $0xd0] sm:$0xff]
      %v3765 = vld [vmem:[#allocation11 + $0xd8] sm:$0xff]
      %v3766 = vld [vmem:[#allocation11 + $0xe0] sm:$0xff]
      %v3767 = vld [vmem:[#allocation11 + $0xe8] sm:$0xff]
      %v3768 = vld [vmem:[#allocation11 + $0xf0] sm:$0xff]
      %v3769 = vld [vmem:[#allocation11 + $0xf8] sm:$0xff]
      %v3770 = vld [vmem:[#allocation11 + $0x100] sm:$0xff]
      %v3771 = vld [vmem:[#allocation11 + $0x108] sm:$0xff]
      %v3772 = vld [vmem:[#allocation11 + $0x110] sm:$0xff]
      %v3773 = vld [vmem:[#allocation11 + $0x118] sm:$0xff]
      %v3774 = vld [vmem:[#allocation11 + $0x120] sm:$0xff]
      %v3775 = vld [vmem:[#allocation11 + $0x128] sm:$0xff]
      %v3776 = vld [vmem:[#allocation11 + $0x130] sm:$0xff]
      %v3777 = vld [vmem:[#allocation11 + $0x138] sm:$0xff]
      %v3778 = vld [vmem:[#allocation11 + $0x140] sm:$0xff]
      %v3779 = vld [vmem:[#allocation11 + $0x148] sm:$0xff]
      %v3780 = vld [vmem:[#allocation11 + $0x150] sm:$0xff]
      %v3781 = vld [vmem:[#allocation11 + $0x158] sm:$0xff]
      %v3782 = vld [vmem:[#allocation11 + $0x160] sm:$0xff]
      %v3783 = vld [vmem:[#allocation11 + $0x168] sm:$0xff]
      %v3784 = vld [vmem:[#allocation11 + $0x170] sm:$0xff]
      %v3785 = vld [vmem:[#allocation11 + $0x178] sm:$0xff]
      %v3786 = vld [vmem:[#allocation11 + $0x180] sm:$0xff]
      %v3787 = vld [vmem:[#allocation11 + $0x188] sm:$0xff]
      %v3788 = vld [vmem:[#allocation11 + $0x190] sm:$0xff]
      %v3789 = vld [vmem:[#allocation11 + $0x198] sm:$0xff]
      %v3790 = vld [vmem:[#allocation11 + $0x1a0] sm:$0xff]
      %v3791 = vld [vmem:[#allocation11 + $0x1a8] sm:$0xff]
      %v3792 = vld [vmem:[#allocation11 + $0x1b0] sm:$0xff]
      %v3793 = vld [vmem:[#allocation11 + $0x1b8] sm:$0xff]
      %v3794 = vld [vmem:[#allocation11 + $0x1c0] sm:$0xff]
      %v3795 = vld [vmem:[#allocation11 + $0x1c8] sm:$0xff]
      %v3796 = vld [vmem:[#allocation11 + $0x1d0] sm:$0xff]
      %v3797 = vld [vmem:[#allocation11 + $0x1d8] sm:$0xff]
      %v3798 = vld [vmem:[#allocation11 + $0x1e0] sm:$0xff]
      %v3799 = vld [vmem:[#allocation11 + $0x1e8] sm:$0xff]
      %v3800 = vld [vmem:[#allocation11 + $0x1f0] sm:$0xff]
      %v3801 = vld [vmem:[#allocation11 + $0x1f8] sm:$0xff]
      %v3802 = vld [vmem:[#allocation11 + $0x200] sm:$0xff]
      %v3803 = vld [vmem:[#allocation11 + $0x208] sm:$0xff]
      %v3804 = vld [vmem:[#allocation11 + $0x210] sm:$0xff]
      %v3805 = vld [vmem:[#allocation11 + $0x218] sm:$0xff]
      %v3806 = vld [vmem:[#allocation11 + $0x220] sm:$0xff]
      %v3807 = vld [vmem:[#allocation11 + $0x228] sm:$0xff]
      %v3808 = vld [vmem:[#allocation11 + $0x230] sm:$0xff]
      %v3809 = vld [vmem:[#allocation11 + $0x238] sm:$0xff]
      %v3810 = vld [vmem:[#allocation11 + $0x240] sm:$0xff]
      %v3811 = vld [vmem:[#allocation11 + $0x248] sm:$0xff]
      %v3812 = vld [vmem:[#allocation11 + $0x250] sm:$0xff]
      %v3813 = vld [vmem:[#allocation11 + $0x258] sm:$0xff]
      %v3814 = vld [vmem:[#allocation11 + $0x260] sm:$0xff]
      %v3815 = vld [vmem:[#allocation11 + $0x268] sm:$0xff]
      %v3816 = vld [vmem:[#allocation11 + $0x270] sm:$0xff]
      %v3817 = vld [vmem:[#allocation11 + $0x278] sm:$0xff]
      %v3818 = vld [vmem:[#allocation11 + $0x280] sm:$0xff]
      %v3819 = vld [vmem:[#allocation11 + $0x288] sm:$0xff]
      %v3820 = vld [vmem:[#allocation11 + $0x290] sm:$0xff]
      %v3821 = vld [vmem:[#allocation11 + $0x298] sm:$0xff]
      %v3822 = vld [vmem:[#allocation11 + $0x2a0] sm:$0xff]
      %v3823 = vld [vmem:[#allocation11 + $0x2a8] sm:$0xff]
      %v3824 = vld [vmem:[#allocation11 + $0x2b0] sm:$0xff]
      %v3825 = vld [vmem:[#allocation11 + $0x2b8] sm:$0xff]
      %v3826 = vld [vmem:[#allocation11 + $0x2c0] sm:$0xff]
      %v3827 = vld [vmem:[#allocation11 + $0x2c8] sm:$0xff]
      %v3828 = vld [vmem:[#allocation11 + $0x2d0] sm:$0xff]
      %v3829 = vld [vmem:[#allocation11 + $0x2d8] sm:$0xff]
      %v3830 = vld [vmem:[#allocation11 + $0x2e0] sm:$0xff]
      %v3831 = vld [vmem:[#allocation11 + $0x2e8] sm:$0xff]
      %v3832 = vld [vmem:[#allocation11 + $0x2f0] sm:$0xff]
      %v3833 = vld [vmem:[#allocation11 + $0x2f8] sm:$0xff]
      %v3834 = vld [vmem:[#allocation11 + $0x300] sm:$0xff]
      %v3835 = vld [vmem:[#allocation11 + $0x308] sm:$0xff]
      %v3836 = vld [vmem:[#allocation11 + $0x310] sm:$0xff]
      %v3837 = vld [vmem:[#allocation11 + $0x318] sm:$0xff]
      %v3838 = vld [vmem:[#allocation11 + $0x320] sm:$0xff]
      %v3839 = vld [vmem:[#allocation11 + $0x328] sm:$0xff]
      %v3840 = vld [vmem:[#allocation11 + $0x330] sm:$0xff]
      %v3841 = vld [vmem:[#allocation11 + $0x338] sm:$0xff]
      %v3842 = vld [vmem:[#allocation11 + $0x340] sm:$0xff]
      %v3843 = vld [vmem:[#allocation11 + $0x348] sm:$0xff]
      %v3844 = vld [vmem:[#allocation11 + $0x350] sm:$0xff]
      %v3845 = vld [vmem:[#allocation11 + $0x358] sm:$0xff]
      %v3846 = vld [vmem:[#allocation11 + $0x360] sm:$0xff]
      %v3847 = vld [vmem:[#allocation11 + $0x368] sm:$0xff]
      %v3848 = vld [vmem:[#allocation11 + $0x370] sm:$0xff]
      %v3849 = vld [vmem:[#allocation11 + $0x378] sm:$0xff]
      %v3850 = vld [vmem:[#allocation11 + $0x380] sm:$0xff]
      %v3851 = vld [vmem:[#allocation11 + $0x388] sm:$0xff]
      %v3852 = vld [vmem:[#allocation11 + $0x390] sm:$0xff]
      %v3853 = vld [vmem:[#allocation11 + $0x398] sm:$0xff]
      %v3854 = vld [vmem:[#allocation11 + $0x3a0] sm:$0xff]
      %v3855 = vld [vmem:[#allocation11 + $0x3a8] sm:$0xff]
      %v3856 = vld [vmem:[#allocation11 + $0x3b0] sm:$0xff]
      %v3857 = vld [vmem:[#allocation11 + $0x3b8] sm:$0xff]
      %v3858 = vld [vmem:[#allocation11 + $0x3c0] sm:$0xff]
      %v3859 = vld [vmem:[#allocation11 + $0x3c8] sm:$0xff]
      %v3860 = vld [vmem:[#allocation11 + $0x3d0] sm:$0xff]
      %v3861 = vld [vmem:[#allocation11 + $0x3d8] sm:$0xff]
      %v3862 = vld [vmem:[#allocation11 + $0x3e0] sm:$0xff]
      %v3863 = vld [vmem:[#allocation11 + $0x3e8] sm:$0xff]
      %v3864 = vld [vmem:[#allocation11 + $0x3f0] sm:$0xff]
      %v3865 = vld [vmem:[#allocation11 + $0x3f8] sm:$0xff]
      %v3866 = vld [vmem:[#allocation11 + $0x400] sm:$0xff]
      %v3867 = vld [vmem:[#allocation11 + $0x408] sm:$0xff]
      %v3868 = vld [vmem:[#allocation11 + $0x410] sm:$0xff]
      %v3869 = vld [vmem:[#allocation11 + $0x418] sm:$0xff]
      %v3870 = vld [vmem:[#allocation11 + $0x420] sm:$0xff]
      %v3871 = vld [vmem:[#allocation11 + $0x428] sm:$0xff]
      %v3872 = vld [vmem:[#allocation11 + $0x430] sm:$0xff]
      %v3873 = vld [vmem:[#allocation11 + $0x438] sm:$0xff]
      %v3874 = vld [vmem:[#allocation11 + $0x440] sm:$0xff]
      %v3875 = vld [vmem:[#allocation11 + $0x448] sm:$0xff]
      %v3876 = vld [vmem:[#allocation11 + $0x450] sm:$0xff]
      %v3877 = vld [vmem:[#allocation11 + $0x458] sm:$0xff]
      %v3878 = vld [vmem:[#allocation11 + $0x460] sm:$0xff]
      %v3879 = vld [vmem:[#allocation11 + $0x468] sm:$0xff]
      %v3880 = vld [vmem:[#allocation11 + $0x470] sm:$0xff]
      %v3881 = vld [vmem:[#allocation11 + $0x478] sm:$0xff]
      %v3882 = vld [vmem:[#allocation11 + $0x480] sm:$0xff]
      %v3883 = vld [vmem:[#allocation11 + $0x488] sm:$0xff]
      %v3884 = vld [vmem:[#allocation11 + $0x490] sm:$0xff]
      %v3885 = vld [vmem:[#allocation11 + $0x498] sm:$0xff]
      %v3886 = vld [vmem:[#allocation11 + $0x4a0] sm:$0xff]
      %v3887 = vld [vmem:[#allocation11 + $0x4a8] sm:$0xff]
      %v3888 = vld [vmem:[#allocation11 + $0x4b0] sm:$0xff]
      %v3889 = vld [vmem:[#allocation11 + $0x4b8] sm:$0xff]
      %v3890 = vld [vmem:[#allocation11 + $0x4c0] sm:$0xff]
      %v3891 = vld [vmem:[#allocation11 + $0x4c8] sm:$0xff]
      %v3892 = vld [vmem:[#allocation11 + $0x4d0] sm:$0xff]
      %v3893 = vld [vmem:[#allocation11 + $0x4d8] sm:$0xff]
      %v3894 = vld [vmem:[#allocation11 + $0x4e0] sm:$0xff]
      %v3895 = vld [vmem:[#allocation11 + $0x4e8] sm:$0xff]
      %v3896 = vld [vmem:[#allocation11 + $0x4f0] sm:$0xff]
      %v3897 = vld [vmem:[#allocation11 + $0x4f8] sm:$0xff]
      %v3898 = vld [vmem:[#allocation11 + $0x500] sm:$0xff]
      %v3899 = vld [vmem:[#allocation11 + $0x508] sm:$0xff]
      %v3900 = vld [vmem:[#allocation11 + $0x510] sm:$0xff]
      %v3901 = vld [vmem:[#allocation11 + $0x518] sm:$0xff]
      %v3902 = vld [vmem:[#allocation11 + $0x520] sm:$0xff]
      %v3903 = vld [vmem:[#allocation11 + $0x528] sm:$0xff]
      %v3904 = vld [vmem:[#allocation11 + $0x530] sm:$0xff]
      %v3905 = vld [vmem:[#allocation11 + $0x538] sm:$0xff]
      %v3906 = vld [vmem:[#allocation11 + $0x540] sm:$0xff]
      %v3907 = vld [vmem:[#allocation11 + $0x548] sm:$0xff]
      %v3908 = vld [vmem:[#allocation11 + $0x550] sm:$0xff]
      %v3909 = vld [vmem:[#allocation11 + $0x558] sm:$0xff]
      %v3910 = vld [vmem:[#allocation11 + $0x560] sm:$0xff]
      %v3911 = vld [vmem:[#allocation11 + $0x568] sm:$0xff]
      %v3912 = vld [vmem:[#allocation11 + $0x570] sm:$0xff]
      %v3913 = vld [vmem:[#allocation11 + $0x578] sm:$0xff]
      %v3914 = vld [vmem:[#allocation11 + $0x580] sm:$0xff]
      %v3915 = vld [vmem:[#allocation11 + $0x588] sm:$0xff]
      %v3916 = vld [vmem:[#allocation11 + $0x590] sm:$0xff]
      %v3917 = vld [vmem:[#allocation11 + $0x598] sm:$0xff]
      %v3918 = vld [vmem:[#allocation11 + $0x5a0] sm:$0xff]
      %v3919 = vld [vmem:[#allocation11 + $0x5a8] sm:$0xff]
      %v3920 = vld [vmem:[#allocation11 + $0x5b0] sm:$0xff]
      %v3921 = vld [vmem:[#allocation11 + $0x5b8] sm:$0xff]
      %v3922 = vld [vmem:[#allocation11 + $0x5c0] sm:$0xff]
      %v3923 = vld [vmem:[#allocation11 + $0x5c8] sm:$0xff]
      %v3924 = vld [vmem:[#allocation11 + $0x5d0] sm:$0xff]
      %v3925 = vld [vmem:[#allocation11 + $0x5d8] sm:$0xff]
      %v3926 = vld [vmem:[#allocation11 + $0x5e0] sm:$0xff]
      %v3927 = vld [vmem:[#allocation11 + $0x5e8] sm:$0xff]
      %v3928 = vld [vmem:[#allocation11 + $0x5f0] sm:$0xff]
      %v3929 = vld [vmem:[#allocation11 + $0x5f8] sm:$0xff]
      %v3930 = vld [vmem:[#allocation11 + $0x600] sm:$0xff]
      %v3931 = vld [vmem:[#allocation11 + $0x608] sm:$0xff]
      %v3932 = vld [vmem:[#allocation11 + $0x610] sm:$0xff]
      %v3933 = vld [vmem:[#allocation11 + $0x618] sm:$0xff]
      %v3934 = vld [vmem:[#allocation11 + $0x620] sm:$0xff]
      %v3935 = vld [vmem:[#allocation11 + $0x628] sm:$0xff]
      %v3936 = vld [vmem:[#allocation11 + $0x630] sm:$0xff]
      %v3937 = vld [vmem:[#allocation11 + $0x638] sm:$0xff]
      %v3938 = vld [vmem:[#allocation11 + $0x640] sm:$0xff]
      %v3939 = vld [vmem:[#allocation11 + $0x648] sm:$0xff]
      %v3940 = vld [vmem:[#allocation11 + $0x650] sm:$0xff]
      %v3941 = vld [vmem:[#allocation11 + $0x658] sm:$0xff]
      %v3942 = vld [vmem:[#allocation11 + $0x660] sm:$0xff]
      %v3943 = vld [vmem:[#allocation11 + $0x668] sm:$0xff]
      %v3944 = vld [vmem:[#allocation11 + $0x670] sm:$0xff]
      %v3945 = vld [vmem:[#allocation11 + $0x678] sm:$0xff]
      %v3946 = vld [vmem:[#allocation11 + $0x680] sm:$0xff]
      %v3947 = vld [vmem:[#allocation11 + $0x688] sm:$0xff]
      %v3948 = vld [vmem:[#allocation11 + $0x690] sm:$0xff]
      %v3949 = vld [vmem:[#allocation11 + $0x698] sm:$0xff]
      %v3950 = vld [vmem:[#allocation11 + $0x6a0] sm:$0xff]
      %v3951 = vld [vmem:[#allocation11 + $0x6a8] sm:$0xff]
      %v3952 = vld [vmem:[#allocation11 + $0x6b0] sm:$0xff]
      %v3953 = vld [vmem:[#allocation11 + $0x6b8] sm:$0xff]
      %v3954 = vld [vmem:[#allocation11 + $0x6c0] sm:$0xff]
      %v3955 = vld [vmem:[#allocation11 + $0x6c8] sm:$0xff]
      %v3956 = vld [vmem:[#allocation11 + $0x6d0] sm:$0xff]
      %v3957 = vld [vmem:[#allocation11 + $0x6d8] sm:$0xff]
      %v3958 = vld [vmem:[#allocation11 + $0x6e0] sm:$0xff]
      %v3959 = vld [vmem:[#allocation11 + $0x6e8] sm:$0xff]
      %v3960 = vld [vmem:[#allocation11 + $0x6f0] sm:$0xff]
      %v3961 = vld [vmem:[#allocation11 + $0x6f8] sm:$0xff]
      %v3962 = vld [vmem:[#allocation11 + $0x700] sm:$0xff]
      %v3963 = vld [vmem:[#allocation11 + $0x708] sm:$0xff]
      %v3964 = vld [vmem:[#allocation11 + $0x710] sm:$0xff]
      %v3965 = vld [vmem:[#allocation11 + $0x718] sm:$0xff]
      %v3966 = vld [vmem:[#allocation11 + $0x720] sm:$0xff]
      %v3967 = vld [vmem:[#allocation11 + $0x728] sm:$0xff]
      %v3968 = vld [vmem:[#allocation11 + $0x730] sm:$0xff]
      %v3969 = vld [vmem:[#allocation11 + $0x738] sm:$0xff]
      %v3970 = vld [vmem:[#allocation11 + $0x740] sm:$0xff]
      %v3971 = vld [vmem:[#allocation11 + $0x748] sm:$0xff]
      %v3972 = vld [vmem:[#allocation11 + $0x750] sm:$0xff]
      %v3973 = vld [vmem:[#allocation11 + $0x758] sm:$0xff]
      %v3974 = vld [vmem:[#allocation11 + $0x760] sm:$0xff]
      %v3975 = vld [vmem:[#allocation11 + $0x768] sm:$0xff]
      %v3976 = vld [vmem:[#allocation11 + $0x770] sm:$0xff]
      %v3977 = vld [vmem:[#allocation11 + $0x778] sm:$0xff]
      %v3978 = vld [vmem:[#allocation11 + $0x780] sm:$0xff]
      %v3979 = vld [vmem:[#allocation11 + $0x788] sm:$0xff]
      %v3980 = vld [vmem:[#allocation11 + $0x790] sm:$0xff]
      %v3981 = vld [vmem:[#allocation11 + $0x798] sm:$0xff]
      %v3982 = vld [vmem:[#allocation11 + $0x7a0] sm:$0xff]
      %v3983 = vld [vmem:[#allocation11 + $0x7a8] sm:$0xff]
      %v3984 = vld [vmem:[#allocation11 + $0x7b0] sm:$0xff]
      %v3985 = vld [vmem:[#allocation11 + $0x7b8] sm:$0xff]
      %v3986 = vld [vmem:[#allocation11 + $0x7c0] sm:$0xff]
      %v3987 = vld [vmem:[#allocation11 + $0x7c8] sm:$0xff]
      %v3988 = vld [vmem:[#allocation11 + $0x7d0] sm:$0xff]
      %v3989 = vld [vmem:[#allocation11 + $0x7d8] sm:$0xff]
      %v3990 = vld [vmem:[#allocation11 + $0x7e0] sm:$0xff]
      %v3991 = vld [vmem:[#allocation11 + $0x7e8] sm:$0xff]
      %v3992 = vld [vmem:[#allocation11 + $0x7f0] sm:$0xff]
      %v3993 = vld [vmem:[#allocation11 + $0x7f8] sm:$0xff]
      %v3994 = vld [vmem:[#allocation11 + $0x800] sm:$0xff]
      %v3995 = vld [vmem:[#allocation11 + $0x808] sm:$0xff]
      %v3996 = vld [vmem:[#allocation11 + $0x810] sm:$0xff]
      %v3997 = vld [vmem:[#allocation11 + $0x818] sm:$0xff]
      %v3998 = vld [vmem:[#allocation11 + $0x820] sm:$0xff]
      %v3999 = vld [vmem:[#allocation11 + $0x828] sm:$0xff]
      %v4000 = vld [vmem:[#allocation11 + $0x830] sm:$0xff]
      %v4001 = vld [vmem:[#allocation11 + $0x838] sm:$0xff]
      %v4002 = vld [vmem:[#allocation11 + $0x840] sm:$0xff]
      %v4003 = vld [vmem:[#allocation11 + $0x848] sm:$0xff]
      %v4004 = vld [vmem:[#allocation11 + $0x850] sm:$0xff]
      %v4005 = vld [vmem:[#allocation11 + $0x858] sm:$0xff]
      %v4006 = vld [vmem:[#allocation11 + $0x860] sm:$0xff]
      %v4007 = vld [vmem:[#allocation11 + $0x868] sm:$0xff]
      %v4008 = vld [vmem:[#allocation11 + $0x870] sm:$0xff]
      %v4009 = vld [vmem:[#allocation11 + $0x878] sm:$0xff]
      %v4010 = vld [vmem:[#allocation11 + $0x880] sm:$0xff]
      %v4011 = vld [vmem:[#allocation11 + $0x888] sm:$0xff]
      %v4012 = vld [vmem:[#allocation11 + $0x890] sm:$0xff]
      %v4013 = vld [vmem:[#allocation11 + $0x898] sm:$0xff]
      %v4014 = vld [vmem:[#allocation11 + $0x8a0] sm:$0xff]
      %v4015 = vld [vmem:[#allocation11 + $0x8a8] sm:$0xff]
      %v4016 = vld [vmem:[#allocation11 + $0x8b0] sm:$0xff]
      %v4017 = vld [vmem:[#allocation11 + $0x8b8] sm:$0xff]
      %v4018 = vld [vmem:[#allocation11 + $0x8c0] sm:$0xff]
      %v4019 = vld [vmem:[#allocation11 + $0x8c8] sm:$0xff]
      %v4020 = vld [vmem:[#allocation11 + $0x8d0] sm:$0xff]
      %v4021 = vld [vmem:[#allocation11 + $0x8d8] sm:$0xff]
      %v4022 = vld [vmem:[#allocation11 + $0x8e0] sm:$0xff]
      %v4023 = vld [vmem:[#allocation11 + $0x8e8] sm:$0xff]
      %v4024 = vld [vmem:[#allocation11 + $0x8f0] sm:$0xff]
      %v4025 = vld [vmem:[#allocation11 + $0x8f8] sm:$0xff]
      %v4026 = vld [vmem:[#allocation11 + $0x900] sm:$0xff]
      %v4027 = vld [vmem:[#allocation11 + $0x908] sm:$0xff]
      %v4028 = vld [vmem:[#allocation11 + $0x910] sm:$0xff]
      %v4029 = vld [vmem:[#allocation11 + $0x918] sm:$0xff]
      %v4030 = vld [vmem:[#allocation11 + $0x920] sm:$0xff]
      %v4031 = vld [vmem:[#allocation11 + $0x928] sm:$0xff]
      %v4032 = vld [vmem:[#allocation11 + $0x930] sm:$0xff]
      %v4033 = vld [vmem:[#allocation11 + $0x938] sm:$0xff]
      %v4034 = vld [vmem:[#allocation11 + $0x940] sm:$0xff]
      %v4035 = vld [vmem:[#allocation11 + $0x948] sm:$0xff]
      %v4036 = vld [vmem:[#allocation11 + $0x950] sm:$0xff]
      %v4037 = vld [vmem:[#allocation11 + $0x958] sm:$0xff]
      %v4038 = vld [vmem:[#allocation11 + $0x960] sm:$0xff]
      %v4039 = vld [vmem:[#allocation11 + $0x968] sm:$0xff]
      %v4040 = vld [vmem:[#allocation11 + $0x970] sm:$0xff]
      %v4041 = vld [vmem:[#allocation11 + $0x978] sm:$0xff]
      %v4042 = vld [vmem:[#allocation11 + $0x980] sm:$0xff]
      %v4043 = vld [vmem:[#allocation11 + $0x988] sm:$0xff]
      %v4044 = vld [vmem:[#allocation11 + $0x990] sm:$0xff]
      %v4045 = vld [vmem:[#allocation11 + $0x998] sm:$0xff]
      %v4046 = vld [vmem:[#allocation11 + $0x9a0] sm:$0xff]
      %v4047 = vld [vmem:[#allocation11 + $0x9a8] sm:$0xff]
      %v4048 = vld [vmem:[#allocation11 + $0x9b0] sm:$0xff]
      %v4049 = vld [vmem:[#allocation11 + $0x9b8] sm:$0xff]
      %v4050 = vld [vmem:[#allocation11 + $0x9c0] sm:$0xff]
      %v4051 = vld [vmem:[#allocation11 + $0x9c8] sm:$0xff]
      %v4052 = vld [vmem:[#allocation11 + $0x9d0] sm:$0xff]
      %v4053 = vld [vmem:[#allocation11 + $0x9d8] sm:$0xff]
      %v4054 = vld [vmem:[#allocation11 + $0x9e0] sm:$0xff]
      %v4055 = vld [vmem:[#allocation11 + $0x9e8] sm:$0xff]
      %v4056 = vld [vmem:[#allocation11 + $0x9f0] sm:$0xff]
      %v4057 = vld [vmem:[#allocation11 + $0x9f8] sm:$0xff]
      %v4058 = vld [vmem:[#allocation11 + $0xa00] sm:$0xff]
      %v4059 = vld [vmem:[#allocation11 + $0xa08] sm:$0xff]
      %v4060 = vld [vmem:[#allocation11 + $0xa10] sm:$0xff]
      %v4061 = vld [vmem:[#allocation11 + $0xa18] sm:$0xff]
      %v4062 = vld [vmem:[#allocation11 + $0xa20] sm:$0xff]
      %v4063 = vld [vmem:[#allocation11 + $0xa28] sm:$0xff]
      %v4064 = vld [vmem:[#allocation11 + $0xa30] sm:$0xff]
      %v4065 = vld [vmem:[#allocation11 + $0xa38] sm:$0xff]
      %v4066 = vld [vmem:[#allocation11 + $0xa40] sm:$0xff]
      %v4067 = vld [vmem:[#allocation11 + $0xa48] sm:$0xff]
      %v4068 = vld [vmem:[#allocation11 + $0xa50] sm:$0xff]
      %v4069 = vld [vmem:[#allocation11 + $0xa58] sm:$0xff]
      %v4070 = vld [vmem:[#allocation11 + $0xa60] sm:$0xff]
      %v4071 = vld [vmem:[#allocation11 + $0xa68] sm:$0xff]
      %v4072 = vld [vmem:[#allocation11 + $0xa70] sm:$0xff]
      %v4073 = vld [vmem:[#allocation11 + $0xa78] sm:$0xff]
      %v4074 = vld [vmem:[#allocation11 + $0xa80] sm:$0xff]
      %v4075 = vld [vmem:[#allocation11 + $0xa88] sm:$0xff]
      %v4076 = vld [vmem:[#allocation11 + $0xa90] sm:$0xff]
      %v4077 = vld [vmem:[#allocation11 + $0xa98] sm:$0xff]
      %v4078 = vld [vmem:[#allocation11 + $0xaa0] sm:$0xff]
      %v4079 = vld [vmem:[#allocation11 + $0xaa8] sm:$0xff]
      %v4080 = vld [vmem:[#allocation11 + $0xab0] sm:$0xff]
      %v4081 = vld [vmem:[#allocation11 + $0xab8] sm:$0xff]
      %v4082 = vld [vmem:[#allocation11 + $0xac0] sm:$0xff]
      %v4083 = vld [vmem:[#allocation11 + $0xac8] sm:$0xff]
      %v4084 = vld [vmem:[#allocation11 + $0xad0] sm:$0xff]
      %v4085 = vld [vmem:[#allocation11 + $0xad8] sm:$0xff]
      %v4086 = vld [vmem:[#allocation11 + $0xae0] sm:$0xff]
      %v4087 = vld [vmem:[#allocation11 + $0xae8] sm:$0xff]
      %v4088 = vld [vmem:[#allocation11 + $0xaf0] sm:$0xff]
      %v4089 = vld [vmem:[#allocation11 + $0xaf8] sm:$0xff]
      %v4090 = vld [vmem:[#allocation11 + $0xb00] sm:$0xff]
      %v4091 = vld [vmem:[#allocation11 + $0xb08] sm:$0xff]
      %v4092 = vld [vmem:[#allocation11 + $0xb10] sm:$0xff]
      %v4093 = vld [vmem:[#allocation11 + $0xb18] sm:$0xff]
      %v4094 = vld [vmem:[#allocation11 + $0xb20] sm:$0xff]
      %v4095 = vld [vmem:[#allocation11 + $0xb28] sm:$0xff]
      %v4096 = vld [vmem:[#allocation11 + $0xb30] sm:$0xff]
      %v4097 = vld [vmem:[#allocation11 + $0xb38] sm:$0xff]
      %v4098 = vld [vmem:[#allocation11 + $0xb40] sm:$0xff]
      %v4099 = vld [vmem:[#allocation11 + $0xb48] sm:$0xff]
      %v4100 = vld [vmem:[#allocation11 + $0xb50] sm:$0xff]
      %v4101 = vld [vmem:[#allocation11 + $0xb58] sm:$0xff]
      %v4102 = vld [vmem:[#allocation11 + $0xb60] sm:$0xff]
      %v4103 = vld [vmem:[#allocation11 + $0xb68] sm:$0xff]
      %v4104 = vld [vmem:[#allocation11 + $0xb70] sm:$0xff]
      %v4105 = vld [vmem:[#allocation11 + $0xb78] sm:$0xff]
      %v4106 = vld [vmem:[#allocation11 + $0xb80] sm:$0xff]
      %v4107 = vld [vmem:[#allocation11 + $0xb88] sm:$0xff]
      %v4108 = vld [vmem:[#allocation11 + $0xb90] sm:$0xff]
      %v4109 = vld [vmem:[#allocation11 + $0xb98] sm:$0xff]
      %v4110 = vld [vmem:[#allocation11 + $0xba0] sm:$0xff]
      %v4111 = vld [vmem:[#allocation11 + $0xba8] sm:$0xff]
      %v4112 = vld [vmem:[#allocation11 + $0xbb0] sm:$0xff]
      %v4113 = vld [vmem:[#allocation11 + $0xbb8] sm:$0xff]
      %v4114 = vld [vmem:[#allocation11 + $0xbc0] sm:$0xff]
      %v4115 = vld [vmem:[#allocation11 + $0xbc8] sm:$0xff]
      %v4116 = vld [vmem:[#allocation11 + $0xbd0] sm:$0xff]
      %v4117 = vld [vmem:[#allocation11 + $0xbd8] sm:$0xff]
      %v4118 = vld [vmem:[#allocation11 + $0xbe0] sm:$0xff]
      %v4119 = vld [vmem:[#allocation11 + $0xbe8] sm:$0xff]
      %v4120 = vld [vmem:[#allocation11 + $0xbf0] sm:$0xff]
      %v4121 = vld [vmem:[#allocation11 + $0xbf8] sm:$0xff]
      %v4122 = vld [vmem:[#allocation13] sm:$0x3f]
      %v4124 = vlaneseq
      %v4125 = vshrl.u32 %v4124, 7
      %v4126 = vsub.s32 0, %v4125
      %v4127 = vrot.slane %v4122, %v4126
      %v4128 = vlaneseq
      %v4129 = vshrl.u32 %v4128, 7
      %v4130 = vsub.s32 1, %v4129
      %v4131 = vrot.slane %v4122, %v4130
      %v4132 = vlaneseq
      %v4133 = vshrl.u32 %v4132, 7
      %v4134 = vsub.s32 2, %v4133
      %v4135 = vrot.slane %v4122, %v4134
      %v4136 = vlaneseq
      %v4137 = vshrl.u32 %v4136, 7
      %v4138 = vsub.s32 3, %v4137
      %v4139 = vrot.slane %v4122, %v4138
      %v4140 = vlaneseq
      %v4141 = vshrl.u32 %v4140, 7
      %v4142 = vsub.s32 4, %v4141
      %v4143 = vrot.slane %v4122, %v4142
      %v4144 = vlaneseq
      %v4145 = vshrl.u32 %v4144, 7
      %v4146 = vsub.s32 5, %v4145
      %v4147 = vrot.slane %v4122, %v4146
      %v4538 = vunpack.c.l.b16 %v3738
      %v4539 = vunpack.c.h.b16 %v3738
      %v4540 = vunpack.c.l.b16 %v3739
      %v4541 = vunpack.c.h.b16 %v3739
      %v4542 = vunpack.c.l.b16 %v3740
      %v4543 = vunpack.c.h.b16 %v3740
      %v4544 = vunpack.c.l.b16 %v3741
      %v4545 = vunpack.c.h.b16 %v3741
      %v4546 = vunpack.c.l.b16 %v3742
      %v4547 = vunpack.c.h.b16 %v3742
      %v4548 = vunpack.c.l.b16 %v3743
      %v4549 = vunpack.c.h.b16 %v3743
      %v4550 = vunpack.c.l.b16 %v3744
      %v4551 = vunpack.c.h.b16 %v3744
      %v4552 = vunpack.c.l.b16 %v3745
      %v4553 = vunpack.c.h.b16 %v3745
      %v4554 = vunpack.c.l.b16 %v3746
      %v4555 = vunpack.c.h.b16 %v3746
      %v4556 = vunpack.c.l.b16 %v3747
      %v4557 = vunpack.c.h.b16 %v3747
      %v4558 = vunpack.c.l.b16 %v3748
      %v4559 = vunpack.c.h.b16 %v3748
      %v4560 = vunpack.c.l.b16 %v3749
      %v4561 = vunpack.c.h.b16 %v3749
      %v4562 = vunpack.c.l.b16 %v3750
      %v4563 = vunpack.c.h.b16 %v3750
      %v4564 = vunpack.c.l.b16 %v3751
      %v4565 = vunpack.c.h.b16 %v3751
      %v4566 = vunpack.c.l.b16 %v3752
      %v4567 = vunpack.c.h.b16 %v3752
      %v4568 = vunpack.c.l.b16 %v3753
      %v4569 = vunpack.c.h.b16 %v3753
      %v4570 = vunpack.c.l.b16 %v3754
      %v4571 = vunpack.c.h.b16 %v3754
      %v4572 = vunpack.c.l.b16 %v3755
      %v4573 = vunpack.c.h.b16 %v3755
      %v4574 = vunpack.c.l.b16 %v3756
      %v4575 = vunpack.c.h.b16 %v3756
      %v4576 = vunpack.c.l.b16 %v3757
      %v4577 = vunpack.c.h.b16 %v3757
      %v4578 = vunpack.c.l.b16 %v3758
      %v4579 = vunpack.c.h.b16 %v3758
      %v4580 = vunpack.c.l.b16 %v3759
      %v4581 = vunpack.c.h.b16 %v3759
      %v4582 = vunpack.c.l.b16 %v3760
      %v4583 = vunpack.c.h.b16 %v3760
      %v4584 = vunpack.c.l.b16 %v3761
      %v4585 = vunpack.c.h.b16 %v3761
      %v4586 = vunpack.c.l.b16 %v3762
      %v4587 = vunpack.c.h.b16 %v3762
      %v4588 = vunpack.c.l.b16 %v3763
      %v4589 = vunpack.c.h.b16 %v3763
      %v4590 = vunpack.c.l.b16 %v3764
      %v4591 = vunpack.c.h.b16 %v3764
      %v4592 = vunpack.c.l.b16 %v3765
      %v4593 = vunpack.c.h.b16 %v3765
      %v4594 = vunpack.c.l.b16 %v3766
      %v4595 = vunpack.c.h.b16 %v3766
      %v4596 = vunpack.c.l.b16 %v3767
      %v4597 = vunpack.c.h.b16 %v3767
      %v4598 = vunpack.c.l.b16 %v3768
      %v4599 = vunpack.c.h.b16 %v3768
      %v4600 = vunpack.c.l.b16 %v3769
      %v4601 = vunpack.c.h.b16 %v3769
      %v4602 = vunpack.c.l.b16 %v3770
      %v4603 = vunpack.c.h.b16 %v3770
      %v4604 = vunpack.c.l.b16 %v3771
      %v4605 = vunpack.c.h.b16 %v3771
      %v4606 = vunpack.c.l.b16 %v3772
      %v4607 = vunpack.c.h.b16 %v3772
      %v4608 = vunpack.c.l.b16 %v3773
      %v4609 = vunpack.c.h.b16 %v3773
      %v4610 = vunpack.c.l.b16 %v3774
      %v4611 = vunpack.c.h.b16 %v3774
      %v4612 = vunpack.c.l.b16 %v3775
      %v4613 = vunpack.c.h.b16 %v3775
      %v4614 = vunpack.c.l.b16 %v3776
      %v4615 = vunpack.c.h.b16 %v3776
      %v4616 = vunpack.c.l.b16 %v3777
      %v4617 = vunpack.c.h.b16 %v3777
      %v4618 = vunpack.c.l.b16 %v3778
      %v4619 = vunpack.c.h.b16 %v3778
      %v4620 = vunpack.c.l.b16 %v3779
      %v4621 = vunpack.c.h.b16 %v3779
      %v4622 = vunpack.c.l.b16 %v3780
      %v4623 = vunpack.c.h.b16 %v3780
      %v4624 = vunpack.c.l.b16 %v3781
      %v4625 = vunpack.c.h.b16 %v3781
      %v4626 = vunpack.c.l.b16 %v3782
      %v4627 = vunpack.c.h.b16 %v3782
      %v4628 = vunpack.c.l.b16 %v3783
      %v4629 = vunpack.c.h.b16 %v3783
      %v4630 = vunpack.c.l.b16 %v3784
      %v4631 = vunpack.c.h.b16 %v3784
      %v4632 = vunpack.c.l.b16 %v3785
      %v4633 = vunpack.c.h.b16 %v3785
      %v4634 = vunpack.c.l.b16 %v3786
      %v4635 = vunpack.c.h.b16 %v3786
      %v4636 = vunpack.c.l.b16 %v3787
      %v4637 = vunpack.c.h.b16 %v3787
      %v4638 = vunpack.c.l.b16 %v3788
      %v4639 = vunpack.c.h.b16 %v3788
      %v4640 = vunpack.c.l.b16 %v3789
      %v4641 = vunpack.c.h.b16 %v3789
      %v4642 = vunpack.c.l.b16 %v3790
      %v4643 = vunpack.c.h.b16 %v3790
      %v4644 = vunpack.c.l.b16 %v3791
      %v4645 = vunpack.c.h.b16 %v3791
      %v4646 = vunpack.c.l.b16 %v3792
      %v4647 = vunpack.c.h.b16 %v3792
      %v4648 = vunpack.c.l.b16 %v3793
      %v4649 = vunpack.c.h.b16 %v3793
      %v4650 = vunpack.c.l.b16 %v3794
      %v4651 = vunpack.c.h.b16 %v3794
      %v4652 = vunpack.c.l.b16 %v3795
      %v4653 = vunpack.c.h.b16 %v3795
      %v4654 = vunpack.c.l.b16 %v3796
      %v4655 = vunpack.c.h.b16 %v3796
      %v4656 = vunpack.c.l.b16 %v3797
      %v4657 = vunpack.c.h.b16 %v3797
      %v4658 = vunpack.c.l.b16 %v3798
      %v4659 = vunpack.c.h.b16 %v3798
      %v4660 = vunpack.c.l.b16 %v3799
      %v4661 = vunpack.c.h.b16 %v3799
      %v4662 = vunpack.c.l.b16 %v3800
      %v4663 = vunpack.c.h.b16 %v3800
      %v4664 = vunpack.c.l.b16 %v3801
      %v4665 = vunpack.c.h.b16 %v3801
      %v4666 = vunpack.c.l.b16 %v3802
      %v4667 = vunpack.c.h.b16 %v3802
      %v4668 = vunpack.c.l.b16 %v3803
      %v4669 = vunpack.c.h.b16 %v3803
      %v4670 = vunpack.c.l.b16 %v3804
      %v4671 = vunpack.c.h.b16 %v3804
      %v4672 = vunpack.c.l.b16 %v3805
      %v4673 = vunpack.c.h.b16 %v3805
      %v4674 = vunpack.c.l.b16 %v3806
      %v4675 = vunpack.c.h.b16 %v3806
      %v4676 = vunpack.c.l.b16 %v3807
      %v4677 = vunpack.c.h.b16 %v3807
      %v4678 = vunpack.c.l.b16 %v3808
      %v4679 = vunpack.c.h.b16 %v3808
      %v4680 = vunpack.c.l.b16 %v3809
      %v4681 = vunpack.c.h.b16 %v3809
      %v4682 = vunpack.c.l.b16 %v3810
      %v4683 = vunpack.c.h.b16 %v3810
      %v4684 = vunpack.c.l.b16 %v3811
      %v4685 = vunpack.c.h.b16 %v3811
      %v4686 = vunpack.c.l.b16 %v3812
      %v4687 = vunpack.c.h.b16 %v3812
      %v4688 = vunpack.c.l.b16 %v3813
      %v4689 = vunpack.c.h.b16 %v3813
      %v4690 = vunpack.c.l.b16 %v3814
      %v4691 = vunpack.c.h.b16 %v3814
      %v4692 = vunpack.c.l.b16 %v3815
      %v4693 = vunpack.c.h.b16 %v3815
      %v4694 = vunpack.c.l.b16 %v3816
      %v4695 = vunpack.c.h.b16 %v3816
      %v4696 = vunpack.c.l.b16 %v3817
      %v4697 = vunpack.c.h.b16 %v3817
      %v4698 = vunpack.c.l.b16 %v3818
      %v4699 = vunpack.c.h.b16 %v3818
      %v4700 = vunpack.c.l.b16 %v3819
      %v4701 = vunpack.c.h.b16 %v3819
      %v4702 = vunpack.c.l.b16 %v3820
      %v4703 = vunpack.c.h.b16 %v3820
      %v4704 = vunpack.c.l.b16 %v3821
      %v4705 = vunpack.c.h.b16 %v3821
      %v4706 = vunpack.c.l.b16 %v3822
      %v4707 = vunpack.c.h.b16 %v3822
      %v4708 = vunpack.c.l.b16 %v3823
      %v4709 = vunpack.c.h.b16 %v3823
      %v4710 = vunpack.c.l.b16 %v3824
      %v4711 = vunpack.c.h.b16 %v3824
      %v4712 = vunpack.c.l.b16 %v3825
      %v4713 = vunpack.c.h.b16 %v3825
      %v4714 = vunpack.c.l.b16 %v3826
      %v4715 = vunpack.c.h.b16 %v3826
      %v4716 = vunpack.c.l.b16 %v3827
      %v4717 = vunpack.c.h.b16 %v3827
      %v4718 = vunpack.c.l.b16 %v3828
      %v4719 = vunpack.c.h.b16 %v3828
      %v4720 = vunpack.c.l.b16 %v3829
      %v4721 = vunpack.c.h.b16 %v3829
      %v4722 = vunpack.c.l.b16 %v3830
      %v4723 = vunpack.c.h.b16 %v3830
      %v4724 = vunpack.c.l.b16 %v3831
      %v4725 = vunpack.c.h.b16 %v3831
      %v4726 = vunpack.c.l.b16 %v3832
      %v4727 = vunpack.c.h.b16 %v3832
      %v4728 = vunpack.c.l.b16 %v3833
      %v4729 = vunpack.c.h.b16 %v3833
      %v4730 = vunpack.c.l.b16 %v3834
      %v4731 = vunpack.c.h.b16 %v3834
      %v4732 = vunpack.c.l.b16 %v3835
      %v4733 = vunpack.c.h.b16 %v3835
      %v4734 = vunpack.c.l.b16 %v3836
      %v4735 = vunpack.c.h.b16 %v3836
      %v4736 = vunpack.c.l.b16 %v3837
      %v4737 = vunpack.c.h.b16 %v3837
      %v4738 = vunpack.c.l.b16 %v3838
      %v4739 = vunpack.c.h.b16 %v3838
      %v4740 = vunpack.c.l.b16 %v3839
      %v4741 = vunpack.c.h.b16 %v3839
      %v4742 = vunpack.c.l.b16 %v3840
      %v4743 = vunpack.c.h.b16 %v3840
      %v4744 = vunpack.c.l.b16 %v3841
      %v4745 = vunpack.c.h.b16 %v3841
      %v4746 = vunpack.c.l.b16 %v3842
      %v4747 = vunpack.c.h.b16 %v3842
      %v4748 = vunpack.c.l.b16 %v3843
      %v4749 = vunpack.c.h.b16 %v3843
      %v4750 = vunpack.c.l.b16 %v3844
      %v4751 = vunpack.c.h.b16 %v3844
      %v4752 = vunpack.c.l.b16 %v3845
      %v4753 = vunpack.c.h.b16 %v3845
      %v4754 = vunpack.c.l.b16 %v3846
      %v4755 = vunpack.c.h.b16 %v3846
      %v4756 = vunpack.c.l.b16 %v3847
      %v4757 = vunpack.c.h.b16 %v3847
      %v4758 = vunpack.c.l.b16 %v3848
      %v4759 = vunpack.c.h.b16 %v3848
      %v4760 = vunpack.c.l.b16 %v3849
      %v4761 = vunpack.c.h.b16 %v3849
      %v4762 = vunpack.c.l.b16 %v3850
      %v4763 = vunpack.c.h.b16 %v3850
      %v4764 = vunpack.c.l.b16 %v3851
      %v4765 = vunpack.c.h.b16 %v3851
      %v4766 = vunpack.c.l.b16 %v3852
      %v4767 = vunpack.c.h.b16 %v3852
      %v4768 = vunpack.c.l.b16 %v3853
      %v4769 = vunpack.c.h.b16 %v3853
      %v4770 = vunpack.c.l.b16 %v3854
      %v4771 = vunpack.c.h.b16 %v3854
      %v4772 = vunpack.c.l.b16 %v3855
      %v4773 = vunpack.c.h.b16 %v3855
      %v4774 = vunpack.c.l.b16 %v3856
      %v4775 = vunpack.c.h.b16 %v3856
      %v4776 = vunpack.c.l.b16 %v3857
      %v4777 = vunpack.c.h.b16 %v3857
      %v4778 = vunpack.c.l.b16 %v3858
      %v4779 = vunpack.c.h.b16 %v3858
      %v4780 = vunpack.c.l.b16 %v3859
      %v4781 = vunpack.c.h.b16 %v3859
      %v4782 = vunpack.c.l.b16 %v3860
      %v4783 = vunpack.c.h.b16 %v3860
      %v4784 = vunpack.c.l.b16 %v3861
      %v4785 = vunpack.c.h.b16 %v3861
      %v4786 = vunpack.c.l.b16 %v3862
      %v4787 = vunpack.c.h.b16 %v3862
      %v4788 = vunpack.c.l.b16 %v3863
      %v4789 = vunpack.c.h.b16 %v3863
      %v4790 = vunpack.c.l.b16 %v3864
      %v4791 = vunpack.c.h.b16 %v3864
      %v4792 = vunpack.c.l.b16 %v3865
      %v4793 = vunpack.c.h.b16 %v3865
      %v4794 = vunpack.c.l.b16 %v3866
      %v4795 = vunpack.c.h.b16 %v3866
      %v4796 = vunpack.c.l.b16 %v3867
      %v4797 = vunpack.c.h.b16 %v3867
      %v4798 = vunpack.c.l.b16 %v3868
      %v4799 = vunpack.c.h.b16 %v3868
      %v4800 = vunpack.c.l.b16 %v3869
      %v4801 = vunpack.c.h.b16 %v3869
      %v4802 = vunpack.c.l.b16 %v3870
      %v4803 = vunpack.c.h.b16 %v3870
      %v4804 = vunpack.c.l.b16 %v3871
      %v4805 = vunpack.c.h.b16 %v3871
      %v4806 = vunpack.c.l.b16 %v3872
      %v4807 = vunpack.c.h.b16 %v3872
      %v4808 = vunpack.c.l.b16 %v3873
      %v4809 = vunpack.c.h.b16 %v3873
      %v4810 = vunpack.c.l.b16 %v3874
      %v4811 = vunpack.c.h.b16 %v3874
      %v4812 = vunpack.c.l.b16 %v3875
      %v4813 = vunpack.c.h.b16 %v3875
      %v4814 = vunpack.c.l.b16 %v3876
      %v4815 = vunpack.c.h.b16 %v3876
      %v4816 = vunpack.c.l.b16 %v3877
      %v4817 = vunpack.c.h.b16 %v3877
      %v4818 = vunpack.c.l.b16 %v3878
      %v4819 = vunpack.c.h.b16 %v3878
      %v4820 = vunpack.c.l.b16 %v3879
      %v4821 = vunpack.c.h.b16 %v3879
      %v4822 = vunpack.c.l.b16 %v3880
      %v4823 = vunpack.c.h.b16 %v3880
      %v4824 = vunpack.c.l.b16 %v3881
      %v4825 = vunpack.c.h.b16 %v3881
      %v4826 = vunpack.c.l.b16 %v3882
      %v4827 = vunpack.c.h.b16 %v3882
      %v4828 = vunpack.c.l.b16 %v3883
      %v4829 = vunpack.c.h.b16 %v3883
      %v4830 = vunpack.c.l.b16 %v3884
      %v4831 = vunpack.c.h.b16 %v3884
      %v4832 = vunpack.c.l.b16 %v3885
      %v4833 = vunpack.c.h.b16 %v3885
      %v4834 = vunpack.c.l.b16 %v3886
      %v4835 = vunpack.c.h.b16 %v3886
      %v4836 = vunpack.c.l.b16 %v3887
      %v4837 = vunpack.c.h.b16 %v3887
      %v4838 = vunpack.c.l.b16 %v3888
      %v4839 = vunpack.c.h.b16 %v3888
      %v4840 = vunpack.c.l.b16 %v3889
      %v4841 = vunpack.c.h.b16 %v3889
      %v4842 = vunpack.c.l.b16 %v3890
      %v4843 = vunpack.c.h.b16 %v3890
      %v4844 = vunpack.c.l.b16 %v3891
      %v4845 = vunpack.c.h.b16 %v3891
      %v4846 = vunpack.c.l.b16 %v3892
      %v4847 = vunpack.c.h.b16 %v3892
      %v4848 = vunpack.c.l.b16 %v3893
      %v4849 = vunpack.c.h.b16 %v3893
      %v4850 = vunpack.c.l.b16 %v3894
      %v4851 = vunpack.c.h.b16 %v3894
      %v4852 = vunpack.c.l.b16 %v3895
      %v4853 = vunpack.c.h.b16 %v3895
      %v4854 = vunpack.c.l.b16 %v3896
      %v4855 = vunpack.c.h.b16 %v3896
      %v4856 = vunpack.c.l.b16 %v3897
      %v4857 = vunpack.c.h.b16 %v3897
      %v4858 = vunpack.c.l.b16 %v3898
      %v4859 = vunpack.c.h.b16 %v3898
      %v4860 = vunpack.c.l.b16 %v3899
      %v4861 = vunpack.c.h.b16 %v3899
      %v4862 = vunpack.c.l.b16 %v3900
      %v4863 = vunpack.c.h.b16 %v3900
      %v4864 = vunpack.c.l.b16 %v3901
      %v4865 = vunpack.c.h.b16 %v3901
      %v4866 = vunpack.c.l.b16 %v3902
      %v4867 = vunpack.c.h.b16 %v3902
      %v4868 = vunpack.c.l.b16 %v3903
      %v4869 = vunpack.c.h.b16 %v3903
      %v4870 = vunpack.c.l.b16 %v3904
      %v4871 = vunpack.c.h.b16 %v3904
      %v4872 = vunpack.c.l.b16 %v3905
      %v4873 = vunpack.c.h.b16 %v3905
      %v4874 = vunpack.c.l.b16 %v3906
      %v4875 = vunpack.c.h.b16 %v3906
      %v4876 = vunpack.c.l.b16 %v3907
      %v4877 = vunpack.c.h.b16 %v3907
      %v4878 = vunpack.c.l.b16 %v3908
      %v4879 = vunpack.c.h.b16 %v3908
      %v4880 = vunpack.c.l.b16 %v3909
      %v4881 = vunpack.c.h.b16 %v3909
      %v4882 = vunpack.c.l.b16 %v3910
      %v4883 = vunpack.c.h.b16 %v3910
      %v4884 = vunpack.c.l.b16 %v3911
      %v4885 = vunpack.c.h.b16 %v3911
      %v4886 = vunpack.c.l.b16 %v3912
      %v4887 = vunpack.c.h.b16 %v3912
      %v4888 = vunpack.c.l.b16 %v3913
      %v4889 = vunpack.c.h.b16 %v3913
      %v4890 = vunpack.c.l.b16 %v3914
      %v4891 = vunpack.c.h.b16 %v3914
      %v4892 = vunpack.c.l.b16 %v3915
      %v4893 = vunpack.c.h.b16 %v3915
      %v4894 = vunpack.c.l.b16 %v3916
      %v4895 = vunpack.c.h.b16 %v3916
      %v4896 = vunpack.c.l.b16 %v3917
      %v4897 = vunpack.c.h.b16 %v3917
      %v4898 = vunpack.c.l.b16 %v3918
      %v4899 = vunpack.c.h.b16 %v3918
      %v4900 = vunpack.c.l.b16 %v3919
      %v4901 = vunpack.c.h.b16 %v3919
      %v4902 = vunpack.c.l.b16 %v3920
      %v4903 = vunpack.c.h.b16 %v3920
      %v4904 = vunpack.c.l.b16 %v3921
      %v4905 = vunpack.c.h.b16 %v3921
      %v4906 = vunpack.c.l.b16 %v3922
      %v4907 = vunpack.c.h.b16 %v3922
      %v4908 = vunpack.c.l.b16 %v3923
      %v4909 = vunpack.c.h.b16 %v3923
      %v4910 = vunpack.c.l.b16 %v3924
      %v4911 = vunpack.c.h.b16 %v3924
      %v4912 = vunpack.c.l.b16 %v3925
      %v4913 = vunpack.c.h.b16 %v3925
      %v4914 = vunpack.c.l.b16 %v3926
      %v4915 = vunpack.c.h.b16 %v3926
      %v4916 = vunpack.c.l.b16 %v3927
      %v4917 = vunpack.c.h.b16 %v3927
      %v4918 = vunpack.c.l.b16 %v3928
      %v4919 = vunpack.c.h.b16 %v3928
      %v4920 = vunpack.c.l.b16 %v3929
      %v4921 = vunpack.c.h.b16 %v3929
      %v4922 = vunpack.c.l.b16 %v3930
      %v4923 = vunpack.c.h.b16 %v3930
      %v4924 = vunpack.c.l.b16 %v3931
      %v4925 = vunpack.c.h.b16 %v3931
      %v4926 = vunpack.c.l.b16 %v3932
      %v4927 = vunpack.c.h.b16 %v3932
      %v4928 = vunpack.c.l.b16 %v3933
      %v4929 = vunpack.c.h.b16 %v3933
      %v4930 = vunpack.c.l.b16 %v3934
      %v4931 = vunpack.c.h.b16 %v3934
      %v4932 = vunpack.c.l.b16 %v3935
      %v4933 = vunpack.c.h.b16 %v3935
      %v4934 = vunpack.c.l.b16 %v3936
      %v4935 = vunpack.c.h.b16 %v3936
      %v4936 = vunpack.c.l.b16 %v3937
      %v4937 = vunpack.c.h.b16 %v3937
      %v4938 = vunpack.c.l.b16 %v3938
      %v4939 = vunpack.c.h.b16 %v3938
      %v4940 = vunpack.c.l.b16 %v3939
      %v4941 = vunpack.c.h.b16 %v3939
      %v4942 = vunpack.c.l.b16 %v3940
      %v4943 = vunpack.c.h.b16 %v3940
      %v4944 = vunpack.c.l.b16 %v3941
      %v4945 = vunpack.c.h.b16 %v3941
      %v4946 = vunpack.c.l.b16 %v3942
      %v4947 = vunpack.c.h.b16 %v3942
      %v4948 = vunpack.c.l.b16 %v3943
      %v4949 = vunpack.c.h.b16 %v3943
      %v4950 = vunpack.c.l.b16 %v3944
      %v4951 = vunpack.c.h.b16 %v3944
      %v4952 = vunpack.c.l.b16 %v3945
      %v4953 = vunpack.c.h.b16 %v3945
      %v4954 = vunpack.c.l.b16 %v3946
      %v4955 = vunpack.c.h.b16 %v3946
      %v4956 = vunpack.c.l.b16 %v3947
      %v4957 = vunpack.c.h.b16 %v3947
      %v4958 = vunpack.c.l.b16 %v3948
      %v4959 = vunpack.c.h.b16 %v3948
      %v4960 = vunpack.c.l.b16 %v3949
      %v4961 = vunpack.c.h.b16 %v3949
      %v4962 = vunpack.c.l.b16 %v3950
      %v4963 = vunpack.c.h.b16 %v3950
      %v4964 = vunpack.c.l.b16 %v3951
      %v4965 = vunpack.c.h.b16 %v3951
      %v4966 = vunpack.c.l.b16 %v3952
      %v4967 = vunpack.c.h.b16 %v3952
      %v4968 = vunpack.c.l.b16 %v3953
      %v4969 = vunpack.c.h.b16 %v3953
      %v4970 = vunpack.c.l.b16 %v3954
      %v4971 = vunpack.c.h.b16 %v3954
      %v4972 = vunpack.c.l.b16 %v3955
      %v4973 = vunpack.c.h.b16 %v3955
      %v4974 = vunpack.c.l.b16 %v3956
      %v4975 = vunpack.c.h.b16 %v3956
      %v4976 = vunpack.c.l.b16 %v3957
      %v4977 = vunpack.c.h.b16 %v3957
      %v4978 = vunpack.c.l.b16 %v3958
      %v4979 = vunpack.c.h.b16 %v3958
      %v4980 = vunpack.c.l.b16 %v3959
      %v4981 = vunpack.c.h.b16 %v3959
      %v4982 = vunpack.c.l.b16 %v3960
      %v4983 = vunpack.c.h.b16 %v3960
      %v4984 = vunpack.c.l.b16 %v3961
      %v4985 = vunpack.c.h.b16 %v3961
      %v4986 = vunpack.c.l.b16 %v3962
      %v4987 = vunpack.c.h.b16 %v3962
      %v4988 = vunpack.c.l.b16 %v3963
      %v4989 = vunpack.c.h.b16 %v3963
      %v4990 = vunpack.c.l.b16 %v3964
      %v4991 = vunpack.c.h.b16 %v3964
      %v4992 = vunpack.c.l.b16 %v3965
      %v4993 = vunpack.c.h.b16 %v3965
      %v4994 = vunpack.c.l.b16 %v3966
      %v4995 = vunpack.c.h.b16 %v3966
      %v4996 = vunpack.c.l.b16 %v3967
      %v4997 = vunpack.c.h.b16 %v3967
      %v4998 = vunpack.c.l.b16 %v3968
      %v4999 = vunpack.c.h.b16 %v3968
      %v5000 = vunpack.c.l.b16 %v3969
      %v5001 = vunpack.c.h.b16 %v3969
      %v5002 = vunpack.c.l.b16 %v3970
      %v5003 = vunpack.c.h.b16 %v3970
      %v5004 = vunpack.c.l.b16 %v3971
      %v5005 = vunpack.c.h.b16 %v3971
      %v5006 = vunpack.c.l.b16 %v3972
      %v5007 = vunpack.c.h.b16 %v3972
      %v5008 = vunpack.c.l.b16 %v3973
      %v5009 = vunpack.c.h.b16 %v3973
      %v5010 = vunpack.c.l.b16 %v3974
      %v5011 = vunpack.c.h.b16 %v3974
      %v5012 = vunpack.c.l.b16 %v3975
      %v5013 = vunpack.c.h.b16 %v3975
      %v5014 = vunpack.c.l.b16 %v3976
      %v5015 = vunpack.c.h.b16 %v3976
      %v5016 = vunpack.c.l.b16 %v3977
      %v5017 = vunpack.c.h.b16 %v3977
      %v5018 = vunpack.c.l.b16 %v3978
      %v5019 = vunpack.c.h.b16 %v3978
      %v5020 = vunpack.c.l.b16 %v3979
      %v5021 = vunpack.c.h.b16 %v3979
      %v5022 = vunpack.c.l.b16 %v3980
      %v5023 = vunpack.c.h.b16 %v3980
      %v5024 = vunpack.c.l.b16 %v3981
      %v5025 = vunpack.c.h.b16 %v3981
      %v5026 = vunpack.c.l.b16 %v3982
      %v5027 = vunpack.c.h.b16 %v3982
      %v5028 = vunpack.c.l.b16 %v3983
      %v5029 = vunpack.c.h.b16 %v3983
      %v5030 = vunpack.c.l.b16 %v3984
      %v5031 = vunpack.c.h.b16 %v3984
      %v5032 = vunpack.c.l.b16 %v3985
      %v5033 = vunpack.c.h.b16 %v3985
      %v5034 = vunpack.c.l.b16 %v3986
      %v5035 = vunpack.c.h.b16 %v3986
      %v5036 = vunpack.c.l.b16 %v3987
      %v5037 = vunpack.c.h.b16 %v3987
      %v5038 = vunpack.c.l.b16 %v3988
      %v5039 = vunpack.c.h.b16 %v3988
      %v5040 = vunpack.c.l.b16 %v3989
      %v5041 = vunpack.c.h.b16 %v3989
      %v5042 = vunpack.c.l.b16 %v3990
      %v5043 = vunpack.c.h.b16 %v3990
      %v5044 = vunpack.c.l.b16 %v3991
      %v5045 = vunpack.c.h.b16 %v3991
      %v5046 = vunpack.c.l.b16 %v3992
      %v5047 = vunpack.c.h.b16 %v3992
      %v5048 = vunpack.c.l.b16 %v3993
      %v5049 = vunpack.c.h.b16 %v3993
      %v5050 = vunpack.c.l.b16 %v3994
      %v5051 = vunpack.c.h.b16 %v3994
      %v5052 = vunpack.c.l.b16 %v3995
      %v5053 = vunpack.c.h.b16 %v3995
      %v5054 = vunpack.c.l.b16 %v3996
      %v5055 = vunpack.c.h.b16 %v3996
      %v5056 = vunpack.c.l.b16 %v3997
      %v5057 = vunpack.c.h.b16 %v3997
      %v5058 = vunpack.c.l.b16 %v3998
      %v5059 = vunpack.c.h.b16 %v3998
      %v5060 = vunpack.c.l.b16 %v3999
      %v5061 = vunpack.c.h.b16 %v3999
      %v5062 = vunpack.c.l.b16 %v4000
      %v5063 = vunpack.c.h.b16 %v4000
      %v5064 = vunpack.c.l.b16 %v4001
      %v5065 = vunpack.c.h.b16 %v4001
      %v5066 = vunpack.c.l.b16 %v4002
      %v5067 = vunpack.c.h.b16 %v4002
      %v5068 = vunpack.c.l.b16 %v4003
      %v5069 = vunpack.c.h.b16 %v4003
      %v5070 = vunpack.c.l.b16 %v4004
      %v5071 = vunpack.c.h.b16 %v4004
      %v5072 = vunpack.c.l.b16 %v4005
      %v5073 = vunpack.c.h.b16 %v4005
      %v5074 = vunpack.c.l.b16 %v4006
      %v5075 = vunpack.c.h.b16 %v4006
      %v5076 = vunpack.c.l.b16 %v4007
      %v5077 = vunpack.c.h.b16 %v4007
      %v5078 = vunpack.c.l.b16 %v4008
      %v5079 = vunpack.c.h.b16 %v4008
      %v5080 = vunpack.c.l.b16 %v4009
      %v5081 = vunpack.c.h.b16 %v4009
      %v5082 = vunpack.c.l.b16 %v4010
      %v5083 = vunpack.c.h.b16 %v4010
      %v5084 = vunpack.c.l.b16 %v4011
      %v5085 = vunpack.c.h.b16 %v4011
      %v5086 = vunpack.c.l.b16 %v4012
      %v5087 = vunpack.c.h.b16 %v4012
      %v5088 = vunpack.c.l.b16 %v4013
      %v5089 = vunpack.c.h.b16 %v4013
      %v5090 = vunpack.c.l.b16 %v4014
      %v5091 = vunpack.c.h.b16 %v4014
      %v5092 = vunpack.c.l.b16 %v4015
      %v5093 = vunpack.c.h.b16 %v4015
      %v5094 = vunpack.c.l.b16 %v4016
      %v5095 = vunpack.c.h.b16 %v4016
      %v5096 = vunpack.c.l.b16 %v4017
      %v5097 = vunpack.c.h.b16 %v4017
      %v5098 = vunpack.c.l.b16 %v4018
      %v5099 = vunpack.c.h.b16 %v4018
      %v5100 = vunpack.c.l.b16 %v4019
      %v5101 = vunpack.c.h.b16 %v4019
      %v5102 = vunpack.c.l.b16 %v4020
      %v5103 = vunpack.c.h.b16 %v4020
      %v5104 = vunpack.c.l.b16 %v4021
      %v5105 = vunpack.c.h.b16 %v4021
      %v5106 = vunpack.c.l.b16 %v4022
      %v5107 = vunpack.c.h.b16 %v4022
      %v5108 = vunpack.c.l.b16 %v4023
      %v5109 = vunpack.c.h.b16 %v4023
      %v5110 = vunpack.c.l.b16 %v4024
      %v5111 = vunpack.c.h.b16 %v4024
      %v5112 = vunpack.c.l.b16 %v4025
      %v5113 = vunpack.c.h.b16 %v4025
      %v5114 = vunpack.c.l.b16 %v4026
      %v5115 = vunpack.c.h.b16 %v4026
      %v5116 = vunpack.c.l.b16 %v4027
      %v5117 = vunpack.c.h.b16 %v4027
      %v5118 = vunpack.c.l.b16 %v4028
      %v5119 = vunpack.c.h.b16 %v4028
      %v5120 = vunpack.c.l.b16 %v4029
      %v5121 = vunpack.c.h.b16 %v4029
      %v5122 = vunpack.c.l.b16 %v4030
      %v5123 = vunpack.c.h.b16 %v4030
      %v5124 = vunpack.c.l.b16 %v4031
      %v5125 = vunpack.c.h.b16 %v4031
      %v5126 = vunpack.c.l.b16 %v4032
      %v5127 = vunpack.c.h.b16 %v4032
      %v5128 = vunpack.c.l.b16 %v4033
      %v5129 = vunpack.c.h.b16 %v4033
      %v5130 = vunpack.c.l.b16 %v4034
      %v5131 = vunpack.c.h.b16 %v4034
      %v5132 = vunpack.c.l.b16 %v4035
      %v5133 = vunpack.c.h.b16 %v4035
      %v5134 = vunpack.c.l.b16 %v4036
      %v5135 = vunpack.c.h.b16 %v4036
      %v5136 = vunpack.c.l.b16 %v4037
      %v5137 = vunpack.c.h.b16 %v4037
      %v5138 = vunpack.c.l.b16 %v4038
      %v5139 = vunpack.c.h.b16 %v4038
      %v5140 = vunpack.c.l.b16 %v4039
      %v5141 = vunpack.c.h.b16 %v4039
      %v5142 = vunpack.c.l.b16 %v4040
      %v5143 = vunpack.c.h.b16 %v4040
      %v5144 = vunpack.c.l.b16 %v4041
      %v5145 = vunpack.c.h.b16 %v4041
      %v5146 = vunpack.c.l.b16 %v4042
      %v5147 = vunpack.c.h.b16 %v4042
      %v5148 = vunpack.c.l.b16 %v4043
      %v5149 = vunpack.c.h.b16 %v4043
      %v5150 = vunpack.c.l.b16 %v4044
      %v5151 = vunpack.c.h.b16 %v4044
      %v5152 = vunpack.c.l.b16 %v4045
      %v5153 = vunpack.c.h.b16 %v4045
      %v5154 = vunpack.c.l.b16 %v4046
      %v5155 = vunpack.c.h.b16 %v4046
      %v5156 = vunpack.c.l.b16 %v4047
      %v5157 = vunpack.c.h.b16 %v4047
      %v5158 = vunpack.c.l.b16 %v4048
      %v5159 = vunpack.c.h.b16 %v4048
      %v5160 = vunpack.c.l.b16 %v4049
      %v5161 = vunpack.c.h.b16 %v4049
      %v5162 = vunpack.c.l.b16 %v4050
      %v5163 = vunpack.c.h.b16 %v4050
      %v5164 = vunpack.c.l.b16 %v4051
      %v5165 = vunpack.c.h.b16 %v4051
      %v5166 = vunpack.c.l.b16 %v4052
      %v5167 = vunpack.c.h.b16 %v4052
      %v5168 = vunpack.c.l.b16 %v4053
      %v5169 = vunpack.c.h.b16 %v4053
      %v5170 = vunpack.c.l.b16 %v4054
      %v5171 = vunpack.c.h.b16 %v4054
      %v5172 = vunpack.c.l.b16 %v4055
      %v5173 = vunpack.c.h.b16 %v4055
      %v5174 = vunpack.c.l.b16 %v4056
      %v5175 = vunpack.c.h.b16 %v4056
      %v5176 = vunpack.c.l.b16 %v4057
      %v5177 = vunpack.c.h.b16 %v4057
      %v5178 = vunpack.c.l.b16 %v4058
      %v5179 = vunpack.c.h.b16 %v4058
      %v5180 = vunpack.c.l.b16 %v4059
      %v5181 = vunpack.c.h.b16 %v4059
      %v5182 = vunpack.c.l.b16 %v4060
      %v5183 = vunpack.c.h.b16 %v4060
      %v5184 = vunpack.c.l.b16 %v4061
      %v5185 = vunpack.c.h.b16 %v4061
      %v5186 = vunpack.c.l.b16 %v4062
      %v5187 = vunpack.c.h.b16 %v4062
      %v5188 = vunpack.c.l.b16 %v4063
      %v5189 = vunpack.c.h.b16 %v4063
      %v5190 = vunpack.c.l.b16 %v4064
      %v5191 = vunpack.c.h.b16 %v4064
      %v5192 = vunpack.c.l.b16 %v4065
      %v5193 = vunpack.c.h.b16 %v4065
      %v5194 = vunpack.c.l.b16 %v4066
      %v5195 = vunpack.c.h.b16 %v4066
      %v5196 = vunpack.c.l.b16 %v4067
      %v5197 = vunpack.c.h.b16 %v4067
      %v5198 = vunpack.c.l.b16 %v4068
      %v5199 = vunpack.c.h.b16 %v4068
      %v5200 = vunpack.c.l.b16 %v4069
      %v5201 = vunpack.c.h.b16 %v4069
      %v5202 = vunpack.c.l.b16 %v4070
      %v5203 = vunpack.c.h.b16 %v4070
      %v5204 = vunpack.c.l.b16 %v4071
      %v5205 = vunpack.c.h.b16 %v4071
      %v5206 = vunpack.c.l.b16 %v4072
      %v5207 = vunpack.c.h.b16 %v4072
      %v5208 = vunpack.c.l.b16 %v4073
      %v5209 = vunpack.c.h.b16 %v4073
      %v5210 = vunpack.c.l.b16 %v4074
      %v5211 = vunpack.c.h.b16 %v4074
      %v5212 = vunpack.c.l.b16 %v4075
      %v5213 = vunpack.c.h.b16 %v4075
      %v5214 = vunpack.c.l.b16 %v4076
      %v5215 = vunpack.c.h.b16 %v4076
      %v5216 = vunpack.c.l.b16 %v4077
      %v5217 = vunpack.c.h.b16 %v4077
      %v5218 = vunpack.c.l.b16 %v4078
      %v5219 = vunpack.c.h.b16 %v4078
      %v5220 = vunpack.c.l.b16 %v4079
      %v5221 = vunpack.c.h.b16 %v4079
      %v5222 = vunpack.c.l.b16 %v4080
      %v5223 = vunpack.c.h.b16 %v4080
      %v5224 = vunpack.c.l.b16 %v4081
      %v5225 = vunpack.c.h.b16 %v4081
      %v5226 = vunpack.c.l.b16 %v4082
      %v5227 = vunpack.c.h.b16 %v4082
      %v5228 = vunpack.c.l.b16 %v4083
      %v5229 = vunpack.c.h.b16 %v4083
      %v5230 = vunpack.c.l.b16 %v4084
      %v5231 = vunpack.c.h.b16 %v4084
      %v5232 = vunpack.c.l.b16 %v4085
      %v5233 = vunpack.c.h.b16 %v4085
      %v5234 = vunpack.c.l.b16 %v4086
      %v5235 = vunpack.c.h.b16 %v4086
      %v5236 = vunpack.c.l.b16 %v4087
      %v5237 = vunpack.c.h.b16 %v4087
      %v5238 = vunpack.c.l.b16 %v4088
      %v5239 = vunpack.c.h.b16 %v4088
      %v5240 = vunpack.c.l.b16 %v4089
      %v5241 = vunpack.c.h.b16 %v4089
      %v5242 = vunpack.c.l.b16 %v4090
      %v5243 = vunpack.c.h.b16 %v4090
      %v5244 = vunpack.c.l.b16 %v4091
      %v5245 = vunpack.c.h.b16 %v4091
      %v5246 = vunpack.c.l.b16 %v4092
      %v5247 = vunpack.c.h.b16 %v4092
      %v5248 = vunpack.c.l.b16 %v4093
      %v5249 = vunpack.c.h.b16 %v4093
      %v5250 = vunpack.c.l.b16 %v4094
      %v5251 = vunpack.c.h.b16 %v4094
      %v5252 = vunpack.c.l.b16 %v4095
      %v5253 = vunpack.c.h.b16 %v4095
      %v5254 = vunpack.c.l.b16 %v4096
      %v5255 = vunpack.c.h.b16 %v4096
      %v5256 = vunpack.c.l.b16 %v4097
      %v5257 = vunpack.c.h.b16 %v4097
      %v5258 = vunpack.c.l.b16 %v4098
      %v5259 = vunpack.c.h.b16 %v4098
      %v5260 = vunpack.c.l.b16 %v4099
      %v5261 = vunpack.c.h.b16 %v4099
      %v5262 = vunpack.c.l.b16 %v4100
      %v5263 = vunpack.c.h.b16 %v4100
      %v5264 = vunpack.c.l.b16 %v4101
      %v5265 = vunpack.c.h.b16 %v4101
      %v5266 = vunpack.c.l.b16 %v4102
      %v5267 = vunpack.c.h.b16 %v4102
      %v5268 = vunpack.c.l.b16 %v4103
      %v5269 = vunpack.c.h.b16 %v4103
      %v5270 = vunpack.c.l.b16 %v4104
      %v5271 = vunpack.c.h.b16 %v4104
      %v5272 = vunpack.c.l.b16 %v4105
      %v5273 = vunpack.c.h.b16 %v4105
      %v5274 = vunpack.c.l.b16 %v4106
      %v5275 = vunpack.c.h.b16 %v4106
      %v5276 = vunpack.c.l.b16 %v4107
      %v5277 = vunpack.c.h.b16 %v4107
      %v5278 = vunpack.c.l.b16 %v4108
      %v5279 = vunpack.c.h.b16 %v4108
      %v5280 = vunpack.c.l.b16 %v4109
      %v5281 = vunpack.c.h.b16 %v4109
      %v5282 = vunpack.c.l.b16 %v4110
      %v5283 = vunpack.c.h.b16 %v4110
      %v5284 = vunpack.c.l.b16 %v4111
      %v5285 = vunpack.c.h.b16 %v4111
      %v5286 = vunpack.c.l.b16 %v4112
      %v5287 = vunpack.c.h.b16 %v4112
      %v5288 = vunpack.c.l.b16 %v4113
      %v5289 = vunpack.c.h.b16 %v4113
      %v5290 = vunpack.c.l.b16 %v4114
      %v5291 = vunpack.c.h.b16 %v4114
      %v5292 = vunpack.c.l.b16 %v4115
      %v5293 = vunpack.c.h.b16 %v4115
      %v5294 = vunpack.c.l.b16 %v4116
      %v5295 = vunpack.c.h.b16 %v4116
      %v5296 = vunpack.c.l.b16 %v4117
      %v5297 = vunpack.c.h.b16 %v4117
      %v5298 = vunpack.c.l.b16 %v4118
      %v5299 = vunpack.c.h.b16 %v4118
      %v5300 = vunpack.c.l.b16 %v4119
      %v5301 = vunpack.c.h.b16 %v4119
      %v5302 = vunpack.c.l.b16 %v4120
      %v5303 = vunpack.c.h.b16 %v4120
      %v5304 = vunpack.c.l.b16 %v4121
      %v5305 = vunpack.c.h.b16 %v4121
      %v5306 = vpack.c.b16 %v4544, %v4538
      %v5307 = vpack.c.b16 %v4545, %v4539
      %v5308 = vpack.c.b16 %v4546, %v4540
      %v5309 = vpack.c.b16 %v4547, %v4541
      %v5310 = vpack.c.b16 %v4548, %v4542
      %v5311 = vpack.c.b16 %v4549, %v4543
      %v5312 = vpack.c.b16 %v4556, %v4550
      %v5313 = vpack.c.b16 %v4557, %v4551
      %v5314 = vpack.c.b16 %v4558, %v4552
      %v5315 = vpack.c.b16 %v4559, %v4553
      %v5316 = vpack.c.b16 %v4560, %v4554
      %v5317 = vpack.c.b16 %v4561, %v4555
      %v5318 = vpack.c.b16 %v4568, %v4562
      %v5319 = vpack.c.b16 %v4569, %v4563
      %v5320 = vpack.c.b16 %v4570, %v4564
      %v5321 = vpack.c.b16 %v4571, %v4565
      %v5322 = vpack.c.b16 %v4572, %v4566
      %v5323 = vpack.c.b16 %v4573, %v4567
      %v5324 = vpack.c.b16 %v4580, %v4574
      %v5325 = vpack.c.b16 %v4581, %v4575
      %v5326 = vpack.c.b16 %v4582, %v4576
      %v5327 = vpack.c.b16 %v4583, %v4577
      %v5328 = vpack.c.b16 %v4584, %v4578
      %v5329 = vpack.c.b16 %v4585, %v4579
      %v5330 = vpack.c.b16 %v4592, %v4586
      %v5331 = vpack.c.b16 %v4593, %v4587
      %v5332 = vpack.c.b16 %v4594, %v4588
      %v5333 = vpack.c.b16 %v4595, %v4589
      %v5334 = vpack.c.b16 %v4596, %v4590
      %v5335 = vpack.c.b16 %v4597, %v4591
      %v5336 = vpack.c.b16 %v4604, %v4598
      %v5337 = vpack.c.b16 %v4605, %v4599
      %v5338 = vpack.c.b16 %v4606, %v4600
      %v5339 = vpack.c.b16 %v4607, %v4601
      %v5340 = vpack.c.b16 %v4608, %v4602
      %v5341 = vpack.c.b16 %v4609, %v4603
      %v5342 = vpack.c.b16 %v4616, %v4610
      %v5343 = vpack.c.b16 %v4617, %v4611
      %v5344 = vpack.c.b16 %v4618, %v4612
      %v5345 = vpack.c.b16 %v4619, %v4613
      %v5346 = vpack.c.b16 %v4620, %v4614
      %v5347 = vpack.c.b16 %v4621, %v4615
      %v5348 = vpack.c.b16 %v4628, %v4622
      %v5349 = vpack.c.b16 %v4629, %v4623
      %v5350 = vpack.c.b16 %v4630, %v4624
      %v5351 = vpack.c.b16 %v4631, %v4625
      %v5352 = vpack.c.b16 %v4632, %v4626
      %v5353 = vpack.c.b16 %v4633, %v4627
      %v5354 = vpack.c.b16 %v4640, %v4634
      %v5355 = vpack.c.b16 %v4641, %v4635
      %v5356 = vpack.c.b16 %v4642, %v4636
      %v5357 = vpack.c.b16 %v4643, %v4637
      %v5358 = vpack.c.b16 %v4644, %v4638
      %v5359 = vpack.c.b16 %v4645, %v4639
      %v5360 = vpack.c.b16 %v4652, %v4646
      %v5361 = vpack.c.b16 %v4653, %v4647
      %v5362 = vpack.c.b16 %v4654, %v4648
      %v5363 = vpack.c.b16 %v4655, %v4649
      %v5364 = vpack.c.b16 %v4656, %v4650
      %v5365 = vpack.c.b16 %v4657, %v4651
      %v5366 = vpack.c.b16 %v4664, %v4658
      %v5367 = vpack.c.b16 %v4665, %v4659
      %v5368 = vpack.c.b16 %v4666, %v4660
      %v5369 = vpack.c.b16 %v4667, %v4661
      %v5370 = vpack.c.b16 %v4668, %v4662
      %v5371 = vpack.c.b16 %v4669, %v4663
      %v5372 = vpack.c.b16 %v4676, %v4670
      %v5373 = vpack.c.b16 %v4677, %v4671
      %v5374 = vpack.c.b16 %v4678, %v4672
      %v5375 = vpack.c.b16 %v4679, %v4673
      %v5376 = vpack.c.b16 %v4680, %v4674
      %v5377 = vpack.c.b16 %v4681, %v4675
      %v5378 = vpack.c.b16 %v4688, %v4682
      %v5379 = vpack.c.b16 %v4689, %v4683
      %v5380 = vpack.c.b16 %v4690, %v4684
      %v5381 = vpack.c.b16 %v4691, %v4685
      %v5382 = vpack.c.b16 %v4692, %v4686
      %v5383 = vpack.c.b16 %v4693, %v4687
      %v5384 = vpack.c.b16 %v4700, %v4694
      %v5385 = vpack.c.b16 %v4701, %v4695
      %v5386 = vpack.c.b16 %v4702, %v4696
      %v5387 = vpack.c.b16 %v4703, %v4697
      %v5388 = vpack.c.b16 %v4704, %v4698
      %v5389 = vpack.c.b16 %v4705, %v4699
      %v5390 = vpack.c.b16 %v4712, %v4706
      %v5391 = vpack.c.b16 %v4713, %v4707
      %v5392 = vpack.c.b16 %v4714, %v4708
      %v5393 = vpack.c.b16 %v4715, %v4709
      %v5394 = vpack.c.b16 %v4716, %v4710
      %v5395 = vpack.c.b16 %v4717, %v4711
      %v5396 = vpack.c.b16 %v4724, %v4718
      %v5397 = vpack.c.b16 %v4725, %v4719
      %v5398 = vpack.c.b16 %v4726, %v4720
      %v5399 = vpack.c.b16 %v4727, %v4721
      %v5400 = vpack.c.b16 %v4728, %v4722
      %v5401 = vpack.c.b16 %v4729, %v4723
      %v5402 = vpack.c.b16 %v4736, %v4730
      %v5403 = vpack.c.b16 %v4737, %v4731
      %v5404 = vpack.c.b16 %v4738, %v4732
      %v5405 = vpack.c.b16 %v4739, %v4733
      %v5406 = vpack.c.b16 %v4740, %v4734
      %v5407 = vpack.c.b16 %v4741, %v4735
      %v5408 = vpack.c.b16 %v4748, %v4742
      %v5409 = vpack.c.b16 %v4749, %v4743
      %v5410 = vpack.c.b16 %v4750, %v4744
      %v5411 = vpack.c.b16 %v4751, %v4745
      %v5412 = vpack.c.b16 %v4752, %v4746
      %v5413 = vpack.c.b16 %v4753, %v4747
      %v5414 = vpack.c.b16 %v4760, %v4754
      %v5415 = vpack.c.b16 %v4761, %v4755
      %v5416 = vpack.c.b16 %v4762, %v4756
      %v5417 = vpack.c.b16 %v4763, %v4757
      %v5418 = vpack.c.b16 %v4764, %v4758
      %v5419 = vpack.c.b16 %v4765, %v4759
      %v5420 = vpack.c.b16 %v4772, %v4766
      %v5421 = vpack.c.b16 %v4773, %v4767
      %v5422 = vpack.c.b16 %v4774, %v4768
      %v5423 = vpack.c.b16 %v4775, %v4769
      %v5424 = vpack.c.b16 %v4776, %v4770
      %v5425 = vpack.c.b16 %v4777, %v4771
      %v5426 = vpack.c.b16 %v4784, %v4778
      %v5427 = vpack.c.b16 %v4785, %v4779
      %v5428 = vpack.c.b16 %v4786, %v4780
      %v5429 = vpack.c.b16 %v4787, %v4781
      %v5430 = vpack.c.b16 %v4788, %v4782
      %v5431 = vpack.c.b16 %v4789, %v4783
      %v5432 = vpack.c.b16 %v4796, %v4790
      %v5433 = vpack.c.b16 %v4797, %v4791
      %v5434 = vpack.c.b16 %v4798, %v4792
      %v5435 = vpack.c.b16 %v4799, %v4793
      %v5436 = vpack.c.b16 %v4800, %v4794
      %v5437 = vpack.c.b16 %v4801, %v4795
      %v5438 = vpack.c.b16 %v4808, %v4802
      %v5439 = vpack.c.b16 %v4809, %v4803
      %v5440 = vpack.c.b16 %v4810, %v4804
      %v5441 = vpack.c.b16 %v4811, %v4805
      %v5442 = vpack.c.b16 %v4812, %v4806
      %v5443 = vpack.c.b16 %v4813, %v4807
      %v5444 = vpack.c.b16 %v4820, %v4814
      %v5445 = vpack.c.b16 %v4821, %v4815
      %v5446 = vpack.c.b16 %v4822, %v4816
      %v5447 = vpack.c.b16 %v4823, %v4817
      %v5448 = vpack.c.b16 %v4824, %v4818
      %v5449 = vpack.c.b16 %v4825, %v4819
      %v5450 = vpack.c.b16 %v4832, %v4826
      %v5451 = vpack.c.b16 %v4833, %v4827
      %v5452 = vpack.c.b16 %v4834, %v4828
      %v5453 = vpack.c.b16 %v4835, %v4829
      %v5454 = vpack.c.b16 %v4836, %v4830
      %v5455 = vpack.c.b16 %v4837, %v4831
      %v5456 = vpack.c.b16 %v4844, %v4838
      %v5457 = vpack.c.b16 %v4845, %v4839
      %v5458 = vpack.c.b16 %v4846, %v4840
      %v5459 = vpack.c.b16 %v4847, %v4841
      %v5460 = vpack.c.b16 %v4848, %v4842
      %v5461 = vpack.c.b16 %v4849, %v4843
      %v5462 = vpack.c.b16 %v4856, %v4850
      %v5463 = vpack.c.b16 %v4857, %v4851
      %v5464 = vpack.c.b16 %v4858, %v4852
      %v5465 = vpack.c.b16 %v4859, %v4853
      %v5466 = vpack.c.b16 %v4860, %v4854
      %v5467 = vpack.c.b16 %v4861, %v4855
      %v5468 = vpack.c.b16 %v4868, %v4862
      %v5469 = vpack.c.b16 %v4869, %v4863
      %v5470 = vpack.c.b16 %v4870, %v4864
      %v5471 = vpack.c.b16 %v4871, %v4865
      %v5472 = vpack.c.b16 %v4872, %v4866
      %v5473 = vpack.c.b16 %v4873, %v4867
      %v5474 = vpack.c.b16 %v4880, %v4874
      %v5475 = vpack.c.b16 %v4881, %v4875
      %v5476 = vpack.c.b16 %v4882, %v4876
      %v5477 = vpack.c.b16 %v4883, %v4877
      %v5478 = vpack.c.b16 %v4884, %v4878
      %v5479 = vpack.c.b16 %v4885, %v4879
      %v5480 = vpack.c.b16 %v4892, %v4886
      %v5481 = vpack.c.b16 %v4893, %v4887
      %v5482 = vpack.c.b16 %v4894, %v4888
      %v5483 = vpack.c.b16 %v4895, %v4889
      %v5484 = vpack.c.b16 %v4896, %v4890
      %v5485 = vpack.c.b16 %v4897, %v4891
      %v5486 = vpack.c.b16 %v4904, %v4898
      %v5487 = vpack.c.b16 %v4905, %v4899
      %v5488 = vpack.c.b16 %v4906, %v4900
      %v5489 = vpack.c.b16 %v4907, %v4901
      %v5490 = vpack.c.b16 %v4908, %v4902
      %v5491 = vpack.c.b16 %v4909, %v4903
      %v5492 = vpack.c.b16 %v4916, %v4910
      %v5493 = vpack.c.b16 %v4917, %v4911
      %v5494 = vpack.c.b16 %v4918, %v4912
      %v5495 = vpack.c.b16 %v4919, %v4913
      %v5496 = vpack.c.b16 %v4920, %v4914
      %v5497 = vpack.c.b16 %v4921, %v4915
      %v5498 = vpack.c.b16 %v4928, %v4922
      %v5499 = vpack.c.b16 %v4929, %v4923
      %v5500 = vpack.c.b16 %v4930, %v4924
      %v5501 = vpack.c.b16 %v4931, %v4925
      %v5502 = vpack.c.b16 %v4932, %v4926
      %v5503 = vpack.c.b16 %v4933, %v4927
      %v5504 = vpack.c.b16 %v4940, %v4934
      %v5505 = vpack.c.b16 %v4941, %v4935
      %v5506 = vpack.c.b16 %v4942, %v4936
      %v5507 = vpack.c.b16 %v4943, %v4937
      %v5508 = vpack.c.b16 %v4944, %v4938
      %v5509 = vpack.c.b16 %v4945, %v4939
      %v5510 = vpack.c.b16 %v4952, %v4946
      %v5511 = vpack.c.b16 %v4953, %v4947
      %v5512 = vpack.c.b16 %v4954, %v4948
      %v5513 = vpack.c.b16 %v4955, %v4949
      %v5514 = vpack.c.b16 %v4956, %v4950
      %v5515 = vpack.c.b16 %v4957, %v4951
      %v5516 = vpack.c.b16 %v4964, %v4958
      %v5517 = vpack.c.b16 %v4965, %v4959
      %v5518 = vpack.c.b16 %v4966, %v4960
      %v5519 = vpack.c.b16 %v4967, %v4961
      %v5520 = vpack.c.b16 %v4968, %v4962
      %v5521 = vpack.c.b16 %v4969, %v4963
      %v5522 = vpack.c.b16 %v4976, %v4970
      %v5523 = vpack.c.b16 %v4977, %v4971
      %v5524 = vpack.c.b16 %v4978, %v4972
      %v5525 = vpack.c.b16 %v4979, %v4973
      %v5526 = vpack.c.b16 %v4980, %v4974
      %v5527 = vpack.c.b16 %v4981, %v4975
      %v5528 = vpack.c.b16 %v4988, %v4982
      %v5529 = vpack.c.b16 %v4989, %v4983
      %v5530 = vpack.c.b16 %v4990, %v4984
      %v5531 = vpack.c.b16 %v4991, %v4985
      %v5532 = vpack.c.b16 %v4992, %v4986
      %v5533 = vpack.c.b16 %v4993, %v4987
      %v5534 = vpack.c.b16 %v5000, %v4994
      %v5535 = vpack.c.b16 %v5001, %v4995
      %v5536 = vpack.c.b16 %v5002, %v4996
      %v5537 = vpack.c.b16 %v5003, %v4997
      %v5538 = vpack.c.b16 %v5004, %v4998
      %v5539 = vpack.c.b16 %v5005, %v4999
      %v5540 = vpack.c.b16 %v5012, %v5006
      %v5541 = vpack.c.b16 %v5013, %v5007
      %v5542 = vpack.c.b16 %v5014, %v5008
      %v5543 = vpack.c.b16 %v5015, %v5009
      %v5544 = vpack.c.b16 %v5016, %v5010
      %v5545 = vpack.c.b16 %v5017, %v5011
      %v5546 = vpack.c.b16 %v5024, %v5018
      %v5547 = vpack.c.b16 %v5025, %v5019
      %v5548 = vpack.c.b16 %v5026, %v5020
      %v5549 = vpack.c.b16 %v5027, %v5021
      %v5550 = vpack.c.b16 %v5028, %v5022
      %v5551 = vpack.c.b16 %v5029, %v5023
      %v5552 = vpack.c.b16 %v5036, %v5030
      %v5553 = vpack.c.b16 %v5037, %v5031
      %v5554 = vpack.c.b16 %v5038, %v5032
      %v5555 = vpack.c.b16 %v5039, %v5033
      %v5556 = vpack.c.b16 %v5040, %v5034
      %v5557 = vpack.c.b16 %v5041, %v5035
      %v5558 = vpack.c.b16 %v5048, %v5042
      %v5559 = vpack.c.b16 %v5049, %v5043
      %v5560 = vpack.c.b16 %v5050, %v5044
      %v5561 = vpack.c.b16 %v5051, %v5045
      %v5562 = vpack.c.b16 %v5052, %v5046
      %v5563 = vpack.c.b16 %v5053, %v5047
      %v5564 = vpack.c.b16 %v5060, %v5054
      %v5565 = vpack.c.b16 %v5061, %v5055
      %v5566 = vpack.c.b16 %v5062, %v5056
      %v5567 = vpack.c.b16 %v5063, %v5057
      %v5568 = vpack.c.b16 %v5064, %v5058
      %v5569 = vpack.c.b16 %v5065, %v5059
      %v5570 = vpack.c.b16 %v5072, %v5066
      %v5571 = vpack.c.b16 %v5073, %v5067
      %v5572 = vpack.c.b16 %v5074, %v5068
      %v5573 = vpack.c.b16 %v5075, %v5069
      %v5574 = vpack.c.b16 %v5076, %v5070
      %v5575 = vpack.c.b16 %v5077, %v5071
      %v5576 = vpack.c.b16 %v5084, %v5078
      %v5577 = vpack.c.b16 %v5085, %v5079
      %v5578 = vpack.c.b16 %v5086, %v5080
      %v5579 = vpack.c.b16 %v5087, %v5081
      %v5580 = vpack.c.b16 %v5088, %v5082
      %v5581 = vpack.c.b16 %v5089, %v5083
      %v5582 = vpack.c.b16 %v5096, %v5090
      %v5583 = vpack.c.b16 %v5097, %v5091
      %v5584 = vpack.c.b16 %v5098, %v5092
      %v5585 = vpack.c.b16 %v5099, %v5093
      %v5586 = vpack.c.b16 %v5100, %v5094
      %v5587 = vpack.c.b16 %v5101, %v5095
      %v5588 = vpack.c.b16 %v5108, %v5102
      %v5589 = vpack.c.b16 %v5109, %v5103
      %v5590 = vpack.c.b16 %v5110, %v5104
      %v5591 = vpack.c.b16 %v5111, %v5105
      %v5592 = vpack.c.b16 %v5112, %v5106
      %v5593 = vpack.c.b16 %v5113, %v5107
      %v5594 = vpack.c.b16 %v5120, %v5114
      %v5595 = vpack.c.b16 %v5121, %v5115
      %v5596 = vpack.c.b16 %v5122, %v5116
      %v5597 = vpack.c.b16 %v5123, %v5117
      %v5598 = vpack.c.b16 %v5124, %v5118
      %v5599 = vpack.c.b16 %v5125, %v5119
      %v5600 = vpack.c.b16 %v5132, %v5126
      %v5601 = vpack.c.b16 %v5133, %v5127
      %v5602 = vpack.c.b16 %v5134, %v5128
      %v5603 = vpack.c.b16 %v5135, %v5129
      %v5604 = vpack.c.b16 %v5136, %v5130
      %v5605 = vpack.c.b16 %v5137, %v5131
      %v5606 = vpack.c.b16 %v5144, %v5138
      %v5607 = vpack.c.b16 %v5145, %v5139
      %v5608 = vpack.c.b16 %v5146, %v5140
      %v5609 = vpack.c.b16 %v5147, %v5141
      %v5610 = vpack.c.b16 %v5148, %v5142
      %v5611 = vpack.c.b16 %v5149, %v5143
      %v5612 = vpack.c.b16 %v5156, %v5150
      %v5613 = vpack.c.b16 %v5157, %v5151
      %v5614 = vpack.c.b16 %v5158, %v5152
      %v5615 = vpack.c.b16 %v5159, %v5153
      %v5616 = vpack.c.b16 %v5160, %v5154
      %v5617 = vpack.c.b16 %v5161, %v5155
      %v5618 = vpack.c.b16 %v5168, %v5162
      %v5619 = vpack.c.b16 %v5169, %v5163
      %v5620 = vpack.c.b16 %v5170, %v5164
      %v5621 = vpack.c.b16 %v5171, %v5165
      %v5622 = vpack.c.b16 %v5172, %v5166
      %v5623 = vpack.c.b16 %v5173, %v5167
      %v5624 = vpack.c.b16 %v5180, %v5174
      %v5625 = vpack.c.b16 %v5181, %v5175
      %v5626 = vpack.c.b16 %v5182, %v5176
      %v5627 = vpack.c.b16 %v5183, %v5177
      %v5628 = vpack.c.b16 %v5184, %v5178
      %v5629 = vpack.c.b16 %v5185, %v5179
      %v5630 = vpack.c.b16 %v5192, %v5186
      %v5631 = vpack.c.b16 %v5193, %v5187
      %v5632 = vpack.c.b16 %v5194, %v5188
      %v5633 = vpack.c.b16 %v5195, %v5189
      %v5634 = vpack.c.b16 %v5196, %v5190
      %v5635 = vpack.c.b16 %v5197, %v5191
      %v5636 = vpack.c.b16 %v5204, %v5198
      %v5637 = vpack.c.b16 %v5205, %v5199
      %v5638 = vpack.c.b16 %v5206, %v5200
      %v5639 = vpack.c.b16 %v5207, %v5201
      %v5640 = vpack.c.b16 %v5208, %v5202
      %v5641 = vpack.c.b16 %v5209, %v5203
      %v5642 = vpack.c.b16 %v5216, %v5210
      %v5643 = vpack.c.b16 %v5217, %v5211
      %v5644 = vpack.c.b16 %v5218, %v5212
      %v5645 = vpack.c.b16 %v5219, %v5213
      %v5646 = vpack.c.b16 %v5220, %v5214
      %v5647 = vpack.c.b16 %v5221, %v5215
      %v5648 = vpack.c.b16 %v5228, %v5222
      %v5649 = vpack.c.b16 %v5229, %v5223
      %v5650 = vpack.c.b16 %v5230, %v5224
      %v5651 = vpack.c.b16 %v5231, %v5225
      %v5652 = vpack.c.b16 %v5232, %v5226
      %v5653 = vpack.c.b16 %v5233, %v5227
      %v5654 = vpack.c.b16 %v5240, %v5234
      %v5655 = vpack.c.b16 %v5241, %v5235
      %v5656 = vpack.c.b16 %v5242, %v5236
      %v5657 = vpack.c.b16 %v5243, %v5237
      %v5658 = vpack.c.b16 %v5244, %v5238
      %v5659 = vpack.c.b16 %v5245, %v5239
      %v5660 = vpack.c.b16 %v5252, %v5246
      %v5661 = vpack.c.b16 %v5253, %v5247
      %v5662 = vpack.c.b16 %v5254, %v5248
      %v5663 = vpack.c.b16 %v5255, %v5249
      %v5664 = vpack.c.b16 %v5256, %v5250
      %v5665 = vpack.c.b16 %v5257, %v5251
      %v5666 = vpack.c.b16 %v5264, %v5258
      %v5667 = vpack.c.b16 %v5265, %v5259
      %v5668 = vpack.c.b16 %v5266, %v5260
      %v5669 = vpack.c.b16 %v5267, %v5261
      %v5670 = vpack.c.b16 %v5268, %v5262
      %v5671 = vpack.c.b16 %v5269, %v5263
      %v5672 = vpack.c.b16 %v5276, %v5270
      %v5673 = vpack.c.b16 %v5277, %v5271
      %v5674 = vpack.c.b16 %v5278, %v5272
      %v5675 = vpack.c.b16 %v5279, %v5273
      %v5676 = vpack.c.b16 %v5280, %v5274
      %v5677 = vpack.c.b16 %v5281, %v5275
      %v5678 = vpack.c.b16 %v5288, %v5282
      %v5679 = vpack.c.b16 %v5289, %v5283
      %v5680 = vpack.c.b16 %v5290, %v5284
      %v5681 = vpack.c.b16 %v5291, %v5285
      %v5682 = vpack.c.b16 %v5292, %v5286
      %v5683 = vpack.c.b16 %v5293, %v5287
      %v5684 = vpack.c.b16 %v5300, %v5294
      %v5685 = vpack.c.b16 %v5301, %v5295
      %v5686 = vpack.c.b16 %v5302, %v5296
      %v5687 = vpack.c.b16 %v5303, %v5297
      %v5688 = vpack.c.b16 %v5304, %v5298
      %v5689 = vpack.c.b16 %v5305, %v5299
      %6074 = vmatprep.subr.bf16.mxu0 %v5349
      %6075 = vmatpush1.bf16.msra.mxu0 %v5348
      %6076 = vmatprep.subr.bf16.mxu0 %v5343
      %6077 = vmatpush1.bf16.msra.mxu0 %v5342
      %6078 = vmatprep.subr.bf16.mxu0 %v5337
      %6079 = vmatpush1.bf16.msra.mxu0 %v5336
      %6080 = vmatprep.subr.bf16.mxu0 %v5331
      %6081 = vmatpush1.bf16.msra.mxu0 %v5330
      %6082 = vmatprep.subr.bf16.mxu0 %v5325
      %6083 = vmatpush1.bf16.msra.mxu0 %v5324
      %6084 = vmatprep.subr.bf16.mxu0 %v5319
      %6085 = vmatpush1.bf16.msra.mxu0 %v5318
      %6086 = vmatprep.subr.bf16.mxu0 %v5313
      %6087 = vmatpush1.bf16.msra.mxu0 %v5312
      %6088 = vmatprep.subr.bf16.mxu0 %v5307
      %6089 = vmatpush1.bf16.msra.mxu0 %v5306
      %6090 = vmatprep.subr.bf16.mxu0 %v5397
      %6091 = vmatpush2.bf16.msra.mxu0 %v5396
      %6092 = vmatprep.subr.bf16.mxu0 %v5391
      %6093 = vmatpush2.bf16.msra.mxu0 %v5390
      %6094 = vmatprep.subr.bf16.mxu0 %v5385
      %6095 = vmatpush2.bf16.msra.mxu0 %v5384
      %6096 = vmatprep.subr.bf16.mxu0 %v5379
      %6097 = vmatpush2.bf16.msra.mxu0 %v5378
      %6098 = vmatprep.subr.bf16.mxu0 %v5373
      %6099 = vmatpush2.bf16.msra.mxu0 %v5372
      %6100 = vmatprep.subr.bf16.mxu0 %v5367
      %6101 = vmatpush2.bf16.msra.mxu0 %v5366
      %6102 = vmatprep.subr.bf16.mxu0 %v5361
      %6103 = vmatpush2.bf16.msra.mxu0 %v5360
      %6104 = vmatprep.subr.bf16.mxu0 %v5355
      %6105 = vmatpush2.bf16.msra.mxu0 %v5354
      %6106 = vmatprep.mubr.bf16.mxu0 %v3675
      %6107 = vmatmul.mubr.bf16.gmra.mxu0 %v3674
      %v6108 = vpop.f32.mrf.mxu0
      %v6109 = vadd.f32 %v4127, %v6108
      %v6110 = vpop.f32.mrf.mxu0
      %v6111 = vadd.f32 %v4131, %v6110
      %v6112 = vpop.f32.mrf.mxu0
      %v6113 = vadd.f32 %v4127, %v6112
      %v6114 = vpop.f32.mrf.mxu0
      %v6115 = vadd.f32 %v4131, %v6114
      %6116 = vmatprep.mubr.bf16.mxu0 %v3683
      %6117 = vmatmul.mubr.bf16.gmra.mxu0 %v3682
      %v6118 = vpop.f32.mrf.mxu0
      %v6119 = vadd.f32 %v4127, %v6118
      %v6120 = vpop.f32.mrf.mxu0
      %v6121 = vadd.f32 %v4131, %v6120
      %v6122 = vpop.f32.mrf.mxu0
      %v6123 = vadd.f32 %v4127, %v6122
      %v6124 = vpop.f32.mrf.mxu0
      %v6125 = vadd.f32 %v4131, %v6124
      %6126 = vmatprep.mubr.bf16.mxu0 %v3691
      %6127 = vmatmul.mubr.bf16.gmra.mxu0 %v3690
      %v6128 = vpop.f32.mrf.mxu0
      %v6129 = vadd.f32 %v4127, %v6128
      %v6130 = vpop.f32.mrf.mxu0
      %v6131 = vadd.f32 %v4131, %v6130
      %v6132 = vpop.f32.mrf.mxu0
      %v6133 = vadd.f32 %v4127, %v6132
      %v6134 = vpop.f32.mrf.mxu0
      %v6135 = vadd.f32 %v4131, %v6134
      %6136 = vmatprep.mubr.bf16.mxu0 %v3699
      %6137 = vmatmul.mubr.bf16.gmra.mxu0 %v3698
      %v6138 = vpop.f32.mrf.mxu0
      %v6139 = vadd.f32 %v4127, %v6138
      %v6140 = vpop.f32.mrf.mxu0
      %v6141 = vadd.f32 %v4131, %v6140
      %v6142 = vpop.f32.mrf.mxu0
      %v6143 = vadd.f32 %v4127, %v6142
      %v6144 = vpop.f32.mrf.mxu0
      %v6145 = vadd.f32 %v4131, %v6144
      %6146 = vmatprep.mubr.bf16.mxu0 %v3707
      %6147 = vmatmul.mubr.bf16.gmra.mxu0 %v3706
      %v6148 = vpop.f32.mrf.mxu0
      %v6149 = vadd.f32 %v4127, %v6148
      %v6150 = vpop.f32.mrf.mxu0
      %v6151 = vadd.f32 %v4131, %v6150
      %v6152 = vpop.f32.mrf.mxu0
      %v6153 = vadd.f32 %v4127, %v6152
      %v6154 = vpop.f32.mrf.mxu0
      %v6155 = vadd.f32 %v4131, %v6154
      %6156 = vmatprep.mubr.bf16.mxu0 %v3715
      %6157 = vmatmul.mubr.bf16.gmra.mxu0 %v3714
      %v6158 = vpop.f32.mrf.mxu0
      %v6159 = vadd.f32 %v4127, %v6158
      %v6160 = vpop.f32.mrf.mxu0
      %v6161 = vadd.f32 %v4131, %v6160
      %v6162 = vpop.f32.mrf.mxu0
      %v6163 = vadd.f32 %v4127, %v6162
      %v6164 = vpop.f32.mrf.mxu0
      %v6165 = vadd.f32 %v4131, %v6164
      %6166 = vmatprep.mubr.bf16.mxu0 %v3723
      %6167 = vmatmul.mubr.bf16.gmra.mxu0 %v3722
      %v6168 = vpop.f32.mrf.mxu0
      %v6169 = vadd.f32 %v4127, %v6168
      %v6170 = vpop.f32.mrf.mxu0
      %v6171 = vadd.f32 %v4131, %v6170
      %v6172 = vpop.f32.mrf.mxu0
      %v6173 = vadd.f32 %v4127, %v6172
      %v6174 = vpop.f32.mrf.mxu0
      %v6175 = vadd.f32 %v4131, %v6174
      %6176 = vmatprep.mubr.bf16.mxu0 %v3731
      %6177 = vmatmul.mubr.bf16.gmra.mxu0 %v3730
      %v6178 = vpop.f32.mrf.mxu0
      %v6179 = vadd.f32 %v4127, %v6178
      %v6180 = vpop.f32.mrf.mxu0
      %v6181 = vadd.f32 %v4131, %v6180
      %v6182 = vpop.f32.mrf.mxu0
      %v6183 = vadd.f32 %v4127, %v6182
      %v6184 = vpop.f32.mrf.mxu0
      %v6185 = vadd.f32 %v4131, %v6184
      %6186 = vdwg.mxu0
      %6187 = vmatprep.subr.bf16.mxu0 %v5445
      %6188 = vmatpush1.bf16.msra.mxu0 %v5444
      %6189 = vmatprep.subr.bf16.mxu0 %v5439
      %6190 = vmatpush1.bf16.msra.mxu0 %v5438
      %6191 = vmatprep.subr.bf16.mxu0 %v5433
      %6192 = vmatpush1.bf16.msra.mxu0 %v5432
      %6193 = vmatprep.subr.bf16.mxu0 %v5427
      %6194 = vmatpush1.bf16.msra.mxu0 %v5426
      %6195 = vmatprep.subr.bf16.mxu0 %v5421
      %6196 = vmatpush1.bf16.msra.mxu0 %v5420
      %6197 = vmatprep.subr.bf16.mxu0 %v5415
      %6198 = vmatpush1.bf16.msra.mxu0 %v5414
      %6199 = vmatprep.subr.bf16.mxu0 %v5409
      %6200 = vmatpush1.bf16.msra.mxu0 %v5408
      %6201 = vmatprep.subr.bf16.mxu0 %v5403
      %6202 = vmatpush1.bf16.msra.mxu0 %v5402
      %6203 = vmatprep.subr.bf16.mxu0 %v5493
      %6204 = vmatpush2.bf16.msra.mxu0 %v5492
      %6205 = vmatprep.subr.bf16.mxu0 %v5487
      %6206 = vmatpush2.bf16.msra.mxu0 %v5486
      %6207 = vmatprep.subr.bf16.mxu0 %v5481
      %6208 = vmatpush2.bf16.msra.mxu0 %v5480
      %6209 = vmatprep.subr.bf16.mxu0 %v5475
      %6210 = vmatpush2.bf16.msra.mxu0 %v5474
      %6211 = vmatprep.subr.bf16.mxu0 %v5469
      %6212 = vmatpush2.bf16.msra.mxu0 %v5468
      %6213 = vmatprep.subr.bf16.mxu0 %v5463
      %6214 = vmatpush2.bf16.msra.mxu0 %v5462
      %6215 = vmatprep.subr.bf16.mxu0 %v5457
      %6216 = vmatpush2.bf16.msra.mxu0 %v5456
      %6217 = vmatprep.subr.bf16.mxu0 %v5451
      %6218 = vmatpush2.bf16.msra.mxu0 %v5450
      %6219 = vmatprep.mubr.bf16.mxu0 %v3677
      %6220 = vmatmul.mubr.bf16.gmra.mxu0 %v3676
      %v6221 = vpop.f32.mrf.mxu0
      %v6222 = vadd.f32 %v6109, %v6221
      %v6223 = vpop.f32.mrf.mxu0
      %v6224 = vadd.f32 %v6111, %v6223
      %v6225 = vpop.f32.mrf.mxu0
      %v6226 = vadd.f32 %v6113, %v6225
      %v6227 = vpop.f32.mrf.mxu0
      %v6228 = vadd.f32 %v6115, %v6227
      %6229 = vmatprep.mubr.bf16.mxu0 %v3685
      %6230 = vmatmul.mubr.bf16.gmra.mxu0 %v3684
      %v6231 = vpop.f32.mrf.mxu0
      %v6232 = vadd.f32 %v6119, %v6231
      %v6233 = vpop.f32.mrf.mxu0
      %v6234 = vadd.f32 %v6121, %v6233
      %v6235 = vpop.f32.mrf.mxu0
      %v6236 = vadd.f32 %v6123, %v6235
      %v6237 = vpop.f32.mrf.mxu0
      %v6238 = vadd.f32 %v6125, %v6237
      %6239 = vmatprep.mubr.bf16.mxu0 %v3693
      %6240 = vmatmul.mubr.bf16.gmra.mxu0 %v3692
      %v6241 = vpop.f32.mrf.mxu0
      %v6242 = vadd.f32 %v6129, %v6241
      %v6243 = vpop.f32.mrf.mxu0
      %v6244 = vadd.f32 %v6131, %v6243
      %v6245 = vpop.f32.mrf.mxu0
      %v6246 = vadd.f32 %v6133, %v6245
      %v6247 = vpop.f32.mrf.mxu0
      %v6248 = vadd.f32 %v6135, %v6247
      %6249 = vmatprep.mubr.bf16.mxu0 %v3701
      %6250 = vmatmul.mubr.bf16.gmra.mxu0 %v3700
      %v6251 = vpop.f32.mrf.mxu0
      %v6252 = vadd.f32 %v6139, %v6251
      %v6253 = vpop.f32.mrf.mxu0
      %v6254 = vadd.f32 %v6141, %v6253
      %v6255 = vpop.f32.mrf.mxu0
      %v6256 = vadd.f32 %v6143, %v6255
      %v6257 = vpop.f32.mrf.mxu0
      %v6258 = vadd.f32 %v6145, %v6257
      %6259 = vmatprep.mubr.bf16.mxu0 %v3709
      %6260 = vmatmul.mubr.bf16.gmra.mxu0 %v3708
      %v6261 = vpop.f32.mrf.mxu0
      %v6262 = vadd.f32 %v6149, %v6261
      %v6263 = vpop.f32.mrf.mxu0
      %v6264 = vadd.f32 %v6151, %v6263
      %v6265 = vpop.f32.mrf.mxu0
      %v6266 = vadd.f32 %v6153, %v6265
      %v6267 = vpop.f32.mrf.mxu0
      %v6268 = vadd.f32 %v6155, %v6267
      %6269 = vmatprep.mubr.bf16.mxu0 %v3717
      %6270 = vmatmul.mubr.bf16.gmra.mxu0 %v3716
      %v6271 = vpop.f32.mrf.mxu0
      %v6272 = vadd.f32 %v6159, %v6271
      %v6273 = vpop.f32.mrf.mxu0
      %v6274 = vadd.f32 %v6161, %v6273
      %v6275 = vpop.f32.mrf.mxu0
      %v6276 = vadd.f32 %v6163, %v6275
      %v6277 = vpop.f32.mrf.mxu0
      %v6278 = vadd.f32 %v6165, %v6277
      %6279 = vmatprep.mubr.bf16.mxu0 %v3725
      %6280 = vmatmul.mubr.bf16.gmra.mxu0 %v3724
      %v6281 = vpop.f32.mrf.mxu0
      %v6282 = vadd.f32 %v6169, %v6281
      %v6283 = vpop.f32.mrf.mxu0
      %v6284 = vadd.f32 %v6171, %v6283
      %v6285 = vpop.f32.mrf.mxu0
      %v6286 = vadd.f32 %v6173, %v6285
      %v6287 = vpop.f32.mrf.mxu0
      %v6288 = vadd.f32 %v6175, %v6287
      %6289 = vmatprep.mubr.bf16.mxu0 %v3733
      %6290 = vmatmul.mubr.bf16.gmra.mxu0 %v3732
      %v6291 = vpop.f32.mrf.mxu0
      %v6292 = vadd.f32 %v6179, %v6291
      %v6293 = vpop.f32.mrf.mxu0
      %v6294 = vadd.f32 %v6181, %v6293
      %v6295 = vpop.f32.mrf.mxu0
      %v6296 = vadd.f32 %v6183, %v6295
      %v6297 = vpop.f32.mrf.mxu0
      %v6298 = vadd.f32 %v6185, %v6297
      %6299 = vdwg.mxu0
      %6300 = vmatprep.subr.bf16.mxu0 %v5541
      %6301 = vmatpush1.bf16.msra.mxu0 %v5540
      %6302 = vmatprep.subr.bf16.mxu0 %v5535
      %6303 = vmatpush1.bf16.msra.mxu0 %v5534
      %6304 = vmatprep.subr.bf16.mxu0 %v5529
      %6305 = vmatpush1.bf16.msra.mxu0 %v5528
      %6306 = vmatprep.subr.bf16.mxu0 %v5523
      %6307 = vmatpush1.bf16.msra.mxu0 %v5522
      %6308 = vmatprep.subr.bf16.mxu0 %v5517
      %6309 = vmatpush1.bf16.msra.mxu0 %v5516
      %6310 = vmatprep.subr.bf16.mxu0 %v5511
      %6311 = vmatpush1.bf16.msra.mxu0 %v5510
      %6312 = vmatprep.subr.bf16.mxu0 %v5505
      %6313 = vmatpush1.bf16.msra.mxu0 %v5504
      %6314 = vmatprep.subr.bf16.mxu0 %v5499
      %6315 = vmatpush1.bf16.msra.mxu0 %v5498
      %6316 = vmatprep.subr.bf16.mxu0 %v5589
      %6317 = vmatpush2.bf16.msra.mxu0 %v5588
      %6318 = vmatprep.subr.bf16.mxu0 %v5583
      %6319 = vmatpush2.bf16.msra.mxu0 %v5582
      %6320 = vmatprep.subr.bf16.mxu0 %v5577
      %6321 = vmatpush2.bf16.msra.mxu0 %v5576
      %6322 = vmatprep.subr.bf16.mxu0 %v5571
      %6323 = vmatpush2.bf16.msra.mxu0 %v5570
      %6324 = vmatprep.subr.bf16.mxu0 %v5565
      %6325 = vmatpush2.bf16.msra.mxu0 %v5564
      %6326 = vmatprep.subr.bf16.mxu0 %v5559
      %6327 = vmatpush2.bf16.msra.mxu0 %v5558
      %6328 = vmatprep.subr.bf16.mxu0 %v5553
      %6329 = vmatpush2.bf16.msra.mxu0 %v5552
      %6330 = vmatprep.subr.bf16.mxu0 %v5547
      %6331 = vmatpush2.bf16.msra.mxu0 %v5546
      %6332 = vmatprep.mubr.bf16.mxu0 %v3679
      %6333 = vmatmul.mubr.bf16.gmra.mxu0 %v3678
      %v6334 = vpop.f32.mrf.mxu0
      %v6335 = vadd.f32 %v6222, %v6334
      %v6336 = vpop.f32.mrf.mxu0
      %v6337 = vadd.f32 %v6224, %v6336
      %v6338 = vpop.f32.mrf.mxu0
      %v6339 = vadd.f32 %v6226, %v6338
      %v6340 = vpop.f32.mrf.mxu0
      %v6341 = vadd.f32 %v6228, %v6340
      %6342 = vmatprep.mubr.bf16.mxu0 %v3687
      %6343 = vmatmul.mubr.bf16.gmra.mxu0 %v3686
      %v6344 = vpop.f32.mrf.mxu0
      %v6345 = vadd.f32 %v6232, %v6344
      %v6346 = vpop.f32.mrf.mxu0
      %v6347 = vadd.f32 %v6234, %v6346
      %v6348 = vpop.f32.mrf.mxu0
      %v6349 = vadd.f32 %v6236, %v6348
      %v6350 = vpop.f32.mrf.mxu0
      %v6351 = vadd.f32 %v6238, %v6350
      %6352 = vmatprep.mubr.bf16.mxu0 %v3695
      %6353 = vmatmul.mubr.bf16.gmra.mxu0 %v3694
      %v6354 = vpop.f32.mrf.mxu0
      %v6355 = vadd.f32 %v6242, %v6354
      %v6356 = vpop.f32.mrf.mxu0
      %v6357 = vadd.f32 %v6244, %v6356
      %v6358 = vpop.f32.mrf.mxu0
      %v6359 = vadd.f32 %v6246, %v6358
      %v6360 = vpop.f32.mrf.mxu0
      %v6361 = vadd.f32 %v6248, %v6360
      %6362 = vmatprep.mubr.bf16.mxu0 %v3703
      %6363 = vmatmul.mubr.bf16.gmra.mxu0 %v3702
      %v6364 = vpop.f32.mrf.mxu0
      %v6365 = vadd.f32 %v6252, %v6364
      %v6366 = vpop.f32.mrf.mxu0
      %v6367 = vadd.f32 %v6254, %v6366
      %v6368 = vpop.f32.mrf.mxu0
      %v6369 = vadd.f32 %v6256, %v6368
      %v6370 = vpop.f32.mrf.mxu0
      %v6371 = vadd.f32 %v6258, %v6370
      %6372 = vmatprep.mubr.bf16.mxu0 %v3711
      %6373 = vmatmul.mubr.bf16.gmra.mxu0 %v3710
      %v6374 = vpop.f32.mrf.mxu0
      %v6375 = vadd.f32 %v6262, %v6374
      %v6376 = vpop.f32.mrf.mxu0
      %v6377 = vadd.f32 %v6264, %v6376
      %v6378 = vpop.f32.mrf.mxu0
      %v6379 = vadd.f32 %v6266, %v6378
      %v6380 = vpop.f32.mrf.mxu0
      %v6381 = vadd.f32 %v6268, %v6380
      %6382 = vmatprep.mubr.bf16.mxu0 %v3719
      %6383 = vmatmul.mubr.bf16.gmra.mxu0 %v3718
      %v6384 = vpop.f32.mrf.mxu0
      %v6385 = vadd.f32 %v6272, %v6384
      %v6386 = vpop.f32.mrf.mxu0
      %v6387 = vadd.f32 %v6274, %v6386
      %v6388 = vpop.f32.mrf.mxu0
      %v6389 = vadd.f32 %v6276, %v6388
      %v6390 = vpop.f32.mrf.mxu0
      %v6391 = vadd.f32 %v6278, %v6390
      %6392 = vmatprep.mubr.bf16.mxu0 %v3727
      %6393 = vmatmul.mubr.bf16.gmra.mxu0 %v3726
      %v6394 = vpop.f32.mrf.mxu0
      %v6395 = vadd.f32 %v6282, %v6394
      %v6396 = vpop.f32.mrf.mxu0
      %v6397 = vadd.f32 %v6284, %v6396
      %v6398 = vpop.f32.mrf.mxu0
      %v6399 = vadd.f32 %v6286, %v6398
      %v6400 = vpop.f32.mrf.mxu0
      %v6401 = vadd.f32 %v6288, %v6400
      %6402 = vmatprep.mubr.bf16.mxu0 %v3735
      %6403 = vmatmul.mubr.bf16.gmra.mxu0 %v3734
      %v6404 = vpop.f32.mrf.mxu0
      %v6405 = vadd.f32 %v6292, %v6404
      %v6406 = vpop.f32.mrf.mxu0
      %v6407 = vadd.f32 %v6294, %v6406
      %v6408 = vpop.f32.mrf.mxu0
      %v6409 = vadd.f32 %v6296, %v6408
      %v6410 = vpop.f32.mrf.mxu0
      %v6411 = vadd.f32 %v6298, %v6410
      %6412 = vdwg.mxu0
      %6413 = vmatprep.subr.bf16.mxu0 %v5637
      %6414 = vmatpush1.bf16.msra.mxu0 %v5636
      %6415 = vmatprep.subr.bf16.mxu0 %v5631
      %6416 = vmatpush1.bf16.msra.mxu0 %v5630
      %6417 = vmatprep.subr.bf16.mxu0 %v5625
      %6418 = vmatpush1.bf16.msra.mxu0 %v5624
      %6419 = vmatprep.subr.bf16.mxu0 %v5619
      %6420 = vmatpush1.bf16.msra.mxu0 %v5618
      %6421 = vmatprep.subr.bf16.mxu0 %v5613
      %6422 = vmatpush1.bf16.msra.mxu0 %v5612
      %6423 = vmatprep.subr.bf16.mxu0 %v5607
      %6424 = vmatpush1.bf16.msra.mxu0 %v5606
      %6425 = vmatprep.subr.bf16.mxu0 %v5601
      %6426 = vmatpush1.bf16.msra.mxu0 %v5600
      %6427 = vmatprep.subr.bf16.mxu0 %v5595
      %6428 = vmatpush1.bf16.msra.mxu0 %v5594
      %6429 = vmatprep.subr.bf16.mxu0 %v5685
      %6430 = vmatpush2.bf16.msra.mxu0 %v5684
      %6431 = vmatprep.subr.bf16.mxu0 %v5679
      %6432 = vmatpush2.bf16.msra.mxu0 %v5678
      %6433 = vmatprep.subr.bf16.mxu0 %v5673
      %6434 = vmatpush2.bf16.msra.mxu0 %v5672
      %6435 = vmatprep.subr.bf16.mxu0 %v5667
      %6436 = vmatpush2.bf16.msra.mxu0 %v5666
      %6437 = vmatprep.subr.bf16.mxu0 %v5661
      %6438 = vmatpush2.bf16.msra.mxu0 %v5660
      %6439 = vmatprep.subr.bf16.mxu0 %v5655
      %6440 = vmatpush2.bf16.msra.mxu0 %v5654
      %6441 = vmatprep.subr.bf16.mxu0 %v5649
      %6442 = vmatpush2.bf16.msra.mxu0 %v5648
      %6443 = vmatprep.subr.bf16.mxu0 %v5643
      %6444 = vmatpush2.bf16.msra.mxu0 %v5642
      %6445 = vmatprep.mubr.bf16.mxu0 %v3681
      %6446 = vmatmul.mubr.bf16.gmra.mxu0 %v3680
      %v6447 = vpop.f32.mrf.mxu0
      %v6448 = vadd.f32 %v6335, %v6447
      %v6449 = vpop.f32.mrf.mxu0
      %v6450 = vadd.f32 %v6337, %v6449
      %v6451 = vpop.f32.mrf.mxu0
      %v6452 = vadd.f32 %v6339, %v6451
      %v6453 = vpop.f32.mrf.mxu0
      %v6454 = vadd.f32 %v6341, %v6453
      %6455 = vmatprep.mubr.bf16.mxu0 %v3689
      %6456 = vmatmul.mubr.bf16.gmra.mxu0 %v3688
      %v6457 = vpop.f32.mrf.mxu0
      %v6458 = vadd.f32 %v6345, %v6457
      %v6459 = vpop.f32.mrf.mxu0
      %v6460 = vadd.f32 %v6347, %v6459
      %v6461 = vpop.f32.mrf.mxu0
      %v6462 = vadd.f32 %v6349, %v6461
      %v6463 = vpop.f32.mrf.mxu0
      %v6464 = vadd.f32 %v6351, %v6463
      %6465 = vmatprep.mubr.bf16.mxu0 %v3697
      %6466 = vmatmul.mubr.bf16.gmra.mxu0 %v3696
      %v6467 = vpop.f32.mrf.mxu0
      %v6468 = vadd.f32 %v6355, %v6467
      %v6469 = vpop.f32.mrf.mxu0
      %v6470 = vadd.f32 %v6357, %v6469
      %v6471 = vpop.f32.mrf.mxu0
      %v6472 = vadd.f32 %v6359, %v6471
      %v6473 = vpop.f32.mrf.mxu0
      %v6474 = vadd.f32 %v6361, %v6473
      %6475 = vmatprep.mubr.bf16.mxu0 %v3705
      %6476 = vmatmul.mubr.bf16.gmra.mxu0 %v3704
      %v6477 = vpop.f32.mrf.mxu0
      %v6478 = vadd.f32 %v6365, %v6477
      %v6479 = vpop.f32.mrf.mxu0
      %v6480 = vadd.f32 %v6367, %v6479
      %v6481 = vpop.f32.mrf.mxu0
      %v6482 = vadd.f32 %v6369, %v6481
      %v6483 = vpop.f32.mrf.mxu0
      %v6484 = vadd.f32 %v6371, %v6483
      %6485 = vmatprep.mubr.bf16.mxu0 %v3713
      %6486 = vmatmul.mubr.bf16.gmra.mxu0 %v3712
      %v6487 = vpop.f32.mrf.mxu0
      %v6488 = vadd.f32 %v6375, %v6487
      %v6489 = vpop.f32.mrf.mxu0
      %v6490 = vadd.f32 %v6377, %v6489
      %v6491 = vpop.f32.mrf.mxu0
      %v6492 = vadd.f32 %v6379, %v6491
      %v6493 = vpop.f32.mrf.mxu0
      %v6494 = vadd.f32 %v6381, %v6493
      %6495 = vmatprep.mubr.bf16.mxu0 %v3721
      %6496 = vmatmul.mubr.bf16.gmra.mxu0 %v3720
      %v6497 = vpop.f32.mrf.mxu0
      %v6498 = vadd.f32 %v6385, %v6497
      %v6499 = vpop.f32.mrf.mxu0
      %v6500 = vadd.f32 %v6387, %v6499
      %v6501 = vpop.f32.mrf.mxu0
      %v6502 = vadd.f32 %v6389, %v6501
      %v6503 = vpop.f32.mrf.mxu0
      %v6504 = vadd.f32 %v6391, %v6503
      %6505 = vmatprep.mubr.bf16.mxu0 %v3729
      %6506 = vmatmul.mubr.bf16.gmra.mxu0 %v3728
      %v6507 = vpop.f32.mrf.mxu0
      %v6508 = vadd.f32 %v6395, %v6507
      %v6509 = vpop.f32.mrf.mxu0
      %v6510 = vadd.f32 %v6397, %v6509
      %v6511 = vpop.f32.mrf.mxu0
      %v6512 = vadd.f32 %v6399, %v6511
      %v6513 = vpop.f32.mrf.mxu0
      %v6514 = vadd.f32 %v6401, %v6513
      %6515 = vmatprep.mubr.bf16.mxu0 %v3737
      %6516 = vmatmul.mubr.bf16.gmra.mxu0 %v3736
      %v6517 = vpop.f32.mrf.mxu0
      %v6518 = vadd.f32 %v6405, %v6517
      %v6519 = vpop.f32.mrf.mxu0
      %v6520 = vadd.f32 %v6407, %v6519
      %v6521 = vpop.f32.mrf.mxu0
      %v6522 = vadd.f32 %v6409, %v6521
      %v6523 = vpop.f32.mrf.mxu0
      %v6524 = vadd.f32 %v6411, %v6523
      %6525 = vdwg.mxu0
      %6526 = vmatprep.subr.bf16.mxu0 %v5351
      %6527 = vmatpush1.bf16.msra.mxu0 %v5350
      %6528 = vmatprep.subr.bf16.mxu0 %v5345
      %6529 = vmatpush1.bf16.msra.mxu0 %v5344
      %6530 = vmatprep.subr.bf16.mxu0 %v5339
      %6531 = vmatpush1.bf16.msra.mxu0 %v5338
      %6532 = vmatprep.subr.bf16.mxu0 %v5333
      %6533 = vmatpush1.bf16.msra.mxu0 %v5332
      %6534 = vmatprep.subr.bf16.mxu0 %v5327
      %6535 = vmatpush1.bf16.msra.mxu0 %v5326
      %6536 = vmatprep.subr.bf16.mxu0 %v5321
      %6537 = vmatpush1.bf16.msra.mxu0 %v5320
      %6538 = vmatprep.subr.bf16.mxu0 %v5315
      %6539 = vmatpush1.bf16.msra.mxu0 %v5314
      %6540 = vmatprep.subr.bf16.mxu0 %v5309
      %6541 = vmatpush1.bf16.msra.mxu0 %v5308
      %6542 = vmatprep.subr.bf16.mxu0 %v5399
      %6543 = vmatpush2.bf16.msra.mxu0 %v5398
      %6544 = vmatprep.subr.bf16.mxu0 %v5393
      %6545 = vmatpush2.bf16.msra.mxu0 %v5392
      %6546 = vmatprep.subr.bf16.mxu0 %v5387
      %6547 = vmatpush2.bf16.msra.mxu0 %v5386
      %6548 = vmatprep.subr.bf16.mxu0 %v5381
      %6549 = vmatpush2.bf16.msra.mxu0 %v5380
      %6550 = vmatprep.subr.bf16.mxu0 %v5375
      %6551 = vmatpush2.bf16.msra.mxu0 %v5374
      %6552 = vmatprep.subr.bf16.mxu0 %v5369
      %6553 = vmatpush2.bf16.msra.mxu0 %v5368
      %6554 = vmatprep.subr.bf16.mxu0 %v5363
      %6555 = vmatpush2.bf16.msra.mxu0 %v5362
      %6556 = vmatprep.subr.bf16.mxu0 %v5357
      %6557 = vmatpush2.bf16.msra.mxu0 %v5356
      %6558 = vmatprep.mubr.bf16.mxu0 %v3675
      %6559 = vmatmul.mubr.bf16.gmra.mxu0 %v3674
      %v6560 = vpop.f32.mrf.mxu0
      %v6561 = vadd.f32 %v4135, %v6560
      %v6562 = vpop.f32.mrf.mxu0
      %v6563 = vadd.f32 %v4139, %v6562
      %v6564 = vpop.f32.mrf.mxu0
      %v6565 = vadd.f32 %v4135, %v6564
      %v6566 = vpop.f32.mrf.mxu0
      %v6567 = vadd.f32 %v4139, %v6566
      %6568 = vmatprep.mubr.bf16.mxu0 %v3683
      %6569 = vmatmul.mubr.bf16.gmra.mxu0 %v3682
      %v6570 = vpop.f32.mrf.mxu0
      %v6571 = vadd.f32 %v4135, %v6570
      %v6572 = vpop.f32.mrf.mxu0
      %v6573 = vadd.f32 %v4139, %v6572
      %v6574 = vpop.f32.mrf.mxu0
      %v6575 = vadd.f32 %v4135, %v6574
      %v6576 = vpop.f32.mrf.mxu0
      %v6577 = vadd.f32 %v4139, %v6576
      %6578 = vmatprep.mubr.bf16.mxu0 %v3691
      %6579 = vmatmul.mubr.bf16.gmra.mxu0 %v3690
      %v6580 = vpop.f32.mrf.mxu0
      %v6581 = vadd.f32 %v4135, %v6580
      %v6582 = vpop.f32.mrf.mxu0
      %v6583 = vadd.f32 %v4139, %v6582
      %v6584 = vpop.f32.mrf.mxu0
      %v6585 = vadd.f32 %v4135, %v6584
      %v6586 = vpop.f32.mrf.mxu0
      %v6587 = vadd.f32 %v4139, %v6586
      %6588 = vmatprep.mubr.bf16.mxu0 %v3699
      %6589 = vmatmul.mubr.bf16.gmra.mxu0 %v3698
      %v6590 = vpop.f32.mrf.mxu0
      %v6591 = vadd.f32 %v4135, %v6590
      %v6592 = vpop.f32.mrf.mxu0
      %v6593 = vadd.f32 %v4139, %v6592
      %v6594 = vpop.f32.mrf.mxu0
      %v6595 = vadd.f32 %v4135, %v6594
      %v6596 = vpop.f32.mrf.mxu0
      %v6597 = vadd.f32 %v4139, %v6596
      %6598 = vmatprep.mubr.bf16.mxu0 %v3707
      %6599 = vmatmul.mubr.bf16.gmra.mxu0 %v3706
      %v6600 = vpop.f32.mrf.mxu0
      %v6601 = vadd.f32 %v4135, %v6600
      %v6602 = vpop.f32.mrf.mxu0
      %v6603 = vadd.f32 %v4139, %v6602
      %v6604 = vpop.f32.mrf.mxu0
      %v6605 = vadd.f32 %v4135, %v6604
      %v6606 = vpop.f32.mrf.mxu0
      %v6607 = vadd.f32 %v4139, %v6606
      %6608 = vmatprep.mubr.bf16.mxu0 %v3715
      %6609 = vmatmul.mubr.bf16.gmra.mxu0 %v3714
      %v6610 = vpop.f32.mrf.mxu0
      %v6611 = vadd.f32 %v4135, %v6610
      %v6612 = vpop.f32.mrf.mxu0
      %v6613 = vadd.f32 %v4139, %v6612
      %v6614 = vpop.f32.mrf.mxu0
      %v6615 = vadd.f32 %v4135, %v6614
      %v6616 = vpop.f32.mrf.mxu0
      %v6617 = vadd.f32 %v4139, %v6616
      %6618 = vmatprep.mubr.bf16.mxu0 %v3723
      %6619 = vmatmul.mubr.bf16.gmra.mxu0 %v3722
      %v6620 = vpop.f32.mrf.mxu0
      %v6621 = vadd.f32 %v4135, %v6620
      %v6622 = vpop.f32.mrf.mxu0
      %v6623 = vadd.f32 %v4139, %v6622
      %v6624 = vpop.f32.mrf.mxu0
      %v6625 = vadd.f32 %v4135, %v6624
      %v6626 = vpop.f32.mrf.mxu0
      %v6627 = vadd.f32 %v4139, %v6626
      %6628 = vmatprep.mubr.bf16.mxu0 %v3731
      %6629 = vmatmul.mubr.bf16.gmra.mxu0 %v3730
      %v6630 = vpop.f32.mrf.mxu0
      %v6631 = vadd.f32 %v4135, %v6630
      %v6632 = vpop.f32.mrf.mxu0
      %v6633 = vadd.f32 %v4139, %v6632
      %v6634 = vpop.f32.mrf.mxu0
      %v6635 = vadd.f32 %v4135, %v6634
      %v6636 = vpop.f32.mrf.mxu0
      %v6637 = vadd.f32 %v4139, %v6636
      %6638 = vdwg.mxu0
      %6639 = vmatprep.subr.bf16.mxu0 %v5447
      %6640 = vmatpush1.bf16.msra.mxu0 %v5446
      %6641 = vmatprep.subr.bf16.mxu0 %v5441
      %6642 = vmatpush1.bf16.msra.mxu0 %v5440
      %6643 = vmatprep.subr.bf16.mxu0 %v5435
      %6644 = vmatpush1.bf16.msra.mxu0 %v5434
      %6645 = vmatprep.subr.bf16.mxu0 %v5429
      %6646 = vmatpush1.bf16.msra.mxu0 %v5428
      %6647 = vmatprep.subr.bf16.mxu0 %v5423
      %6648 = vmatpush1.bf16.msra.mxu0 %v5422
      %6649 = vmatprep.subr.bf16.mxu0 %v5417
      %6650 = vmatpush1.bf16.msra.mxu0 %v5416
      %6651 = vmatprep.subr.bf16.mxu0 %v5411
      %6652 = vmatpush1.bf16.msra.mxu0 %v5410
      %6653 = vmatprep.subr.bf16.mxu0 %v5405
      %6654 = vmatpush1.bf16.msra.mxu0 %v5404
      %6655 = vmatprep.subr.bf16.mxu0 %v5495
      %6656 = vmatpush2.bf16.msra.mxu0 %v5494
      %6657 = vmatprep.subr.bf16.mxu0 %v5489
      %6658 = vmatpush2.bf16.msra.mxu0 %v5488
      %6659 = vmatprep.subr.bf16.mxu0 %v5483
      %6660 = vmatpush2.bf16.msra.mxu0 %v5482
      %6661 = vmatprep.subr.bf16.mxu0 %v5477
      %6662 = vmatpush2.bf16.msra.mxu0 %v5476
      %6663 = vmatprep.subr.bf16.mxu0 %v5471
      %6664 = vmatpush2.bf16.msra.mxu0 %v5470
      %6665 = vmatprep.subr.bf16.mxu0 %v5465
      %6666 = vmatpush2.bf16.msra.mxu0 %v5464
      %6667 = vmatprep.subr.bf16.mxu0 %v5459
      %6668 = vmatpush2.bf16.msra.mxu0 %v5458
      %6669 = vmatprep.subr.bf16.mxu0 %v5453
      %6670 = vmatpush2.bf16.msra.mxu0 %v5452
      %6671 = vmatprep.mubr.bf16.mxu0 %v3677
      %6672 = vmatmul.mubr.bf16.gmra.mxu0 %v3676
      %v6673 = vpop.f32.mrf.mxu0
      %v6674 = vadd.f32 %v6561, %v6673
      %v6675 = vpop.f32.mrf.mxu0
      %v6676 = vadd.f32 %v6563, %v6675
      %v6677 = vpop.f32.mrf.mxu0
      %v6678 = vadd.f32 %v6565, %v6677
      %v6679 = vpop.f32.mrf.mxu0
      %v6680 = vadd.f32 %v6567, %v6679
      %6681 = vmatprep.mubr.bf16.mxu0 %v3685
      %6682 = vmatmul.mubr.bf16.gmra.mxu0 %v3684
      %v6683 = vpop.f32.mrf.mxu0
      %v6684 = vadd.f32 %v6571, %v6683
      %v6685 = vpop.f32.mrf.mxu0
      %v6686 = vadd.f32 %v6573, %v6685
      %v6687 = vpop.f32.mrf.mxu0
      %v6688 = vadd.f32 %v6575, %v6687
      %v6689 = vpop.f32.mrf.mxu0
      %v6690 = vadd.f32 %v6577, %v6689
      %6691 = vmatprep.mubr.bf16.mxu0 %v3693
      %6692 = vmatmul.mubr.bf16.gmra.mxu0 %v3692
      %v6693 = vpop.f32.mrf.mxu0
      %v6694 = vadd.f32 %v6581, %v6693
      %v6695 = vpop.f32.mrf.mxu0
      %v6696 = vadd.f32 %v6583, %v6695
      %v6697 = vpop.f32.mrf.mxu0
      %v6698 = vadd.f32 %v6585, %v6697
      %v6699 = vpop.f32.mrf.mxu0
      %v6700 = vadd.f32 %v6587, %v6699
      %6701 = vmatprep.mubr.bf16.mxu0 %v3701
      %6702 = vmatmul.mubr.bf16.gmra.mxu0 %v3700
      %v6703 = vpop.f32.mrf.mxu0
      %v6704 = vadd.f32 %v6591, %v6703
      %v6705 = vpop.f32.mrf.mxu0
      %v6706 = vadd.f32 %v6593, %v6705
      %v6707 = vpop.f32.mrf.mxu0
      %v6708 = vadd.f32 %v6595, %v6707
      %v6709 = vpop.f32.mrf.mxu0
      %v6710 = vadd.f32 %v6597, %v6709
      %6711 = vmatprep.mubr.bf16.mxu0 %v3709
      %6712 = vmatmul.mubr.bf16.gmra.mxu0 %v3708
      %v6713 = vpop.f32.mrf.mxu0
      %v6714 = vadd.f32 %v6601, %v6713
      %v6715 = vpop.f32.mrf.mxu0
      %v6716 = vadd.f32 %v6603, %v6715
      %v6717 = vpop.f32.mrf.mxu0
      %v6718 = vadd.f32 %v6605, %v6717
      %v6719 = vpop.f32.mrf.mxu0
      %v6720 = vadd.f32 %v6607, %v6719
      %6721 = vmatprep.mubr.bf16.mxu0 %v3717
      %6722 = vmatmul.mubr.bf16.gmra.mxu0 %v3716
      %v6723 = vpop.f32.mrf.mxu0
      %v6724 = vadd.f32 %v6611, %v6723
      %v6725 = vpop.f32.mrf.mxu0
      %v6726 = vadd.f32 %v6613, %v6725
      %v6727 = vpop.f32.mrf.mxu0
      %v6728 = vadd.f32 %v6615, %v6727
      %v6729 = vpop.f32.mrf.mxu0
      %v6730 = vadd.f32 %v6617, %v6729
      %6731 = vmatprep.mubr.bf16.mxu0 %v3725
      %6732 = vmatmul.mubr.bf16.gmra.mxu0 %v3724
      %v6733 = vpop.f32.mrf.mxu0
      %v6734 = vadd.f32 %v6621, %v6733
      %v6735 = vpop.f32.mrf.mxu0
      %v6736 = vadd.f32 %v6623, %v6735
      %v6737 = vpop.f32.mrf.mxu0
      %v6738 = vadd.f32 %v6625, %v6737
      %v6739 = vpop.f32.mrf.mxu0
      %v6740 = vadd.f32 %v6627, %v6739
      %6741 = vmatprep.mubr.bf16.mxu0 %v3733
      %6742 = vmatmul.mubr.bf16.gmra.mxu0 %v3732
      %v6743 = vpop.f32.mrf.mxu0
      %v6744 = vadd.f32 %v6631, %v6743
      %v6745 = vpop.f32.mrf.mxu0
      %v6746 = vadd.f32 %v6633, %v6745
      %v6747 = vpop.f32.mrf.mxu0
      %v6748 = vadd.f32 %v6635, %v6747
      %v6749 = vpop.f32.mrf.mxu0
      %v6750 = vadd.f32 %v6637, %v6749
      %6751 = vdwg.mxu0
      %6752 = vmatprep.subr.bf16.mxu0 %v5543
      %6753 = vmatpush1.bf16.msra.mxu0 %v5542
      %6754 = vmatprep.subr.bf16.mxu0 %v5537
      %6755 = vmatpush1.bf16.msra.mxu0 %v5536
      %6756 = vmatprep.subr.bf16.mxu0 %v5531
      %6757 = vmatpush1.bf16.msra.mxu0 %v5530
      %6758 = vmatprep.subr.bf16.mxu0 %v5525
      %6759 = vmatpush1.bf16.msra.mxu0 %v5524
      %6760 = vmatprep.subr.bf16.mxu0 %v5519
      %6761 = vmatpush1.bf16.msra.mxu0 %v5518
      %6762 = vmatprep.subr.bf16.mxu0 %v5513
      %6763 = vmatpush1.bf16.msra.mxu0 %v5512
      %6764 = vmatprep.subr.bf16.mxu0 %v5507
      %6765 = vmatpush1.bf16.msra.mxu0 %v5506
      %6766 = vmatprep.subr.bf16.mxu0 %v5501
      %6767 = vmatpush1.bf16.msra.mxu0 %v5500
      %6768 = vmatprep.subr.bf16.mxu0 %v5591
      %6769 = vmatpush2.bf16.msra.mxu0 %v5590
      %6770 = vmatprep.subr.bf16.mxu0 %v5585
      %6771 = vmatpush2.bf16.msra.mxu0 %v5584
      %6772 = vmatprep.subr.bf16.mxu0 %v5579
      %6773 = vmatpush2.bf16.msra.mxu0 %v5578
      %6774 = vmatprep.subr.bf16.mxu0 %v5573
      %6775 = vmatpush2.bf16.msra.mxu0 %v5572
      %6776 = vmatprep.subr.bf16.mxu0 %v5567
      %6777 = vmatpush2.bf16.msra.mxu0 %v5566
      %6778 = vmatprep.subr.bf16.mxu0 %v5561
      %6779 = vmatpush2.bf16.msra.mxu0 %v5560
      %6780 = vmatprep.subr.bf16.mxu0 %v5555
      %6781 = vmatpush2.bf16.msra.mxu0 %v5554
      %6782 = vmatprep.subr.bf16.mxu0 %v5549
      %6783 = vmatpush2.bf16.msra.mxu0 %v5548
      %6784 = vmatprep.mubr.bf16.mxu0 %v3679
      %6785 = vmatmul.mubr.bf16.gmra.mxu0 %v3678
      %v6786 = vpop.f32.mrf.mxu0
      %v6787 = vadd.f32 %v6674, %v6786
      %v6788 = vpop.f32.mrf.mxu0
      %v6789 = vadd.f32 %v6676, %v6788
      %v6790 = vpop.f32.mrf.mxu0
      %v6791 = vadd.f32 %v6678, %v6790
      %v6792 = vpop.f32.mrf.mxu0
      %v6793 = vadd.f32 %v6680, %v6792
      %6794 = vmatprep.mubr.bf16.mxu0 %v3687
      %6795 = vmatmul.mubr.bf16.gmra.mxu0 %v3686
      %v6796 = vpop.f32.mrf.mxu0
      %v6797 = vadd.f32 %v6684, %v6796
      %v6798 = vpop.f32.mrf.mxu0
      %v6799 = vadd.f32 %v6686, %v6798
      %v6800 = vpop.f32.mrf.mxu0
      %v6801 = vadd.f32 %v6688, %v6800
      %v6802 = vpop.f32.mrf.mxu0
      %v6803 = vadd.f32 %v6690, %v6802
      %6804 = vmatprep.mubr.bf16.mxu0 %v3695
      %6805 = vmatmul.mubr.bf16.gmra.mxu0 %v3694
      %v6806 = vpop.f32.mrf.mxu0
      %v6807 = vadd.f32 %v6694, %v6806
      %v6808 = vpop.f32.mrf.mxu0
      %v6809 = vadd.f32 %v6696, %v6808
      %v6810 = vpop.f32.mrf.mxu0
      %v6811 = vadd.f32 %v6698, %v6810
      %v6812 = vpop.f32.mrf.mxu0
      %v6813 = vadd.f32 %v6700, %v6812
      %6814 = vmatprep.mubr.bf16.mxu0 %v3703
      %6815 = vmatmul.mubr.bf16.gmra.mxu0 %v3702
      %v6816 = vpop.f32.mrf.mxu0
      %v6817 = vadd.f32 %v6704, %v6816
      %v6818 = vpop.f32.mrf.mxu0
      %v6819 = vadd.f32 %v6706, %v6818
      %v6820 = vpop.f32.mrf.mxu0
      %v6821 = vadd.f32 %v6708, %v6820
      %v6822 = vpop.f32.mrf.mxu0
      %v6823 = vadd.f32 %v6710, %v6822
      %6824 = vmatprep.mubr.bf16.mxu0 %v3711
      %6825 = vmatmul.mubr.bf16.gmra.mxu0 %v3710
      %v6826 = vpop.f32.mrf.mxu0
      %v6827 = vadd.f32 %v6714, %v6826
      %v6828 = vpop.f32.mrf.mxu0
      %v6829 = vadd.f32 %v6716, %v6828
      %v6830 = vpop.f32.mrf.mxu0
      %v6831 = vadd.f32 %v6718, %v6830
      %v6832 = vpop.f32.mrf.mxu0
      %v6833 = vadd.f32 %v6720, %v6832
      %6834 = vmatprep.mubr.bf16.mxu0 %v3719
      %6835 = vmatmul.mubr.bf16.gmra.mxu0 %v3718
      %v6836 = vpop.f32.mrf.mxu0
      %v6837 = vadd.f32 %v6724, %v6836
      %v6838 = vpop.f32.mrf.mxu0
      %v6839 = vadd.f32 %v6726, %v6838
      %v6840 = vpop.f32.mrf.mxu0
      %v6841 = vadd.f32 %v6728, %v6840
      %v6842 = vpop.f32.mrf.mxu0
      %v6843 = vadd.f32 %v6730, %v6842
      %6844 = vmatprep.mubr.bf16.mxu0 %v3727
      %6845 = vmatmul.mubr.bf16.gmra.mxu0 %v3726
      %v6846 = vpop.f32.mrf.mxu0
      %v6847 = vadd.f32 %v6734, %v6846
      %v6848 = vpop.f32.mrf.mxu0
      %v6849 = vadd.f32 %v6736, %v6848
      %v6850 = vpop.f32.mrf.mxu0
      %v6851 = vadd.f32 %v6738, %v6850
      %v6852 = vpop.f32.mrf.mxu0
      %v6853 = vadd.f32 %v6740, %v6852
      %6854 = vmatprep.mubr.bf16.mxu0 %v3735
      %6855 = vmatmul.mubr.bf16.gmra.mxu0 %v3734
      %v6856 = vpop.f32.mrf.mxu0
      %v6857 = vadd.f32 %v6744, %v6856
      %v6858 = vpop.f32.mrf.mxu0
      %v6859 = vadd.f32 %v6746, %v6858
      %v6860 = vpop.f32.mrf.mxu0
      %v6861 = vadd.f32 %v6748, %v6860
      %v6862 = vpop.f32.mrf.mxu0
      %v6863 = vadd.f32 %v6750, %v6862
      %6864 = vdwg.mxu0
      %6865 = vmatprep.subr.bf16.mxu0 %v5639
      %6866 = vmatpush1.bf16.msra.mxu0 %v5638
      %6867 = vmatprep.subr.bf16.mxu0 %v5633
      %6868 = vmatpush1.bf16.msra.mxu0 %v5632
      %6869 = vmatprep.subr.bf16.mxu0 %v5627
      %6870 = vmatpush1.bf16.msra.mxu0 %v5626
      %6871 = vmatprep.subr.bf16.mxu0 %v5621
      %6872 = vmatpush1.bf16.msra.mxu0 %v5620
      %6873 = vmatprep.subr.bf16.mxu0 %v5615
      %6874 = vmatpush1.bf16.msra.mxu0 %v5614
      %6875 = vmatprep.subr.bf16.mxu0 %v5609
      %6876 = vmatpush1.bf16.msra.mxu0 %v5608
      %6877 = vmatprep.subr.bf16.mxu0 %v5603
      %6878 = vmatpush1.bf16.msra.mxu0 %v5602
      %6879 = vmatprep.subr.bf16.mxu0 %v5597
      %6880 = vmatpush1.bf16.msra.mxu0 %v5596
      %6881 = vmatprep.subr.bf16.mxu0 %v5687
      %6882 = vmatpush2.bf16.msra.mxu0 %v5686
      %6883 = vmatprep.subr.bf16.mxu0 %v5681
      %6884 = vmatpush2.bf16.msra.mxu0 %v5680
      %6885 = vmatprep.subr.bf16.mxu0 %v5675
      %6886 = vmatpush2.bf16.msra.mxu0 %v5674
      %6887 = vmatprep.subr.bf16.mxu0 %v5669
      %6888 = vmatpush2.bf16.msra.mxu0 %v5668
      %6889 = vmatprep.subr.bf16.mxu0 %v5663
      %6890 = vmatpush2.bf16.msra.mxu0 %v5662
      %6891 = vmatprep.subr.bf16.mxu0 %v5657
      %6892 = vmatpush2.bf16.msra.mxu0 %v5656
      %6893 = vmatprep.subr.bf16.mxu0 %v5651
      %6894 = vmatpush2.bf16.msra.mxu0 %v5650
      %6895 = vmatprep.subr.bf16.mxu0 %v5645
      %6896 = vmatpush2.bf16.msra.mxu0 %v5644
      %6897 = vmatprep.mubr.bf16.mxu0 %v3681
      %6898 = vmatmul.mubr.bf16.gmra.mxu0 %v3680
      %v6899 = vpop.f32.mrf.mxu0
      %v6900 = vadd.f32 %v6787, %v6899
      %v6901 = vpop.f32.mrf.mxu0
      %v6902 = vadd.f32 %v6789, %v6901
      %v6903 = vpop.f32.mrf.mxu0
      %v6904 = vadd.f32 %v6791, %v6903
      %v6905 = vpop.f32.mrf.mxu0
      %v6906 = vadd.f32 %v6793, %v6905
      %6907 = vmatprep.mubr.bf16.mxu0 %v3689
      %6908 = vmatmul.mubr.bf16.gmra.mxu0 %v3688
      %v6909 = vpop.f32.mrf.mxu0
      %v6910 = vadd.f32 %v6797, %v6909
      %v6911 = vpop.f32.mrf.mxu0
      %v6912 = vadd.f32 %v6799, %v6911
      %v6913 = vpop.f32.mrf.mxu0
      %v6914 = vadd.f32 %v6801, %v6913
      %v6915 = vpop.f32.mrf.mxu0
      %v6916 = vadd.f32 %v6803, %v6915
      %6917 = vmatprep.mubr.bf16.mxu0 %v3697
      %6918 = vmatmul.mubr.bf16.gmra.mxu0 %v3696
      %v6919 = vpop.f32.mrf.mxu0
      %v6920 = vadd.f32 %v6807, %v6919
      %v6921 = vpop.f32.mrf.mxu0
      %v6922 = vadd.f32 %v6809, %v6921
      %v6923 = vpop.f32.mrf.mxu0
      %v6924 = vadd.f32 %v6811, %v6923
      %v6925 = vpop.f32.mrf.mxu0
      %v6926 = vadd.f32 %v6813, %v6925
      %6927 = vmatprep.mubr.bf16.mxu0 %v3705
      %6928 = vmatmul.mubr.bf16.gmra.mxu0 %v3704
      %v6929 = vpop.f32.mrf.mxu0
      %v6930 = vadd.f32 %v6817, %v6929
      %v6931 = vpop.f32.mrf.mxu0
      %v6932 = vadd.f32 %v6819, %v6931
      %v6933 = vpop.f32.mrf.mxu0
      %v6934 = vadd.f32 %v6821, %v6933
      %v6935 = vpop.f32.mrf.mxu0
      %v6936 = vadd.f32 %v6823, %v6935
      %6937 = vmatprep.mubr.bf16.mxu0 %v3713
      %6938 = vmatmul.mubr.bf16.gmra.mxu0 %v3712
      %v6939 = vpop.f32.mrf.mxu0
      %v6940 = vadd.f32 %v6827, %v6939
      %v6941 = vpop.f32.mrf.mxu0
      %v6942 = vadd.f32 %v6829, %v6941
      %v6943 = vpop.f32.mrf.mxu0
      %v6944 = vadd.f32 %v6831, %v6943
      %v6945 = vpop.f32.mrf.mxu0
      %v6946 = vadd.f32 %v6833, %v6945
      %6947 = vmatprep.mubr.bf16.mxu0 %v3721
      %6948 = vmatmul.mubr.bf16.gmra.mxu0 %v3720
      %v6949 = vpop.f32.mrf.mxu0
      %v6950 = vadd.f32 %v6837, %v6949
      %v6951 = vpop.f32.mrf.mxu0
      %v6952 = vadd.f32 %v6839, %v6951
      %v6953 = vpop.f32.mrf.mxu0
      %v6954 = vadd.f32 %v6841, %v6953
      %v6955 = vpop.f32.mrf.mxu0
      %v6956 = vadd.f32 %v6843, %v6955
      %6957 = vmatprep.mubr.bf16.mxu0 %v3729
      %6958 = vmatmul.mubr.bf16.gmra.mxu0 %v3728
      %v6959 = vpop.f32.mrf.mxu0
      %v6960 = vadd.f32 %v6847, %v6959
      %v6961 = vpop.f32.mrf.mxu0
      %v6962 = vadd.f32 %v6849, %v6961
      %v6963 = vpop.f32.mrf.mxu0
      %v6964 = vadd.f32 %v6851, %v6963
      %v6965 = vpop.f32.mrf.mxu0
      %v6966 = vadd.f32 %v6853, %v6965
      %6967 = vmatprep.mubr.bf16.mxu0 %v3737
      %6968 = vmatmul.mubr.bf16.gmra.mxu0 %v3736
      %v6969 = vpop.f32.mrf.mxu0
      %v6970 = vadd.f32 %v6857, %v6969
      %v6971 = vpop.f32.mrf.mxu0
      %v6972 = vadd.f32 %v6859, %v6971
      %v6973 = vpop.f32.mrf.mxu0
      %v6974 = vadd.f32 %v6861, %v6973
      %v6975 = vpop.f32.mrf.mxu0
      %v6976 = vadd.f32 %v6863, %v6975
      %6977 = vdwg.mxu0
      %6978 = vmatprep.subr.bf16.mxu0 %v5353
      %6979 = vmatpush1.bf16.msra.mxu0 %v5352
      %6980 = vmatprep.subr.bf16.mxu0 %v5347
      %6981 = vmatpush1.bf16.msra.mxu0 %v5346
      %6982 = vmatprep.subr.bf16.mxu0 %v5341
      %6983 = vmatpush1.bf16.msra.mxu0 %v5340
      %6984 = vmatprep.subr.bf16.mxu0 %v5335
      %6985 = vmatpush1.bf16.msra.mxu0 %v5334
      %6986 = vmatprep.subr.bf16.mxu0 %v5329
      %6987 = vmatpush1.bf16.msra.mxu0 %v5328
      %6988 = vmatprep.subr.bf16.mxu0 %v5323
      %6989 = vmatpush1.bf16.msra.mxu0 %v5322
      %6990 = vmatprep.subr.bf16.mxu0 %v5317
      %6991 = vmatpush1.bf16.msra.mxu0 %v5316
      %6992 = vmatprep.subr.bf16.mxu0 %v5311
      %6993 = vmatpush1.bf16.msra.mxu0 %v5310
      %6994 = vmatprep.subr.bf16.mxu0 %v5401
      %6995 = vmatpush2.bf16.msra.mxu0 %v5400
      %6996 = vmatprep.subr.bf16.mxu0 %v5395
      %6997 = vmatpush2.bf16.msra.mxu0 %v5394
      %6998 = vmatprep.subr.bf16.mxu0 %v5389
      %6999 = vmatpush2.bf16.msra.mxu0 %v5388
      %7000 = vmatprep.subr.bf16.mxu0 %v5383
      %7001 = vmatpush2.bf16.msra.mxu0 %v5382
      %7002 = vmatprep.subr.bf16.mxu0 %v5377
      %7003 = vmatpush2.bf16.msra.mxu0 %v5376
      %7004 = vmatprep.subr.bf16.mxu0 %v5371
      %7005 = vmatpush2.bf16.msra.mxu0 %v5370
      %7006 = vmatprep.subr.bf16.mxu0 %v5365
      %7007 = vmatpush2.bf16.msra.mxu0 %v5364
      %7008 = vmatprep.subr.bf16.mxu0 %v5359
      %7009 = vmatpush2.bf16.msra.mxu0 %v5358
      %7010 = vmatprep.mubr.bf16.mxu0 %v3675
      %7011 = vmatmul.mubr.bf16.gmra.mxu0 %v3674
      %v7012 = vpop.f32.mrf.mxu0
      %v7013 = vadd.f32 %v4143, %v7012
      %v7014 = vpop.f32.mrf.mxu0
      %v7015 = vadd.f32 %v4147, %v7014
      %v7016 = vpop.f32.mrf.mxu0
      %v7017 = vadd.f32 %v4143, %v7016
      %v7018 = vpop.f32.mrf.mxu0
      %v7019 = vadd.f32 %v4147, %v7018
      %7020 = vmatprep.mubr.bf16.mxu0 %v3683
      %7021 = vmatmul.mubr.bf16.gmra.mxu0 %v3682
      %v7022 = vpop.f32.mrf.mxu0
      %v7023 = vadd.f32 %v4143, %v7022
      %v7024 = vpop.f32.mrf.mxu0
      %v7025 = vadd.f32 %v4147, %v7024
      %v7026 = vpop.f32.mrf.mxu0
      %v7027 = vadd.f32 %v4143, %v7026
      %v7028 = vpop.f32.mrf.mxu0
      %v7029 = vadd.f32 %v4147, %v7028
      %7030 = vmatprep.mubr.bf16.mxu0 %v3691
      %7031 = vmatmul.mubr.bf16.gmra.mxu0 %v3690
      %v7032 = vpop.f32.mrf.mxu0
      %v7033 = vadd.f32 %v4143, %v7032
      %v7034 = vpop.f32.mrf.mxu0
      %v7035 = vadd.f32 %v4147, %v7034
      %v7036 = vpop.f32.mrf.mxu0
      %v7037 = vadd.f32 %v4143, %v7036
      %v7038 = vpop.f32.mrf.mxu0
      %v7039 = vadd.f32 %v4147, %v7038
      %7040 = vmatprep.mubr.bf16.mxu0 %v3699
      %7041 = vmatmul.mubr.bf16.gmra.mxu0 %v3698
      %v7042 = vpop.f32.mrf.mxu0
      %v7043 = vadd.f32 %v4143, %v7042
      %v7044 = vpop.f32.mrf.mxu0
      %v7045 = vadd.f32 %v4147, %v7044
      %v7046 = vpop.f32.mrf.mxu0
      %v7047 = vadd.f32 %v4143, %v7046
      %v7048 = vpop.f32.mrf.mxu0
      %v7049 = vadd.f32 %v4147, %v7048
      %7050 = vmatprep.mubr.bf16.mxu0 %v3707
      %7051 = vmatmul.mubr.bf16.gmra.mxu0 %v3706
      %v7052 = vpop.f32.mrf.mxu0
      %v7053 = vadd.f32 %v4143, %v7052
      %v7054 = vpop.f32.mrf.mxu0
      %v7055 = vadd.f32 %v4147, %v7054
      %v7056 = vpop.f32.mrf.mxu0
      %v7057 = vadd.f32 %v4143, %v7056
      %v7058 = vpop.f32.mrf.mxu0
      %v7059 = vadd.f32 %v4147, %v7058
      %7060 = vmatprep.mubr.bf16.mxu0 %v3715
      %7061 = vmatmul.mubr.bf16.gmra.mxu0 %v3714
      %v7062 = vpop.f32.mrf.mxu0
      %v7063 = vadd.f32 %v4143, %v7062
      %v7064 = vpop.f32.mrf.mxu0
      %v7065 = vadd.f32 %v4147, %v7064
      %v7066 = vpop.f32.mrf.mxu0
      %v7067 = vadd.f32 %v4143, %v7066
      %v7068 = vpop.f32.mrf.mxu0
      %v7069 = vadd.f32 %v4147, %v7068
      %7070 = vmatprep.mubr.bf16.mxu0 %v3723
      %7071 = vmatmul.mubr.bf16.gmra.mxu0 %v3722
      %v7072 = vpop.f32.mrf.mxu0
      %v7073 = vadd.f32 %v4143, %v7072
      %v7074 = vpop.f32.mrf.mxu0
      %v7075 = vadd.f32 %v4147, %v7074
      %v7076 = vpop.f32.mrf.mxu0
      %v7077 = vadd.f32 %v4143, %v7076
      %v7078 = vpop.f32.mrf.mxu0
      %v7079 = vadd.f32 %v4147, %v7078
      %7080 = vmatprep.mubr.bf16.mxu0 %v3731
      %7081 = vmatmul.mubr.bf16.gmra.mxu0 %v3730
      %v7082 = vpop.f32.mrf.mxu0
      %v7083 = vadd.f32 %v4143, %v7082
      %v7084 = vpop.f32.mrf.mxu0
      %v7085 = vadd.f32 %v4147, %v7084
      %v7086 = vpop.f32.mrf.mxu0
      %v7087 = vadd.f32 %v4143, %v7086
      %v7088 = vpop.f32.mrf.mxu0
      %v7089 = vadd.f32 %v4147, %v7088
      %7090 = vdwg.mxu0
      %7091 = vmatprep.subr.bf16.mxu0 %v5449
      %7092 = vmatpush1.bf16.msra.mxu0 %v5448
      %7093 = vmatprep.subr.bf16.mxu0 %v5443
      %7094 = vmatpush1.bf16.msra.mxu0 %v5442
      %7095 = vmatprep.subr.bf16.mxu0 %v5437
      %7096 = vmatpush1.bf16.msra.mxu0 %v5436
      %7097 = vmatprep.subr.bf16.mxu0 %v5431
      %7098 = vmatpush1.bf16.msra.mxu0 %v5430
      %7099 = vmatprep.subr.bf16.mxu0 %v5425
      %7100 = vmatpush1.bf16.msra.mxu0 %v5424
      %7101 = vmatprep.subr.bf16.mxu0 %v5419
      %7102 = vmatpush1.bf16.msra.mxu0 %v5418
      %7103 = vmatprep.subr.bf16.mxu0 %v5413
      %7104 = vmatpush1.bf16.msra.mxu0 %v5412
      %7105 = vmatprep.subr.bf16.mxu0 %v5407
      %7106 = vmatpush1.bf16.msra.mxu0 %v5406
      %7107 = vmatprep.subr.bf16.mxu0 %v5497
      %7108 = vmatpush2.bf16.msra.mxu0 %v5496
      %7109 = vmatprep.subr.bf16.mxu0 %v5491
      %7110 = vmatpush2.bf16.msra.mxu0 %v5490
      %7111 = vmatprep.subr.bf16.mxu0 %v5485
      %7112 = vmatpush2.bf16.msra.mxu0 %v5484
      %7113 = vmatprep.subr.bf16.mxu0 %v5479
      %7114 = vmatpush2.bf16.msra.mxu0 %v5478
      %7115 = vmatprep.subr.bf16.mxu0 %v5473
      %7116 = vmatpush2.bf16.msra.mxu0 %v5472
      %7117 = vmatprep.subr.bf16.mxu0 %v5467
      %7118 = vmatpush2.bf16.msra.mxu0 %v5466
      %7119 = vmatprep.subr.bf16.mxu0 %v5461
      %7120 = vmatpush2.bf16.msra.mxu0 %v5460
      %7121 = vmatprep.subr.bf16.mxu0 %v5455
      %7122 = vmatpush2.bf16.msra.mxu0 %v5454
      %7123 = vmatprep.mubr.bf16.mxu0 %v3677
      %7124 = vmatmul.mubr.bf16.gmra.mxu0 %v3676
      %v7125 = vpop.f32.mrf.mxu0
      %v7126 = vadd.f32 %v7013, %v7125
      %v7127 = vpop.f32.mrf.mxu0
      %v7128 = vadd.f32 %v7015, %v7127
      %v7129 = vpop.f32.mrf.mxu0
      %v7130 = vadd.f32 %v7017, %v7129
      %v7131 = vpop.f32.mrf.mxu0
      %v7132 = vadd.f32 %v7019, %v7131
      %7133 = vmatprep.mubr.bf16.mxu0 %v3685
      %7134 = vmatmul.mubr.bf16.gmra.mxu0 %v3684
      %v7135 = vpop.f32.mrf.mxu0
      %v7136 = vadd.f32 %v7023, %v7135
      %v7137 = vpop.f32.mrf.mxu0
      %v7138 = vadd.f32 %v7025, %v7137
      %v7139 = vpop.f32.mrf.mxu0
      %v7140 = vadd.f32 %v7027, %v7139
      %v7141 = vpop.f32.mrf.mxu0
      %v7142 = vadd.f32 %v7029, %v7141
      %7143 = vmatprep.mubr.bf16.mxu0 %v3693
      %7144 = vmatmul.mubr.bf16.gmra.mxu0 %v3692
      %v7145 = vpop.f32.mrf.mxu0
      %v7146 = vadd.f32 %v7033, %v7145
      %v7147 = vpop.f32.mrf.mxu0
      %v7148 = vadd.f32 %v7035, %v7147
      %v7149 = vpop.f32.mrf.mxu0
      %v7150 = vadd.f32 %v7037, %v7149
      %v7151 = vpop.f32.mrf.mxu0
      %v7152 = vadd.f32 %v7039, %v7151
      %7153 = vmatprep.mubr.bf16.mxu0 %v3701
      %7154 = vmatmul.mubr.bf16.gmra.mxu0 %v3700
      %v7155 = vpop.f32.mrf.mxu0
      %v7156 = vadd.f32 %v7043, %v7155
      %v7157 = vpop.f32.mrf.mxu0
      %v7158 = vadd.f32 %v7045, %v7157
      %v7159 = vpop.f32.mrf.mxu0
      %v7160 = vadd.f32 %v7047, %v7159
      %v7161 = vpop.f32.mrf.mxu0
      %v7162 = vadd.f32 %v7049, %v7161
      %7163 = vmatprep.mubr.bf16.mxu0 %v3709
      %7164 = vmatmul.mubr.bf16.gmra.mxu0 %v3708
      %v7165 = vpop.f32.mrf.mxu0
      %v7166 = vadd.f32 %v7053, %v7165
      %v7167 = vpop.f32.mrf.mxu0
      %v7168 = vadd.f32 %v7055, %v7167
      %v7169 = vpop.f32.mrf.mxu0
      %v7170 = vadd.f32 %v7057, %v7169
      %v7171 = vpop.f32.mrf.mxu0
      %v7172 = vadd.f32 %v7059, %v7171
      %7173 = vmatprep.mubr.bf16.mxu0 %v3717
      %7174 = vmatmul.mubr.bf16.gmra.mxu0 %v3716
      %v7175 = vpop.f32.mrf.mxu0
      %v7176 = vadd.f32 %v7063, %v7175
      %v7177 = vpop.f32.mrf.mxu0
      %v7178 = vadd.f32 %v7065, %v7177
      %v7179 = vpop.f32.mrf.mxu0
      %v7180 = vadd.f32 %v7067, %v7179
      %v7181 = vpop.f32.mrf.mxu0
      %v7182 = vadd.f32 %v7069, %v7181
      %7183 = vmatprep.mubr.bf16.mxu0 %v3725
      %7184 = vmatmul.mubr.bf16.gmra.mxu0 %v3724
      %v7185 = vpop.f32.mrf.mxu0
      %v7186 = vadd.f32 %v7073, %v7185
      %v7187 = vpop.f32.mrf.mxu0
      %v7188 = vadd.f32 %v7075, %v7187
      %v7189 = vpop.f32.mrf.mxu0
      %v7190 = vadd.f32 %v7077, %v7189
      %v7191 = vpop.f32.mrf.mxu0
      %v7192 = vadd.f32 %v7079, %v7191
      %7193 = vmatprep.mubr.bf16.mxu0 %v3733
      %7194 = vmatmul.mubr.bf16.gmra.mxu0 %v3732
      %v7195 = vpop.f32.mrf.mxu0
      %v7196 = vadd.f32 %v7083, %v7195
      %v7197 = vpop.f32.mrf.mxu0
      %v7198 = vadd.f32 %v7085, %v7197
      %v7199 = vpop.f32.mrf.mxu0
      %v7200 = vadd.f32 %v7087, %v7199
      %v7201 = vpop.f32.mrf.mxu0
      %v7202 = vadd.f32 %v7089, %v7201
      %7203 = vdwg.mxu0
      %7204 = vmatprep.subr.bf16.mxu0 %v5545
      %7205 = vmatpush1.bf16.msra.mxu0 %v5544
      %7206 = vmatprep.subr.bf16.mxu0 %v5539
      %7207 = vmatpush1.bf16.msra.mxu0 %v5538
      %7208 = vmatprep.subr.bf16.mxu0 %v5533
      %7209 = vmatpush1.bf16.msra.mxu0 %v5532
      %7210 = vmatprep.subr.bf16.mxu0 %v5527
      %7211 = vmatpush1.bf16.msra.mxu0 %v5526
      %7212 = vmatprep.subr.bf16.mxu0 %v5521
      %7213 = vmatpush1.bf16.msra.mxu0 %v5520
      %7214 = vmatprep.subr.bf16.mxu0 %v5515
      %7215 = vmatpush1.bf16.msra.mxu0 %v5514
      %7216 = vmatprep.subr.bf16.mxu0 %v5509
      %7217 = vmatpush1.bf16.msra.mxu0 %v5508
      %7218 = vmatprep.subr.bf16.mxu0 %v5503
      %7219 = vmatpush1.bf16.msra.mxu0 %v5502
      %7220 = vmatprep.subr.bf16.mxu0 %v5593
      %7221 = vmatpush2.bf16.msra.mxu0 %v5592
      %7222 = vmatprep.subr.bf16.mxu0 %v5587
      %7223 = vmatpush2.bf16.msra.mxu0 %v5586
      %7224 = vmatprep.subr.bf16.mxu0 %v5581
      %7225 = vmatpush2.bf16.msra.mxu0 %v5580
      %7226 = vmatprep.subr.bf16.mxu0 %v5575
      %7227 = vmatpush2.bf16.msra.mxu0 %v5574
      %7228 = vmatprep.subr.bf16.mxu0 %v5569
      %7229 = vmatpush2.bf16.msra.mxu0 %v5568
      %7230 = vmatprep.subr.bf16.mxu0 %v5563
      %7231 = vmatpush2.bf16.msra.mxu0 %v5562
      %7232 = vmatprep.subr.bf16.mxu0 %v5557
      %7233 = vmatpush2.bf16.msra.mxu0 %v5556
      %7234 = vmatprep.subr.bf16.mxu0 %v5551
      %7235 = vmatpush2.bf16.msra.mxu0 %v5550
      %7236 = vmatprep.mubr.bf16.mxu0 %v3679
      %7237 = vmatmul.mubr.bf16.gmra.mxu0 %v3678
      %v7238 = vpop.f32.mrf.mxu0
      %v7239 = vadd.f32 %v7126, %v7238
      %v7240 = vpop.f32.mrf.mxu0
      %v7241 = vadd.f32 %v7128, %v7240
      %v7242 = vpop.f32.mrf.mxu0
      %v7243 = vadd.f32 %v7130, %v7242
      %v7244 = vpop.f32.mrf.mxu0
      %v7245 = vadd.f32 %v7132, %v7244
      %7246 = vmatprep.mubr.bf16.mxu0 %v3687
      %7247 = vmatmul.mubr.bf16.gmra.mxu0 %v3686
      %v7248 = vpop.f32.mrf.mxu0
      %v7249 = vadd.f32 %v7136, %v7248
      %v7250 = vpop.f32.mrf.mxu0
      %v7251 = vadd.f32 %v7138, %v7250
      %v7252 = vpop.f32.mrf.mxu0
      %v7253 = vadd.f32 %v7140, %v7252
      %v7254 = vpop.f32.mrf.mxu0
      %v7255 = vadd.f32 %v7142, %v7254
      %7256 = vmatprep.mubr.bf16.mxu0 %v3695
      %7257 = vmatmul.mubr.bf16.gmra.mxu0 %v3694
      %v7258 = vpop.f32.mrf.mxu0
      %v7259 = vadd.f32 %v7146, %v7258
      %v7260 = vpop.f32.mrf.mxu0
      %v7261 = vadd.f32 %v7148, %v7260
      %v7262 = vpop.f32.mrf.mxu0
      %v7263 = vadd.f32 %v7150, %v7262
      %v7264 = vpop.f32.mrf.mxu0
      %v7265 = vadd.f32 %v7152, %v7264
      %7266 = vmatprep.mubr.bf16.mxu0 %v3703
      %7267 = vmatmul.mubr.bf16.gmra.mxu0 %v3702
      %v7268 = vpop.f32.mrf.mxu0
      %v7269 = vadd.f32 %v7156, %v7268
      %v7270 = vpop.f32.mrf.mxu0
      %v7271 = vadd.f32 %v7158, %v7270
      %v7272 = vpop.f32.mrf.mxu0
      %v7273 = vadd.f32 %v7160, %v7272
      %v7274 = vpop.f32.mrf.mxu0
      %v7275 = vadd.f32 %v7162, %v7274
      %7276 = vmatprep.mubr.bf16.mxu0 %v3711
      %7277 = vmatmul.mubr.bf16.gmra.mxu0 %v3710
      %v7278 = vpop.f32.mrf.mxu0
      %v7279 = vadd.f32 %v7166, %v7278
      %v7280 = vpop.f32.mrf.mxu0
      %v7281 = vadd.f32 %v7168, %v7280
      %v7282 = vpop.f32.mrf.mxu0
      %v7283 = vadd.f32 %v7170, %v7282
      %v7284 = vpop.f32.mrf.mxu0
      %v7285 = vadd.f32 %v7172, %v7284
      %7286 = vmatprep.mubr.bf16.mxu0 %v3719
      %7287 = vmatmul.mubr.bf16.gmra.mxu0 %v3718
      %v7288 = vpop.f32.mrf.mxu0
      %v7289 = vadd.f32 %v7176, %v7288
      %v7290 = vpop.f32.mrf.mxu0
      %v7291 = vadd.f32 %v7178, %v7290
      %v7292 = vpop.f32.mrf.mxu0
      %v7293 = vadd.f32 %v7180, %v7292
      %v7294 = vpop.f32.mrf.mxu0
      %v7295 = vadd.f32 %v7182, %v7294
      %7296 = vmatprep.mubr.bf16.mxu0 %v3727
      %7297 = vmatmul.mubr.bf16.gmra.mxu0 %v3726
      %v7298 = vpop.f32.mrf.mxu0
      %v7299 = vadd.f32 %v7186, %v7298
      %v7300 = vpop.f32.mrf.mxu0
      %v7301 = vadd.f32 %v7188, %v7300
      %v7302 = vpop.f32.mrf.mxu0
      %v7303 = vadd.f32 %v7190, %v7302
      %v7304 = vpop.f32.mrf.mxu0
      %v7305 = vadd.f32 %v7192, %v7304
      %7306 = vmatprep.mubr.bf16.mxu0 %v3735
      %7307 = vmatmul.mubr.bf16.gmra.mxu0 %v3734
      %v7308 = vpop.f32.mrf.mxu0
      %v7309 = vadd.f32 %v7196, %v7308
      %v7310 = vpop.f32.mrf.mxu0
      %v7311 = vadd.f32 %v7198, %v7310
      %v7312 = vpop.f32.mrf.mxu0
      %v7313 = vadd.f32 %v7200, %v7312
      %v7314 = vpop.f32.mrf.mxu0
      %v7315 = vadd.f32 %v7202, %v7314
      %7316 = vdwg.mxu0
      %7317 = vmatprep.subr.bf16.mxu0 %v5641
      %7318 = vmatpush1.bf16.msra.mxu0 %v5640
      %7319 = vmatprep.subr.bf16.mxu0 %v5635
      %7320 = vmatpush1.bf16.msra.mxu0 %v5634
      %7321 = vmatprep.subr.bf16.mxu0 %v5629
      %7322 = vmatpush1.bf16.msra.mxu0 %v5628
      %7323 = vmatprep.subr.bf16.mxu0 %v5623
      %7324 = vmatpush1.bf16.msra.mxu0 %v5622
      %7325 = vmatprep.subr.bf16.mxu0 %v5617
      %7326 = vmatpush1.bf16.msra.mxu0 %v5616
      %7327 = vmatprep.subr.bf16.mxu0 %v5611
      %7328 = vmatpush1.bf16.msra.mxu0 %v5610
      %7329 = vmatprep.subr.bf16.mxu0 %v5605
      %7330 = vmatpush1.bf16.msra.mxu0 %v5604
      %7331 = vmatprep.subr.bf16.mxu0 %v5599
      %7332 = vmatpush1.bf16.msra.mxu0 %v5598
      %7333 = vmatprep.subr.bf16.mxu0 %v5689
      %7334 = vmatpush2.bf16.msra.mxu0 %v5688
      %7335 = vmatprep.subr.bf16.mxu0 %v5683
      %7336 = vmatpush2.bf16.msra.mxu0 %v5682
      %7337 = vmatprep.subr.bf16.mxu0 %v5677
      %7338 = vmatpush2.bf16.msra.mxu0 %v5676
      %7339 = vmatprep.subr.bf16.mxu0 %v5671
      %7340 = vmatpush2.bf16.msra.mxu0 %v5670
      %7341 = vmatprep.subr.bf16.mxu0 %v5665
      %7342 = vmatpush2.bf16.msra.mxu0 %v5664
      %7343 = vmatprep.subr.bf16.mxu0 %v5659
      %7344 = vmatpush2.bf16.msra.mxu0 %v5658
      %7345 = vmatprep.subr.bf16.mxu0 %v5653
      %7346 = vmatpush2.bf16.msra.mxu0 %v5652
      %7347 = vmatprep.subr.bf16.mxu0 %v5647
      %7348 = vmatpush2.bf16.msra.mxu0 %v5646
      %7349 = vmatprep.mubr.bf16.mxu0 %v3681
      %7350 = vmatmul.mubr.bf16.gmra.mxu0 %v3680
      %v7351 = vpop.f32.mrf.mxu0
      %v7352 = vadd.f32 %v7239, %v7351
      %v7353 = vpop.f32.mrf.mxu0
      %v7354 = vadd.f32 %v7241, %v7353
      %v7355 = vpop.f32.mrf.mxu0
      %v7356 = vadd.f32 %v7243, %v7355
      %v7357 = vpop.f32.mrf.mxu0
      %v7358 = vadd.f32 %v7245, %v7357
      %7359 = vmatprep.mubr.bf16.mxu0 %v3689
      %7360 = vmatmul.mubr.bf16.gmra.mxu0 %v3688
      %v7361 = vpop.f32.mrf.mxu0
      %v7362 = vadd.f32 %v7249, %v7361
      %v7363 = vpop.f32.mrf.mxu0
      %v7364 = vadd.f32 %v7251, %v7363
      %v7365 = vpop.f32.mrf.mxu0
      %v7366 = vadd.f32 %v7253, %v7365
      %v7367 = vpop.f32.mrf.mxu0
      %v7368 = vadd.f32 %v7255, %v7367
      %7369 = vmatprep.mubr.bf16.mxu0 %v3697
      %7370 = vmatmul.mubr.bf16.gmra.mxu0 %v3696
      %v7371 = vpop.f32.mrf.mxu0
      %v7372 = vadd.f32 %v7259, %v7371
      %v7373 = vpop.f32.mrf.mxu0
      %v7374 = vadd.f32 %v7261, %v7373
      %v7375 = vpop.f32.mrf.mxu0
      %v7376 = vadd.f32 %v7263, %v7375
      %v7377 = vpop.f32.mrf.mxu0
      %v7378 = vadd.f32 %v7265, %v7377
      %7379 = vmatprep.mubr.bf16.mxu0 %v3705
      %7380 = vmatmul.mubr.bf16.gmra.mxu0 %v3704
      %v7381 = vpop.f32.mrf.mxu0
      %v7382 = vadd.f32 %v7269, %v7381
      %v7383 = vpop.f32.mrf.mxu0
      %v7384 = vadd.f32 %v7271, %v7383
      %v7385 = vpop.f32.mrf.mxu0
      %v7386 = vadd.f32 %v7273, %v7385
      %v7387 = vpop.f32.mrf.mxu0
      %v7388 = vadd.f32 %v7275, %v7387
      %7389 = vmatprep.mubr.bf16.mxu0 %v3713
      %7390 = vmatmul.mubr.bf16.gmra.mxu0 %v3712
      %v7391 = vpop.f32.mrf.mxu0
      %v7392 = vadd.f32 %v7279, %v7391
      %v7393 = vpop.f32.mrf.mxu0
      %v7394 = vadd.f32 %v7281, %v7393
      %v7395 = vpop.f32.mrf.mxu0
      %v7396 = vadd.f32 %v7283, %v7395
      %v7397 = vpop.f32.mrf.mxu0
      %v7398 = vadd.f32 %v7285, %v7397
      %7399 = vmatprep.mubr.bf16.mxu0 %v3721
      %7400 = vmatmul.mubr.bf16.gmra.mxu0 %v3720
      %v7401 = vpop.f32.mrf.mxu0
      %v7402 = vadd.f32 %v7289, %v7401
      %v7403 = vpop.f32.mrf.mxu0
      %v7404 = vadd.f32 %v7291, %v7403
      %v7405 = vpop.f32.mrf.mxu0
      %v7406 = vadd.f32 %v7293, %v7405
      %v7407 = vpop.f32.mrf.mxu0
      %v7408 = vadd.f32 %v7295, %v7407
      %7409 = vmatprep.mubr.bf16.mxu0 %v3729
      %7410 = vmatmul.mubr.bf16.gmra.mxu0 %v3728
      %v7411 = vpop.f32.mrf.mxu0
      %v7412 = vadd.f32 %v7299, %v7411
      %v7413 = vpop.f32.mrf.mxu0
      %v7414 = vadd.f32 %v7301, %v7413
      %v7415 = vpop.f32.mrf.mxu0
      %v7416 = vadd.f32 %v7303, %v7415
      %v7417 = vpop.f32.mrf.mxu0
      %v7418 = vadd.f32 %v7305, %v7417
      %7419 = vmatprep.mubr.bf16.mxu0 %v3737
      %7420 = vmatmul.mubr.bf16.gmra.mxu0 %v3736
      %v7421 = vpop.f32.mrf.mxu0
      %v7422 = vadd.f32 %v7309, %v7421
      %v7423 = vpop.f32.mrf.mxu0
      %v7424 = vadd.f32 %v7311, %v7423
      %v7425 = vpop.f32.mrf.mxu0
      %v7426 = vadd.f32 %v7313, %v7425
      %v7427 = vpop.f32.mrf.mxu0
      %v7428 = vadd.f32 %v7315, %v7427
      %7429 = vdwg.mxu0
      %7430 = vmax.xlane.f32.xlu0 %v6448
      %v7431 = vpop.xlane.xlu0 %7430
      %7432 = vmax.xlane.f32.xlu0 %v6452
      %v7433 = vpop.xlane.xlu0 %7432
      %7434 = vmax.xlane.f32.xlu0 %v6458
      %v7435 = vpop.xlane.xlu0 %7434
      %7436 = vmax.xlane.f32.xlu0 %v6462
      %v7437 = vpop.xlane.xlu0 %7436
      %7438 = vmax.xlane.f32.xlu0 %v6468
      %v7439 = vpop.xlane.xlu0 %7438
      %7440 = vmax.xlane.f32.xlu0 %v6472
      %v7441 = vpop.xlane.xlu0 %7440
      %7442 = vmax.xlane.f32.xlu0 %v6478
      %v7443 = vpop.xlane.xlu0 %7442
      %7444 = vmax.xlane.f32.xlu0 %v6482
      %v7445 = vpop.xlane.xlu0 %7444
      %7446 = vmax.xlane.f32.xlu0 %v6488
      %v7447 = vpop.xlane.xlu0 %7446
      %7448 = vmax.xlane.f32.xlu0 %v6492
      %v7449 = vpop.xlane.xlu0 %7448
      %7450 = vmax.xlane.f32.xlu0 %v6498
      %v7451 = vpop.xlane.xlu0 %7450
      %7452 = vmax.xlane.f32.xlu0 %v6502
      %v7453 = vpop.xlane.xlu0 %7452
      %7454 = vmax.xlane.f32.xlu0 %v6508
      %v7455 = vpop.xlane.xlu0 %7454
      %7456 = vmax.xlane.f32.xlu0 %v6512
      %v7457 = vpop.xlane.xlu0 %7456
      %7458 = vmax.xlane.f32.xlu0 %v6518
      %v7459 = vpop.xlane.xlu0 %7458
      %7460 = vmax.xlane.f32.xlu0 %v6522
      %v7461 = vpop.xlane.xlu0 %7460
      %v7462 = vsub.f32 %v6448, %v7431
      %v7463 = vsub.f32 %v6452, %v7433
      %v7464 = vsub.f32 %v6458, %v7435
      %v7465 = vsub.f32 %v6462, %v7437
      %v7466 = vsub.f32 %v6468, %v7439
      %v7467 = vsub.f32 %v6472, %v7441
      %v7468 = vsub.f32 %v6478, %v7443
      %v7469 = vsub.f32 %v6482, %v7445
      %v7470 = vsub.f32 %v6488, %v7447
      %v7471 = vsub.f32 %v6492, %v7449
      %v7472 = vsub.f32 %v6498, %v7451
      %v7473 = vsub.f32 %v6502, %v7453
      %v7474 = vsub.f32 %v6508, %v7455
      %v7475 = vsub.f32 %v6512, %v7457
      %v7476 = vsub.f32 %v6518, %v7459
      %v7477 = vsub.f32 %v6522, %v7461
      %v7478 = vmul.f32 %v7462, 1.442695
      %v7479 = vpow.pop %v7478
      %v7480 = vmul.f32 %v7463, 1.442695
      %v7481 = vpow.pop %v7480
      %v7482 = vmul.f32 %v7464, 1.442695
      %v7483 = vpow.pop %v7482
      %v7484 = vmul.f32 %v7465, 1.442695
      %v7485 = vpow.pop %v7484
      %v7486 = vmul.f32 %v7466, 1.442695
      %v7487 = vpow.pop %v7486
      %v7488 = vmul.f32 %v7467, 1.442695
      %v7489 = vpow.pop %v7488
      %v7490 = vmul.f32 %v7468, 1.442695
      %v7491 = vpow.pop %v7490
      %v7492 = vmul.f32 %v7469, 1.442695
      %v7493 = vpow.pop %v7492
      %v7494 = vmul.f32 %v7470, 1.442695
      %v7495 = vpow.pop %v7494
      %v7496 = vmul.f32 %v7471, 1.442695
      %v7497 = vpow.pop %v7496
      %v7498 = vmul.f32 %v7472, 1.442695
      %v7499 = vpow.pop %v7498
      %v7500 = vmul.f32 %v7473, 1.442695
      %v7501 = vpow.pop %v7500
      %v7502 = vmul.f32 %v7474, 1.442695
      %v7503 = vpow.pop %v7502
      %v7504 = vmul.f32 %v7475, 1.442695
      %v7505 = vpow.pop %v7504
      %v7506 = vmul.f32 %v7476, 1.442695
      %v7507 = vpow.pop %v7506
      %v7508 = vmul.f32 %v7477, 1.442695
      %v7509 = vpow.pop %v7508
      %7510 = vadd.xlane.f32.xlu0 %v7479
      %v7511 = vpop.xlane.xlu0 %7510
      %7512 = vadd.xlane.f32.xlu0 %v7481
      %v7513 = vpop.xlane.xlu0 %7512
      %7514 = vadd.xlane.f32.xlu0 %v7483
      %v7515 = vpop.xlane.xlu0 %7514
      %7516 = vadd.xlane.f32.xlu0 %v7485
      %v7517 = vpop.xlane.xlu0 %7516
      %7518 = vadd.xlane.f32.xlu0 %v7487
      %v7519 = vpop.xlane.xlu0 %7518
      %7520 = vadd.xlane.f32.xlu0 %v7489
      %v7521 = vpop.xlane.xlu0 %7520
      %7522 = vadd.xlane.f32.xlu0 %v7491
      %v7523 = vpop.xlane.xlu0 %7522
      %7524 = vadd.xlane.f32.xlu0 %v7493
      %v7525 = vpop.xlane.xlu0 %7524
      %7526 = vadd.xlane.f32.xlu0 %v7495
      %v7527 = vpop.xlane.xlu0 %7526
      %7528 = vadd.xlane.f32.xlu0 %v7497
      %v7529 = vpop.xlane.xlu0 %7528
      %7530 = vadd.xlane.f32.xlu0 %v7499
      %v7531 = vpop.xlane.xlu0 %7530
      %7532 = vadd.xlane.f32.xlu0 %v7501
      %v7533 = vpop.xlane.xlu0 %7532
      %7534 = vadd.xlane.f32.xlu0 %v7503
      %v7535 = vpop.xlane.xlu0 %7534
      %7536 = vadd.xlane.f32.xlu0 %v7505
      %v7537 = vpop.xlane.xlu0 %7536
      %7538 = vadd.xlane.f32.xlu0 %v7507
      %v7539 = vpop.xlane.xlu0 %7538
      %7540 = vadd.xlane.f32.xlu0 %v7509
      %v7541 = vpop.xlane.xlu0 %7540
      %v7542 = vrcp.pop %v7511
      %v7543 = vrcp.pop %v7513
      %v7544 = vrcp.pop %v7515
      %v7545 = vrcp.pop %v7517
      %v7546 = vrcp.pop %v7519
      %v7547 = vrcp.pop %v7521
      %v7548 = vrcp.pop %v7523
      %v7549 = vrcp.pop %v7525
      %v7550 = vrcp.pop %v7527
      %v7551 = vrcp.pop %v7529
      %v7552 = vrcp.pop %v7531
      %v7553 = vrcp.pop %v7533
      %v7554 = vrcp.pop %v7535
      %v7555 = vrcp.pop %v7537
      %v7556 = vrcp.pop %v7539
      %v7557 = vrcp.pop %v7541
      %v7558 = vmul.f32 %v7479, %v7542
      %v7559 = vmul.f32 %v7481, %v7543
      %v7560 = vmul.f32 %v7483, %v7544
      %v7561 = vmul.f32 %v7485, %v7545
      %v7562 = vmul.f32 %v7487, %v7546
      %v7563 = vmul.f32 %v7489, %v7547
      %v7564 = vmul.f32 %v7491, %v7548
      %v7565 = vmul.f32 %v7493, %v7549
      %v7566 = vmul.f32 %v7495, %v7550
      %v7567 = vmul.f32 %v7497, %v7551
      %v7568 = vmul.f32 %v7499, %v7552
      %v7569 = vmul.f32 %v7501, %v7553
      %v7570 = vmul.f32 %v7503, %v7554
      %v7571 = vmul.f32 %v7505, %v7555
      %v7572 = vmul.f32 %v7507, %v7556
      %v7573 = vmul.f32 %v7509, %v7557
      %7574 = vst [vmem:[%s8] sm:$0xff] %v7558
      %7575 = vst [vmem:[%s8 + $0x8] sm:$0xff] %v7559
      %7576 = vst [vmem:[%s8 + $0x10] sm:$0xff] %v7560
      %7577 = vst [vmem:[%s8 + $0x18] sm:$0xff] %v7561
      %7578 = vst [vmem:[%s8 + $0x20] sm:$0xff] %v7562
      %7579 = vst [vmem:[%s8 + $0x28] sm:$0xff] %v7563
      %7580 = vst [vmem:[%s8 + $0x30] sm:$0xff] %v7564
      %7581 = vst [vmem:[%s8 + $0x38] sm:$0xff] %v7565
      %7582 = vst [vmem:[%s8 + $0x40] sm:$0xff] %v7566
      %7583 = vst [vmem:[%s8 + $0x48] sm:$0xff] %v7567
      %7584 = vst [vmem:[%s8 + $0x50] sm:$0xff] %v7568
      %7585 = vst [vmem:[%s8 + $0x58] sm:$0xff] %v7569
      %7586 = vst [vmem:[%s8 + $0x60] sm:$0xff] %v7570
      %7587 = vst [vmem:[%s8 + $0x68] sm:$0xff] %v7571
      %7588 = vst [vmem:[%s8 + $0x70] sm:$0xff] %v7572
      %7589 = vst [vmem:[%s8 + $0x78] sm:$0xff] %v7573
      %7590 = vmax.xlane.f32.xlu0 %v6450
      %v7591 = vpop.xlane.xlu0 %7590
      %7592 = vmax.xlane.f32.xlu0 %v6454
      %v7593 = vpop.xlane.xlu0 %7592
      %7594 = vmax.xlane.f32.xlu0 %v6460
      %v7595 = vpop.xlane.xlu0 %7594
      %7596 = vmax.xlane.f32.xlu0 %v6464
      %v7597 = vpop.xlane.xlu0 %7596
      %7598 = vmax.xlane.f32.xlu0 %v6470
      %v7599 = vpop.xlane.xlu0 %7598
      %7600 = vmax.xlane.f32.xlu0 %v6474
      %v7601 = vpop.xlane.xlu0 %7600
      %7602 = vmax.xlane.f32.xlu0 %v6480
      %v7603 = vpop.xlane.xlu0 %7602
      %7604 = vmax.xlane.f32.xlu0 %v6484
      %v7605 = vpop.xlane.xlu0 %7604
      %7606 = vmax.xlane.f32.xlu0 %v6490
      %v7607 = vpop.xlane.xlu0 %7606
      %7608 = vmax.xlane.f32.xlu0 %v6494
      %v7609 = vpop.xlane.xlu0 %7608
      %7610 = vmax.xlane.f32.xlu0 %v6500
      %v7611 = vpop.xlane.xlu0 %7610
      %7612 = vmax.xlane.f32.xlu0 %v6504
      %v7613 = vpop.xlane.xlu0 %7612
      %7614 = vmax.xlane.f32.xlu0 %v6510
      %v7615 = vpop.xlane.xlu0 %7614
      %7616 = vmax.xlane.f32.xlu0 %v6514
      %v7617 = vpop.xlane.xlu0 %7616
      %7618 = vmax.xlane.f32.xlu0 %v6520
      %v7619 = vpop.xlane.xlu0 %7618
      %7620 = vmax.xlane.f32.xlu0 %v6524
      %v7621 = vpop.xlane.xlu0 %7620
      %v7622 = vlaneseq
      %v7623 = vand.u32 %v7622, 127
      %vm7624 = vcmp.eq.f32.partialorder %v6450, %v7591
      %vm7625 = vcmp.eq.f32.partialorder %v6454, %v7593
      %vm7626 = vcmp.eq.f32.partialorder %v6460, %v7595
      %vm7627 = vcmp.eq.f32.partialorder %v6464, %v7597
      %vm7628 = vcmp.eq.f32.partialorder %v6470, %v7599
      %vm7629 = vcmp.eq.f32.partialorder %v6474, %v7601
      %vm7630 = vcmp.eq.f32.partialorder %v6480, %v7603
      %vm7631 = vcmp.eq.f32.partialorder %v6484, %v7605
      %vm7632 = vcmp.eq.f32.partialorder %v6490, %v7607
      %vm7633 = vcmp.eq.f32.partialorder %v6494, %v7609
      %vm7634 = vcmp.eq.f32.partialorder %v6500, %v7611
      %vm7635 = vcmp.eq.f32.partialorder %v6504, %v7613
      %vm7636 = vcmp.eq.f32.partialorder %v6510, %v7615
      %vm7637 = vcmp.eq.f32.partialorder %v6514, %v7617
      %vm7638 = vcmp.eq.f32.partialorder %v6520, %v7619
      %vm7639 = vcmp.eq.f32.partialorder %v6524, %v7621
      %v7640 = vsel %vm7624, %v7623, 128
      %v7641 = vsel %vm7625, %v7623, 128
      %v7642 = vsel %vm7626, %v7623, 128
      %v7643 = vsel %vm7627, %v7623, 128
      %v7644 = vsel %vm7628, %v7623, 128
      %v7645 = vsel %vm7629, %v7623, 128
      %v7646 = vsel %vm7630, %v7623, 128
      %v7647 = vsel %vm7631, %v7623, 128
      %v7648 = vsel %vm7632, %v7623, 128
      %v7649 = vsel %vm7633, %v7623, 128
      %v7650 = vsel %vm7634, %v7623, 128
      %v7651 = vsel %vm7635, %v7623, 128
      %v7652 = vsel %vm7636, %v7623, 128
      %v7653 = vsel %vm7637, %v7623, 128
      %v7654 = vsel %vm7638, %v7623, 128
      %v7655 = vsel %vm7639, %v7623, 128
      %v7656 = vand.u32 %v7640, 65535
      %v7657 = vshra.s32 %v7640, 16
      %v7658 = vcvt.s32.f32 %v7656
      %v7659 = vcvt.s32.f32 %v7657
      %7660 = vmin.xlane.f32.xlu0 %v7659
      %v7661 = vpop.xlane.xlu0 %7660
      %vm7662 = vcmp.eq.f32.partialorder %v7659, %v7661
      %v7663 = vsel %vm7662, %v7658, inf
      %7664 = vmin.xlane.f32.xlu0 %v7663
      %v7665 = vpop.xlane.xlu0 %7664
      %v7666 = vcvt.f32.s32 %v7665
      %v7667 = vcvt.f32.s32 %v7661
      %v7668 = vshll.u32 %v7667, 16
      %v7669 = vadd.s32 %v7668, %v7666
      %v7670 = vand.u32 %v7641, 65535
      %v7671 = vshra.s32 %v7641, 16
      %v7672 = vcvt.s32.f32 %v7670
      %v7673 = vcvt.s32.f32 %v7671
      %7674 = vmin.xlane.f32.xlu0 %v7673
      %v7675 = vpop.xlane.xlu0 %7674
      %vm7676 = vcmp.eq.f32.partialorder %v7673, %v7675
      %v7677 = vsel %vm7676, %v7672, inf
      %7678 = vmin.xlane.f32.xlu0 %v7677
      %v7679 = vpop.xlane.xlu0 %7678
      %v7680 = vcvt.f32.s32 %v7679
      %v7681 = vcvt.f32.s32 %v7675
      %v7682 = vshll.u32 %v7681, 16
      %v7683 = vadd.s32 %v7682, %v7680
      %v7684 = vand.u32 %v7642, 65535
      %v7685 = vshra.s32 %v7642, 16
      %v7686 = vcvt.s32.f32 %v7684
      %v7687 = vcvt.s32.f32 %v7685
      %7688 = vmin.xlane.f32.xlu0 %v7687
      %v7689 = vpop.xlane.xlu0 %7688
      %vm7690 = vcmp.eq.f32.partialorder %v7687, %v7689
      %v7691 = vsel %vm7690, %v7686, inf
      %7692 = vmin.xlane.f32.xlu0 %v7691
      %v7693 = vpop.xlane.xlu0 %7692
      %v7694 = vcvt.f32.s32 %v7693
      %v7695 = vcvt.f32.s32 %v7689
      %v7696 = vshll.u32 %v7695, 16
      %v7697 = vadd.s32 %v7696, %v7694
      %v7698 = vand.u32 %v7643, 65535
      %v7699 = vshra.s32 %v7643, 16
      %v7700 = vcvt.s32.f32 %v7698
      %v7701 = vcvt.s32.f32 %v7699
      %7702 = vmin.xlane.f32.xlu0 %v7701
      %v7703 = vpop.xlane.xlu0 %7702
      %vm7704 = vcmp.eq.f32.partialorder %v7701, %v7703
      %v7705 = vsel %vm7704, %v7700, inf
      %7706 = vmin.xlane.f32.xlu0 %v7705
      %v7707 = vpop.xlane.xlu0 %7706
      %v7708 = vcvt.f32.s32 %v7707
      %v7709 = vcvt.f32.s32 %v7703
      %v7710 = vshll.u32 %v7709, 16
      %v7711 = vadd.s32 %v7710, %v7708
      %v7712 = vand.u32 %v7644, 65535
      %v7713 = vshra.s32 %v7644, 16
      %v7714 = vcvt.s32.f32 %v7712
      %v7715 = vcvt.s32.f32 %v7713
      %7716 = vmin.xlane.f32.xlu0 %v7715
      %v7717 = vpop.xlane.xlu0 %7716
      %vm7718 = vcmp.eq.f32.partialorder %v7715, %v7717
      %v7719 = vsel %vm7718, %v7714, inf
      %7720 = vmin.xlane.f32.xlu0 %v7719
      %v7721 = vpop.xlane.xlu0 %7720
      %v7722 = vcvt.f32.s32 %v7721
      %v7723 = vcvt.f32.s32 %v7717
      %v7724 = vshll.u32 %v7723, 16
      %v7725 = vadd.s32 %v7724, %v7722
      %v7726 = vand.u32 %v7645, 65535
      %v7727 = vshra.s32 %v7645, 16
      %v7728 = vcvt.s32.f32 %v7726
      %v7729 = vcvt.s32.f32 %v7727
      %7730 = vmin.xlane.f32.xlu0 %v7729
      %v7731 = vpop.xlane.xlu0 %7730
      %vm7732 = vcmp.eq.f32.partialorder %v7729, %v7731
      %v7733 = vsel %vm7732, %v7728, inf
      %7734 = vmin.xlane.f32.xlu0 %v7733
      %v7735 = vpop.xlane.xlu0 %7734
      %v7736 = vcvt.f32.s32 %v7735
      %v7737 = vcvt.f32.s32 %v7731
      %v7738 = vshll.u32 %v7737, 16
      %v7739 = vadd.s32 %v7738, %v7736
      %v7740 = vand.u32 %v7646, 65535
      %v7741 = vshra.s32 %v7646, 16
      %v7742 = vcvt.s32.f32 %v7740
      %v7743 = vcvt.s32.f32 %v7741
      %7744 = vmin.xlane.f32.xlu0 %v7743
      %v7745 = vpop.xlane.xlu0 %7744
      %vm7746 = vcmp.eq.f32.partialorder %v7743, %v7745
      %v7747 = vsel %vm7746, %v7742, inf
      %7748 = vmin.xlane.f32.xlu0 %v7747
      %v7749 = vpop.xlane.xlu0 %7748
      %v7750 = vcvt.f32.s32 %v7749
      %v7751 = vcvt.f32.s32 %v7745
      %v7752 = vshll.u32 %v7751, 16
      %v7753 = vadd.s32 %v7752, %v7750
      %v7754 = vand.u32 %v7647, 65535
      %v7755 = vshra.s32 %v7647, 16
      %v7756 = vcvt.s32.f32 %v7754
      %v7757 = vcvt.s32.f32 %v7755
      %7758 = vmin.xlane.f32.xlu0 %v7757
      %v7759 = vpop.xlane.xlu0 %7758
      %vm7760 = vcmp.eq.f32.partialorder %v7757, %v7759
      %v7761 = vsel %vm7760, %v7756, inf
      %7762 = vmin.xlane.f32.xlu0 %v7761
      %v7763 = vpop.xlane.xlu0 %7762
      %v7764 = vcvt.f32.s32 %v7763
      %v7765 = vcvt.f32.s32 %v7759
      %v7766 = vshll.u32 %v7765, 16
      %v7767 = vadd.s32 %v7766, %v7764
      %v7768 = vand.u32 %v7648, 65535
      %v7769 = vshra.s32 %v7648, 16
      %v7770 = vcvt.s32.f32 %v7768
      %v7771 = vcvt.s32.f32 %v7769
      %7772 = vmin.xlane.f32.xlu0 %v7771
      %v7773 = vpop.xlane.xlu0 %7772
      %vm7774 = vcmp.eq.f32.partialorder %v7771, %v7773
      %v7775 = vsel %vm7774, %v7770, inf
      %7776 = vmin.xlane.f32.xlu0 %v7775
      %v7777 = vpop.xlane.xlu0 %7776
      %v7778 = vcvt.f32.s32 %v7777
      %v7779 = vcvt.f32.s32 %v7773
      %v7780 = vshll.u32 %v7779, 16
      %v7781 = vadd.s32 %v7780, %v7778
      %v7782 = vand.u32 %v7649, 65535
      %v7783 = vshra.s32 %v7649, 16
      %v7784 = vcvt.s32.f32 %v7782
      %v7785 = vcvt.s32.f32 %v7783
      %7786 = vmin.xlane.f32.xlu0 %v7785
      %v7787 = vpop.xlane.xlu0 %7786
      %vm7788 = vcmp.eq.f32.partialorder %v7785, %v7787
      %v7789 = vsel %vm7788, %v7784, inf
      %7790 = vmin.xlane.f32.xlu0 %v7789
      %v7791 = vpop.xlane.xlu0 %7790
      %v7792 = vcvt.f32.s32 %v7791
      %v7793 = vcvt.f32.s32 %v7787
      %v7794 = vshll.u32 %v7793, 16
      %v7795 = vadd.s32 %v7794, %v7792
      %v7796 = vand.u32 %v7650, 65535
      %v7797 = vshra.s32 %v7650, 16
      %v7798 = vcvt.s32.f32 %v7796
      %v7799 = vcvt.s32.f32 %v7797
      %7800 = vmin.xlane.f32.xlu0 %v7799
      %v7801 = vpop.xlane.xlu0 %7800
      %vm7802 = vcmp.eq.f32.partialorder %v7799, %v7801
      %v7803 = vsel %vm7802, %v7798, inf
      %7804 = vmin.xlane.f32.xlu0 %v7803
      %v7805 = vpop.xlane.xlu0 %7804
      %v7806 = vcvt.f32.s32 %v7805
      %v7807 = vcvt.f32.s32 %v7801
      %v7808 = vshll.u32 %v7807, 16
      %v7809 = vadd.s32 %v7808, %v7806
      %v7810 = vand.u32 %v7651, 65535
      %v7811 = vshra.s32 %v7651, 16
      %v7812 = vcvt.s32.f32 %v7810
      %v7813 = vcvt.s32.f32 %v7811
      %7814 = vmin.xlane.f32.xlu0 %v7813
      %v7815 = vpop.xlane.xlu0 %7814
      %vm7816 = vcmp.eq.f32.partialorder %v7813, %v7815
      %v7817 = vsel %vm7816, %v7812, inf
      %7818 = vmin.xlane.f32.xlu0 %v7817
      %v7819 = vpop.xlane.xlu0 %7818
      %v7820 = vcvt.f32.s32 %v7819
      %v7821 = vcvt.f32.s32 %v7815
      %v7822 = vshll.u32 %v7821, 16
      %v7823 = vadd.s32 %v7822, %v7820
      %v7824 = vand.u32 %v7652, 65535
      %v7825 = vshra.s32 %v7652, 16
      %v7826 = vcvt.s32.f32 %v7824
      %v7827 = vcvt.s32.f32 %v7825
      %7828 = vmin.xlane.f32.xlu0 %v7827
      %v7829 = vpop.xlane.xlu0 %7828
      %vm7830 = vcmp.eq.f32.partialorder %v7827, %v7829
      %v7831 = vsel %vm7830, %v7826, inf
      %7832 = vmin.xlane.f32.xlu0 %v7831
      %v7833 = vpop.xlane.xlu0 %7832
      %v7834 = vcvt.f32.s32 %v7833
      %v7835 = vcvt.f32.s32 %v7829
      %v7836 = vshll.u32 %v7835, 16
      %v7837 = vadd.s32 %v7836, %v7834
      %v7838 = vand.u32 %v7653, 65535
      %v7839 = vshra.s32 %v7653, 16
      %v7840 = vcvt.s32.f32 %v7838
      %v7841 = vcvt.s32.f32 %v7839
      %7842 = vmin.xlane.f32.xlu0 %v7841
      %v7843 = vpop.xlane.xlu0 %7842
      %vm7844 = vcmp.eq.f32.partialorder %v7841, %v7843
      %v7845 = vsel %vm7844, %v7840, inf
      %7846 = vmin.xlane.f32.xlu0 %v7845
      %v7847 = vpop.xlane.xlu0 %7846
      %v7848 = vcvt.f32.s32 %v7847
      %v7849 = vcvt.f32.s32 %v7843
      %v7850 = vshll.u32 %v7849, 16
      %v7851 = vadd.s32 %v7850, %v7848
      %v7852 = vand.u32 %v7654, 65535
      %v7853 = vshra.s32 %v7654, 16
      %v7854 = vcvt.s32.f32 %v7852
      %v7855 = vcvt.s32.f32 %v7853
      %7856 = vmin.xlane.f32.xlu0 %v7855
      %v7857 = vpop.xlane.xlu0 %7856
      %vm7858 = vcmp.eq.f32.partialorder %v7855, %v7857
      %v7859 = vsel %vm7858, %v7854, inf
      %7860 = vmin.xlane.f32.xlu0 %v7859
      %v7861 = vpop.xlane.xlu0 %7860
      %v7862 = vcvt.f32.s32 %v7861
      %v7863 = vcvt.f32.s32 %v7857
      %v7864 = vshll.u32 %v7863, 16
      %v7865 = vadd.s32 %v7864, %v7862
      %v7866 = vand.u32 %v7655, 65535
      %v7867 = vshra.s32 %v7655, 16
      %v7868 = vcvt.s32.f32 %v7866
      %v7869 = vcvt.s32.f32 %v7867
      %7870 = vmin.xlane.f32.xlu0 %v7869
      %v7871 = vpop.xlane.xlu0 %7870
      %vm7872 = vcmp.eq.f32.partialorder %v7869, %v7871
      %v7873 = vsel %vm7872, %v7868, inf
      %7874 = vmin.xlane.f32.xlu0 %v7873
      %v7875 = vpop.xlane.xlu0 %7874
      %v7876 = vcvt.f32.s32 %v7875
      %v7877 = vcvt.f32.s32 %v7871
      %v7878 = vshll.u32 %v7877, 16
      %v7879 = vadd.s32 %v7878, %v7876
      %7880 = vst [vmem:[%s10] sm:$0xff] %v7669
      %7881 = vst [vmem:[%s10 + $0x8] sm:$0xff] %v7683
      %7882 = vst [vmem:[%s10 + $0x10] sm:$0xff] %v7697
      %7883 = vst [vmem:[%s10 + $0x18] sm:$0xff] %v7711
      %7884 = vst [vmem:[%s10 + $0x20] sm:$0xff] %v7725
      %7885 = vst [vmem:[%s10 + $0x28] sm:$0xff] %v7739
      %7886 = vst [vmem:[%s10 + $0x30] sm:$0xff] %v7753
      %7887 = vst [vmem:[%s10 + $0x38] sm:$0xff] %v7767
      %7888 = vst [vmem:[%s10 + $0x40] sm:$0xff] %v7781
      %7889 = vst [vmem:[%s10 + $0x48] sm:$0xff] %v7795
      %7890 = vst [vmem:[%s10 + $0x50] sm:$0xff] %v7809
      %7891 = vst [vmem:[%s10 + $0x58] sm:$0xff] %v7823
      %7892 = vst [vmem:[%s10 + $0x60] sm:$0xff] %v7837
      %7893 = vst [vmem:[%s10 + $0x68] sm:$0xff] %v7851
      %7894 = vst [vmem:[%s10 + $0x70] sm:$0xff] %v7865
      %7895 = vst [vmem:[%s10 + $0x78] sm:$0xff] %v7879
      %v7896 = vld [vmem:[%s2] sm:$0xff]
      %v7897 = vld [vmem:[%s2 + $0x8] sm:$0xff]
      %v7898 = vld [vmem:[%s2 + $0x10] sm:$0xff]
      %v7899 = vld [vmem:[%s2 + $0x18] sm:$0xff]
      %v7900 = vld [vmem:[%s2 + $0x20] sm:$0xff]
      %v7901 = vld [vmem:[%s2 + $0x28] sm:$0xff]
      %v7902 = vld [vmem:[%s2 + $0x30] sm:$0xff]
      %v7903 = vld [vmem:[%s2 + $0x38] sm:$0xff]
      %v7904 = vld [vmem:[%s2 + $0x40] sm:$0xff]
      %v7905 = vld [vmem:[%s2 + $0x48] sm:$0xff]
      %v7906 = vld [vmem:[%s2 + $0x50] sm:$0xff]
      %v7907 = vld [vmem:[%s2 + $0x58] sm:$0xff]
      %v7908 = vld [vmem:[%s2 + $0x60] sm:$0xff]
      %v7909 = vld [vmem:[%s2 + $0x68] sm:$0xff]
      %v7910 = vld [vmem:[%s2 + $0x70] sm:$0xff]
      %v7911 = vld [vmem:[%s2 + $0x78] sm:$0xff]
      %7928 = vrot.lane.b32.xlu0 %v7896, 2
      %v7929 = vpop.permute.xlu0 %7928
      %7930 = vrot.lane.b32.xlu0 %v7897, 2
      %v7931 = vpop.permute.xlu0 %7930
      %7932 = vrot.lane.b32.xlu0 %v7898, 2
      %v7933 = vpop.permute.xlu0 %7932
      %7934 = vrot.lane.b32.xlu0 %v7899, 2
      %v7935 = vpop.permute.xlu0 %7934
      %7936 = vrot.lane.b32.xlu0 %v7900, 2
      %v7937 = vpop.permute.xlu0 %7936
      %7938 = vrot.lane.b32.xlu0 %v7901, 2
      %v7939 = vpop.permute.xlu0 %7938
      %7940 = vrot.lane.b32.xlu0 %v7902, 2
      %v7941 = vpop.permute.xlu0 %7940
      %7942 = vrot.lane.b32.xlu0 %v7903, 2
      %v7943 = vpop.permute.xlu0 %7942
      %7944 = vrot.lane.b32.xlu0 %v7904, 2
      %v7945 = vpop.permute.xlu0 %7944
      %7946 = vrot.lane.b32.xlu0 %v7905, 2
      %v7947 = vpop.permute.xlu0 %7946
      %7948 = vrot.lane.b32.xlu0 %v7906, 2
      %v7949 = vpop.permute.xlu0 %7948
      %7950 = vrot.lane.b32.xlu0 %v7907, 2
      %v7951 = vpop.permute.xlu0 %7950
      %7952 = vrot.lane.b32.xlu0 %v7908, 2
      %v7953 = vpop.permute.xlu0 %7952
      %7954 = vrot.lane.b32.xlu0 %v7909, 2
      %v7955 = vpop.permute.xlu0 %7954
      %7956 = vrot.lane.b32.xlu0 %v7910, 2
      %v7957 = vpop.permute.xlu0 %7956
      %7958 = vrot.lane.b32.xlu0 %v7911, 2
      %v7959 = vpop.permute.xlu0 %7958
      %v7976 = vsub.f32 %v7896, %v7929
      %v7977 = vsub.f32 %v7897, %v7931
      %v7978 = vsub.f32 %v7898, %v7933
      %v7979 = vsub.f32 %v7899, %v7935
      %v7980 = vsub.f32 %v7900, %v7937
      %v7981 = vsub.f32 %v7901, %v7939
      %v7982 = vsub.f32 %v7902, %v7941
      %v7983 = vsub.f32 %v7903, %v7943
      %v7984 = vsub.f32 %v7904, %v7945
      %v7985 = vsub.f32 %v7905, %v7947
      %v7986 = vsub.f32 %v7906, %v7949
      %v7987 = vsub.f32 %v7907, %v7951
      %v7988 = vsub.f32 %v7908, %v7953
      %v7989 = vsub.f32 %v7909, %v7955
      %v7990 = vsub.f32 %v7910, %v7957
      %v7991 = vsub.f32 %v7911, %v7959
      %v7992 = vmul.f32 %v7976, 0.5
      %v7993 = vmul.f32 %v7977, 0.5
      %v7994 = vmul.f32 %v7978, 0.5
      %v7995 = vmul.f32 %v7979, 0.5
      %v7996 = vmul.f32 %v7980, 0.5
      %v7997 = vmul.f32 %v7981, 0.5
      %v7998 = vmul.f32 %v7982, 0.5
      %v7999 = vmul.f32 %v7983, 0.5
      %v8000 = vmul.f32 %v7984, 0.5
      %v8001 = vmul.f32 %v7985, 0.5
      %v8002 = vmul.f32 %v7986, 0.5
      %v8003 = vmul.f32 %v7987, 0.5
      %v8004 = vmul.f32 %v7988, 0.5
      %v8005 = vmul.f32 %v7989, 0.5
      %v8006 = vmul.f32 %v7990, 0.5
      %v8007 = vmul.f32 %v7991, 0.5
      %8024 = vrot.lane.b32.xlu0 %v7992, 126
      %v8025 = vpop.permute.xlu0 %8024
      %8026 = vrot.lane.b32.xlu0 %v7993, 126
      %v8027 = vpop.permute.xlu0 %8026
      %8028 = vrot.lane.b32.xlu0 %v7994, 126
      %v8029 = vpop.permute.xlu0 %8028
      %8030 = vrot.lane.b32.xlu0 %v7995, 126
      %v8031 = vpop.permute.xlu0 %8030
      %8032 = vrot.lane.b32.xlu0 %v7996, 126
      %v8033 = vpop.permute.xlu0 %8032
      %8034 = vrot.lane.b32.xlu0 %v7997, 126
      %v8035 = vpop.permute.xlu0 %8034
      %8036 = vrot.lane.b32.xlu0 %v7998, 126
      %v8037 = vpop.permute.xlu0 %8036
      %8038 = vrot.lane.b32.xlu0 %v7999, 126
      %v8039 = vpop.permute.xlu0 %8038
      %8040 = vrot.lane.b32.xlu0 %v8000, 126
      %v8041 = vpop.permute.xlu0 %8040
      %8042 = vrot.lane.b32.xlu0 %v8001, 126
      %v8043 = vpop.permute.xlu0 %8042
      %8044 = vrot.lane.b32.xlu0 %v8002, 126
      %v8045 = vpop.permute.xlu0 %8044
      %8046 = vrot.lane.b32.xlu0 %v8003, 126
      %v8047 = vpop.permute.xlu0 %8046
      %8048 = vrot.lane.b32.xlu0 %v8004, 126
      %v8049 = vpop.permute.xlu0 %8048
      %8050 = vrot.lane.b32.xlu0 %v8005, 126
      %v8051 = vpop.permute.xlu0 %8050
      %8052 = vrot.lane.b32.xlu0 %v8006, 126
      %v8053 = vpop.permute.xlu0 %8052
      %8054 = vrot.lane.b32.xlu0 %v8007, 126
      %v8055 = vpop.permute.xlu0 %8054
      %v8072 = vadd.f32 %v7896, %v8025
      %v8073 = vadd.f32 %v7897, %v8027
      %v8074 = vadd.f32 %v7898, %v8029
      %v8075 = vadd.f32 %v7899, %v8031
      %v8076 = vadd.f32 %v7900, %v8033
      %v8077 = vadd.f32 %v7901, %v8035
      %v8078 = vadd.f32 %v7902, %v8037
      %v8079 = vadd.f32 %v7903, %v8039
      %v8080 = vadd.f32 %v7904, %v8041
      %v8081 = vadd.f32 %v7905, %v8043
      %v8082 = vadd.f32 %v7906, %v8045
      %v8083 = vadd.f32 %v7907, %v8047
      %v8084 = vadd.f32 %v7908, %v8049
      %v8085 = vadd.f32 %v7909, %v8051
      %v8086 = vadd.f32 %v7910, %v8053
      %v8087 = vadd.f32 %v7911, %v8055
      %v8088 = vmul.f32 %v6900, 0.1
      %v8089 = vmul.f32 %v6904, 0.1
      %v8090 = vmul.f32 %v6910, 0.1
      %v8091 = vmul.f32 %v6914, 0.1
      %v8092 = vmul.f32 %v6920, 0.1
      %v8093 = vmul.f32 %v6924, 0.1
      %v8094 = vmul.f32 %v6930, 0.1
      %v8095 = vmul.f32 %v6934, 0.1
      %v8096 = vmul.f32 %v6940, 0.1
      %v8097 = vmul.f32 %v6944, 0.1
      %v8098 = vmul.f32 %v6950, 0.1
      %v8099 = vmul.f32 %v6954, 0.1
      %v8100 = vmul.f32 %v6960, 0.1
      %v8101 = vmul.f32 %v6964, 0.1
      %v8102 = vmul.f32 %v6970, 0.1
      %v8103 = vmul.f32 %v6974, 0.1
      %v8104 = vmul.f32 %v6902, 0.1
      %v8105 = vmul.f32 %v6906, 0.1
      %v8106 = vmul.f32 %v6912, 0.1
      %v8107 = vmul.f32 %v6916, 0.1
      %v8108 = vmul.f32 %v6922, 0.1
      %v8109 = vmul.f32 %v6926, 0.1
      %v8110 = vmul.f32 %v6932, 0.1
      %v8111 = vmul.f32 %v6936, 0.1
      %v8112 = vmul.f32 %v6942, 0.1
      %v8113 = vmul.f32 %v6946, 0.1
      %v8114 = vmul.f32 %v6952, 0.1
      %v8115 = vmul.f32 %v6956, 0.1
      %v8116 = vmul.f32 %v6962, 0.1
      %v8117 = vmul.f32 %v6966, 0.1
      %v8118 = vmul.f32 %v6972, 0.1
      %v8119 = vmul.f32 %v6976, 0.1
      %v8120 = vmul.f32 %v7352, 0.2
      %v8121 = vmul.f32 %v7356, 0.2
      %v8122 = vmul.f32 %v7362, 0.2
      %v8123 = vmul.f32 %v7366, 0.2
      %v8124 = vmul.f32 %v7372, 0.2
      %v8125 = vmul.f32 %v7376, 0.2
      %v8126 = vmul.f32 %v7382, 0.2
      %v8127 = vmul.f32 %v7386, 0.2
      %v8128 = vmul.f32 %v7392, 0.2
      %v8129 = vmul.f32 %v7396, 0.2
      %v8130 = vmul.f32 %v7402, 0.2
      %v8131 = vmul.f32 %v7406, 0.2
      %v8132 = vmul.f32 %v7412, 0.2
      %v8133 = vmul.f32 %v7416, 0.2
      %v8134 = vmul.f32 %v7422, 0.2
      %v8135 = vmul.f32 %v7426, 0.2
      %v8136 = vmin.f32 %v8120, 4.1351666
      %v8137 = vmin.f32 %v8121, 4.1351666
      %v8138 = vmin.f32 %v8122, 4.1351666
      %v8139 = vmin.f32 %v8123, 4.1351666
      %v8140 = vmin.f32 %v8124, 4.1351666
      %v8141 = vmin.f32 %v8125, 4.1351666
      %v8142 = vmin.f32 %v8126, 4.1351666
      %v8143 = vmin.f32 %v8127, 4.1351666
      %v8144 = vmin.f32 %v8128, 4.1351666
      %v8145 = vmin.f32 %v8129, 4.1351666
      %v8146 = vmin.f32 %v8130, 4.1351666
      %v8147 = vmin.f32 %v8131, 4.1351666
      %v8148 = vmin.f32 %v8132, 4.1351666
      %v8149 = vmin.f32 %v8133, 4.1351666
      %v8150 = vmin.f32 %v8134, 4.1351666
      %v8151 = vmin.f32 %v8135, 4.1351666
      %v8152 = vmul.f32 %v7354, 0.2
      %v8153 = vmul.f32 %v7358, 0.2
      %v8154 = vmul.f32 %v7364, 0.2
      %v8155 = vmul.f32 %v7368, 0.2
      %v8156 = vmul.f32 %v7374, 0.2
      %v8157 = vmul.f32 %v7378, 0.2
      %v8158 = vmul.f32 %v7384, 0.2
      %v8159 = vmul.f32 %v7388, 0.2
      %v8160 = vmul.f32 %v7394, 0.2
      %v8161 = vmul.f32 %v7398, 0.2
      %v8162 = vmul.f32 %v7404, 0.2
      %v8163 = vmul.f32 %v7408, 0.2
      %v8164 = vmul.f32 %v7414, 0.2
      %v8165 = vmul.f32 %v7418, 0.2
      %v8166 = vmul.f32 %v7424, 0.2
      %v8167 = vmul.f32 %v7428, 0.2
      %v8168 = vmin.f32 %v8152, 4.1351666
      %v8169 = vmin.f32 %v8153, 4.1351666
      %v8170 = vmin.f32 %v8154, 4.1351666
      %v8171 = vmin.f32 %v8155, 4.1351666
      %v8172 = vmin.f32 %v8156, 4.1351666
      %v8173 = vmin.f32 %v8157, 4.1351666
      %v8174 = vmin.f32 %v8158, 4.1351666
      %v8175 = vmin.f32 %v8159, 4.1351666
      %v8176 = vmin.f32 %v8160, 4.1351666
      %v8177 = vmin.f32 %v8161, 4.1351666
      %v8178 = vmin.f32 %v8162, 4.1351666
      %v8179 = vmin.f32 %v8163, 4.1351666
      %v8180 = vmin.f32 %v8164, 4.1351666
      %v8181 = vmin.f32 %v8165, 4.1351666
      %v8182 = vmin.f32 %v8166, 4.1351666
      %v8183 = vmin.f32 %v8167, 4.1351666
      %8185 = vset.pattern.permute.xlu0 2
      %8186 = vperm.xlu0 %8185, %v7976
      %v8187 = vpop.permute.xlu0 %8186
      %8190 = vset.pattern.permute.xlu0 2
      %8191 = vperm.xlu0 %8190, %v7977
      %v8192 = vpop.permute.xlu0 %8191
      %8195 = vset.pattern.permute.xlu0 2
      %8196 = vperm.xlu0 %8195, %v7978
      %v8197 = vpop.permute.xlu0 %8196
      %8200 = vset.pattern.permute.xlu0 2
      %8201 = vperm.xlu0 %8200, %v7979
      %v8202 = vpop.permute.xlu0 %8201
      %8205 = vset.pattern.permute.xlu0 2
      %8206 = vperm.xlu0 %8205, %v7980
      %v8207 = vpop.permute.xlu0 %8206
      %8210 = vset.pattern.permute.xlu0 2
      %8211 = vperm.xlu0 %8210, %v7981
      %v8212 = vpop.permute.xlu0 %8211
      %8215 = vset.pattern.permute.xlu0 2
      %8216 = vperm.xlu0 %8215, %v7982
      %v8217 = vpop.permute.xlu0 %8216
      %8220 = vset.pattern.permute.xlu0 2
      %8221 = vperm.xlu0 %8220, %v7983
      %v8222 = vpop.permute.xlu0 %8221
      %8225 = vset.pattern.permute.xlu0 2
      %8226 = vperm.xlu0 %8225, %v7984
      %v8227 = vpop.permute.xlu0 %8226
      %8230 = vset.pattern.permute.xlu0 2
      %8231 = vperm.xlu0 %8230, %v7985
      %v8232 = vpop.permute.xlu0 %8231
      %8235 = vset.pattern.permute.xlu0 2
      %8236 = vperm.xlu0 %8235, %v7986
      %v8237 = vpop.permute.xlu0 %8236
      %8240 = vset.pattern.permute.xlu0 2
      %8241 = vperm.xlu0 %8240, %v7987
      %v8242 = vpop.permute.xlu0 %8241
      %8245 = vset.pattern.permute.xlu0 2
      %8246 = vperm.xlu0 %8245, %v7988
      %v8247 = vpop.permute.xlu0 %8246
      %8250 = vset.pattern.permute.xlu0 2
      %8251 = vperm.xlu0 %8250, %v7989
      %v8252 = vpop.permute.xlu0 %8251
      %8255 = vset.pattern.permute.xlu0 2
      %8256 = vperm.xlu0 %8255, %v7990
      %v8257 = vpop.permute.xlu0 %8256
      %8260 = vset.pattern.permute.xlu0 2
      %8261 = vperm.xlu0 %8260, %v7991
      %v8262 = vpop.permute.xlu0 %8261
      %v8264 = vmul.f32 %v8088, %v8187
      %v8265 = vmul.f32 %v8089, %v8192
      %v8266 = vmul.f32 %v8090, %v8197
      %v8267 = vmul.f32 %v8091, %v8202
      %v8268 = vmul.f32 %v8092, %v8207
      %v8269 = vmul.f32 %v8093, %v8212
      %v8270 = vmul.f32 %v8094, %v8217
      %v8271 = vmul.f32 %v8095, %v8222
      %v8272 = vmul.f32 %v8096, %v8227
      %v8273 = vmul.f32 %v8097, %v8232
      %v8274 = vmul.f32 %v8098, %v8237
      %v8275 = vmul.f32 %v8099, %v8242
      %v8276 = vmul.f32 %v8100, %v8247
      %v8277 = vmul.f32 %v8101, %v8252
      %v8278 = vmul.f32 %v8102, %v8257
      %v8279 = vmul.f32 %v8103, %v8262
      %8281 = vset.pattern.permute.xlu0 0
      %8282 = vperm.xlu0 %8281, %v8072
      %v8283 = vpop.permute.xlu0 %8282
      %8286 = vset.pattern.permute.xlu0 0
      %8287 = vperm.xlu0 %8286, %v8073
      %v8288 = vpop.permute.xlu0 %8287
      %8291 = vset.pattern.permute.xlu0 0
      %8292 = vperm.xlu0 %8291, %v8074
      %v8293 = vpop.permute.xlu0 %8292
      %8296 = vset.pattern.permute.xlu0 0
      %8297 = vperm.xlu0 %8296, %v8075
      %v8298 = vpop.permute.xlu0 %8297
      %8301 = vset.pattern.permute.xlu0 0
      %8302 = vperm.xlu0 %8301, %v8076
      %v8303 = vpop.permute.xlu0 %8302
      %8306 = vset.pattern.permute.xlu0 0
      %8307 = vperm.xlu0 %8306, %v8077
      %v8308 = vpop.permute.xlu0 %8307
      %8311 = vset.pattern.permute.xlu0 0
      %8312 = vperm.xlu0 %8311, %v8078
      %v8313 = vpop.permute.xlu0 %8312
      %8316 = vset.pattern.permute.xlu0 0
      %8317 = vperm.xlu0 %8316, %v8079
      %v8318 = vpop.permute.xlu0 %8317
      %8321 = vset.pattern.permute.xlu0 0
      %8322 = vperm.xlu0 %8321, %v8080
      %v8323 = vpop.permute.xlu0 %8322
      %8326 = vset.pattern.permute.xlu0 0
      %8327 = vperm.xlu0 %8326, %v8081
      %v8328 = vpop.permute.xlu0 %8327
      %8331 = vset.pattern.permute.xlu0 0
      %8332 = vperm.xlu0 %8331, %v8082
      %v8333 = vpop.permute.xlu0 %8332
      %8336 = vset.pattern.permute.xlu0 0
      %8337 = vperm.xlu0 %8336, %v8083
      %v8338 = vpop.permute.xlu0 %8337
      %8341 = vset.pattern.permute.xlu0 0
      %8342 = vperm.xlu0 %8341, %v8084
      %v8343 = vpop.permute.xlu0 %8342
      %8346 = vset.pattern.permute.xlu0 0
      %8347 = vperm.xlu0 %8346, %v8085
      %v8348 = vpop.permute.xlu0 %8347
      %8351 = vset.pattern.permute.xlu0 0
      %8352 = vperm.xlu0 %8351, %v8086
      %v8353 = vpop.permute.xlu0 %8352
      %8356 = vset.pattern.permute.xlu0 0
      %8357 = vperm.xlu0 %8356, %v8087
      %v8358 = vpop.permute.xlu0 %8357
      %v8360 = vadd.f32 %v8264, %v8283
      %v8361 = vadd.f32 %v8265, %v8288
      %v8362 = vadd.f32 %v8266, %v8293
      %v8363 = vadd.f32 %v8267, %v8298
      %v8364 = vadd.f32 %v8268, %v8303
      %v8365 = vadd.f32 %v8269, %v8308
      %v8366 = vadd.f32 %v8270, %v8313
      %v8367 = vadd.f32 %v8271, %v8318
      %v8368 = vadd.f32 %v8272, %v8323
      %v8369 = vadd.f32 %v8273, %v8328
      %v8370 = vadd.f32 %v8274, %v8333
      %v8371 = vadd.f32 %v8275, %v8338
      %v8372 = vadd.f32 %v8276, %v8343
      %v8373 = vadd.f32 %v8277, %v8348
      %v8374 = vadd.f32 %v8278, %v8353
      %v8375 = vadd.f32 %v8279, %v8358
      %8376 = vset.pattern.permute.xlu0 3
      %8377 = vperm.xlu0 %8376, %v7976
      %v8378 = vpop.permute.xlu0 %8377
      %8380 = vset.pattern.permute.xlu0 3
      %8381 = vperm.xlu0 %8380, %v7977
      %v8382 = vpop.permute.xlu0 %8381
      %8384 = vset.pattern.permute.xlu0 3
      %8385 = vperm.xlu0 %8384, %v7978
      %v8386 = vpop.permute.xlu0 %8385
      %8388 = vset.pattern.permute.xlu0 3
      %8389 = vperm.xlu0 %8388, %v7979
      %v8390 = vpop.permute.xlu0 %8389
      %8392 = vset.pattern.permute.xlu0 3
      %8393 = vperm.xlu0 %8392, %v7980
      %v8394 = vpop.permute.xlu0 %8393
      %8396 = vset.pattern.permute.xlu0 3
      %8397 = vperm.xlu0 %8396, %v7981
      %v8398 = vpop.permute.xlu0 %8397
      %8400 = vset.pattern.permute.xlu0 3
      %8401 = vperm.xlu0 %8400, %v7982
      %v8402 = vpop.permute.xlu0 %8401
      %8404 = vset.pattern.permute.xlu0 3
      %8405 = vperm.xlu0 %8404, %v7983
      %v8406 = vpop.permute.xlu0 %8405
      %8408 = vset.pattern.permute.xlu0 3
      %8409 = vperm.xlu0 %8408, %v7984
      %v8410 = vpop.permute.xlu0 %8409
      %8412 = vset.pattern.permute.xlu0 3
      %8413 = vperm.xlu0 %8412, %v7985
      %v8414 = vpop.permute.xlu0 %8413
      %8416 = vset.pattern.permute.xlu0 3
      %8417 = vperm.xlu0 %8416, %v7986
      %v8418 = vpop.permute.xlu0 %8417
      %8420 = vset.pattern.permute.xlu0 3
      %8421 = vperm.xlu0 %8420, %v7987
      %v8422 = vpop.permute.xlu0 %8421
      %8424 = vset.pattern.permute.xlu0 3
      %8425 = vperm.xlu0 %8424, %v7988
      %v8426 = vpop.permute.xlu0 %8425
      %8428 = vset.pattern.permute.xlu0 3
      %8429 = vperm.xlu0 %8428, %v7989
      %v8430 = vpop.permute.xlu0 %8429
      %8432 = vset.pattern.permute.xlu0 3
      %8433 = vperm.xlu0 %8432, %v7990
      %v8434 = vpop.permute.xlu0 %8433
      %8436 = vset.pattern.permute.xlu0 3
      %8437 = vperm.xlu0 %8436, %v7991
      %v8438 = vpop.permute.xlu0 %8437
      %v8440 = vmul.f32 %v8104, %v8378
      %v8441 = vmul.f32 %v8105, %v8382
      %v8442 = vmul.f32 %v8106, %v8386
      %v8443 = vmul.f32 %v8107, %v8390
      %v8444 = vmul.f32 %v8108, %v8394
      %v8445 = vmul.f32 %v8109, %v8398
      %v8446 = vmul.f32 %v8110, %v8402
      %v8447 = vmul.f32 %v8111, %v8406
      %v8448 = vmul.f32 %v8112, %v8410
      %v8449 = vmul.f32 %v8113, %v8414
      %v8450 = vmul.f32 %v8114, %v8418
      %v8451 = vmul.f32 %v8115, %v8422
      %v8452 = vmul.f32 %v8116, %v8426
      %v8453 = vmul.f32 %v8117, %v8430
      %v8454 = vmul.f32 %v8118, %v8434
      %v8455 = vmul.f32 %v8119, %v8438
      %8456 = vset.pattern.permute.xlu0 1
      %8457 = vperm.xlu0 %8456, %v8072
      %v8458 = vpop.permute.xlu0 %8457
      %8460 = vset.pattern.permute.xlu0 1
      %8461 = vperm.xlu0 %8460, %v8073
      %v8462 = vpop.permute.xlu0 %8461
      %8464 = vset.pattern.permute.xlu0 1
      %8465 = vperm.xlu0 %8464, %v8074
      %v8466 = vpop.permute.xlu0 %8465
      %8468 = vset.pattern.permute.xlu0 1
      %8469 = vperm.xlu0 %8468, %v8075
      %v8470 = vpop.permute.xlu0 %8469
      %8472 = vset.pattern.permute.xlu0 1
      %8473 = vperm.xlu0 %8472, %v8076
      %v8474 = vpop.permute.xlu0 %8473
      %8476 = vset.pattern.permute.xlu0 1
      %8477 = vperm.xlu0 %8476, %v8077
      %v8478 = vpop.permute.xlu0 %8477
      %8480 = vset.pattern.permute.xlu0 1
      %8481 = vperm.xlu0 %8480, %v8078
      %v8482 = vpop.permute.xlu0 %8481
      %8484 = vset.pattern.permute.xlu0 1
      %8485 = vperm.xlu0 %8484, %v8079
      %v8486 = vpop.permute.xlu0 %8485
      %8488 = vset.pattern.permute.xlu0 1
      %8489 = vperm.xlu0 %8488, %v8080
      %v8490 = vpop.permute.xlu0 %8489
      %8492 = vset.pattern.permute.xlu0 1
      %8493 = vperm.xlu0 %8492, %v8081
      %v8494 = vpop.permute.xlu0 %8493
      %8496 = vset.pattern.permute.xlu0 1
      %8497 = vperm.xlu0 %8496, %v8082
      %v8498 = vpop.permute.xlu0 %8497
      %8500 = vset.pattern.permute.xlu0 1
      %8501 = vperm.xlu0 %8500, %v8083
      %v8502 = vpop.permute.xlu0 %8501
      %8504 = vset.pattern.permute.xlu0 1
      %8505 = vperm.xlu0 %8504, %v8084
      %v8506 = vpop.permute.xlu0 %8505
      %8508 = vset.pattern.permute.xlu0 1
      %8509 = vperm.xlu0 %8508, %v8085
      %v8510 = vpop.permute.xlu0 %8509
      %8512 = vset.pattern.permute.xlu0 1
      %8513 = vperm.xlu0 %8512, %v8086
      %v8514 = vpop.permute.xlu0 %8513
      %8516 = vset.pattern.permute.xlu0 1
      %8517 = vperm.xlu0 %8516, %v8087
      %v8518 = vpop.permute.xlu0 %8517
      %v8520 = vadd.f32 %v8440, %v8458
      %v8521 = vadd.f32 %v8441, %v8462
      %v8522 = vadd.f32 %v8442, %v8466
      %v8523 = vadd.f32 %v8443, %v8470
      %v8524 = vadd.f32 %v8444, %v8474
      %v8525 = vadd.f32 %v8445, %v8478
      %v8526 = vadd.f32 %v8446, %v8482
      %v8527 = vadd.f32 %v8447, %v8486
      %v8528 = vadd.f32 %v8448, %v8490
      %v8529 = vadd.f32 %v8449, %v8494
      %v8530 = vadd.f32 %v8450, %v8498
      %v8531 = vadd.f32 %v8451, %v8502
      %v8532 = vadd.f32 %v8452, %v8506
      %v8533 = vadd.f32 %v8453, %v8510
      %v8534 = vadd.f32 %v8454, %v8514
      %v8535 = vadd.f32 %v8455, %v8518
      %v8536 = vmul.f32 %v8136, 1.442695
      %v8537 = vpow.pop %v8536
      %v8538 = vmul.f32 %v8137, 1.442695
      %v8539 = vpow.pop %v8538
      %v8540 = vmul.f32 %v8138, 1.442695
      %v8541 = vpow.pop %v8540
      %v8542 = vmul.f32 %v8139, 1.442695
      %v8543 = vpow.pop %v8542
      %v8544 = vmul.f32 %v8140, 1.442695
      %v8545 = vpow.pop %v8544
      %v8546 = vmul.f32 %v8141, 1.442695
      %v8547 = vpow.pop %v8546
      %v8548 = vmul.f32 %v8142, 1.442695
      %v8549 = vpow.pop %v8548
      %v8550 = vmul.f32 %v8143, 1.442695
      %v8551 = vpow.pop %v8550
      %v8552 = vmul.f32 %v8144, 1.442695
      %v8553 = vpow.pop %v8552
      %v8554 = vmul.f32 %v8145, 1.442695
      %v8555 = vpow.pop %v8554
      %v8556 = vmul.f32 %v8146, 1.442695
      %v8557 = vpow.pop %v8556
      %v8558 = vmul.f32 %v8147, 1.442695
      %v8559 = vpow.pop %v8558
      %v8560 = vmul.f32 %v8148, 1.442695
      %v8561 = vpow.pop %v8560
      %v8562 = vmul.f32 %v8149, 1.442695
      %v8563 = vpow.pop %v8562
      %v8564 = vmul.f32 %v8150, 1.442695
      %v8565 = vpow.pop %v8564
      %v8566 = vmul.f32 %v8151, 1.442695
      %v8567 = vpow.pop %v8566
      %v8568 = vmul.f32 %v8537, %v8187
      %v8569 = vmul.f32 %v8539, %v8192
      %v8570 = vmul.f32 %v8541, %v8197
      %v8571 = vmul.f32 %v8543, %v8202
      %v8572 = vmul.f32 %v8545, %v8207
      %v8573 = vmul.f32 %v8547, %v8212
      %v8574 = vmul.f32 %v8549, %v8217
      %v8575 = vmul.f32 %v8551, %v8222
      %v8576 = vmul.f32 %v8553, %v8227
      %v8577 = vmul.f32 %v8555, %v8232
      %v8578 = vmul.f32 %v8557, %v8237
      %v8579 = vmul.f32 %v8559, %v8242
      %v8580 = vmul.f32 %v8561, %v8247
      %v8581 = vmul.f32 %v8563, %v8252
      %v8582 = vmul.f32 %v8565, %v8257
      %v8583 = vmul.f32 %v8567, %v8262
      %v8584 = vmul.f32 %v8168, 1.442695
      %v8585 = vpow.pop %v8584
      %v8586 = vmul.f32 %v8169, 1.442695
      %v8587 = vpow.pop %v8586
      %v8588 = vmul.f32 %v8170, 1.442695
      %v8589 = vpow.pop %v8588
      %v8590 = vmul.f32 %v8171, 1.442695
      %v8591 = vpow.pop %v8590
      %v8592 = vmul.f32 %v8172, 1.442695
      %v8593 = vpow.pop %v8592
      %v8594 = vmul.f32 %v8173, 1.442695
      %v8595 = vpow.pop %v8594
      %v8596 = vmul.f32 %v8174, 1.442695
      %v8597 = vpow.pop %v8596
      %v8598 = vmul.f32 %v8175, 1.442695
      %v8599 = vpow.pop %v8598
      %v8600 = vmul.f32 %v8176, 1.442695
      %v8601 = vpow.pop %v8600
      %v8602 = vmul.f32 %v8177, 1.442695
      %v8603 = vpow.pop %v8602
      %v8604 = vmul.f32 %v8178, 1.442695
      %v8605 = vpow.pop %v8604
      %v8606 = vmul.f32 %v8179, 1.442695
      %v8607 = vpow.pop %v8606
      %v8608 = vmul.f32 %v8180, 1.442695
      %v8609 = vpow.pop %v8608
      %v8610 = vmul.f32 %v8181, 1.442695
      %v8611 = vpow.pop %v8610
      %v8612 = vmul.f32 %v8182, 1.442695
      %v8613 = vpow.pop %v8612
      %v8614 = vmul.f32 %v8183, 1.442695
      %v8615 = vpow.pop %v8614
      %v8616 = vmul.f32 %v8585, %v8378
      %v8617 = vmul.f32 %v8587, %v8382
      %v8618 = vmul.f32 %v8589, %v8386
      %v8619 = vmul.f32 %v8591, %v8390
      %v8620 = vmul.f32 %v8593, %v8394
      %v8621 = vmul.f32 %v8595, %v8398
      %v8622 = vmul.f32 %v8597, %v8402
      %v8623 = vmul.f32 %v8599, %v8406
      %v8624 = vmul.f32 %v8601, %v8410
      %v8625 = vmul.f32 %v8603, %v8414
      %v8626 = vmul.f32 %v8605, %v8418
      %v8627 = vmul.f32 %v8607, %v8422
      %v8628 = vmul.f32 %v8609, %v8426
      %v8629 = vmul.f32 %v8611, %v8430
      %v8630 = vmul.f32 %v8613, %v8434
      %v8631 = vmul.f32 %v8615, %v8438
      %v8632 = vmul.f32 %v8568, 0.5
      %v8633 = vmul.f32 %v8569, 0.5
      %v8634 = vmul.f32 %v8570, 0.5
      %v8635 = vmul.f32 %v8571, 0.5
      %v8636 = vmul.f32 %v8572, 0.5
      %v8637 = vmul.f32 %v8573, 0.5
      %v8638 = vmul.f32 %v8574, 0.5
      %v8639 = vmul.f32 %v8575, 0.5
      %v8640 = vmul.f32 %v8576, 0.5
      %v8641 = vmul.f32 %v8577, 0.5
      %v8642 = vmul.f32 %v8578, 0.5
      %v8643 = vmul.f32 %v8579, 0.5
      %v8644 = vmul.f32 %v8580, 0.5
      %v8645 = vmul.f32 %v8581, 0.5
      %v8646 = vmul.f32 %v8582, 0.5
      %v8647 = vmul.f32 %v8583, 0.5
      %v8648 = vsub.f32 %v8360, %v8632
      %v8649 = vsub.f32 %v8361, %v8633
      %v8650 = vsub.f32 %v8362, %v8634
      %v8651 = vsub.f32 %v8363, %v8635
      %v8652 = vsub.f32 %v8364, %v8636
      %v8653 = vsub.f32 %v8365, %v8637
      %v8654 = vsub.f32 %v8366, %v8638
      %v8655 = vsub.f32 %v8367, %v8639
      %v8656 = vsub.f32 %v8368, %v8640
      %v8657 = vsub.f32 %v8369, %v8641
      %v8658 = vsub.f32 %v8370, %v8642
      %v8659 = vsub.f32 %v8371, %v8643
      %v8660 = vsub.f32 %v8372, %v8644
      %v8661 = vsub.f32 %v8373, %v8645
      %v8662 = vsub.f32 %v8374, %v8646
      %v8663 = vsub.f32 %v8375, %v8647
      %v8664 = vmul.f32 %v8616, 0.5
      %v8665 = vmul.f32 %v8617, 0.5
      %v8666 = vmul.f32 %v8618, 0.5
      %v8667 = vmul.f32 %v8619, 0.5
      %v8668 = vmul.f32 %v8620, 0.5
      %v8669 = vmul.f32 %v8621, 0.5
      %v8670 = vmul.f32 %v8622, 0.5
      %v8671 = vmul.f32 %v8623, 0.5
      %v8672 = vmul.f32 %v8624, 0.5
      %v8673 = vmul.f32 %v8625, 0.5
      %v8674 = vmul.f32 %v8626, 0.5
      %v8675 = vmul.f32 %v8627, 0.5
      %v8676 = vmul.f32 %v8628, 0.5
      %v8677 = vmul.f32 %v8629, 0.5
      %v8678 = vmul.f32 %v8630, 0.5
      %v8679 = vmul.f32 %v8631, 0.5
      %v8680 = vsub.f32 %v8520, %v8664
      %v8681 = vsub.f32 %v8521, %v8665
      %v8682 = vsub.f32 %v8522, %v8666
      %v8683 = vsub.f32 %v8523, %v8667
      %v8684 = vsub.f32 %v8524, %v8668
      %v8685 = vsub.f32 %v8525, %v8669
      %v8686 = vsub.f32 %v8526, %v8670
      %v8687 = vsub.f32 %v8527, %v8671
      %v8688 = vsub.f32 %v8528, %v8672
      %v8689 = vsub.f32 %v8529, %v8673
      %v8690 = vsub.f32 %v8530, %v8674
      %v8691 = vsub.f32 %v8531, %v8675
      %v8692 = vsub.f32 %v8532, %v8676
      %v8693 = vsub.f32 %v8533, %v8677
      %v8694 = vsub.f32 %v8534, %v8678
      %v8695 = vsub.f32 %v8535, %v8679
      %v8696 = vadd.f32 %v8360, %v8632
      %v8697 = vadd.f32 %v8361, %v8633
      %v8698 = vadd.f32 %v8362, %v8634
      %v8699 = vadd.f32 %v8363, %v8635
      %v8700 = vadd.f32 %v8364, %v8636
      %v8701 = vadd.f32 %v8365, %v8637
      %v8702 = vadd.f32 %v8366, %v8638
      %v8703 = vadd.f32 %v8367, %v8639
      %v8704 = vadd.f32 %v8368, %v8640
      %v8705 = vadd.f32 %v8369, %v8641
      %v8706 = vadd.f32 %v8370, %v8642
      %v8707 = vadd.f32 %v8371, %v8643
      %v8708 = vadd.f32 %v8372, %v8644
      %v8709 = vadd.f32 %v8373, %v8645
      %v8710 = vadd.f32 %v8374, %v8646
      %v8711 = vadd.f32 %v8375, %v8647
      %v8712 = vadd.f32 %v8520, %v8664
      %v8713 = vadd.f32 %v8521, %v8665
      %v8714 = vadd.f32 %v8522, %v8666
      %v8715 = vadd.f32 %v8523, %v8667
      %v8716 = vadd.f32 %v8524, %v8668
      %v8717 = vadd.f32 %v8525, %v8669
      %v8718 = vadd.f32 %v8526, %v8670
      %v8719 = vadd.f32 %v8527, %v8671
      %v8720 = vadd.f32 %v8528, %v8672
      %v8721 = vadd.f32 %v8529, %v8673
      %v8722 = vadd.f32 %v8530, %v8674
      %v8723 = vadd.f32 %v8531, %v8675
      %v8724 = vadd.f32 %v8532, %v8676
      %v8725 = vadd.f32 %v8533, %v8677
      %v8726 = vadd.f32 %v8534, %v8678
      %v8727 = vadd.f32 %v8535, %v8679
      %s8728 = sld [smem:[#allocation4]]
      %s8729 = scvt.s32.f32 %s8728
      %s8730 = sld [smem:[#allocation4 + $0x1]]
      %s8731 = scvt.s32.f32 %s8730
      %v8732 = vmax.f32 %v8648, 0.0
      %v8733 = vmax.f32 %v8649, 0.0
      %v8734 = vmax.f32 %v8650, 0.0
      %v8735 = vmax.f32 %v8651, 0.0
      %v8736 = vmax.f32 %v8652, 0.0
      %v8737 = vmax.f32 %v8653, 0.0
      %v8738 = vmax.f32 %v8654, 0.0
      %v8739 = vmax.f32 %v8655, 0.0
      %v8740 = vmax.f32 %v8656, 0.0
      %v8741 = vmax.f32 %v8657, 0.0
      %v8742 = vmax.f32 %v8658, 0.0
      %v8743 = vmax.f32 %v8659, 0.0
      %v8744 = vmax.f32 %v8660, 0.0
      %v8745 = vmax.f32 %v8661, 0.0
      %v8746 = vmax.f32 %v8662, 0.0
      %v8747 = vmax.f32 %v8663, 0.0
      %v8748 = vstv %s8731
      %v8749 = vmin.f32 %v8748, %v8732
      %v8750 = vmin.f32 %v8748, %v8733
      %v8751 = vmin.f32 %v8748, %v8734
      %v8752 = vmin.f32 %v8748, %v8735
      %v8753 = vmin.f32 %v8748, %v8736
      %v8754 = vmin.f32 %v8748, %v8737
      %v8755 = vmin.f32 %v8748, %v8738
      %v8756 = vmin.f32 %v8748, %v8739
      %v8757 = vmin.f32 %v8748, %v8740
      %v8758 = vmin.f32 %v8748, %v8741
      %v8759 = vmin.f32 %v8748, %v8742
      %v8760 = vmin.f32 %v8748, %v8743
      %v8761 = vmin.f32 %v8748, %v8744
      %v8762 = vmin.f32 %v8748, %v8745
      %v8763 = vmin.f32 %v8748, %v8746
      %v8764 = vmin.f32 %v8748, %v8747
      %8765 = vst [vmem:[%s9] sm:$0xff] %v8749
      %8766 = vst [vmem:[%s9 + $0x20] sm:$0xff] %v8750
      %8767 = vst [vmem:[%s9 + $0x40] sm:$0xff] %v8751
      %8768 = vst [vmem:[%s9 + $0x60] sm:$0xff] %v8752
      %8769 = vst [vmem:[%s9 + $0x80] sm:$0xff] %v8753
      %8770 = vst [vmem:[%s9 + $0xa0] sm:$0xff] %v8754
      %8771 = vst [vmem:[%s9 + $0xc0] sm:$0xff] %v8755
      %8772 = vst [vmem:[%s9 + $0xe0] sm:$0xff] %v8756
      %8773 = vst [vmem:[%s9 + $0x100] sm:$0xff] %v8757
      %8774 = vst [vmem:[%s9 + $0x120] sm:$0xff] %v8758
      %8775 = vst [vmem:[%s9 + $0x140] sm:$0xff] %v8759
      %8776 = vst [vmem:[%s9 + $0x160] sm:$0xff] %v8760
      %8777 = vst [vmem:[%s9 + $0x180] sm:$0xff] %v8761
      %8778 = vst [vmem:[%s9 + $0x1a0] sm:$0xff] %v8762
      %8779 = vst [vmem:[%s9 + $0x1c0] sm:$0xff] %v8763
      %8780 = vst [vmem:[%s9 + $0x1e0] sm:$0xff] %v8764
      %v8781 = vmax.f32 %v8680, 0.0
      %v8782 = vmax.f32 %v8681, 0.0
      %v8783 = vmax.f32 %v8682, 0.0
      %v8784 = vmax.f32 %v8683, 0.0
      %v8785 = vmax.f32 %v8684, 0.0
      %v8786 = vmax.f32 %v8685, 0.0
      %v8787 = vmax.f32 %v8686, 0.0
      %v8788 = vmax.f32 %v8687, 0.0
      %v8789 = vmax.f32 %v8688, 0.0
      %v8790 = vmax.f32 %v8689, 0.0
      %v8791 = vmax.f32 %v8690, 0.0
      %v8792 = vmax.f32 %v8691, 0.0
      %v8793 = vmax.f32 %v8692, 0.0
      %v8794 = vmax.f32 %v8693, 0.0
      %v8795 = vmax.f32 %v8694, 0.0
      %v8796 = vmax.f32 %v8695, 0.0
      %v8797 = vstv %s8729
      %v8798 = vmin.f32 %v8797, %v8781
      %v8799 = vmin.f32 %v8797, %v8782
      %v8800 = vmin.f32 %v8797, %v8783
      %v8801 = vmin.f32 %v8797, %v8784
      %v8802 = vmin.f32 %v8797, %v8785
      %v8803 = vmin.f32 %v8797, %v8786
      %v8804 = vmin.f32 %v8797, %v8787
      %v8805 = vmin.f32 %v8797, %v8788
      %v8806 = vmin.f32 %v8797, %v8789
      %v8807 = vmin.f32 %v8797, %v8790
      %v8808 = vmin.f32 %v8797, %v8791
      %v8809 = vmin.f32 %v8797, %v8792
      %v8810 = vmin.f32 %v8797, %v8793
      %v8811 = vmin.f32 %v8797, %v8794
      %v8812 = vmin.f32 %v8797, %v8795
      %v8813 = vmin.f32 %v8797, %v8796
      %8814 = vst [vmem:[%s9 + $0x8] sm:$0xff] %v8798
      %8815 = vst [vmem:[%s9 + $0x28] sm:$0xff] %v8799
      %8816 = vst [vmem:[%s9 + $0x48] sm:$0xff] %v8800
      %8817 = vst [vmem:[%s9 + $0x68] sm:$0xff] %v8801
      %8818 = vst [vmem:[%s9 + $0x88] sm:$0xff] %v8802
      %8819 = vst [vmem:[%s9 + $0xa8] sm:$0xff] %v8803
      %8820 = vst [vmem:[%s9 + $0xc8] sm:$0xff] %v8804
      %8821 = vst [vmem:[%s9 + $0xe8] sm:$0xff] %v8805
      %8822 = vst [vmem:[%s9 + $0x108] sm:$0xff] %v8806
      %8823 = vst [vmem:[%s9 + $0x128] sm:$0xff] %v8807
      %8824 = vst [vmem:[%s9 + $0x148] sm:$0xff] %v8808
      %8825 = vst [vmem:[%s9 + $0x168] sm:$0xff] %v8809
      %8826 = vst [vmem:[%s9 + $0x188] sm:$0xff] %v8810
      %8827 = vst [vmem:[%s9 + $0x1a8] sm:$0xff] %v8811
      %8828 = vst [vmem:[%s9 + $0x1c8] sm:$0xff] %v8812
      %8829 = vst [vmem:[%s9 + $0x1e8] sm:$0xff] %v8813
      %v8830 = vmax.f32 %v8696, 0.0
      %v8831 = vmax.f32 %v8697, 0.0
      %v8832 = vmax.f32 %v8698, 0.0
      %v8833 = vmax.f32 %v8699, 0.0
      %v8834 = vmax.f32 %v8700, 0.0
      %v8835 = vmax.f32 %v8701, 0.0
      %v8836 = vmax.f32 %v8702, 0.0
      %v8837 = vmax.f32 %v8703, 0.0
      %v8838 = vmax.f32 %v8704, 0.0
      %v8839 = vmax.f32 %v8705, 0.0
      %v8840 = vmax.f32 %v8706, 0.0
      %v8841 = vmax.f32 %v8707, 0.0
      %v8842 = vmax.f32 %v8708, 0.0
      %v8843 = vmax.f32 %v8709, 0.0
      %v8844 = vmax.f32 %v8710, 0.0
      %v8845 = vmax.f32 %v8711, 0.0
      %v8846 = vmin.f32 %v8748, %v8830
      %v8847 = vmin.f32 %v8748, %v8831
      %v8848 = vmin.f32 %v8748, %v8832
      %v8849 = vmin.f32 %v8748, %v8833
      %v8850 = vmin.f32 %v8748, %v8834
      %v8851 = vmin.f32 %v8748, %v8835
      %v8852 = vmin.f32 %v8748, %v8836
      %v8853 = vmin.f32 %v8748, %v8837
      %v8854 = vmin.f32 %v8748, %v8838
      %v8855 = vmin.f32 %v8748, %v8839
      %v8856 = vmin.f32 %v8748, %v8840
      %v8857 = vmin.f32 %v8748, %v8841
      %v8858 = vmin.f32 %v8748, %v8842
      %v8859 = vmin.f32 %v8748, %v8843
      %v8860 = vmin.f32 %v8748, %v8844
      %v8861 = vmin.f32 %v8748, %v8845
      %8862 = vst [vmem:[%s9 + $0x10] sm:$0xff] %v8846
      %8863 = vst [vmem:[%s9 + $0x30] sm:$0xff] %v8847
      %8864 = vst [vmem:[%s9 + $0x50] sm:$0xff] %v8848
      %8865 = vst [vmem:[%s9 + $0x70] sm:$0xff] %v8849
      %8866 = vst [vmem:[%s9 + $0x90] sm:$0xff] %v8850
      %8867 = vst [vmem:[%s9 + $0xb0] sm:$0xff] %v8851
      %8868 = vst [vmem:[%s9 + $0xd0] sm:$0xff] %v8852
      %8869 = vst [vmem:[%s9 + $0xf0] sm:$0xff] %v8853
      %8870 = vst [vmem:[%s9 + $0x110] sm:$0xff] %v8854
      %8871 = vst [vmem:[%s9 + $0x130] sm:$0xff] %v8855
      %8872 = vst [vmem:[%s9 + $0x150] sm:$0xff] %v8856
      %8873 = vst [vmem:[%s9 + $0x170] sm:$0xff] %v8857
      %8874 = vst [vmem:[%s9 + $0x190] sm:$0xff] %v8858
      %8875 = vst [vmem:[%s9 + $0x1b0] sm:$0xff] %v8859
      %8876 = vst [vmem:[%s9 + $0x1d0] sm:$0xff] %v8860
      %8877 = vst [vmem:[%s9 + $0x1f0] sm:$0xff] %v8861
      %v8878 = vmax.f32 %v8712, 0.0
      %v8879 = vmax.f32 %v8713, 0.0
      %v8880 = vmax.f32 %v8714, 0.0
      %v8881 = vmax.f32 %v8715, 0.0
      %v8882 = vmax.f32 %v8716, 0.0
      %v8883 = vmax.f32 %v8717, 0.0
      %v8884 = vmax.f32 %v8718, 0.0
      %v8885 = vmax.f32 %v8719, 0.0
      %v8886 = vmax.f32 %v8720, 0.0
      %v8887 = vmax.f32 %v8721, 0.0
      %v8888 = vmax.f32 %v8722, 0.0
      %v8889 = vmax.f32 %v8723, 0.0
      %v8890 = vmax.f32 %v8724, 0.0
      %v8891 = vmax.f32 %v8725, 0.0
      %v8892 = vmax.f32 %v8726, 0.0
      %v8893 = vmax.f32 %v8727, 0.0
      %v8894 = vmin.f32 %v8797, %v8878
      %v8895 = vmin.f32 %v8797, %v8879
      %v8896 = vmin.f32 %v8797, %v8880
      %v8897 = vmin.f32 %v8797, %v8881
      %v8898 = vmin.f32 %v8797, %v8882
      %v8899 = vmin.f32 %v8797, %v8883
      %v8900 = vmin.f32 %v8797, %v8884
      %v8901 = vmin.f32 %v8797, %v8885
      %v8902 = vmin.f32 %v8797, %v8886
      %v8903 = vmin.f32 %v8797, %v8887
      %v8904 = vmin.f32 %v8797, %v8888
      %v8905 = vmin.f32 %v8797, %v8889
      %v8906 = vmin.f32 %v8797, %v8890
      %v8907 = vmin.f32 %v8797, %v8891
      %v8908 = vmin.f32 %v8797, %v8892
      %v8909 = vmin.f32 %v8797, %v8893
      %8910 = vst [vmem:[%s9 + $0x18] sm:$0xff] %v8894
      %8911 = vst [vmem:[%s9 + $0x38] sm:$0xff] %v8895
      %8912 = vst [vmem:[%s9 + $0x58] sm:$0xff] %v8896
      %8913 = vst [vmem:[%s9 + $0x78] sm:$0xff] %v8897
      %8914 = vst [vmem:[%s9 + $0x98] sm:$0xff] %v8898
      %8915 = vst [vmem:[%s9 + $0xb8] sm:$0xff] %v8899
      %8916 = vst [vmem:[%s9 + $0xd8] sm:$0xff] %v8900
      %8917 = vst [vmem:[%s9 + $0xf8] sm:$0xff] %v8901
      %8918 = vst [vmem:[%s9 + $0x118] sm:$0xff] %v8902
      %8919 = vst [vmem:[%s9 + $0x138] sm:$0xff] %v8903
      %8920 = vst [vmem:[%s9 + $0x158] sm:$0xff] %v8904
      %8921 = vst [vmem:[%s9 + $0x178] sm:$0xff] %v8905
      %8922 = vst [vmem:[%s9 + $0x198] sm:$0xff] %v8906
      %8923 = vst [vmem:[%s9 + $0x1b8] sm:$0xff] %v8907
      %8924 = vst [vmem:[%s9 + $0x1d8] sm:$0xff] %v8908
      %8925 = vst [vmem:[%s9 + $0x1f8] sm:$0xff] %v8909
    $region53: #{roi_heads_forward.1} parent=1 // pred_fallthru
      _
    // Predicated region
    $region54: #{roi_heads_forward.1} parent=1 // pred_check
      _
    $region55: #{roi_heads_forward.1} parent=1 // pred_check_branch
      %8927 = sbr.rel (0) target = $region57
    $region56: #{roi_heads_forward.1} parent=1 // pred_region
      %s8929 = ssub.s32 16384, 16384
      %8930 = vsyncadd [#allocation7], %s8929
      %s8931 = sshll.u32 [#allocation14], 4
      %s8932 = int_to_ptr.vmem [resolvable:$true] %s8931
      %8937 = dma.vmem_to_hbm [thread:$0]  %s8932, 16384, %s7, [#allocation7], 1024, 1024, 64
    $region57: #{roi_heads_forward.1} parent=1 // pred_fallthru
      _
    // Predicated region
    $region58: #{roi_heads_forward.1} parent=1 // pred_check
      _
    $region59: #{roi_heads_forward.1} parent=1 // pred_check_branch
      %8939 = sbr.rel (0) target = $region61
    $region60: #{roi_heads_forward.1} parent=1 // pred_region
      _
    $region61: #{roi_heads_forward.1} parent=1 // pred_fallthru
      _
    // Predicated region
    $region62: #{roi_heads_forward.1} parent=1 // pred_check
      _
    $region63: #{roi_heads_forward.1} parent=1 // pred_check_branch
      %8941 = sbr.rel (0) target = $region65
    $region64: #{roi_heads_forward.1} parent=1 // pred_region
      _
    $region65: #{roi_heads_forward.1} parent=1 // pred_fallthru
      _
    // Predicated region
    $region66: #{roi_heads_forward.1} parent=1 // pred_check
      _
    $region67: #{roi_heads_forward.1} parent=1 // pred_check_branch
      %8943 = sbr.rel (0) target = $region69
    $region68: #{roi_heads_forward.1} parent=1 // pred_region
      _
    $region69: #{roi_heads_forward.1} parent=1 // pred_fallthru
      _
    // Predicated region
    $region70: #{roi_heads_forward.1} parent=1 // pred_check
      _
    $region71: #{roi_heads_forward.1} parent=1 // pred_check_branch
      %8945 = sbr.rel (0) target = $region73
    $region72: #{roi_heads_forward.1} parent=1 // pred_region
      %8946 = dma.done [#allocation7], 16384
    $region73: #{roi_heads_forward.1} parent=1 // pred_fallthru
      _
    // Predicated region
    $region74: #{roi_heads_forward.1} parent=1 // pred_check
      _
    $region75: #{roi_heads_forward.1} parent=1 // pred_check_branch
      %8948 = sbr.rel (0) target = $region77
    $region76: #{roi_heads_forward.1} parent=1 // pred_region
      _
    $region77: #{roi_heads_forward.1} parent=1 // pred_fallthru
      _
    // Predicated region
    $region78: #{roi_heads_forward.1} parent=1 // pred_check
      _
    $region79: #{roi_heads_forward.1} parent=1 // pred_check_branch
      %8950 = sbr.rel (0) target = $region81
    $region80: #{roi_heads_forward.1} parent=1 // pred_region
      _
    $region81: #{roi_heads_forward.1} parent=1 // pred_fallthru
      _
    // Predicated region
    $region82: #{roi_heads_forward.1} parent=1 // pred_check
      _
    $region83: #{roi_heads_forward.1} parent=1 // pred_check_branch
      %8952 = sbr.rel (0) target = $region85
    $region84: #{roi_heads_forward.1} parent=1 // pred_region
      _
    $region85: #{roi_heads_forward.1} parent=1 // pred_fallthru
      _
    %8953 = vsyncpa [#allocation6], 1
    %8954 = vsyncpa [#allocation9], 1
    %8955 = vsyncpa [#allocation12], 1
    %8956 = vsyncpa [#allocation7], 1

</llo_original>
